<compile_context>
chip_gen: v7x
topology: tpu7x:2x2x1
jax: 0.10.0
libtpu: 0.0.40
codegen_flags: <defaults>
</compile_context>

<pallas_src>
import functools
import math

import jax
import jax.numpy as jnp
from jax.experimental import pallas as pl
from jax.experimental.pallas import tpu as pltpu

CONSIDER_STEPS = 3        # LSTM input feature size (module's `consider_steps`)
HIDDEN = 20
NUM_LAYERS = 4
OUT_DIM = 3

GATE_W = 128              # each gate gets its own 128-lane block: (i, f, o, g)
GATES_PAD = 4 * GATE_W    # 512
K_IN = HIDDEN             # LHS lanes [H, 2H): input from below (x_t or h_{l-1}(t))
K_BIAS = 2 * HIDDEN       # LHS lane 2H: constant 1.0 -> fused-bias weight row
K_PAD = 48                # contraction depth (2H + 1 padded to a multiple of 8)


def _trade_on_error_kernel(x_ref, w_ref, wout_ref, bout_ref, out_ref,
                           lhs_ref, seq_ref, *, S, B):
    # x_ref   : (S, B, K_PAD)            x pre-placed at lanes [H, 2H) (wrapper)
    # w_ref   : (L, K_PAD, GATES_PAD)    fused per-layer [w_hh | w_ih | b_ih+b_hh] weights
    # wout_ref: (HIDDEN, OUT_DIM)        final Linear weight (transposed)
    # bout_ref: (1, OUT_DIM)             final Linear bias
    # out_ref : (S*B, OUT_DIM)
    # lhs_ref : (L, B, K_PAD)  VMEM      wavefront LHS: [h_l | below_l | 1] per layer
    # seq_ref : (S*B, HIDDEN)  VMEM      top-layer output sequence (epilogue input)
    H, L, GW = HIDDEN, NUM_LAYERS, GATE_W
    n_diag = S + L - 1

    # ---- one-time init: LHS = 0 everywhere except the constant-1 bias lane ----
    lane = jax.lax.broadcasted_iota(jnp.int32, (L, B, K_PAD), 2)
    lhs_ref[...] = jnp.where(lane == K_BIAS, 1.0, 0.0).astype(jnp.float32)

    layer_idx = jax.lax.broadcasted_iota(jnp.int32, (L, B, H), 0)   # hoisted, invariant
    c = jnp.zeros((L, B, H), jnp.float32)                           # cell state, all layers

    # ---- wavefront over the (layer, time) grid: cells with equal l + t are independent.
    # Static, fully unrolled (11 iterations; live state across iterations is ~2 vregs,
    # so no spill risk and no need for a bounded-unroll fori_loop).
    for d in range(n_diag):
        if d < S:
            # feed x(t=d) into layer 0's "below" lanes; source and destination share the
            # same lane offset -> plain masked store, no XLU rotation on the chain.
            lhs_ref[0, :, K_IN:K_IN + H] = x_ref[d, :, K_IN:K_IN + H]

        # one batched MXU call services every layer's cell on this diagonal; the fused
        # weight already contains the recurrent, input and bias contributions.
        gates = jnp.einsum("lbk,lkg->lbg", lhs_ref[...], w_ref[...],
                           preferred_element_type=jnp.float32)        # (L, B, 512)

        # gate blocks start on 128-lane boundaries -> all slices below are lane-aligned
        sig = jax.nn.sigmoid(gates[..., :3 * GW])                     # i | f | o, one pass
        g_in = jnp.tanh(gates[..., 3 * GW:3 * GW + H])                # g, one pass
        i_g = sig[..., 0:H]
        f_g = sig[..., GW:GW + H]
        o_g = sig[..., 2 * GW:2 * GW + H]

        c_new = f_g * c + i_g * g_in
        h_new = o_g * jnp.tanh(c_new)                                 # (L, B, H)

        if d >= L - 1:
            # every layer has started; rows of already-finished layers are never read
            # again, so their stale updates are harmless.
            c = c_new
            lhs_ref[:, :, 0:H] = h_new
        else:
            # layers with l > d have not started yet: keep their zero initial h / c.
            live = layer_idx <= d
            c = jnp.where(live, c_new, c)
            lhs_ref[:, :, 0:H] = jnp.where(live, h_new, lhs_ref[:, :, 0:H])

        # hand each layer's fresh output to the layer above (consumed on the next
        # diagonal); writes coming from not-yet-started layers are overwritten before
        # their first use, so no mask is needed here.
        lhs_ref[1:L, :, K_IN:K_IN + H] = h_new[0:L - 1]

        if d >= L - 1:
            # top layer just emitted time step t = d - (L-1); this store is off the
            # critical chain (seq_ref is only read in the epilogue).
            t = d - (L - 1)
            seq_ref[t * B:(t + 1) * B, :] = h_new[L - 1]

    # ---- epilogue: softmax over the hidden dim of the flattened (S*B, H) rows, then
    # Linear(H -> 3). 1/denominator goes through the EUP (approx reciprocal) and is
    # folded into the small (S*B, 3) matmul result instead of the (S*B, H) probabilities.
    y = seq_ref[...]
    y = y - jnp.max(y, axis=-1, keepdims=True)
    e = jnp.exp(y)
    r = pl.reciprocal(jnp.sum(e, axis=-1, keepdims=True), approx=True)
    out_ref[...] = (jnp.dot(e, wout_ref[...], preferred_element_type=jnp.float32) * r
                    + bout_ref[...])
    # TODO(synk): if S*B ever grows, write a lane-padded (rows, 128) output slab, add a
    # batch-parallel grid axis (v7x has 2 TensorCores) and retile scratch against v7x's
    # 64 MiB VMEM; unnecessary at these sizes (~0.5 MiB total footprint).


def trade_on_error(x, packed_params):
    """x: (S, B, CONSIDER_STEPS) float32 -> (S, B, OUT_DIM) float32."""
    w_packed, wout_t, bout = packed_params
    S, B, F = x.shape
    assert F == CONSIDER_STEPS
    # Pre-place x at lanes [H, 2H) of a K_PAD-wide slab so the per-diagonal in-kernel
    # store into layer 0's "below" lanes is a rotation-free masked store.
    x_slab = jnp.zeros((S, B, K_PAD), jnp.float32).at[:, :, K_IN:K_IN + F].set(x)

    kernel = functools.partial(_trade_on_error_kernel, S=S, B=B)
    out2d = pl.pallas_call(
        kernel,
        out_shape=jax.ShapeDtypeStruct((S * B, OUT_DIM), jnp.float32),
        in_specs=[pl.BlockSpec(memory_space=pltpu.MemorySpace.VMEM)] * 4,
        out_specs=pl.BlockSpec(memory_space=pltpu.MemorySpace.VMEM),
        scratch_shapes=[
            pltpu.VMEM((NUM_LAYERS, B, K_PAD), jnp.float32),  # wavefront LHS / h state
            pltpu.VMEM((S * B, HIDDEN), jnp.float32),         # top-layer output sequence
        ],
    )(x_slab, w_packed, wout_t, bout)
    return out2d.reshape(S, B, OUT_DIM)


# ----------------------------------------------------------------------------------
# Parameter handling: PyTorch-layout params -> fused/padded kernel layout + reference
# ----------------------------------------------------------------------------------

_PT_GATE_TO_BLOCK = (0, 1, 3, 2)   # PyTorch gate order (i, f, g, o) -> blocks (i, f, o, g)


def pack_params(lstm_layers, out_params):
    """PyTorch-layout LSTM/Linear parameters -> the kernel's fused, 128-aligned layout."""
    H = HIDDEN
    w = jnp.zeros((NUM_LAYERS, K_PAD, GATES_PAD), jnp.float32)
    for l, (w_ih, w_hh, b_ih, b_hh) in enumerate(lstm_layers):
        in_dim = w_ih.shape[1]
        bias = b_ih + b_hh
        for pt_gate in range(4):
            c0 = _PT_GATE_TO_BLOCK[pt_gate] * GATE_W
            rows = slice(pt_gate * H, (pt_gate + 1) * H)
            w = w.at[l, 0:H, c0:c0 + H].set(w_hh[rows].T)                  # h     -> gate
            w = w.at[l, K_IN:K_IN + in_dim, c0:c0 + H].set(w_ih[rows].T)   # below -> gate
            w = w.at[l, K_BIAS, c0:c0 + H].set(bias[rows])                 # fused bias row
    w_out, b_out = out_params
    return w, w_out.T, b_out.reshape(1, OUT_DIM)


def init_torch_params(key):
    """Deterministic params in PyTorch layout, PyTorch-default U(-1/sqrt(H), 1/sqrt(H))."""
    H = HIDDEN
    bound = 1.0 / math.sqrt(H)

    def u(k, shape):
        return jax.random.uniform(k, shape, minval=-bound, maxval=bound, dtype=jnp.float32)

    keys = jax.random.split(key, 4 * NUM_LAYERS + 2)
    layers = []
    for l in range(NUM_LAYERS):
        in_dim = CONSIDER_STEPS if l == 0 else H
        k0, k1, k2, k3 = keys[4 * l:4 * l + 4]
        layers.append((u(k0, (4 * H, in_dim)), u(k1, (4 * H, H)),
                       u(k2, (4 * H,)), u(k3, (4 * H,))))
    w_out = u(keys[-2], (OUT_DIM, H))
    b_out = u(keys[-1], (OUT_DIM,))
    return layers, (w_out, b_out)


def reference(x, lstm_layers, out_params):
    """Pure-JAX forward of the PyTorch module, straight from PyTorch-layout params."""
    H = HIDDEN
    S, B, _ = x.shape
    seq = x
    for (w_ih, w_hh, b_ih, b_hh) in lstm_layers:
        h = jnp.zeros((B, H), jnp.float32)
        c = jnp.zeros((B, H), jnp.float32)
        outs = []
        for t in range(S):
            g = seq[t] @ w_ih.T + b_ih + h @ w_hh.T + b_hh     # gate order (i, f, g, o)
            i = jax.nn.sigmoid(g[:, 0:H])
            f = jax.nn.sigmoid(g[:, H:2 * H])
            gg = jnp.tanh(g[:, 2 * H:3 * H])
            o = jax.nn.sigmoid(g[:, 3 * H:4 * H])
            c = f * c + i * gg
            h = o * jnp.tanh(c)
            outs.append(h)
        seq = jnp.stack(outs, axis=0)
    w_out, b_out = out_params
    p = jax.nn.softmax(seq.reshape(S * B, H), axis=-1)          # nn.Softmax -> dim=1 on 2-D
    return (p @ w_out.T + b_out).reshape(S, B, OUT_DIM)


if __name__ == "__main__":
    key = jax.random.PRNGKey(0)
    pkey, xkey = jax.random.split(key)
    lstm_layers, out_params = init_torch_params(pkey)
    packed = pack_params(lstm_layers, out_params)

    S, B = 8, 2
    x = jax.random.normal(xkey, (S, B, CONSIDER_STEPS), dtype=jnp.float32)

    out = jax.block_until_ready(trade_on_error(x, packed))
    ref = reference(x, lstm_layers, out_params)

    assert out.shape == (S, B, OUT_DIM)
    # tolerance covers the EUP approximate reciprocal used in the softmax epilogue
    assert jnp.allclose(out, ref, rtol=2e-3, atol=2e-3), "mismatch vs JAX reference"
    print("KERNEL_OK")
</pallas_src>

<mosaic_0001>
module attributes {stable_mosaic.version = 11 : i64} {
  func.func @_trade_on_error_kernel(%arg0: memref<8x2x48xf32, #tpu.memory_space<vmem>>, %arg1: memref<4x48x512xf32, #tpu.memory_space<vmem>>, %arg2: memref<20x3xf32, #tpu.memory_space<vmem>>, %arg3: memref<1x3xf32, #tpu.memory_space<vmem>>, %arg4: memref<16x3xf32, #tpu.memory_space<vmem>>, %arg5: memref<4x2x48xf32, #tpu.memory_space<vmem>>, %arg6: memref<16x20xf32, #tpu.memory_space<vmem>>) attributes {dimension_semantics = [], scalar_prefetch = 0 : i64, scratch_operands = 2 : i64, tpu.core_type = #tpu.core_type<tc>} {
    %0 = tpu.iota {dimensions = array<i32: 2>} : vector<4x2x48xi32>
    %c40_i32 = arith.constant 40 : i32
    %1 = vector.broadcast %c40_i32 : i32 to vector<4x2x48xi32>
    %2 = arith.cmpi eq, %0, %1 : vector<4x2x48xi32>
    %cst = arith.constant 1.000000e+00 : f32
    %cst_0 = arith.constant 0.000000e+00 : f32
    %3 = vector.broadcast %cst : f32 to vector<4x2x48xf32>
    %4 = vector.broadcast %cst_0 : f32 to vector<4x2x48xf32>
    %5 = arith.select %2, %3, %4 : vector<4x2x48xi1>, vector<4x2x48xf32>
    %c0 = arith.constant 0 : index
    %c0_1 = arith.constant 0 : index
    %c0_2 = arith.constant 0 : index
    %6 = vector.load %arg5[%c0, %c0_1, %c0_2] : memref<4x2x48xf32, #tpu.memory_space<vmem>>, vector<4x2x48xf32>
    tpu.vector_store %arg5[%c0, %c0_1, %c0_2], %5 {strides = array<i32>} : memref<4x2x48xf32, #tpu.memory_space<vmem>>, vector<4x2x48xf32>,
    %7 = tpu.iota {dimensions = array<i32: 0>} : vector<4x2x20xi32>
    %cst_3 = arith.constant 0.000000e+00 : f32
    %8 = vector.broadcast %cst_3 : f32 to vector<4x2x20xf32>
    %c0_4 = arith.constant 0 : index
    %c0_5 = arith.constant 0 : index
    %c20 = arith.constant 20 : index
    %9 = vector.load %arg0[%c0_4, %c0_5, %c20] : memref<8x2x48xf32, #tpu.memory_space<vmem>>, vector<1x2x20xf32>
    %10 = vector.shape_cast %9 : vector<1x2x20xf32> to vector<2x20xf32>
    %c0_6 = arith.constant 0 : index
    %c0_7 = arith.constant 0 : index
    %c20_8 = arith.constant 20 : index
    %11 = vector.load %arg5[%c0_6, %c0_7, %c20_8] : memref<4x2x48xf32, #tpu.memory_space<vmem>>, vector<1x2x20xf32>
    %12 = vector.shape_cast %11 : vector<1x2x20xf32> to vector<2x20xf32>
    %13 = vector.shape_cast %10 : vector<2x20xf32> to vector<1x2x20xf32>
    tpu.vector_store %arg5[%c0_6, %c0_7, %c20_8], %13 {strides = array<i32>} : memref<4x2x48xf32, #tpu.memory_space<vmem>>, vector<1x2x20xf32>,
    %c0_9 = arith.constant 0 : index
    %c0_10 = arith.constant 0 : index
    %c0_11 = arith.constant 0 : index
    %14 = vector.load %arg5[%c0_9, %c0_10, %c0_11] : memref<4x2x48xf32, #tpu.memory_space<vmem>>, vector<4x2x48xf32>
    %c0_12 = arith.constant 0 : index
    %c0_13 = arith.constant 0 : index
    %c0_14 = arith.constant 0 : index
    %15 = vector.load %arg1[%c0_12, %c0_13, %c0_14] : memref<4x48x512xf32, #tpu.memory_space<vmem>>, vector<4x48x512xf32>
    "tpu.trace_start"() <{level = 10 : i32, message = "lbk,lkg->lbg"}> : () -> ()
    %cst_15 = arith.constant dense<0.000000e+00> : vector<4x2x512xf32>
    %16 = tpu.matmul %14, %15, %cst_15 {dimension_numbers = #tpu.dot_dimension_numbers<[2], [1], [1], [2], [0, 0, 0, 1, 1, 2], [0], [0]>} : vector<4x2x48xf32>, vector<4x48x512xf32>, vector<4x2x512xf32> -> vector<4x2x512xf32>
    "tpu.trace_stop"() : () -> ()
    %17 = vector.extract_strided_slice %16 {offsets = [0, 0, 0], sizes = [4, 2, 384], strides = [1, 1, 1]} : vector<4x2x512xf32> to vector<4x2x384xf32>
    %18 = arith.negf %17 : vector<4x2x384xf32>
    %19 = math.exp %18 : vector<4x2x384xf32>
    %cst_16 = arith.constant 1.000000e+00 : f32
    %20 = vector.broadcast %cst_16 : f32 to vector<4x2x384xf32>
    %21 = arith.addf %20, %19 : vector<4x2x384xf32>
    %22 = arith.divf %20, %21 : vector<4x2x384xf32>
    %23 = vector.extract_strided_slice %16 {offsets = [0, 0, 384], sizes = [4, 2, 20], strides = [1, 1, 1]} : vector<4x2x512xf32> to vector<4x2x20xf32>
    %24 = math.tanh %23 : vector<4x2x20xf32>
    %25 = vector.extract_strided_slice %22 {offsets = [0, 0, 0], sizes = [4, 2, 20], strides = [1, 1, 1]} : vector<4x2x384xf32> to vector<4x2x20xf32>
    %26 = vector.extract_strided_slice %22 {offsets = [0, 0, 128], sizes = [4, 2, 20], strides = [1, 1, 1]} : vector<4x2x384xf32> to vector<4x2x20xf32>
    %27 = vector.extract_strided_slice %22 {offsets = [0, 0, 256], sizes = [4, 2, 20], strides = [1, 1, 1]} : vector<4x2x384xf32> to vector<4x2x20xf32>
    %28 = arith.mulf %26, %8 : vector<4x2x20xf32>
    %29 = arith.mulf %25, %24 : vector<4x2x20xf32>
    %30 = arith.addf %28, %29 : vector<4x2x20xf32>
    %31 = math.tanh %30 : vector<4x2x20xf32>
    %32 = arith.mulf %27, %31 : vector<4x2x20xf32>
    %c0_i32 = arith.constant 0 : i32
    %33 = vector.broadcast %c0_i32 : i32 to vector<4x2x20xi32>
    %34 = arith.cmpi sle, %7, %33 : vector<4x2x20xi32>
    %35 = arith.select %34, %30, %8 : vector<4x2x20xi1>, vector<4x2x20xf32>
    %c0_17 = arith.constant 0 : index
    %c0_18 = arith.constant 0 : index
    %c0_19 = arith.constant 0 : index
    %36 = vector.load %arg5[%c0_17, %c0_18, %c0_19] : memref<4x2x48xf32, #tpu.memory_space<vmem>>, vector<4x2x20xf32>
    %37 = arith.select %34, %32, %36 : vector<4x2x20xi1>, vector<4x2x20xf32>
    %c0_20 = arith.constant 0 : index
    %c0_21 = arith.constant 0 : index
    %c0_22 = arith.constant 0 : index
    %38 = vector.load %arg5[%c0_20, %c0_21, %c0_22] : memref<4x2x48xf32, #tpu.memory_space<vmem>>, vector<4x2x20xf32>
    tpu.vector_store %arg5[%c0_20, %c0_21, %c0_22], %37 {strides = array<i32>} : memref<4x2x48xf32, #tpu.memory_space<vmem>>, vector<4x2x20xf32>,
    %39 = vector.extract_strided_slice %32 {offsets = [0, 0, 0], sizes = [3, 2, 20], strides = [1, 1, 1]} : vector<4x2x20xf32> to vector<3x2x20xf32>
    %c1 = arith.constant 1 : index
    %c0_23 = arith.constant 0 : index
    %c20_24 = arith.constant 20 : index
    %40 = vector.load %arg5[%c1, %c0_23, %c20_24] : memref<4x2x48xf32, #tpu.memory_space<vmem>>, vector<3x2x20xf32>
    tpu.vector_store %arg5[%c1, %c0_23, %c20_24], %39 {strides = array<i32>} : memref<4x2x48xf32, #tpu.memory_space<vmem>>, vector<3x2x20xf32>,
    %c1_25 = arith.constant 1 : index
    %c0_26 = arith.constant 0 : index
    %c20_27 = arith.constant 20 : index
    %41 = vector.load %arg0[%c1_25, %c0_26, %c20_27] : memref<8x2x48xf32, #tpu.memory_space<vmem>>, vector<1x2x20xf32>
    %42 = vector.shape_cast %41 : vector<1x2x20xf32> to vector<2x20xf32>
    %c0_28 = arith.constant 0 : index
    %c0_29 = arith.constant 0 : index
    %c20_30 = arith.constant 20 : index
    %43 = vector.load %arg5[%c0_28, %c0_29, %c20_30] : memref<4x2x48xf32, #tpu.memory_space<vmem>>, vector<1x2x20xf32>
    %44 = vector.shape_cast %43 : vector<1x2x20xf32> to vector<2x20xf32>
    %45 = vector.shape_cast %42 : vector<2x20xf32> to vector<1x2x20xf32>
    tpu.vector_store %arg5[%c0_28, %c0_29, %c20_30], %45 {strides = array<i32>} : memref<4x2x48xf32, #tpu.memory_space<vmem>>, vector<1x2x20xf32>,
    %c0_31 = arith.constant 0 : index
    %c0_32 = arith.constant 0 : index
    %c0_33 = arith.constant 0 : index
    %46 = vector.load %arg5[%c0_31, %c0_32, %c0_33] : memref<4x2x48xf32, #tpu.memory_space<vmem>>, vector<4x2x48xf32>
    %c0_34 = arith.constant 0 : index
    %c0_35 = arith.constant 0 : index
    %c0_36 = arith.constant 0 : index
    %47 = vector.load %arg1[%c0_34, %c0_35, %c0_36] : memref<4x48x512xf32, #tpu.memory_space<vmem>>, vector<4x48x512xf32>
    "tpu.trace_start"() <{level = 10 : i32, message = "lbk,lkg->lbg"}> : () -> ()
    %cst_37 = arith.constant dense<0.000000e+00> : vector<4x2x512xf32>
    %48 = tpu.matmul %46, %47, %cst_37 {dimension_numbers = #tpu.dot_dimension_numbers<[2], [1], [1], [2], [0, 0, 0, 1, 1, 2], [0], [0]>} : vector<4x2x48xf32>, vector<4x48x512xf32>, vector<4x2x512xf32> -> vector<4x2x512xf32>
    "tpu.trace_stop"() : () -> ()
    %49 = vector.extract_strided_slice %48 {offsets = [0, 0, 0], sizes = [4, 2, 384], strides = [1, 1, 1]} : vector<4x2x512xf32> to vector<4x2x384xf32>
    %50 = arith.negf %49 : vector<4x2x384xf32>
    %51 = math.exp %50 : vector<4x2x384xf32>
    %cst_38 = arith.constant 1.000000e+00 : f32
    %52 = vector.broadcast %cst_38 : f32 to vector<4x2x384xf32>
    %53 = arith.addf %52, %51 : vector<4x2x384xf32>
    %54 = arith.divf %52, %53 : vector<4x2x384xf32>
    %55 = vector.extract_strided_slice %48 {offsets = [0, 0, 384], sizes = [4, 2, 20], strides = [1, 1, 1]} : vector<4x2x512xf32> to vector<4x2x20xf32>
    %56 = math.tanh %55 : vector<4x2x20xf32>
    %57 = vector.extract_strided_slice %54 {offsets = [0, 0, 0], sizes = [4, 2, 20], strides = [1, 1, 1]} : vector<4x2x384xf32> to vector<4x2x20xf32>
    %58 = vector.extract_strided_slice %54 {offsets = [0, 0, 128], sizes = [4, 2, 20], strides = [1, 1, 1]} : vector<4x2x384xf32> to vector<4x2x20xf32>
    %59 = vector.extract_strided_slice %54 {offsets = [0, 0, 256], sizes = [4, 2, 20], strides = [1, 1, 1]} : vector<4x2x384xf32> to vector<4x2x20xf32>
    %60 = arith.mulf %58, %35 : vector<4x2x20xf32>
    %61 = arith.mulf %57, %56 : vector<4x2x20xf32>
    %62 = arith.addf %60, %61 : vector<4x2x20xf32>
    %63 = math.tanh %62 : vector<4x2x20xf32>
    %64 = arith.mulf %59, %63 : vector<4x2x20xf32>
    %c1_i32 = arith.constant 1 : i32
    %65 = vector.broadcast %c1_i32 : i32 to vector<4x2x20xi32>
    %66 = arith.cmpi sle, %7, %65 : vector<4x2x20xi32>
    %67 = arith.select %66, %62, %35 : vector<4x2x20xi1>, vector<4x2x20xf32>
    %c0_39 = arith.constant 0 : index
    %c0_40 = arith.constant 0 : index
    %c0_41 = arith.constant 0 : index
    %68 = vector.load %arg5[%c0_39, %c0_40, %c0_41] : memref<4x2x48xf32, #tpu.memory_space<vmem>>, vector<4x2x20xf32>
    %69 = arith.select %66, %64, %68 : vector<4x2x20xi1>, vector<4x2x20xf32>
    %c0_42 = arith.constant 0 : index
    %c0_43 = arith.constant 0 : index
    %c0_44 = arith.constant 0 : index
    %70 = vector.load %arg5[%c0_42, %c0_43, %c0_44] : memref<4x2x48xf32, #tpu.memory_space<vmem>>, vector<4x2x20xf32>
    tpu.vector_store %arg5[%c0_42, %c0_43, %c0_44], %69 {strides = array<i32>} : memref<4x2x48xf32, #tpu.memory_space<vmem>>, vector<4x2x20xf32>,
    %71 = vector.extract_strided_slice %64 {offsets = [0, 0, 0], sizes = [3, 2, 20], strides = [1, 1, 1]} : vector<4x2x20xf32> to vector<3x2x20xf32>
    %c1_45 = arith.constant 1 : index
    %c0_46 = arith.constant 0 : index
    %c20_47 = arith.constant 20 : index
    %72 = vector.load %arg5[%c1_45, %c0_46, %c20_47] : memref<4x2x48xf32, #tpu.memory_space<vmem>>, vector<3x2x20xf32>
    tpu.vector_store %arg5[%c1_45, %c0_46, %c20_47], %71 {strides = array<i32>} : memref<4x2x48xf32, #tpu.memory_space<vmem>>, vector<3x2x20xf32>,
    %c2 = arith.constant 2 : index
    %c0_48 = arith.constant 0 : index
    %c20_49 = arith.constant 20 : index
    %73 = vector.load %arg0[%c2, %c0_48, %c20_49] : memref<8x2x48xf32, #tpu.memory_space<vmem>>, vector<1x2x20xf32>
    %74 = vector.shape_cast %73 : vector<1x2x20xf32> to vector<2x20xf32>
    %c0_50 = arith.constant 0 : index
    %c0_51 = arith.constant 0 : index
    %c20_52 = arith.constant 20 : index
    %75 = vector.load %arg5[%c0_50, %c0_51, %c20_52] : memref<4x2x48xf32, #tpu.memory_space<vmem>>, vector<1x2x20xf32>
    %76 = vector.shape_cast %75 : vector<1x2x20xf32> to vector<2x20xf32>
    %77 = vector.shape_cast %74 : vector<2x20xf32> to vector<1x2x20xf32>
    tpu.vector_store %arg5[%c0_50, %c0_51, %c20_52], %77 {strides = array<i32>} : memref<4x2x48xf32, #tpu.memory_space<vmem>>, vector<1x2x20xf32>,
    %c0_53 = arith.constant 0 : index
    %c0_54 = arith.constant 0 : index
    %c0_55 = arith.constant 0 : index
    %78 = vector.load %arg5[%c0_53, %c0_54, %c0_55] : memref<4x2x48xf32, #tpu.memory_space<vmem>>, vector<4x2x48xf32>
    %c0_56 = arith.constant 0 : index
    %c0_57 = arith.constant 0 : index
    %c0_58 = arith.constant 0 : index
    %79 = vector.load %arg1[%c0_56, %c0_57, %c0_58] : memref<4x48x512xf32, #tpu.memory_space<vmem>>, vector<4x48x512xf32>
    "tpu.trace_start"() <{level = 10 : i32, message = "lbk,lkg->lbg"}> : () -> ()
    %cst_59 = arith.constant dense<0.000000e+00> : vector<4x2x512xf32>
    %80 = tpu.matmul %78, %79, %cst_59 {dimension_numbers = #tpu.dot_dimension_numbers<[2], [1], [1], [2], [0, 0, 0, 1, 1, 2], [0], [0]>} : vector<4x2x48xf32>, vector<4x48x512xf32>, vector<4x2x512xf32> -> vector<4x2x512xf32>
    "tpu.trace_stop"() : () -> ()
    %81 = vector.extract_strided_slice %80 {offsets = [0, 0, 0], sizes = [4, 2, 384], strides = [1, 1, 1]} : vector<4x2x512xf32> to vector<4x2x384xf32>
    %82 = arith.negf %81 : vector<4x2x384xf32>
    %83 = math.exp %82 : vector<4x2x384xf32>
    %cst_60 = arith.constant 1.000000e+00 : f32
    %84 = vector.broadcast %cst_60 : f32 to vector<4x2x384xf32>
    %85 = arith.addf %84, %83 : vector<4x2x384xf32>
    %86 = arith.divf %84, %85 : vector<4x2x384xf32>
    %87 = vector.extract_strided_slice %80 {offsets = [0, 0, 384], sizes = [4, 2, 20], strides = [1, 1, 1]} : vector<4x2x512xf32> to vector<4x2x20xf32>
    %88 = math.tanh %87 : vector<4x2x20xf32>
    %89 = vector.extract_strided_slice %86 {offsets = [0, 0, 0], sizes = [4, 2, 20], strides = [1, 1, 1]} : vector<4x2x384xf32> to vector<4x2x20xf32>
    %90 = vector.extract_strided_slice %86 {offsets = [0, 0, 128], sizes = [4, 2, 20], strides = [1, 1, 1]} : vector<4x2x384xf32> to vector<4x2x20xf32>
    %91 = vector.extract_strided_slice %86 {offsets = [0, 0, 256], sizes = [4, 2, 20], strides = [1, 1, 1]} : vector<4x2x384xf32> to vector<4x2x20xf32>
    %92 = arith.mulf %90, %67 : vector<4x2x20xf32>
    %93 = arith.mulf %89, %88 : vector<4x2x20xf32>
    %94 = arith.addf %92, %93 : vector<4x2x20xf32>
    %95 = math.tanh %94 : vector<4x2x20xf32>
    %96 = arith.mulf %91, %95 : vector<4x2x20xf32>
    %c2_i32 = arith.constant 2 : i32
    %97 = vector.broadcast %c2_i32 : i32 to vector<4x2x20xi32>
    %98 = arith.cmpi sle, %7, %97 : vector<4x2x20xi32>
    %99 = arith.select %98, %94, %67 : vector<4x2x20xi1>, vector<4x2x20xf32>
    %c0_61 = arith.constant 0 : index
    %c0_62 = arith.constant 0 : index
    %c0_63 = arith.constant 0 : index
    %100 = vector.load %arg5[%c0_61, %c0_62, %c0_63] : memref<4x2x48xf32, #tpu.memory_space<vmem>>, vector<4x2x20xf32>
    %101 = arith.select %98, %96, %100 : vector<4x2x20xi1>, vector<4x2x20xf32>
    %c0_64 = arith.constant 0 : index
    %c0_65 = arith.constant 0 : index
    %c0_66 = arith.constant 0 : index
    %102 = vector.load %arg5[%c0_64, %c0_65, %c0_66] : memref<4x2x48xf32, #tpu.memory_space<vmem>>, vector<4x2x20xf32>
    tpu.vector_store %arg5[%c0_64, %c0_65, %c0_66], %101 {strides = array<i32>} : memref<4x2x48xf32, #tpu.memory_space<vmem>>, vector<4x2x20xf32>,
    %103 = vector.extract_strided_slice %96 {offsets = [0, 0, 0], sizes = [3, 2, 20], strides = [1, 1, 1]} : vector<4x2x20xf32> to vector<3x2x20xf32>
    %c1_67 = arith.constant 1 : index
    %c0_68 = arith.constant 0 : index
    %c20_69 = arith.constant 20 : index
    %104 = vector.load %arg5[%c1_67, %c0_68, %c20_69] : memref<4x2x48xf32, #tpu.memory_space<vmem>>, vector<3x2x20xf32>
    tpu.vector_store %arg5[%c1_67, %c0_68, %c20_69], %103 {strides = array<i32>} : memref<4x2x48xf32, #tpu.memory_space<vmem>>, vector<3x2x20xf32>,
    %c3 = arith.constant 3 : index
    %c0_70 = arith.constant 0 : index
    %c20_71 = arith.constant 20 : index
    %105 = vector.load %arg0[%c3, %c0_70, %c20_71] : memref<8x2x48xf32, #tpu.memory_space<vmem>>, vector<1x2x20xf32>
    %106 = vector.shape_cast %105 : vector<1x2x20xf32> to vector<2x20xf32>
    %c0_72 = arith.constant 0 : index
    %c0_73 = arith.constant 0 : index
    %c20_74 = arith.constant 20 : index
    %107 = vector.load %arg5[%c0_72, %c0_73, %c20_74] : memref<4x2x48xf32, #tpu.memory_space<vmem>>, vector<1x2x20xf32>
    %108 = vector.shape_cast %107 : vector<1x2x20xf32> to vector<2x20xf32>
    %109 = vector.shape_cast %106 : vector<2x20xf32> to vector<1x2x20xf32>
    tpu.vector_store %arg5[%c0_72, %c0_73, %c20_74], %109 {strides = array<i32>} : memref<4x2x48xf32, #tpu.memory_space<vmem>>, vector<1x2x20xf32>,
    %c0_75 = arith.constant 0 : index
    %c0_76 = arith.constant 0 : index
    %c0_77 = arith.constant 0 : index
    %110 = vector.load %arg5[%c0_75, %c0_76, %c0_77] : memref<4x2x48xf32, #tpu.memory_space<vmem>>, vector<4x2x48xf32>
    %c0_78 = arith.constant 0 : index
    %c0_79 = arith.constant 0 : index
    %c0_80 = arith.constant 0 : index
    %111 = vector.load %arg1[%c0_78, %c0_79, %c0_80] : memref<4x48x512xf32, #tpu.memory_space<vmem>>, vector<4x48x512xf32>
    "tpu.trace_start"() <{level = 10 : i32, message = "lbk,lkg->lbg"}> : () -> ()
    %cst_81 = arith.constant dense<0.000000e+00> : vector<4x2x512xf32>
    %112 = tpu.matmul %110, %111, %cst_81 {dimension_numbers = #tpu.dot_dimension_numbers<[2], [1], [1], [2], [0, 0, 0, 1, 1, 2], [0], [0]>} : vector<4x2x48xf32>, vector<4x48x512xf32>, vector<4x2x512xf32> -> vector<4x2x512xf32>
    "tpu.trace_stop"() : () -> ()
    %113 = vector.extract_strided_slice %112 {offsets = [0, 0, 0], sizes = [4, 2, 384], strides = [1, 1, 1]} : vector<4x2x512xf32> to vector<4x2x384xf32>
    %114 = arith.negf %113 : vector<4x2x384xf32>
    %115 = math.exp %114 : vector<4x2x384xf32>
    %cst_82 = arith.constant 1.000000e+00 : f32
    %116 = vector.broadcast %cst_82 : f32 to vector<4x2x384xf32>
    %117 = arith.addf %116, %115 : vector<4x2x384xf32>
    %118 = arith.divf %116, %117 : vector<4x2x384xf32>
    %119 = vector.extract_strided_slice %112 {offsets = [0, 0, 384], sizes = [4, 2, 20], strides = [1, 1, 1]} : vector<4x2x512xf32> to vector<4x2x20xf32>
    %120 = math.tanh %119 : vector<4x2x20xf32>
    %121 = vector.extract_strided_slice %118 {offsets = [0, 0, 0], sizes = [4, 2, 20], strides = [1, 1, 1]} : vector<4x2x384xf32> to vector<4x2x20xf32>
    %122 = vector.extract_strided_slice %118 {offsets = [0, 0, 128], sizes = [4, 2, 20], strides = [1, 1, 1]} : vector<4x2x384xf32> to vector<4x2x20xf32>
    %123 = vector.extract_strided_slice %118 {offsets = [0, 0, 256], sizes = [4, 2, 20], strides = [1, 1, 1]} : vector<4x2x384xf32> to vector<4x2x20xf32>
    %124 = arith.mulf %122, %99 : vector<4x2x20xf32>
    %125 = arith.mulf %121, %120 : vector<4x2x20xf32>
    %126 = arith.addf %124, %125 : vector<4x2x20xf32>
    %127 = math.tanh %126 : vector<4x2x20xf32>
    %128 = arith.mulf %123, %127 : vector<4x2x20xf32>
    %c0_83 = arith.constant 0 : index
    %c0_84 = arith.constant 0 : index
    %c0_85 = arith.constant 0 : index
    %129 = vector.load %arg5[%c0_83, %c0_84, %c0_85] : memref<4x2x48xf32, #tpu.memory_space<vmem>>, vector<4x2x20xf32>
    tpu.vector_store %arg5[%c0_83, %c0_84, %c0_85], %128 {strides = array<i32>} : memref<4x2x48xf32, #tpu.memory_space<vmem>>, vector<4x2x20xf32>,
    %130 = vector.extract_strided_slice %128 {offsets = [0, 0, 0], sizes = [3, 2, 20], strides = [1, 1, 1]} : vector<4x2x20xf32> to vector<3x2x20xf32>
    %c1_86 = arith.constant 1 : index
    %c0_87 = arith.constant 0 : index
    %c20_88 = arith.constant 20 : index
    %131 = vector.load %arg5[%c1_86, %c0_87, %c20_88] : memref<4x2x48xf32, #tpu.memory_space<vmem>>, vector<3x2x20xf32>
    tpu.vector_store %arg5[%c1_86, %c0_87, %c20_88], %130 {strides = array<i32>} : memref<4x2x48xf32, #tpu.memory_space<vmem>>, vector<3x2x20xf32>,
    %132 = vector.extract_strided_slice %128 {offsets = [3, 0, 0], sizes = [1, 2, 20], strides = [1, 1, 1]} : vector<4x2x20xf32> to vector<1x2x20xf32>
    %133 = vector.shape_cast %132 : vector<1x2x20xf32> to vector<2x20xf32>
    %c0_89 = arith.constant 0 : index
    %c0_90 = arith.constant 0 : index
    %134 = vector.load %arg6[%c0_89, %c0_90] : memref<16x20xf32, #tpu.memory_space<vmem>>, vector<2x20xf32>
    tpu.vector_store %arg6[%c0_89, %c0_90], %133 {strides = array<i32>} : memref<16x20xf32, #tpu.memory_space<vmem>>, vector<2x20xf32>,
    %c4 = arith.constant 4 : index
    %c0_91 = arith.constant 0 : index
    %c20_92 = arith.constant 20 : index
    %135 = vector.load %arg0[%c4, %c0_91, %c20_92] : memref<8x2x48xf32, #tpu.memory_space<vmem>>, vector<1x2x20xf32>
    %136 = vector.shape_cast %135 : vector<1x2x20xf32> to vector<2x20xf32>
    %c0_93 = arith.constant 0 : index
    %c0_94 = arith.constant 0 : index
    %c20_95 = arith.constant 20 : index
    %137 = vector.load %arg5[%c0_93, %c0_94, %c20_95] : memref<4x2x48xf32, #tpu.memory_space<vmem>>, vector<1x2x20xf32>
    %138 = vector.shape_cast %137 : vector<1x2x20xf32> to vector<2x20xf32>
    %139 = vector.shape_cast %136 : vector<2x20xf32> to vector<1x2x20xf32>
    tpu.vector_store %arg5[%c0_93, %c0_94, %c20_95], %139 {strides = array<i32>} : memref<4x2x48xf32, #tpu.memory_space<vmem>>, vector<1x2x20xf32>,
    %c0_96 = arith.constant 0 : index
    %c0_97 = arith.constant 0 : index
    %c0_98 = arith.constant 0 : index
    %140 = vector.load %arg5[%c0_96, %c0_97, %c0_98] : memref<4x2x48xf32, #tpu.memory_space<vmem>>, vector<4x2x48xf32>
    %c0_99 = arith.constant 0 : index
    %c0_100 = arith.constant 0 : index
    %c0_101 = arith.constant 0 : index
    %141 = vector.load %arg1[%c0_99, %c0_100, %c0_101] : memref<4x48x512xf32, #tpu.memory_space<vmem>>, vector<4x48x512xf32>
    "tpu.trace_start"() <{level = 10 : i32, message = "lbk,lkg->lbg"}> : () -> ()
    %cst_102 = arith.constant dense<0.000000e+00> : vector<4x2x512xf32>
    %142 = tpu.matmul %140, %141, %cst_102 {dimension_numbers = #tpu.dot_dimension_numbers<[2], [1], [1], [2], [0, 0, 0, 1, 1, 2], [0], [0]>} : vector<4x2x48xf32>, vector<4x48x512xf32>, vector<4x2x512xf32> -> vector<4x2x512xf32>
    "tpu.trace_stop"() : () -> ()
    %143 = vector.extract_strided_slice %142 {offsets = [0, 0, 0], sizes = [4, 2, 384], strides = [1, 1, 1]} : vector<4x2x512xf32> to vector<4x2x384xf32>
    %144 = arith.negf %143 : vector<4x2x384xf32>
    %145 = math.exp %144 : vector<4x2x384xf32>
    %cst_103 = arith.constant 1.000000e+00 : f32
    %146 = vector.broadcast %cst_103 : f32 to vector<4x2x384xf32>
    %147 = arith.addf %146, %145 : vector<4x2x384xf32>
    %148 = arith.divf %146, %147 : vector<4x2x384xf32>
    %149 = vector.extract_strided_slice %142 {offsets = [0, 0, 384], sizes = [4, 2, 20], strides = [1, 1, 1]} : vector<4x2x512xf32> to vector<4x2x20xf32>
    %150 = math.tanh %149 : vector<4x2x20xf32>
    %151 = vector.extract_strided_slice %148 {offsets = [0, 0, 0], sizes = [4, 2, 20], strides = [1, 1, 1]} : vector<4x2x384xf32> to vector<4x2x20xf32>
    %152 = vector.extract_strided_slice %148 {offsets = [0, 0, 128], sizes = [4, 2, 20], strides = [1, 1, 1]} : vector<4x2x384xf32> to vector<4x2x20xf32>
    %153 = vector.extract_strided_slice %148 {offsets = [0, 0, 256], sizes = [4, 2, 20], strides = [1, 1, 1]} : vector<4x2x384xf32> to vector<4x2x20xf32>
    %154 = arith.mulf %152, %126 : vector<4x2x20xf32>
    %155 = arith.mulf %151, %150 : vector<4x2x20xf32>
    %156 = arith.addf %154, %155 : vector<4x2x20xf32>
    %157 = math.tanh %156 : vector<4x2x20xf32>
    %158 = arith.mulf %153, %157 : vector<4x2x20xf32>
    %c0_104 = arith.constant 0 : index
    %c0_105 = arith.constant 0 : index
    %c0_106 = arith.constant 0 : index
    %159 = vector.load %arg5[%c0_104, %c0_105, %c0_106] : memref<4x2x48xf32, #tpu.memory_space<vmem>>, vector<4x2x20xf32>
    tpu.vector_store %arg5[%c0_104, %c0_105, %c0_106], %158 {strides = array<i32>} : memref<4x2x48xf32, #tpu.memory_space<vmem>>, vector<4x2x20xf32>,
    %160 = vector.extract_strided_slice %158 {offsets = [0, 0, 0], sizes = [3, 2, 20], strides = [1, 1, 1]} : vector<4x2x20xf32> to vector<3x2x20xf32>
    %c1_107 = arith.constant 1 : index
    %c0_108 = arith.constant 0 : index
    %c20_109 = arith.constant 20 : index
    %161 = vector.load %arg5[%c1_107, %c0_108, %c20_109] : memref<4x2x48xf32, #tpu.memory_space<vmem>>, vector<3x2x20xf32>
    tpu.vector_store %arg5[%c1_107, %c0_108, %c20_109], %160 {strides = array<i32>} : memref<4x2x48xf32, #tpu.memory_space<vmem>>, vector<3x2x20xf32>,
    %162 = vector.extract_strided_slice %158 {offsets = [3, 0, 0], sizes = [1, 2, 20], strides = [1, 1, 1]} : vector<4x2x20xf32> to vector<1x2x20xf32>
    %163 = vector.shape_cast %162 : vector<1x2x20xf32> to vector<2x20xf32>
    %c2_110 = arith.constant 2 : index
    %c0_111 = arith.constant 0 : index
    %164 = vector.load %arg6[%c2_110, %c0_111] : memref<16x20xf32, #tpu.memory_space<vmem>>, vector<2x20xf32>
    tpu.vector_store %arg6[%c2_110, %c0_111], %163 {strides = array<i32>} : memref<16x20xf32, #tpu.memory_space<vmem>>, vector<2x20xf32>,
    %c5 = arith.constant 5 : index
    %c0_112 = arith.constant 0 : index
    %c20_113 = arith.constant 20 : index
    %165 = vector.load %arg0[%c5, %c0_112, %c20_113] : memref<8x2x48xf32, #tpu.memory_space<vmem>>, vector<1x2x20xf32>
    %166 = vector.shape_cast %165 : vector<1x2x20xf32> to vector<2x20xf32>
    %c0_114 = arith.constant 0 : index
    %c0_115 = arith.constant 0 : index
    %c20_116 = arith.constant 20 : index
    %167 = vector.load %arg5[%c0_114, %c0_115, %c20_116] : memref<4x2x48xf32, #tpu.memory_space<vmem>>, vector<1x2x20xf32>
    %168 = vector.shape_cast %167 : vector<1x2x20xf32> to vector<2x20xf32>
    %169 = vector.shape_cast %166 : vector<2x20xf32> to vector<1x2x20xf32>
    tpu.vector_store %arg5[%c0_114, %c0_115, %c20_116], %169 {strides = array<i32>} : memref<4x2x48xf32, #tpu.memory_space<vmem>>, vector<1x2x20xf32>,
    %c0_117 = arith.constant 0 : index
    %c0_118 = arith.constant 0 : index
    %c0_119 = arith.constant 0 : index
    %170 = vector.load %arg5[%c0_117, %c0_118, %c0_119] : memref<4x2x48xf32, #tpu.memory_space<vmem>>, vector<4x2x48xf32>
    %c0_120 = arith.constant 0 : index
    %c0_121 = arith.constant 0 : index
    %c0_122 = arith.constant 0 : index
    %171 = vector.load %arg1[%c0_120, %c0_121, %c0_122] : memref<4x48x512xf32, #tpu.memory_space<vmem>>, vector<4x48x512xf32>
    "tpu.trace_start"() <{level = 10 : i32, message = "lbk,lkg->lbg"}> : () -> ()
    %cst_123 = arith.constant dense<0.000000e+00> : vector<4x2x512xf32>
    %172 = tpu.matmul %170, %171, %cst_123 {dimension_numbers = #tpu.dot_dimension_numbers<[2], [1], [1], [2], [0, 0, 0, 1, 1, 2], [0], [0]>} : vector<4x2x48xf32>, vector<4x48x512xf32>, vector<4x2x512xf32> -> vector<4x2x512xf32>
    "tpu.trace_stop"() : () -> ()
    %173 = vector.extract_strided_slice %172 {offsets = [0, 0, 0], sizes = [4, 2, 384], strides = [1, 1, 1]} : vector<4x2x512xf32> to vector<4x2x384xf32>
    %174 = arith.negf %173 : vector<4x2x384xf32>
    %175 = math.exp %174 : vector<4x2x384xf32>
    %cst_124 = arith.constant 1.000000e+00 : f32
    %176 = vector.broadcast %cst_124 : f32 to vector<4x2x384xf32>
    %177 = arith.addf %176, %175 : vector<4x2x384xf32>
    %178 = arith.divf %176, %177 : vector<4x2x384xf32>
    %179 = vector.extract_strided_slice %172 {offsets = [0, 0, 384], sizes = [4, 2, 20], strides = [1, 1, 1]} : vector<4x2x512xf32> to vector<4x2x20xf32>
    %180 = math.tanh %179 : vector<4x2x20xf32>
    %181 = vector.extract_strided_slice %178 {offsets = [0, 0, 0], sizes = [4, 2, 20], strides = [1, 1, 1]} : vector<4x2x384xf32> to vector<4x2x20xf32>
    %182 = vector.extract_strided_slice %178 {offsets = [0, 0, 128], sizes = [4, 2, 20], strides = [1, 1, 1]} : vector<4x2x384xf32> to vector<4x2x20xf32>
    %183 = vector.extract_strided_slice %178 {offsets = [0, 0, 256], sizes = [4, 2, 20], strides = [1, 1, 1]} : vector<4x2x384xf32> to vector<4x2x20xf32>
    %184 = arith.mulf %182, %156 : vector<4x2x20xf32>
    %185 = arith.mulf %181, %180 : vector<4x2x20xf32>
    %186 = arith.addf %184, %185 : vector<4x2x20xf32>
    %187 = math.tanh %186 : vector<4x2x20xf32>
    %188 = arith.mulf %183, %187 : vector<4x2x20xf32>
    %c0_125 = arith.constant 0 : index
    %c0_126 = arith.constant 0 : index
    %c0_127 = arith.constant 0 : index
    %189 = vector.load %arg5[%c0_125, %c0_126, %c0_127] : memref<4x2x48xf32, #tpu.memory_space<vmem>>, vector<4x2x20xf32>
    tpu.vector_store %arg5[%c0_125, %c0_126, %c0_127], %188 {strides = array<i32>} : memref<4x2x48xf32, #tpu.memory_space<vmem>>, vector<4x2x20xf32>,
    %190 = vector.extract_strided_slice %188 {offsets = [0, 0, 0], sizes = [3, 2, 20], strides = [1, 1, 1]} : vector<4x2x20xf32> to vector<3x2x20xf32>
    %c1_128 = arith.constant 1 : index
    %c0_129 = arith.constant 0 : index
    %c20_130 = arith.constant 20 : index
    %191 = vector.load %arg5[%c1_128, %c0_129, %c20_130] : memref<4x2x48xf32, #tpu.memory_space<vmem>>, vector<3x2x20xf32>
    tpu.vector_store %arg5[%c1_128, %c0_129, %c20_130], %190 {strides = array<i32>} : memref<4x2x48xf32, #tpu.memory_space<vmem>>, vector<3x2x20xf32>,
    %192 = vector.extract_strided_slice %188 {offsets = [3, 0, 0], sizes = [1, 2, 20], strides = [1, 1, 1]} : vector<4x2x20xf32> to vector<1x2x20xf32>
    %193 = vector.shape_cast %192 : vector<1x2x20xf32> to vector<2x20xf32>
    %c4_131 = arith.constant 4 : index
    %c0_132 = arith.constant 0 : index
    %194 = vector.load %arg6[%c4_131, %c0_132] : memref<16x20xf32, #tpu.memory_space<vmem>>, vector<2x20xf32>
    tpu.vector_store %arg6[%c4_131, %c0_132], %193 {strides = array<i32>} : memref<16x20xf32, #tpu.memory_space<vmem>>, vector<2x20xf32>,
    %c6 = arith.constant 6 : index
    %c0_133 = arith.constant 0 : index
    %c20_134 = arith.constant 20 : index
    %195 = vector.load %arg0[%c6, %c0_133, %c20_134] : memref<8x2x48xf32, #tpu.memory_space<vmem>>, vector<1x2x20xf32>
    %196 = vector.shape_cast %195 : vector<1x2x20xf32> to vector<2x20xf32>
    %c0_135 = arith.constant 0 : index
    %c0_136 = arith.constant 0 : index
    %c20_137 = arith.constant 20 : index
    %197 = vector.load %arg5[%c0_135, %c0_136, %c20_137] : memref<4x2x48xf32, #tpu.memory_space<vmem>>, vector<1x2x20xf32>
    %198 = vector.shape_cast %197 : vector<1x2x20xf32> to vector<2x20xf32>
    %199 = vector.shape_cast %196 : vector<2x20xf32> to vector<1x2x20xf32>
    tpu.vector_store %arg5[%c0_135, %c0_136, %c20_137], %199 {strides = array<i32>} : memref<4x2x48xf32, #tpu.memory_space<vmem>>, vector<1x2x20xf32>,
    %c0_138 = arith.constant 0 : index
    %c0_139 = arith.constant 0 : index
    %c0_140 = arith.constant 0 : index
    %200 = vector.load %arg5[%c0_138, %c0_139, %c0_140] : memref<4x2x48xf32, #tpu.memory_space<vmem>>, vector<4x2x48xf32>
    %c0_141 = arith.constant 0 : index
    %c0_142 = arith.constant 0 : index
    %c0_143 = arith.constant 0 : index
    %201 = vector.load %arg1[%c0_141, %c0_142, %c0_143] : memref<4x48x512xf32, #tpu.memory_space<vmem>>, vector<4x48x512xf32>
    "tpu.trace_start"() <{level = 10 : i32, message = "lbk,lkg->lbg"}> : () -> ()
    %cst_144 = arith.constant dense<0.000000e+00> : vector<4x2x512xf32>
    %202 = tpu.matmul %200, %201, %cst_144 {dimension_numbers = #tpu.dot_dimension_numbers<[2], [1], [1], [2], [0, 0, 0, 1, 1, 2], [0], [0]>} : vector<4x2x48xf32>, vector<4x48x512xf32>, vector<4x2x512xf32> -> vector<4x2x512xf32>
    "tpu.trace_stop"() : () -> ()
    %203 = vector.extract_strided_slice %202 {offsets = [0, 0, 0], sizes = [4, 2, 384], strides = [1, 1, 1]} : vector<4x2x512xf32> to vector<4x2x384xf32>
    %204 = arith.negf %203 : vector<4x2x384xf32>
    %205 = math.exp %204 : vector<4x2x384xf32>
    %cst_145 = arith.constant 1.000000e+00 : f32
    %206 = vector.broadcast %cst_145 : f32 to vector<4x2x384xf32>
    %207 = arith.addf %206, %205 : vector<4x2x384xf32>
    %208 = arith.divf %206, %207 : vector<4x2x384xf32>
    %209 = vector.extract_strided_slice %202 {offsets = [0, 0, 384], sizes = [4, 2, 20], strides = [1, 1, 1]} : vector<4x2x512xf32> to vector<4x2x20xf32>
    %210 = math.tanh %209 : vector<4x2x20xf32>
    %211 = vector.extract_strided_slice %208 {offsets = [0, 0, 0], sizes = [4, 2, 20], strides = [1, 1, 1]} : vector<4x2x384xf32> to vector<4x2x20xf32>
    %212 = vector.extract_strided_slice %208 {offsets = [0, 0, 128], sizes = [4, 2, 20], strides = [1, 1, 1]} : vector<4x2x384xf32> to vector<4x2x20xf32>
    %213 = vector.extract_strided_slice %208 {offsets = [0, 0, 256], sizes = [4, 2, 20], strides = [1, 1, 1]} : vector<4x2x384xf32> to vector<4x2x20xf32>
    %214 = arith.mulf %212, %186 : vector<4x2x20xf32>
    %215 = arith.mulf %211, %210 : vector<4x2x20xf32>
    %216 = arith.addf %214, %215 : vector<4x2x20xf32>
    %217 = math.tanh %216 : vector<4x2x20xf32>
    %218 = arith.mulf %213, %217 : vector<4x2x20xf32>
    %c0_146 = arith.constant 0 : index
    %c0_147 = arith.constant 0 : index
    %c0_148 = arith.constant 0 : index
    %219 = vector.load %arg5[%c0_146, %c0_147, %c0_148] : memref<4x2x48xf32, #tpu.memory_space<vmem>>, vector<4x2x20xf32>
    tpu.vector_store %arg5[%c0_146, %c0_147, %c0_148], %218 {strides = array<i32>} : memref<4x2x48xf32, #tpu.memory_space<vmem>>, vector<4x2x20xf32>,
    %220 = vector.extract_strided_slice %218 {offsets = [0, 0, 0], sizes = [3, 2, 20], strides = [1, 1, 1]} : vector<4x2x20xf32> to vector<3x2x20xf32>
    %c1_149 = arith.constant 1 : index
    %c0_150 = arith.constant 0 : index
    %c20_151 = arith.constant 20 : index
    %221 = vector.load %arg5[%c1_149, %c0_150, %c20_151] : memref<4x2x48xf32, #tpu.memory_space<vmem>>, vector<3x2x20xf32>
    tpu.vector_store %arg5[%c1_149, %c0_150, %c20_151], %220 {strides = array<i32>} : memref<4x2x48xf32, #tpu.memory_space<vmem>>, vector<3x2x20xf32>,
    %222 = vector.extract_strided_slice %218 {offsets = [3, 0, 0], sizes = [1, 2, 20], strides = [1, 1, 1]} : vector<4x2x20xf32> to vector<1x2x20xf32>
    %223 = vector.shape_cast %222 : vector<1x2x20xf32> to vector<2x20xf32>
    %c6_152 = arith.constant 6 : index
    %c0_153 = arith.constant 0 : index
    %224 = vector.load %arg6[%c6_152, %c0_153] : memref<16x20xf32, #tpu.memory_space<vmem>>, vector<2x20xf32>
    tpu.vector_store %arg6[%c6_152, %c0_153], %223 {strides = array<i32>} : memref<16x20xf32, #tpu.memory_space<vmem>>, vector<2x20xf32>,
    %c7 = arith.constant 7 : index
    %c0_154 = arith.constant 0 : index
    %c20_155 = arith.constant 20 : index
    %225 = vector.load %arg0[%c7, %c0_154, %c20_155] : memref<8x2x48xf32, #tpu.memory_space<vmem>>, vector<1x2x20xf32>
    %226 = vector.shape_cast %225 : vector<1x2x20xf32> to vector<2x20xf32>
    %c0_156 = arith.constant 0 : index
    %c0_157 = arith.constant 0 : index
    %c20_158 = arith.constant 20 : index
    %227 = vector.load %arg5[%c0_156, %c0_157, %c20_158] : memref<4x2x48xf32, #tpu.memory_space<vmem>>, vector<1x2x20xf32>
    %228 = vector.shape_cast %227 : vector<1x2x20xf32> to vector<2x20xf32>
    %229 = vector.shape_cast %226 : vector<2x20xf32> to vector<1x2x20xf32>
    tpu.vector_store %arg5[%c0_156, %c0_157, %c20_158], %229 {strides = array<i32>} : memref<4x2x48xf32, #tpu.memory_space<vmem>>, vector<1x2x20xf32>,
    %c0_159 = arith.constant 0 : index
    %c0_160 = arith.constant 0 : index
    %c0_161 = arith.constant 0 : index
    %230 = vector.load %arg5[%c0_159, %c0_160, %c0_161] : memref<4x2x48xf32, #tpu.memory_space<vmem>>, vector<4x2x48xf32>
    %c0_162 = arith.constant 0 : index
    %c0_163 = arith.constant 0 : index
    %c0_164 = arith.constant 0 : index
    %231 = vector.load %arg1[%c0_162, %c0_163, %c0_164] : memref<4x48x512xf32, #tpu.memory_space<vmem>>, vector<4x48x512xf32>
    "tpu.trace_start"() <{level = 10 : i32, message = "lbk,lkg->lbg"}> : () -> ()
    %cst_165 = arith.constant dense<0.000000e+00> : vector<4x2x512xf32>
    %232 = tpu.matmul %230, %231, %cst_165 {dimension_numbers = #tpu.dot_dimension_numbers<[2], [1], [1], [2], [0, 0, 0, 1, 1, 2], [0], [0]>} : vector<4x2x48xf32>, vector<4x48x512xf32>, vector<4x2x512xf32> -> vector<4x2x512xf32>
    "tpu.trace_stop"() : () -> ()
    %233 = vector.extract_strided_slice %232 {offsets = [0, 0, 0], sizes = [4, 2, 384], strides = [1, 1, 1]} : vector<4x2x512xf32> to vector<4x2x384xf32>
    %234 = arith.negf %233 : vector<4x2x384xf32>
    %235 = math.exp %234 : vector<4x2x384xf32>
    %cst_166 = arith.constant 1.000000e+00 : f32
    %236 = vector.broadcast %cst_166 : f32 to vector<4x2x384xf32>
    %237 = arith.addf %236, %235 : vector<4x2x384xf32>
    %238 = arith.divf %236, %237 : vector<4x2x384xf32>
    %239 = vector.extract_strided_slice %232 {offsets = [0, 0, 384], sizes = [4, 2, 20], strides = [1, 1, 1]} : vector<4x2x512xf32> to vector<4x2x20xf32>
    %240 = math.tanh %239 : vector<4x2x20xf32>
    %241 = vector.extract_strided_slice %238 {offsets = [0, 0, 0], sizes = [4, 2, 20], strides = [1, 1, 1]} : vector<4x2x384xf32> to vector<4x2x20xf32>
    %242 = vector.extract_strided_slice %238 {offsets = [0, 0, 128], sizes = [4, 2, 20], strides = [1, 1, 1]} : vector<4x2x384xf32> to vector<4x2x20xf32>
    %243 = vector.extract_strided_slice %238 {offsets = [0, 0, 256], sizes = [4, 2, 20], strides = [1, 1, 1]} : vector<4x2x384xf32> to vector<4x2x20xf32>
    %244 = arith.mulf %242, %216 : vector<4x2x20xf32>
    %245 = arith.mulf %241, %240 : vector<4x2x20xf32>
    %246 = arith.addf %244, %245 : vector<4x2x20xf32>
    %247 = math.tanh %246 : vector<4x2x20xf32>
    %248 = arith.mulf %243, %247 : vector<4x2x20xf32>
    %c0_167 = arith.constant 0 : index
    %c0_168 = arith.constant 0 : index
    %c0_169 = arith.constant 0 : index
    %249 = vector.load %arg5[%c0_167, %c0_168, %c0_169] : memref<4x2x48xf32, #tpu.memory_space<vmem>>, vector<4x2x20xf32>
    tpu.vector_store %arg5[%c0_167, %c0_168, %c0_169], %248 {strides = array<i32>} : memref<4x2x48xf32, #tpu.memory_space<vmem>>, vector<4x2x20xf32>,
    %250 = vector.extract_strided_slice %248 {offsets = [0, 0, 0], sizes = [3, 2, 20], strides = [1, 1, 1]} : vector<4x2x20xf32> to vector<3x2x20xf32>
    %c1_170 = arith.constant 1 : index
    %c0_171 = arith.constant 0 : index
    %c20_172 = arith.constant 20 : index
    %251 = vector.load %arg5[%c1_170, %c0_171, %c20_172] : memref<4x2x48xf32, #tpu.memory_space<vmem>>, vector<3x2x20xf32>
    tpu.vector_store %arg5[%c1_170, %c0_171, %c20_172], %250 {strides = array<i32>} : memref<4x2x48xf32, #tpu.memory_space<vmem>>, vector<3x2x20xf32>,
    %252 = vector.extract_strided_slice %248 {offsets = [3, 0, 0], sizes = [1, 2, 20], strides = [1, 1, 1]} : vector<4x2x20xf32> to vector<1x2x20xf32>
    %253 = vector.shape_cast %252 : vector<1x2x20xf32> to vector<2x20xf32>
    %c8 = arith.constant 8 : index
    %c0_173 = arith.constant 0 : index
    %254 = vector.load %arg6[%c8, %c0_173] : memref<16x20xf32, #tpu.memory_space<vmem>>, vector<2x20xf32>
    tpu.vector_store %arg6[%c8, %c0_173], %253 {strides = array<i32>} : memref<16x20xf32, #tpu.memory_space<vmem>>, vector<2x20xf32>,
    %c0_174 = arith.constant 0 : index
    %c0_175 = arith.constant 0 : index
    %c0_176 = arith.constant 0 : index
    %255 = vector.load %arg5[%c0_174, %c0_175, %c0_176] : memref<4x2x48xf32, #tpu.memory_space<vmem>>, vector<4x2x48xf32>
    %c0_177 = arith.constant 0 : index
    %c0_178 = arith.constant 0 : index
    %c0_179 = arith.constant 0 : index
    %256 = vector.load %arg1[%c0_177, %c0_178, %c0_179] : memref<4x48x512xf32, #tpu.memory_space<vmem>>, vector<4x48x512xf32>
    "tpu.trace_start"() <{level = 10 : i32, message = "lbk,lkg->lbg"}> : () -> ()
    %cst_180 = arith.constant dense<0.000000e+00> : vector<4x2x512xf32>
    %257 = tpu.matmul %255, %256, %cst_180 {dimension_numbers = #tpu.dot_dimension_numbers<[2], [1], [1], [2], [0, 0, 0, 1, 1, 2], [0], [0]>} : vector<4x2x48xf32>, vector<4x48x512xf32>, vector<4x2x512xf32> -> vector<4x2x512xf32>
    "tpu.trace_stop"() : () -> ()
    %258 = vector.extract_strided_slice %257 {offsets = [0, 0, 0], sizes = [4, 2, 384], strides = [1, 1, 1]} : vector<4x2x512xf32> to vector<4x2x384xf32>
    %259 = arith.negf %258 : vector<4x2x384xf32>
    %260 = math.exp %259 : vector<4x2x384xf32>
    %cst_181 = arith.constant 1.000000e+00 : f32
    %261 = vector.broadcast %cst_181 : f32 to vector<4x2x384xf32>
    %262 = arith.addf %261, %260 : vector<4x2x384xf32>
    %263 = arith.divf %261, %262 : vector<4x2x384xf32>
    %264 = vector.extract_strided_slice %257 {offsets = [0, 0, 384], sizes = [4, 2, 20], strides = [1, 1, 1]} : vector<4x2x512xf32> to vector<4x2x20xf32>
    %265 = math.tanh %264 : vector<4x2x20xf32>
    %266 = vector.extract_strided_slice %263 {offsets = [0, 0, 0], sizes = [4, 2, 20], strides = [1, 1, 1]} : vector<4x2x384xf32> to vector<4x2x20xf32>
    %267 = vector.extract_strided_slice %263 {offsets = [0, 0, 128], sizes = [4, 2, 20], strides = [1, 1, 1]} : vector<4x2x384xf32> to vector<4x2x20xf32>
    %268 = vector.extract_strided_slice %263 {offsets = [0, 0, 256], sizes = [4, 2, 20], strides = [1, 1, 1]} : vector<4x2x384xf32> to vector<4x2x20xf32>
    %269 = arith.mulf %267, %246 : vector<4x2x20xf32>
    %270 = arith.mulf %266, %265 : vector<4x2x20xf32>
    %271 = arith.addf %269, %270 : vector<4x2x20xf32>
    %272 = math.tanh %271 : vector<4x2x20xf32>
    %273 = arith.mulf %268, %272 : vector<4x2x20xf32>
    %c0_182 = arith.constant 0 : index
    %c0_183 = arith.constant 0 : index
    %c0_184 = arith.constant 0 : index
    %274 = vector.load %arg5[%c0_182, %c0_183, %c0_184] : memref<4x2x48xf32, #tpu.memory_space<vmem>>, vector<4x2x20xf32>
    tpu.vector_store %arg5[%c0_182, %c0_183, %c0_184], %273 {strides = array<i32>} : memref<4x2x48xf32, #tpu.memory_space<vmem>>, vector<4x2x20xf32>,
    %275 = vector.extract_strided_slice %273 {offsets = [0, 0, 0], sizes = [3, 2, 20], strides = [1, 1, 1]} : vector<4x2x20xf32> to vector<3x2x20xf32>
    %c1_185 = arith.constant 1 : index
    %c0_186 = arith.constant 0 : index
    %c20_187 = arith.constant 20 : index
    %276 = vector.load %arg5[%c1_185, %c0_186, %c20_187] : memref<4x2x48xf32, #tpu.memory_space<vmem>>, vector<3x2x20xf32>
    tpu.vector_store %arg5[%c1_185, %c0_186, %c20_187], %275 {strides = array<i32>} : memref<4x2x48xf32, #tpu.memory_space<vmem>>, vector<3x2x20xf32>,
    %277 = vector.extract_strided_slice %273 {offsets = [3, 0, 0], sizes = [1, 2, 20], strides = [1, 1, 1]} : vector<4x2x20xf32> to vector<1x2x20xf32>
    %278 = vector.shape_cast %277 : vector<1x2x20xf32> to vector<2x20xf32>
    %c10 = arith.constant 10 : index
    %c0_188 = arith.constant 0 : index
    %279 = vector.load %arg6[%c10, %c0_188] : memref<16x20xf32, #tpu.memory_space<vmem>>, vector<2x20xf32>
    tpu.vector_store %arg6[%c10, %c0_188], %278 {strides = array<i32>} : memref<16x20xf32, #tpu.memory_space<vmem>>, vector<2x20xf32>,
    %c0_189 = arith.constant 0 : index
    %c0_190 = arith.constant 0 : index
    %c0_191 = arith.constant 0 : index
    %280 = vector.load %arg5[%c0_189, %c0_190, %c0_191] : memref<4x2x48xf32, #tpu.memory_space<vmem>>, vector<4x2x48xf32>
    %c0_192 = arith.constant 0 : index
    %c0_193 = arith.constant 0 : index
    %c0_194 = arith.constant 0 : index
    %281 = vector.load %arg1[%c0_192, %c0_193, %c0_194] : memref<4x48x512xf32, #tpu.memory_space<vmem>>, vector<4x48x512xf32>
    "tpu.trace_start"() <{level = 10 : i32, message = "lbk,lkg->lbg"}> : () -> ()
    %cst_195 = arith.constant dense<0.000000e+00> : vector<4x2x512xf32>
    %282 = tpu.matmul %280, %281, %cst_195 {dimension_numbers = #tpu.dot_dimension_numbers<[2], [1], [1], [2], [0, 0, 0, 1, 1, 2], [0], [0]>} : vector<4x2x48xf32>, vector<4x48x512xf32>, vector<4x2x512xf32> -> vector<4x2x512xf32>
    "tpu.trace_stop"() : () -> ()
    %283 = vector.extract_strided_slice %282 {offsets = [0, 0, 0], sizes = [4, 2, 384], strides = [1, 1, 1]} : vector<4x2x512xf32> to vector<4x2x384xf32>
    %284 = arith.negf %283 : vector<4x2x384xf32>
    %285 = math.exp %284 : vector<4x2x384xf32>
    %cst_196 = arith.constant 1.000000e+00 : f32
    %286 = vector.broadcast %cst_196 : f32 to vector<4x2x384xf32>
    %287 = arith.addf %286, %285 : vector<4x2x384xf32>
    %288 = arith.divf %286, %287 : vector<4x2x384xf32>
    %289 = vector.extract_strided_slice %282 {offsets = [0, 0, 384], sizes = [4, 2, 20], strides = [1, 1, 1]} : vector<4x2x512xf32> to vector<4x2x20xf32>
    %290 = math.tanh %289 : vector<4x2x20xf32>
    %291 = vector.extract_strided_slice %288 {offsets = [0, 0, 0], sizes = [4, 2, 20], strides = [1, 1, 1]} : vector<4x2x384xf32> to vector<4x2x20xf32>
    %292 = vector.extract_strided_slice %288 {offsets = [0, 0, 128], sizes = [4, 2, 20], strides = [1, 1, 1]} : vector<4x2x384xf32> to vector<4x2x20xf32>
    %293 = vector.extract_strided_slice %288 {offsets = [0, 0, 256], sizes = [4, 2, 20], strides = [1, 1, 1]} : vector<4x2x384xf32> to vector<4x2x20xf32>
    %294 = arith.mulf %292, %271 : vector<4x2x20xf32>
    %295 = arith.mulf %291, %290 : vector<4x2x20xf32>
    %296 = arith.addf %294, %295 : vector<4x2x20xf32>
    %297 = math.tanh %296 : vector<4x2x20xf32>
    %298 = arith.mulf %293, %297 : vector<4x2x20xf32>
    %c0_197 = arith.constant 0 : index
    %c0_198 = arith.constant 0 : index
    %c0_199 = arith.constant 0 : index
    %299 = vector.load %arg5[%c0_197, %c0_198, %c0_199] : memref<4x2x48xf32, #tpu.memory_space<vmem>>, vector<4x2x20xf32>
    tpu.vector_store %arg5[%c0_197, %c0_198, %c0_199], %298 {strides = array<i32>} : memref<4x2x48xf32, #tpu.memory_space<vmem>>, vector<4x2x20xf32>,
    %300 = vector.extract_strided_slice %298 {offsets = [0, 0, 0], sizes = [3, 2, 20], strides = [1, 1, 1]} : vector<4x2x20xf32> to vector<3x2x20xf32>
    %c1_200 = arith.constant 1 : index
    %c0_201 = arith.constant 0 : index
    %c20_202 = arith.constant 20 : index
    %301 = vector.load %arg5[%c1_200, %c0_201, %c20_202] : memref<4x2x48xf32, #tpu.memory_space<vmem>>, vector<3x2x20xf32>
    tpu.vector_store %arg5[%c1_200, %c0_201, %c20_202], %300 {strides = array<i32>} : memref<4x2x48xf32, #tpu.memory_space<vmem>>, vector<3x2x20xf32>,
    %302 = vector.extract_strided_slice %298 {offsets = [3, 0, 0], sizes = [1, 2, 20], strides = [1, 1, 1]} : vector<4x2x20xf32> to vector<1x2x20xf32>
    %303 = vector.shape_cast %302 : vector<1x2x20xf32> to vector<2x20xf32>
    %c12 = arith.constant 12 : index
    %c0_203 = arith.constant 0 : index
    %304 = vector.load %arg6[%c12, %c0_203] : memref<16x20xf32, #tpu.memory_space<vmem>>, vector<2x20xf32>
    tpu.vector_store %arg6[%c12, %c0_203], %303 {strides = array<i32>} : memref<16x20xf32, #tpu.memory_space<vmem>>, vector<2x20xf32>,
    %c0_204 = arith.constant 0 : index
    %c0_205 = arith.constant 0 : index
    %c0_206 = arith.constant 0 : index
    %305 = vector.load %arg5[%c0_204, %c0_205, %c0_206] : memref<4x2x48xf32, #tpu.memory_space<vmem>>, vector<4x2x48xf32>
    %c0_207 = arith.constant 0 : index
    %c0_208 = arith.constant 0 : index
    %c0_209 = arith.constant 0 : index
    %306 = vector.load %arg1[%c0_207, %c0_208, %c0_209] : memref<4x48x512xf32, #tpu.memory_space<vmem>>, vector<4x48x512xf32>
    "tpu.trace_start"() <{level = 10 : i32, message = "lbk,lkg->lbg"}> : () -> ()
    %cst_210 = arith.constant dense<0.000000e+00> : vector<4x2x512xf32>
    %307 = tpu.matmul %305, %306, %cst_210 {dimension_numbers = #tpu.dot_dimension_numbers<[2], [1], [1], [2], [0, 0, 0, 1, 1, 2], [0], [0]>} : vector<4x2x48xf32>, vector<4x48x512xf32>, vector<4x2x512xf32> -> vector<4x2x512xf32>
    "tpu.trace_stop"() : () -> ()
    %308 = vector.extract_strided_slice %307 {offsets = [0, 0, 0], sizes = [4, 2, 384], strides = [1, 1, 1]} : vector<4x2x512xf32> to vector<4x2x384xf32>
    %309 = arith.negf %308 : vector<4x2x384xf32>
    %310 = math.exp %309 : vector<4x2x384xf32>
    %cst_211 = arith.constant 1.000000e+00 : f32
    %311 = vector.broadcast %cst_211 : f32 to vector<4x2x384xf32>
    %312 = arith.addf %311, %310 : vector<4x2x384xf32>
    %313 = arith.divf %311, %312 : vector<4x2x384xf32>
    %314 = vector.extract_strided_slice %307 {offsets = [0, 0, 384], sizes = [4, 2, 20], strides = [1, 1, 1]} : vector<4x2x512xf32> to vector<4x2x20xf32>
    %315 = math.tanh %314 : vector<4x2x20xf32>
    %316 = vector.extract_strided_slice %313 {offsets = [0, 0, 0], sizes = [4, 2, 20], strides = [1, 1, 1]} : vector<4x2x384xf32> to vector<4x2x20xf32>
    %317 = vector.extract_strided_slice %313 {offsets = [0, 0, 128], sizes = [4, 2, 20], strides = [1, 1, 1]} : vector<4x2x384xf32> to vector<4x2x20xf32>
    %318 = vector.extract_strided_slice %313 {offsets = [0, 0, 256], sizes = [4, 2, 20], strides = [1, 1, 1]} : vector<4x2x384xf32> to vector<4x2x20xf32>
    %319 = arith.mulf %317, %296 : vector<4x2x20xf32>
    %320 = arith.mulf %316, %315 : vector<4x2x20xf32>
    %321 = arith.addf %319, %320 : vector<4x2x20xf32>
    %322 = math.tanh %321 : vector<4x2x20xf32>
    %323 = arith.mulf %318, %322 : vector<4x2x20xf32>
    %c0_212 = arith.constant 0 : index
    %c0_213 = arith.constant 0 : index
    %c0_214 = arith.constant 0 : index
    %324 = vector.load %arg5[%c0_212, %c0_213, %c0_214] : memref<4x2x48xf32, #tpu.memory_space<vmem>>, vector<4x2x20xf32>
    tpu.vector_store %arg5[%c0_212, %c0_213, %c0_214], %323 {strides = array<i32>} : memref<4x2x48xf32, #tpu.memory_space<vmem>>, vector<4x2x20xf32>,
    %325 = vector.extract_strided_slice %323 {offsets = [0, 0, 0], sizes = [3, 2, 20], strides = [1, 1, 1]} : vector<4x2x20xf32> to vector<3x2x20xf32>
    %c1_215 = arith.constant 1 : index
    %c0_216 = arith.constant 0 : index
    %c20_217 = arith.constant 20 : index
    %326 = vector.load %arg5[%c1_215, %c0_216, %c20_217] : memref<4x2x48xf32, #tpu.memory_space<vmem>>, vector<3x2x20xf32>
    tpu.vector_store %arg5[%c1_215, %c0_216, %c20_217], %325 {strides = array<i32>} : memref<4x2x48xf32, #tpu.memory_space<vmem>>, vector<3x2x20xf32>,
    %327 = vector.extract_strided_slice %323 {offsets = [3, 0, 0], sizes = [1, 2, 20], strides = [1, 1, 1]} : vector<4x2x20xf32> to vector<1x2x20xf32>
    %328 = vector.shape_cast %327 : vector<1x2x20xf32> to vector<2x20xf32>
    %c14 = arith.constant 14 : index
    %c0_218 = arith.constant 0 : index
    %329 = vector.load %arg6[%c14, %c0_218] : memref<16x20xf32, #tpu.memory_space<vmem>>, vector<2x20xf32>
    tpu.vector_store %arg6[%c14, %c0_218], %328 {strides = array<i32>} : memref<16x20xf32, #tpu.memory_space<vmem>>, vector<2x20xf32>,
    %c0_219 = arith.constant 0 : index
    %c0_220 = arith.constant 0 : index
    %330 = vector.load %arg6[%c0_219, %c0_220] : memref<16x20xf32, #tpu.memory_space<vmem>>, vector<16x20xf32>
    %cst_221 = arith.constant dense<0xFF800000> : vector<16xf32>
    %331 = vector.multi_reduction <maximumf>, %330, %cst_221 [1] : vector<16x20xf32> to vector<16xf32>
    %332 = vector.shape_cast %331 : vector<16xf32> to vector<16x1xf32>
    %333 = vector.broadcast %332 : vector<16x1xf32> to vector<16x20xf32>
    %334 = arith.subf %330, %333 : vector<16x20xf32>
    %335 = math.exp %334 : vector<16x20xf32>
    %cst_222 = arith.constant dense<0.000000e+00> : vector<16xf32>
    %336 = vector.multi_reduction <add>, %335, %cst_222 [1] : vector<16x20xf32> to vector<16xf32>
    %337 = vector.shape_cast %336 : vector<16xf32> to vector<16x1xf32>
    %338 = tpu.reciprocal %337 {approx = true} : vector<16x1xf32> -> vector<16x1xf32>
    %c0_223 = arith.constant 0 : index
    %c0_224 = arith.constant 0 : index
    %339 = vector.load %arg2[%c0_223, %c0_224] : memref<20x3xf32, #tpu.memory_space<vmem>>, vector<20x3xf32>
    %cst_225 = arith.constant dense<0.000000e+00> : vector<16x3xf32>
    %340 = tpu.matmul %335, %339, %cst_225 {dimension_numbers = #tpu.dot_dimension_numbers<[1], [0], [0], [1], [0, 0, 1, 1], [], []>} : vector<16x20xf32>, vector<20x3xf32>, vector<16x3xf32> -> vector<16x3xf32>
    %341 = vector.broadcast %338 : vector<16x1xf32> to vector<16x3xf32>
    %342 = arith.mulf %340, %341 : vector<16x3xf32>
    %c0_226 = arith.constant 0 : index
    %c0_227 = arith.constant 0 : index
    %343 = vector.load %arg3[%c0_226, %c0_227] : memref<1x3xf32, #tpu.memory_space<vmem>>, vector<1x3xf32>
    %344 = vector.broadcast %343 : vector<1x3xf32> to vector<16x3xf32>
    %345 = arith.addf %342, %344 : vector<16x3xf32>
    %c0_228 = arith.constant 0 : index
    %c0_229 = arith.constant 0 : index
    %346 = vector.load %arg4[%c0_228, %c0_229] : memref<16x3xf32, #tpu.memory_space<vmem>>, vector<16x3xf32>
    tpu.vector_store %arg4[%c0_228, %c0_229], %345 {strides = array<i32>} : memref<16x3xf32, #tpu.memory_space<vmem>>, vector<16x3xf32>,
    return
  }
}

</mosaic_0001>

<llo_original>
// kernel: tpu_custom_call.1
$region0: #{tpu_custom_call.1}
  #allocation0 [shape = 'u32[]', space=smem, size = 0x4, offset = 0x4, fixed_abs, tag = 'smem constant byte address 0x4 - core index']
  #allocation1 [shape = 'u32[144,128]{1,0:T(1,128)}', space=vmem, size = 0x12000, scoped, tag = 'internal scratch']
  #allocation2 [shape = 'f32[4,2,48]{2,1,0:T(2,128)}', space=vmem, size = 0x1000, scoped, tag = 'scratch operand']
  #allocation3 [shape = 'f32[16,20]{1,0:T(8,128)}', space=vmem, size = 0x2000, scoped, tag = 'scratch operand']
  %s0 = inlined_call_operand.vmem [shape: f32[8,2,48], index: 0, kind: input, shape index: {}]
  %s1 = inlined_call_operand.hbm [shape: f32[4,48,512], index: 1, kind: input, shape index: {}]
  %s2 = inlined_call_operand.vmem [shape: f32[20,3], index: 2, kind: input, shape index: {}]
  %s3 = inlined_call_operand.vmem [shape: f32[1,3], index: 3, kind: input, shape index: {}]
  %s4 = inlined_call_operand.vmem [shape: f32[16,3], index: 4, kind: output, shape index: {}]
  %s5 = sld [smem:[#allocation0]]
  $region30: #{tpu_custom_call.1} parent=0
    _
  %s7 = ssub.s32 1, %s5
  %s8 = scalar_select 0, %s7, %s5
  $region1: #{tpu_custom_call.1} parent=0
    #allocation4 [shape = 'u8[393216]{0}', space=vmem, size = 0x60000, scoped, tag = 'input window, operand 1, single buffered']
    #allocation5 [shape = 's32[1]{0}', space=sflag, size = 0x4, scoped, tag = 'scoped memory for tpu_custom_call.1']
    %9 = vsyncpa [#allocation5], 0
    // Predicated region
    $region2: #{tpu_custom_call.1} parent=1 // pred_check
      _
    $region3: #{tpu_custom_call.1} parent=1 // pred_check_branch
      %11 = sbr.rel (0) target = $region5
    $region4: #{tpu_custom_call.1} parent=1 // pred_region
      _
    $region5: #{tpu_custom_call.1} parent=1 // pred_fallthru
      _
    // Predicated region
    $region6: #{tpu_custom_call.1} parent=1 // pred_check
      _
    $region7: #{tpu_custom_call.1} parent=1 // pred_check_branch
      %13 = sbr.rel (0) target = $region9
    $region8: #{tpu_custom_call.1} parent=1 // pred_region
      %s15 = ssub.s32 12288, 12288
      %16 = vsyncadd [#allocation5], %s15
      %s17 = sshll.u32 [#allocation4], 4
      %s18 = int_to_ptr.vmem [resolvable:$true] %s17
      %23 = dma.hbm_to_vmem [thread:$0]  %s1, 12288, %s18, [#allocation5], 512, 512, 32
    $region9: #{tpu_custom_call.1} parent=1 // pred_fallthru
      _
    // Predicated region
    $region10: #{tpu_custom_call.1} parent=1 // pred_check
      _
    $region11: #{tpu_custom_call.1} parent=1 // pred_check_branch
      %25 = sbr.rel (0) target = $region13
    $region12: #{tpu_custom_call.1} parent=1 // pred_region
      _
    $region13: #{tpu_custom_call.1} parent=1 // pred_fallthru
      _
    // Predicated region
    $region14: #{tpu_custom_call.1} parent=1 // pred_check
      _
    $region15: #{tpu_custom_call.1} parent=1 // pred_check_branch
      %27 = sbr.rel (0) target = $region17
    $region16: #{tpu_custom_call.1} parent=1 // pred_region
      _
    $region17: #{tpu_custom_call.1} parent=1 // pred_fallthru
      _
    // Predicated region
    $region18: #{tpu_custom_call.1} parent=1 // pred_check
      _
    $region19: #{tpu_custom_call.1} parent=1 // pred_check_branch
      %29 = sbr.rel (0) target = $region21
    $region20: #{tpu_custom_call.1} parent=1 // pred_region
      %30 = dma.done [#allocation5], 12288
    $region21: #{tpu_custom_call.1} parent=1 // pred_fallthru
      _
    %v31 = vlaneseq
    %v32 = vand.u32 %v31, 127
    %vm33 = vcmp.eq.s32.totalorder %v32, 40
    %v34 = vsel %vm33, 1.0, 0.0
    %vm35 = vcmask 386048
    %36 = vst.msk [vmem:[#allocation2] sm:$0x3] %vm35, %v34
    %37 = vst.msk [vmem:[#allocation2 + $0x2] sm:$0x3] %vm35, %v34
    %38 = vst.msk [vmem:[#allocation2 + $0x4] sm:$0x3] %vm35, %v34
    %39 = vst.msk [vmem:[#allocation2 + $0x6] sm:$0x3] %vm35, %v34
    %v40 = vld [vmem:[%s0] sm:$0x3]
    %vm41 = vcmask 320672
    %42 = vst.msk [vmem:[#allocation2] sm:$0x3] %vm41, %v40
    %v43 = vld [vmem:[#allocation2] sm:$0x3]
    %v44 = vld [vmem:[#allocation2 + $0x2] sm:$0x3]
    %v45 = vld [vmem:[#allocation2 + $0x4] sm:$0x3]
    %v46 = vld [vmem:[#allocation2 + $0x6] sm:$0x3]
    %v47 = vld [vmem:[#allocation4] sm:$0xff]
    %v48 = vld [vmem:[#allocation4 + $0x8] sm:$0xff]
    %v49 = vld [vmem:[#allocation4 + $0x10] sm:$0xff]
    %v50 = vld [vmem:[#allocation4 + $0x18] sm:$0xff]
    %v51 = vld [vmem:[#allocation4 + $0x20] sm:$0xff]
    %v52 = vld [vmem:[#allocation4 + $0x28] sm:$0xff]
    %v53 = vld [vmem:[#allocation4 + $0x30] sm:$0xff]
    %v54 = vld [vmem:[#allocation4 + $0x38] sm:$0xff]
    %v55 = vld [vmem:[#allocation4 + $0x40] sm:$0xff]
    %v56 = vld [vmem:[#allocation4 + $0x48] sm:$0xff]
    %v57 = vld [vmem:[#allocation4 + $0x50] sm:$0xff]
    %v58 = vld [vmem:[#allocation4 + $0x58] sm:$0xff]
    %v59 = vld [vmem:[#allocation4 + $0x60] sm:$0xff]
    %v60 = vld [vmem:[#allocation4 + $0x68] sm:$0xff]
    %v61 = vld [vmem:[#allocation4 + $0x70] sm:$0xff]
    %v62 = vld [vmem:[#allocation4 + $0x78] sm:$0xff]
    %v63 = vld [vmem:[#allocation4 + $0x80] sm:$0xff]
    %v64 = vld [vmem:[#allocation4 + $0x88] sm:$0xff]
    %v65 = vld [vmem:[#allocation4 + $0x90] sm:$0xff]
    %v66 = vld [vmem:[#allocation4 + $0x98] sm:$0xff]
    %v67 = vld [vmem:[#allocation4 + $0xa0] sm:$0xff]
    %v68 = vld [vmem:[#allocation4 + $0xa8] sm:$0xff]
    %v69 = vld [vmem:[#allocation4 + $0xb0] sm:$0xff]
    %v70 = vld [vmem:[#allocation4 + $0xb8] sm:$0xff]
    %v71 = vld [vmem:[#allocation4 + $0xc0] sm:$0xff]
    %v72 = vld [vmem:[#allocation4 + $0xc8] sm:$0xff]
    %v73 = vld [vmem:[#allocation4 + $0xd0] sm:$0xff]
    %v74 = vld [vmem:[#allocation4 + $0xd8] sm:$0xff]
    %v75 = vld [vmem:[#allocation4 + $0xe0] sm:$0xff]
    %v76 = vld [vmem:[#allocation4 + $0xe8] sm:$0xff]
    %v77 = vld [vmem:[#allocation4 + $0xf0] sm:$0xff]
    %v78 = vld [vmem:[#allocation4 + $0xf8] sm:$0xff]
    %v79 = vld [vmem:[#allocation4 + $0x100] sm:$0xff]
    %v80 = vld [vmem:[#allocation4 + $0x108] sm:$0xff]
    %v81 = vld [vmem:[#allocation4 + $0x110] sm:$0xff]
    %v82 = vld [vmem:[#allocation4 + $0x118] sm:$0xff]
    %v83 = vld [vmem:[#allocation4 + $0x120] sm:$0xff]
    %v84 = vld [vmem:[#allocation4 + $0x128] sm:$0xff]
    %v85 = vld [vmem:[#allocation4 + $0x130] sm:$0xff]
    %v86 = vld [vmem:[#allocation4 + $0x138] sm:$0xff]
    %v87 = vld [vmem:[#allocation4 + $0x140] sm:$0xff]
    %v88 = vld [vmem:[#allocation4 + $0x148] sm:$0xff]
    %v89 = vld [vmem:[#allocation4 + $0x150] sm:$0xff]
    %v90 = vld [vmem:[#allocation4 + $0x158] sm:$0xff]
    %v91 = vld [vmem:[#allocation4 + $0x160] sm:$0xff]
    %v92 = vld [vmem:[#allocation4 + $0x168] sm:$0xff]
    %v93 = vld [vmem:[#allocation4 + $0x170] sm:$0xff]
    %v94 = vld [vmem:[#allocation4 + $0x178] sm:$0xff]
    %v95 = vld [vmem:[#allocation4 + $0x180] sm:$0xff]
    %v96 = vld [vmem:[#allocation4 + $0x188] sm:$0xff]
    %v97 = vld [vmem:[#allocation4 + $0x190] sm:$0xff]
    %v98 = vld [vmem:[#allocation4 + $0x198] sm:$0xff]
    %v99 = vld [vmem:[#allocation4 + $0x1a0] sm:$0xff]
    %v100 = vld [vmem:[#allocation4 + $0x1a8] sm:$0xff]
    %v101 = vld [vmem:[#allocation4 + $0x1b0] sm:$0xff]
    %v102 = vld [vmem:[#allocation4 + $0x1b8] sm:$0xff]
    %v103 = vld [vmem:[#allocation4 + $0x1c0] sm:$0xff]
    %v104 = vld [vmem:[#allocation4 + $0x1c8] sm:$0xff]
    %v105 = vld [vmem:[#allocation4 + $0x1d0] sm:$0xff]
    %v106 = vld [vmem:[#allocation4 + $0x1d8] sm:$0xff]
    %v107 = vld [vmem:[#allocation4 + $0x1e0] sm:$0xff]
    %v108 = vld [vmem:[#allocation4 + $0x1e8] sm:$0xff]
    %v109 = vld [vmem:[#allocation4 + $0x1f0] sm:$0xff]
    %v110 = vld [vmem:[#allocation4 + $0x1f8] sm:$0xff]
    %v111 = vld [vmem:[#allocation4 + $0x200] sm:$0xff]
    %v112 = vld [vmem:[#allocation4 + $0x208] sm:$0xff]
    %v113 = vld [vmem:[#allocation4 + $0x210] sm:$0xff]
    %v114 = vld [vmem:[#allocation4 + $0x218] sm:$0xff]
    %v115 = vld [vmem:[#allocation4 + $0x220] sm:$0xff]
    %v116 = vld [vmem:[#allocation4 + $0x228] sm:$0xff]
    %v117 = vld [vmem:[#allocation4 + $0x230] sm:$0xff]
    %v118 = vld [vmem:[#allocation4 + $0x238] sm:$0xff]
    %v119 = vld [vmem:[#allocation4 + $0x240] sm:$0xff]
    %v120 = vld [vmem:[#allocation4 + $0x248] sm:$0xff]
    %v121 = vld [vmem:[#allocation4 + $0x250] sm:$0xff]
    %v122 = vld [vmem:[#allocation4 + $0x258] sm:$0xff]
    %v123 = vld [vmem:[#allocation4 + $0x260] sm:$0xff]
    %v124 = vld [vmem:[#allocation4 + $0x268] sm:$0xff]
    %v125 = vld [vmem:[#allocation4 + $0x270] sm:$0xff]
    %v126 = vld [vmem:[#allocation4 + $0x278] sm:$0xff]
    %v127 = vld [vmem:[#allocation4 + $0x280] sm:$0xff]
    %v128 = vld [vmem:[#allocation4 + $0x288] sm:$0xff]
    %v129 = vld [vmem:[#allocation4 + $0x290] sm:$0xff]
    %v130 = vld [vmem:[#allocation4 + $0x298] sm:$0xff]
    %v131 = vld [vmem:[#allocation4 + $0x2a0] sm:$0xff]
    %v132 = vld [vmem:[#allocation4 + $0x2a8] sm:$0xff]
    %v133 = vld [vmem:[#allocation4 + $0x2b0] sm:$0xff]
    %v134 = vld [vmem:[#allocation4 + $0x2b8] sm:$0xff]
    %v135 = vld [vmem:[#allocation4 + $0x2c0] sm:$0xff]
    %v136 = vld [vmem:[#allocation4 + $0x2c8] sm:$0xff]
    %v137 = vld [vmem:[#allocation4 + $0x2d0] sm:$0xff]
    %v138 = vld [vmem:[#allocation4 + $0x2d8] sm:$0xff]
    %v139 = vld [vmem:[#allocation4 + $0x2e0] sm:$0xff]
    %v140 = vld [vmem:[#allocation4 + $0x2e8] sm:$0xff]
    %v141 = vld [vmem:[#allocation4 + $0x2f0] sm:$0xff]
    %v142 = vld [vmem:[#allocation4 + $0x2f8] sm:$0xff]
    %vm143 = vcmask 392192
    %v145 = vsel %vm143, %v43, 0
    %147 = vmatprep.subr.mxu0 %v48
    %148 = vmatpush1.msra.mxu0 %v47
    %149 = vmatprep.subr.mxu0 %v52
    %150 = vmatpush1.msra.mxu0 %v51
    %151 = vmatprep.subr.mxu0 %v56
    %152 = vmatpush1.msra.mxu0 %v55
    %153 = vmatprep.subr.mxu0 %v60
    %154 = vmatpush1.msra.mxu0 %v59
    %155 = vmatprep.subr.mxu0 %v64
    %156 = vmatpush1.msra.mxu0 %v63
    %157 = vmatprep.subr.mxu0 %v68
    %158 = vmatpush1.msra.mxu0 %v67
    %159 = vmatprep.subr.mxu0 0.0
    %160 = vmatpush1.msra.mxu0 0.0
    %161 = vmatprep.subr.mxu0 0.0
    %162 = vmatpush1.msra.mxu0 0.0
    %163 = vmatprep.subr.mxu0 0.0
    %164 = vmatpush1.msra.mxu0 0.0
    %165 = vmatprep.subr.mxu0 0.0
    %166 = vmatpush1.msra.mxu0 0.0
    %167 = vmatprep.subr.mxu0 0.0
    %168 = vmatpush1.msra.mxu0 0.0
    %169 = vmatprep.subr.mxu0 0.0
    %170 = vmatpush1.msra.mxu0 0.0
    %171 = vmatprep.subr.mxu0 0.0
    %172 = vmatpush1.msra.mxu0 0.0
    %173 = vmatprep.subr.mxu0 0.0
    %174 = vmatpush1.msra.mxu0 0.0
    %175 = vmatprep.subr.mxu0 0.0
    %176 = vmatpush1.msra.mxu0 0.0
    %177 = vmatprep.subr.mxu0 0.0
    %178 = vmatpush1.msra.mxu0 0.0
    %179 = vmatprep.subr.mxu0 0.0
    %180 = vmatpush1.msra.mxu0 0.0
    %181 = vmatprep.subr.mxu0 0.0
    %182 = vmatpush1.msra.mxu0 0.0
    %183 = vmatprep.subr.mxu0 0.0
    %184 = vmatpush1.msra.mxu0 0.0
    %185 = vmatprep.subr.mxu0 0.0
    %186 = vmatpush1.msra.mxu0 0.0
    %187 = vmatprep.subr.mxu0 0.0
    %188 = vmatpush1.msra.mxu0 0.0
    %189 = vmatprep.subr.mxu0 0.0
    %190 = vmatpush1.msra.mxu0 0.0
    %191 = vmatprep.subr.mxu0 0.0
    %192 = vmatpush1.msra.mxu0 0.0
    %193 = vmatprep.subr.mxu0 0.0
    %194 = vmatpush1.msra.mxu0 0.0
    %195 = vmatprep.subr.mxu0 0.0
    %196 = vmatpush1.msra.mxu0 0.0
    %197 = vmatprep.subr.mxu0 0.0
    %198 = vmatpush1.msra.mxu0 0.0
    %199 = vmatprep.subr.mxu0 0.0
    %200 = vmatpush1.msra.mxu0 0.0
    %201 = vmatprep.subr.mxu0 0.0
    %202 = vmatpush1.msra.mxu0 0.0
    %203 = vmatprep.subr.mxu0 0.0
    %204 = vmatpush1.msra.mxu0 0.0
    %205 = vmatprep.subr.mxu0 0.0
    %206 = vmatpush1.msra.mxu0 0.0
    %207 = vmatprep.subr.mxu0 0.0
    %208 = vmatpush1.msra.mxu0 0.0
    %209 = vmatprep.subr.mxu0 0.0
    %210 = vmatpush1.msra.mxu0 0.0
    %211 = vmatprep.mubr.f32.mxu0 0.0
    %212 = vmatmul.mubr.f32.gmra.mrb[0].mxu0 %v145
    %v213 = vpop.f32.mrb[0].mxu0
    %v214 = vadd.f32 0.0, %v213
    %v215 = vpop.f32.mrb[0].mxu0
    %v216 = vadd.f32 0.0, %v215
    %217 = vdwg.mxu0
    %218 = vmatprep.subr.mxu0 %v50
    %219 = vmatpush1.msra.mxu0 %v49
    %220 = vmatprep.subr.mxu0 %v54
    %221 = vmatpush1.msra.mxu0 %v53
    %222 = vmatprep.subr.mxu0 %v58
    %223 = vmatpush1.msra.mxu0 %v57
    %224 = vmatprep.subr.mxu0 %v62
    %225 = vmatpush1.msra.mxu0 %v61
    %226 = vmatprep.subr.mxu0 %v66
    %227 = vmatpush1.msra.mxu0 %v65
    %228 = vmatprep.subr.mxu0 %v70
    %229 = vmatpush1.msra.mxu0 %v69
    %230 = vmatprep.subr.mxu0 0.0
    %231 = vmatpush1.msra.mxu0 0.0
    %232 = vmatprep.subr.mxu0 0.0
    %233 = vmatpush1.msra.mxu0 0.0
    %234 = vmatprep.subr.mxu0 0.0
    %235 = vmatpush1.msra.mxu0 0.0
    %236 = vmatprep.subr.mxu0 0.0
    %237 = vmatpush1.msra.mxu0 0.0
    %238 = vmatprep.subr.mxu0 0.0
    %239 = vmatpush1.msra.mxu0 0.0
    %240 = vmatprep.subr.mxu0 0.0
    %241 = vmatpush1.msra.mxu0 0.0
    %242 = vmatprep.subr.mxu0 0.0
    %243 = vmatpush1.msra.mxu0 0.0
    %244 = vmatprep.subr.mxu0 0.0
    %245 = vmatpush1.msra.mxu0 0.0
    %246 = vmatprep.subr.mxu0 0.0
    %247 = vmatpush1.msra.mxu0 0.0
    %248 = vmatprep.subr.mxu0 0.0
    %249 = vmatpush1.msra.mxu0 0.0
    %250 = vmatprep.subr.mxu0 0.0
    %251 = vmatpush1.msra.mxu0 0.0
    %252 = vmatprep.subr.mxu0 0.0
    %253 = vmatpush1.msra.mxu0 0.0
    %254 = vmatprep.subr.mxu0 0.0
    %255 = vmatpush1.msra.mxu0 0.0
    %256 = vmatprep.subr.mxu0 0.0
    %257 = vmatpush1.msra.mxu0 0.0
    %258 = vmatprep.subr.mxu0 0.0
    %259 = vmatpush1.msra.mxu0 0.0
    %260 = vmatprep.subr.mxu0 0.0
    %261 = vmatpush1.msra.mxu0 0.0
    %262 = vmatprep.subr.mxu0 0.0
    %263 = vmatpush1.msra.mxu0 0.0
    %264 = vmatprep.subr.mxu0 0.0
    %265 = vmatpush1.msra.mxu0 0.0
    %266 = vmatprep.subr.mxu0 0.0
    %267 = vmatpush1.msra.mxu0 0.0
    %268 = vmatprep.subr.mxu0 0.0
    %269 = vmatpush1.msra.mxu0 0.0
    %270 = vmatprep.subr.mxu0 0.0
    %271 = vmatpush1.msra.mxu0 0.0
    %272 = vmatprep.subr.mxu0 0.0
    %273 = vmatpush1.msra.mxu0 0.0
    %274 = vmatprep.subr.mxu0 0.0
    %275 = vmatpush1.msra.mxu0 0.0
    %276 = vmatprep.subr.mxu0 0.0
    %277 = vmatpush1.msra.mxu0 0.0
    %278 = vmatprep.subr.mxu0 0.0
    %279 = vmatpush1.msra.mxu0 0.0
    %280 = vmatprep.subr.mxu0 0.0
    %281 = vmatpush1.msra.mxu0 0.0
    %282 = vmatprep.mubr.f32.mxu0 0.0
    %283 = vmatmul.mubr.f32.gmra.mrb[0].mxu0 %v145
    %v284 = vpop.f32.mrb[0].mxu0
    %v285 = vadd.f32 0.0, %v284
    %v286 = vpop.f32.mrb[0].mxu0
    %v287 = vadd.f32 0.0, %v286
    %288 = vdwg.mxu0
    %v290 = vsel %vm143, %v44, 0
    %292 = vmatprep.subr.mxu0 %v72
    %293 = vmatpush1.msra.mxu0 %v71
    %294 = vmatprep.subr.mxu0 %v76
    %295 = vmatpush1.msra.mxu0 %v75
    %296 = vmatprep.subr.mxu0 %v80
    %297 = vmatpush1.msra.mxu0 %v79
    %298 = vmatprep.subr.mxu0 %v84
    %299 = vmatpush1.msra.mxu0 %v83
    %300 = vmatprep.subr.mxu0 %v88
    %301 = vmatpush1.msra.mxu0 %v87
    %302 = vmatprep.subr.mxu0 %v92
    %303 = vmatpush1.msra.mxu0 %v91
    %304 = vmatprep.subr.mxu0 0.0
    %305 = vmatpush1.msra.mxu0 0.0
    %306 = vmatprep.subr.mxu0 0.0
    %307 = vmatpush1.msra.mxu0 0.0
    %308 = vmatprep.subr.mxu0 0.0
    %309 = vmatpush1.msra.mxu0 0.0
    %310 = vmatprep.subr.mxu0 0.0
    %311 = vmatpush1.msra.mxu0 0.0
    %312 = vmatprep.subr.mxu0 0.0
    %313 = vmatpush1.msra.mxu0 0.0
    %314 = vmatprep.subr.mxu0 0.0
    %315 = vmatpush1.msra.mxu0 0.0
    %316 = vmatprep.subr.mxu0 0.0
    %317 = vmatpush1.msra.mxu0 0.0
    %318 = vmatprep.subr.mxu0 0.0
    %319 = vmatpush1.msra.mxu0 0.0
    %320 = vmatprep.subr.mxu0 0.0
    %321 = vmatpush1.msra.mxu0 0.0
    %322 = vmatprep.subr.mxu0 0.0
    %323 = vmatpush1.msra.mxu0 0.0
    %324 = vmatprep.subr.mxu0 0.0
    %325 = vmatpush1.msra.mxu0 0.0
    %326 = vmatprep.subr.mxu0 0.0
    %327 = vmatpush1.msra.mxu0 0.0
    %328 = vmatprep.subr.mxu0 0.0
    %329 = vmatpush1.msra.mxu0 0.0
    %330 = vmatprep.subr.mxu0 0.0
    %331 = vmatpush1.msra.mxu0 0.0
    %332 = vmatprep.subr.mxu0 0.0
    %333 = vmatpush1.msra.mxu0 0.0
    %334 = vmatprep.subr.mxu0 0.0
    %335 = vmatpush1.msra.mxu0 0.0
    %336 = vmatprep.subr.mxu0 0.0
    %337 = vmatpush1.msra.mxu0 0.0
    %338 = vmatprep.subr.mxu0 0.0
    %339 = vmatpush1.msra.mxu0 0.0
    %340 = vmatprep.subr.mxu0 0.0
    %341 = vmatpush1.msra.mxu0 0.0
    %342 = vmatprep.subr.mxu0 0.0
    %343 = vmatpush1.msra.mxu0 0.0
    %344 = vmatprep.subr.mxu0 0.0
    %345 = vmatpush1.msra.mxu0 0.0
    %346 = vmatprep.subr.mxu0 0.0
    %347 = vmatpush1.msra.mxu0 0.0
    %348 = vmatprep.subr.mxu0 0.0
    %349 = vmatpush1.msra.mxu0 0.0
    %350 = vmatprep.subr.mxu0 0.0
    %351 = vmatpush1.msra.mxu0 0.0
    %352 = vmatprep.subr.mxu0 0.0
    %353 = vmatpush1.msra.mxu0 0.0
    %354 = vmatprep.subr.mxu0 0.0
    %355 = vmatpush1.msra.mxu0 0.0
    %356 = vmatprep.mubr.f32.mxu0 0.0
    %357 = vmatmul.mubr.f32.gmra.mrb[0].mxu0 %v290
    %v358 = vpop.f32.mrb[0].mxu0
    %v359 = vadd.f32 0.0, %v358
    %v360 = vpop.f32.mrb[0].mxu0
    %v361 = vadd.f32 0.0, %v360
    %362 = vdwg.mxu0
    %363 = vmatprep.subr.mxu0 %v74
    %364 = vmatpush1.msra.mxu0 %v73
    %365 = vmatprep.subr.mxu0 %v78
    %366 = vmatpush1.msra.mxu0 %v77
    %367 = vmatprep.subr.mxu0 %v82
    %368 = vmatpush1.msra.mxu0 %v81
    %369 = vmatprep.subr.mxu0 %v86
    %370 = vmatpush1.msra.mxu0 %v85
    %371 = vmatprep.subr.mxu0 %v90
    %372 = vmatpush1.msra.mxu0 %v89
    %373 = vmatprep.subr.mxu0 %v94
    %374 = vmatpush1.msra.mxu0 %v93
    %375 = vmatprep.subr.mxu0 0.0
    %376 = vmatpush1.msra.mxu0 0.0
    %377 = vmatprep.subr.mxu0 0.0
    %378 = vmatpush1.msra.mxu0 0.0
    %379 = vmatprep.subr.mxu0 0.0
    %380 = vmatpush1.msra.mxu0 0.0
    %381 = vmatprep.subr.mxu0 0.0
    %382 = vmatpush1.msra.mxu0 0.0
    %383 = vmatprep.subr.mxu0 0.0
    %384 = vmatpush1.msra.mxu0 0.0
    %385 = vmatprep.subr.mxu0 0.0
    %386 = vmatpush1.msra.mxu0 0.0
    %387 = vmatprep.subr.mxu0 0.0
    %388 = vmatpush1.msra.mxu0 0.0
    %389 = vmatprep.subr.mxu0 0.0
    %390 = vmatpush1.msra.mxu0 0.0
    %391 = vmatprep.subr.mxu0 0.0
    %392 = vmatpush1.msra.mxu0 0.0
    %393 = vmatprep.subr.mxu0 0.0
    %394 = vmatpush1.msra.mxu0 0.0
    %395 = vmatprep.subr.mxu0 0.0
    %396 = vmatpush1.msra.mxu0 0.0
    %397 = vmatprep.subr.mxu0 0.0
    %398 = vmatpush1.msra.mxu0 0.0
    %399 = vmatprep.subr.mxu0 0.0
    %400 = vmatpush1.msra.mxu0 0.0
    %401 = vmatprep.subr.mxu0 0.0
    %402 = vmatpush1.msra.mxu0 0.0
    %403 = vmatprep.subr.mxu0 0.0
    %404 = vmatpush1.msra.mxu0 0.0
    %405 = vmatprep.subr.mxu0 0.0
    %406 = vmatpush1.msra.mxu0 0.0
    %407 = vmatprep.subr.mxu0 0.0
    %408 = vmatpush1.msra.mxu0 0.0
    %409 = vmatprep.subr.mxu0 0.0
    %410 = vmatpush1.msra.mxu0 0.0
    %411 = vmatprep.subr.mxu0 0.0
    %412 = vmatpush1.msra.mxu0 0.0
    %413 = vmatprep.subr.mxu0 0.0
    %414 = vmatpush1.msra.mxu0 0.0
    %415 = vmatprep.subr.mxu0 0.0
    %416 = vmatpush1.msra.mxu0 0.0
    %417 = vmatprep.subr.mxu0 0.0
    %418 = vmatpush1.msra.mxu0 0.0
    %419 = vmatprep.subr.mxu0 0.0
    %420 = vmatpush1.msra.mxu0 0.0
    %421 = vmatprep.subr.mxu0 0.0
    %422 = vmatpush1.msra.mxu0 0.0
    %423 = vmatprep.subr.mxu0 0.0
    %424 = vmatpush1.msra.mxu0 0.0
    %425 = vmatprep.subr.mxu0 0.0
    %426 = vmatpush1.msra.mxu0 0.0
    %427 = vmatprep.mubr.f32.mxu0 0.0
    %428 = vmatmul.mubr.f32.gmra.mrb[0].mxu0 %v290
    %v429 = vpop.f32.mrb[0].mxu0
    %v430 = vadd.f32 0.0, %v429
    %v431 = vpop.f32.mrb[0].mxu0
    %v432 = vadd.f32 0.0, %v431
    %433 = vdwg.mxu0
    %v435 = vsel %vm143, %v45, 0
    %437 = vmatprep.subr.mxu0 %v96
    %438 = vmatpush1.msra.mxu0 %v95
    %439 = vmatprep.subr.mxu0 %v100
    %440 = vmatpush1.msra.mxu0 %v99
    %441 = vmatprep.subr.mxu0 %v104
    %442 = vmatpush1.msra.mxu0 %v103
    %443 = vmatprep.subr.mxu0 %v108
    %444 = vmatpush1.msra.mxu0 %v107
    %445 = vmatprep.subr.mxu0 %v112
    %446 = vmatpush1.msra.mxu0 %v111
    %447 = vmatprep.subr.mxu0 %v116
    %448 = vmatpush1.msra.mxu0 %v115
    %449 = vmatprep.subr.mxu0 0.0
    %450 = vmatpush1.msra.mxu0 0.0
    %451 = vmatprep.subr.mxu0 0.0
    %452 = vmatpush1.msra.mxu0 0.0
    %453 = vmatprep.subr.mxu0 0.0
    %454 = vmatpush1.msra.mxu0 0.0
    %455 = vmatprep.subr.mxu0 0.0
    %456 = vmatpush1.msra.mxu0 0.0
    %457 = vmatprep.subr.mxu0 0.0
    %458 = vmatpush1.msra.mxu0 0.0
    %459 = vmatprep.subr.mxu0 0.0
    %460 = vmatpush1.msra.mxu0 0.0
    %461 = vmatprep.subr.mxu0 0.0
    %462 = vmatpush1.msra.mxu0 0.0
    %463 = vmatprep.subr.mxu0 0.0
    %464 = vmatpush1.msra.mxu0 0.0
    %465 = vmatprep.subr.mxu0 0.0
    %466 = vmatpush1.msra.mxu0 0.0
    %467 = vmatprep.subr.mxu0 0.0
    %468 = vmatpush1.msra.mxu0 0.0
    %469 = vmatprep.subr.mxu0 0.0
    %470 = vmatpush1.msra.mxu0 0.0
    %471 = vmatprep.subr.mxu0 0.0
    %472 = vmatpush1.msra.mxu0 0.0
    %473 = vmatprep.subr.mxu0 0.0
    %474 = vmatpush1.msra.mxu0 0.0
    %475 = vmatprep.subr.mxu0 0.0
    %476 = vmatpush1.msra.mxu0 0.0
    %477 = vmatprep.subr.mxu0 0.0
    %478 = vmatpush1.msra.mxu0 0.0
    %479 = vmatprep.subr.mxu0 0.0
    %480 = vmatpush1.msra.mxu0 0.0
    %481 = vmatprep.subr.mxu0 0.0
    %482 = vmatpush1.msra.mxu0 0.0
    %483 = vmatprep.subr.mxu0 0.0
    %484 = vmatpush1.msra.mxu0 0.0
    %485 = vmatprep.subr.mxu0 0.0
    %486 = vmatpush1.msra.mxu0 0.0
    %487 = vmatprep.subr.mxu0 0.0
    %488 = vmatpush1.msra.mxu0 0.0
    %489 = vmatprep.subr.mxu0 0.0
    %490 = vmatpush1.msra.mxu0 0.0
    %491 = vmatprep.subr.mxu0 0.0
    %492 = vmatpush1.msra.mxu0 0.0
    %493 = vmatprep.subr.mxu0 0.0
    %494 = vmatpush1.msra.mxu0 0.0
    %495 = vmatprep.subr.mxu0 0.0
    %496 = vmatpush1.msra.mxu0 0.0
    %497 = vmatprep.subr.mxu0 0.0
    %498 = vmatpush1.msra.mxu0 0.0
    %499 = vmatprep.subr.mxu0 0.0
    %500 = vmatpush1.msra.mxu0 0.0
    %501 = vmatprep.mubr.f32.mxu0 0.0
    %502 = vmatmul.mubr.f32.gmra.mrb[0].mxu0 %v435
    %v503 = vpop.f32.mrb[0].mxu0
    %v504 = vadd.f32 0.0, %v503
    %v505 = vpop.f32.mrb[0].mxu0
    %v506 = vadd.f32 0.0, %v505
    %507 = vdwg.mxu0
    %508 = vmatprep.subr.mxu0 %v98
    %509 = vmatpush1.msra.mxu0 %v97
    %510 = vmatprep.subr.mxu0 %v102
    %511 = vmatpush1.msra.mxu0 %v101
    %512 = vmatprep.subr.mxu0 %v106
    %513 = vmatpush1.msra.mxu0 %v105
    %514 = vmatprep.subr.mxu0 %v110
    %515 = vmatpush1.msra.mxu0 %v109
    %516 = vmatprep.subr.mxu0 %v114
    %517 = vmatpush1.msra.mxu0 %v113
    %518 = vmatprep.subr.mxu0 %v118
    %519 = vmatpush1.msra.mxu0 %v117
    %520 = vmatprep.subr.mxu0 0.0
    %521 = vmatpush1.msra.mxu0 0.0
    %522 = vmatprep.subr.mxu0 0.0
    %523 = vmatpush1.msra.mxu0 0.0
    %524 = vmatprep.subr.mxu0 0.0
    %525 = vmatpush1.msra.mxu0 0.0
    %526 = vmatprep.subr.mxu0 0.0
    %527 = vmatpush1.msra.mxu0 0.0
    %528 = vmatprep.subr.mxu0 0.0
    %529 = vmatpush1.msra.mxu0 0.0
    %530 = vmatprep.subr.mxu0 0.0
    %531 = vmatpush1.msra.mxu0 0.0
    %532 = vmatprep.subr.mxu0 0.0
    %533 = vmatpush1.msra.mxu0 0.0
    %534 = vmatprep.subr.mxu0 0.0
    %535 = vmatpush1.msra.mxu0 0.0
    %536 = vmatprep.subr.mxu0 0.0
    %537 = vmatpush1.msra.mxu0 0.0
    %538 = vmatprep.subr.mxu0 0.0
    %539 = vmatpush1.msra.mxu0 0.0
    %540 = vmatprep.subr.mxu0 0.0
    %541 = vmatpush1.msra.mxu0 0.0
    %542 = vmatprep.subr.mxu0 0.0
    %543 = vmatpush1.msra.mxu0 0.0
    %544 = vmatprep.subr.mxu0 0.0
    %545 = vmatpush1.msra.mxu0 0.0
    %546 = vmatprep.subr.mxu0 0.0
    %547 = vmatpush1.msra.mxu0 0.0
    %548 = vmatprep.subr.mxu0 0.0
    %549 = vmatpush1.msra.mxu0 0.0
    %550 = vmatprep.subr.mxu0 0.0
    %551 = vmatpush1.msra.mxu0 0.0
    %552 = vmatprep.subr.mxu0 0.0
    %553 = vmatpush1.msra.mxu0 0.0
    %554 = vmatprep.subr.mxu0 0.0
    %555 = vmatpush1.msra.mxu0 0.0
    %556 = vmatprep.subr.mxu0 0.0
    %557 = vmatpush1.msra.mxu0 0.0
    %558 = vmatprep.subr.mxu0 0.0
    %559 = vmatpush1.msra.mxu0 0.0
    %560 = vmatprep.subr.mxu0 0.0
    %561 = vmatpush1.msra.mxu0 0.0
    %562 = vmatprep.subr.mxu0 0.0
    %563 = vmatpush1.msra.mxu0 0.0
    %564 = vmatprep.subr.mxu0 0.0
    %565 = vmatpush1.msra.mxu0 0.0
    %566 = vmatprep.subr.mxu0 0.0
    %567 = vmatpush1.msra.mxu0 0.0
    %568 = vmatprep.subr.mxu0 0.0
    %569 = vmatpush1.msra.mxu0 0.0
    %570 = vmatprep.subr.mxu0 0.0
    %571 = vmatpush1.msra.mxu0 0.0
    %572 = vmatprep.mubr.f32.mxu0 0.0
    %573 = vmatmul.mubr.f32.gmra.mrb[0].mxu0 %v435
    %v574 = vpop.f32.mrb[0].mxu0
    %v575 = vadd.f32 0.0, %v574
    %v576 = vpop.f32.mrb[0].mxu0
    %v577 = vadd.f32 0.0, %v576
    %578 = vdwg.mxu0
    %v580 = vsel %vm143, %v46, 0
    %582 = vmatprep.subr.mxu0 %v120
    %583 = vmatpush1.msra.mxu0 %v119
    %584 = vmatprep.subr.mxu0 %v124
    %585 = vmatpush1.msra.mxu0 %v123
    %586 = vmatprep.subr.mxu0 %v128
    %587 = vmatpush1.msra.mxu0 %v127
    %588 = vmatprep.subr.mxu0 %v132
    %589 = vmatpush1.msra.mxu0 %v131
    %590 = vmatprep.subr.mxu0 %v136
    %591 = vmatpush1.msra.mxu0 %v135
    %592 = vmatprep.subr.mxu0 %v140
    %593 = vmatpush1.msra.mxu0 %v139
    %594 = vmatprep.subr.mxu0 0.0
    %595 = vmatpush1.msra.mxu0 0.0
    %596 = vmatprep.subr.mxu0 0.0
    %597 = vmatpush1.msra.mxu0 0.0
    %598 = vmatprep.subr.mxu0 0.0
    %599 = vmatpush1.msra.mxu0 0.0
    %600 = vmatprep.subr.mxu0 0.0
    %601 = vmatpush1.msra.mxu0 0.0
    %602 = vmatprep.subr.mxu0 0.0
    %603 = vmatpush1.msra.mxu0 0.0
    %604 = vmatprep.subr.mxu0 0.0
    %605 = vmatpush1.msra.mxu0 0.0
    %606 = vmatprep.subr.mxu0 0.0
    %607 = vmatpush1.msra.mxu0 0.0
    %608 = vmatprep.subr.mxu0 0.0
    %609 = vmatpush1.msra.mxu0 0.0
    %610 = vmatprep.subr.mxu0 0.0
    %611 = vmatpush1.msra.mxu0 0.0
    %612 = vmatprep.subr.mxu0 0.0
    %613 = vmatpush1.msra.mxu0 0.0
    %614 = vmatprep.subr.mxu0 0.0
    %615 = vmatpush1.msra.mxu0 0.0
    %616 = vmatprep.subr.mxu0 0.0
    %617 = vmatpush1.msra.mxu0 0.0
    %618 = vmatprep.subr.mxu0 0.0
    %619 = vmatpush1.msra.mxu0 0.0
    %620 = vmatprep.subr.mxu0 0.0
    %621 = vmatpush1.msra.mxu0 0.0
    %622 = vmatprep.subr.mxu0 0.0
    %623 = vmatpush1.msra.mxu0 0.0
    %624 = vmatprep.subr.mxu0 0.0
    %625 = vmatpush1.msra.mxu0 0.0
    %626 = vmatprep.subr.mxu0 0.0
    %627 = vmatpush1.msra.mxu0 0.0
    %628 = vmatprep.subr.mxu0 0.0
    %629 = vmatpush1.msra.mxu0 0.0
    %630 = vmatprep.subr.mxu0 0.0
    %631 = vmatpush1.msra.mxu0 0.0
    %632 = vmatprep.subr.mxu0 0.0
    %633 = vmatpush1.msra.mxu0 0.0
    %634 = vmatprep.subr.mxu0 0.0
    %635 = vmatpush1.msra.mxu0 0.0
    %636 = vmatprep.subr.mxu0 0.0
    %637 = vmatpush1.msra.mxu0 0.0
    %638 = vmatprep.subr.mxu0 0.0
    %639 = vmatpush1.msra.mxu0 0.0
    %640 = vmatprep.subr.mxu0 0.0
    %641 = vmatpush1.msra.mxu0 0.0
    %642 = vmatprep.subr.mxu0 0.0
    %643 = vmatpush1.msra.mxu0 0.0
    %644 = vmatprep.subr.mxu0 0.0
    %645 = vmatpush1.msra.mxu0 0.0
    %646 = vmatprep.mubr.f32.mxu0 0.0
    %647 = vmatmul.mubr.f32.gmra.mrb[0].mxu0 %v580
    %v648 = vpop.f32.mrb[0].mxu0
    %v649 = vadd.f32 0.0, %v648
    %v650 = vpop.f32.mrb[0].mxu0
    %v651 = vadd.f32 0.0, %v650
    %652 = vdwg.mxu0
    %653 = vmatprep.subr.mxu0 %v122
    %654 = vmatpush1.msra.mxu0 %v121
    %655 = vmatprep.subr.mxu0 %v126
    %656 = vmatpush1.msra.mxu0 %v125
    %657 = vmatprep.subr.mxu0 %v130
    %658 = vmatpush1.msra.mxu0 %v129
    %659 = vmatprep.subr.mxu0 %v134
    %660 = vmatpush1.msra.mxu0 %v133
    %661 = vmatprep.subr.mxu0 %v138
    %662 = vmatpush1.msra.mxu0 %v137
    %663 = vmatprep.subr.mxu0 %v142
    %664 = vmatpush1.msra.mxu0 %v141
    %665 = vmatprep.subr.mxu0 0.0
    %666 = vmatpush1.msra.mxu0 0.0
    %667 = vmatprep.subr.mxu0 0.0
    %668 = vmatpush1.msra.mxu0 0.0
    %669 = vmatprep.subr.mxu0 0.0
    %670 = vmatpush1.msra.mxu0 0.0
    %671 = vmatprep.subr.mxu0 0.0
    %672 = vmatpush1.msra.mxu0 0.0
    %673 = vmatprep.subr.mxu0 0.0
    %674 = vmatpush1.msra.mxu0 0.0
    %675 = vmatprep.subr.mxu0 0.0
    %676 = vmatpush1.msra.mxu0 0.0
    %677 = vmatprep.subr.mxu0 0.0
    %678 = vmatpush1.msra.mxu0 0.0
    %679 = vmatprep.subr.mxu0 0.0
    %680 = vmatpush1.msra.mxu0 0.0
    %681 = vmatprep.subr.mxu0 0.0
    %682 = vmatpush1.msra.mxu0 0.0
    %683 = vmatprep.subr.mxu0 0.0
    %684 = vmatpush1.msra.mxu0 0.0
    %685 = vmatprep.subr.mxu0 0.0
    %686 = vmatpush1.msra.mxu0 0.0
    %687 = vmatprep.subr.mxu0 0.0
    %688 = vmatpush1.msra.mxu0 0.0
    %689 = vmatprep.subr.mxu0 0.0
    %690 = vmatpush1.msra.mxu0 0.0
    %691 = vmatprep.subr.mxu0 0.0
    %692 = vmatpush1.msra.mxu0 0.0
    %693 = vmatprep.subr.mxu0 0.0
    %694 = vmatpush1.msra.mxu0 0.0
    %695 = vmatprep.subr.mxu0 0.0
    %696 = vmatpush1.msra.mxu0 0.0
    %697 = vmatprep.subr.mxu0 0.0
    %698 = vmatpush1.msra.mxu0 0.0
    %699 = vmatprep.subr.mxu0 0.0
    %700 = vmatpush1.msra.mxu0 0.0
    %701 = vmatprep.subr.mxu0 0.0
    %702 = vmatpush1.msra.mxu0 0.0
    %703 = vmatprep.subr.mxu0 0.0
    %704 = vmatpush1.msra.mxu0 0.0
    %705 = vmatprep.subr.mxu0 0.0
    %706 = vmatpush1.msra.mxu0 0.0
    %707 = vmatprep.subr.mxu0 0.0
    %708 = vmatpush1.msra.mxu0 0.0
    %709 = vmatprep.subr.mxu0 0.0
    %710 = vmatpush1.msra.mxu0 0.0
    %711 = vmatprep.subr.mxu0 0.0
    %712 = vmatpush1.msra.mxu0 0.0
    %713 = vmatprep.subr.mxu0 0.0
    %714 = vmatpush1.msra.mxu0 0.0
    %715 = vmatprep.subr.mxu0 0.0
    %716 = vmatpush1.msra.mxu0 0.0
    %717 = vmatprep.mubr.f32.mxu0 0.0
    %718 = vmatmul.mubr.f32.gmra.mrb[0].mxu0 %v580
    %v719 = vpop.f32.mrb[0].mxu0
    %v720 = vadd.f32 0.0, %v719
    %v721 = vpop.f32.mrb[0].mxu0
    %v722 = vadd.f32 0.0, %v721
    %723 = vdwg.mxu0
    %v724 = vxor.u32 %v214, 2147483648
    %v725 = vxor.u32 %v216, 2147483648
    %v726 = vxor.u32 %v285, 2147483648
    %v727 = vxor.u32 %v359, 2147483648
    %v728 = vxor.u32 %v361, 2147483648
    %v729 = vxor.u32 %v430, 2147483648
    %v730 = vxor.u32 %v504, 2147483648
    %v731 = vxor.u32 %v506, 2147483648
    %v732 = vxor.u32 %v575, 2147483648
    %v733 = vxor.u32 %v649, 2147483648
    %v734 = vxor.u32 %v651, 2147483648
    %v735 = vxor.u32 %v720, 2147483648
    %v736 = vmul.f32 %v724, 1.442695
    %v737 = vpow.pop %v736
    %v738 = vmul.f32 %v725, 1.442695
    %v739 = vpow.pop %v738
    %v740 = vmul.f32 %v726, 1.442695
    %v741 = vpow.pop %v740
    %v742 = vmul.f32 %v727, 1.442695
    %v743 = vpow.pop %v742
    %v744 = vmul.f32 %v728, 1.442695
    %v745 = vpow.pop %v744
    %v746 = vmul.f32 %v729, 1.442695
    %v747 = vpow.pop %v746
    %v748 = vmul.f32 %v730, 1.442695
    %v749 = vpow.pop %v748
    %v750 = vmul.f32 %v731, 1.442695
    %v751 = vpow.pop %v750
    %v752 = vmul.f32 %v732, 1.442695
    %v753 = vpow.pop %v752
    %v754 = vmul.f32 %v733, 1.442695
    %v755 = vpow.pop %v754
    %v756 = vmul.f32 %v734, 1.442695
    %v757 = vpow.pop %v756
    %v758 = vmul.f32 %v735, 1.442695
    %v759 = vpow.pop %v758
    %v760 = vadd.f32 %v737, 1.0
    %v761 = vadd.f32 %v739, 1.0
    %v762 = vadd.f32 %v741, 1.0
    %v763 = vadd.f32 %v743, 1.0
    %v764 = vadd.f32 %v745, 1.0
    %v765 = vadd.f32 %v747, 1.0
    %v766 = vadd.f32 %v749, 1.0
    %v767 = vadd.f32 %v751, 1.0
    %v768 = vadd.f32 %v753, 1.0
    %v769 = vadd.f32 %v755, 1.0
    %v770 = vadd.f32 %v757, 1.0
    %v771 = vadd.f32 %v759, 1.0
    %v772 = vrcp.pop %v760
    %v773 = vmul.f32 1.0, %v772
    %v774 = vrcp.pop %v761
    %v775 = vmul.f32 1.0, %v774
    %v776 = vrcp.pop %v762
    %v777 = vmul.f32 1.0, %v776
    %v778 = vrcp.pop %v763
    %v779 = vmul.f32 1.0, %v778
    %v780 = vrcp.pop %v764
    %v781 = vmul.f32 1.0, %v780
    %v782 = vrcp.pop %v765
    %v783 = vmul.f32 1.0, %v782
    %v784 = vrcp.pop %v766
    %v785 = vmul.f32 1.0, %v784
    %v786 = vrcp.pop %v767
    %v787 = vmul.f32 1.0, %v786
    %v788 = vrcp.pop %v768
    %v789 = vmul.f32 1.0, %v788
    %v790 = vrcp.pop %v769
    %v791 = vmul.f32 1.0, %v790
    %v792 = vrcp.pop %v770
    %v793 = vmul.f32 1.0, %v792
    %v794 = vrcp.pop %v771
    %v795 = vmul.f32 1.0, %v794
    %v796 = vtanh.pop %v287
    %v797 = vtanh.pop %v432
    %v798 = vtanh.pop %v577
    %v799 = vtanh.pop %v722
    %v800 = vmul.f32 %v775, 0.0
    %v801 = vmul.f32 %v781, 0.0
    %v802 = vmul.f32 %v787, 0.0
    %v803 = vmul.f32 %v793, 0.0
    %v804 = vmul.f32 %v773, %v796
    %v805 = vmul.f32 %v779, %v797
    %v806 = vmul.f32 %v785, %v798
    %v807 = vmul.f32 %v791, %v799
    %v808 = vadd.f32 %v800, %v804
    %v809 = vadd.f32 %v801, %v805
    %v810 = vadd.f32 %v802, %v806
    %v811 = vadd.f32 %v803, %v807
    %v812 = vtanh.pop %v808
    %v813 = vtanh.pop %v809
    %v814 = vtanh.pop %v810
    %v815 = vtanh.pop %v811
    %v816 = vmul.f32 %v777, %v812
    %v817 = vmul.f32 %v783, %v813
    %v818 = vmul.f32 %v789, %v814
    %v819 = vmul.f32 %v795, %v815
    %v820 = vsel 1, %v808, 0.0
    %v821 = vsel 0, %v809, 0.0
    %v822 = vsel 0, %v810, 0.0
    %v823 = vsel 0, %v811, 0.0
    %v824 = vld [vmem:[#allocation2] sm:$0x3]
    %v825 = vld [vmem:[#allocation2 + $0x2] sm:$0x3]
    %v826 = vld [vmem:[#allocation2 + $0x4] sm:$0x3]
    %v827 = vld [vmem:[#allocation2 + $0x6] sm:$0x3]
    %v828 = vsel 1, %v816, %v824
    %v829 = vsel 0, %v817, %v825
    %v830 = vsel 0, %v818, %v826
    %v831 = vsel 0, %v819, %v827
    %vm832 = vcmask 156672
    %833 = vst.msk [vmem:[#allocation2] sm:$0x3] %vm832, %v828
    %834 = vst.msk [vmem:[#allocation2 + $0x2] sm:$0x3] %vm832, %v829
    %835 = vst.msk [vmem:[#allocation2 + $0x4] sm:$0x3] %vm832, %v830
    %836 = vst.msk [vmem:[#allocation2 + $0x6] sm:$0x3] %vm832, %v831
    %840 = vrot.lane.b32.xlu0 %v816, 20
    %v841 = vpop.permute.xlu0 %840
    %842 = vrot.lane.b32.xlu0 %v817, 20
    %v843 = vpop.permute.xlu0 %842
    %844 = vrot.lane.b32.xlu0 %v818, 20
    %v845 = vpop.permute.xlu0 %844
    %s849 = scalar_lea.vmem [#allocation2], 2
    %850 = vst.msk [vmem:[%s849] sm:$0x3] %vm41, %v841
    %851 = vst.msk [vmem:[%s849 + $0x2] sm:$0x3] %vm41, %v843
    %852 = vst.msk [vmem:[%s849 + $0x4] sm:$0x3] %vm41, %v845
    %s853 = scalar_lea.vmem %s0, 2
    %v854 = vld [vmem:[%s853] sm:$0x3]
    %855 = vst.msk [vmem:[#allocation2] sm:$0x3] %vm41, %v854
    %v856 = vld [vmem:[#allocation2] sm:$0x3]
    %v857 = vld [vmem:[#allocation2 + $0x2] sm:$0x3]
    %v858 = vld [vmem:[#allocation2 + $0x4] sm:$0x3]
    %v859 = vld [vmem:[#allocation2 + $0x6] sm:$0x3]
    %v860 = vld [vmem:[#allocation4] sm:$0xff]
    %v861 = vld [vmem:[#allocation4 + $0x8] sm:$0xff]
    %v862 = vld [vmem:[#allocation4 + $0x10] sm:$0xff]
    %v863 = vld [vmem:[#allocation4 + $0x18] sm:$0xff]
    %v864 = vld [vmem:[#allocation4 + $0x20] sm:$0xff]
    %v865 = vld [vmem:[#allocation4 + $0x28] sm:$0xff]
    %v866 = vld [vmem:[#allocation4 + $0x30] sm:$0xff]
    %v867 = vld [vmem:[#allocation4 + $0x38] sm:$0xff]
    %v868 = vld [vmem:[#allocation4 + $0x40] sm:$0xff]
    %v869 = vld [vmem:[#allocation4 + $0x48] sm:$0xff]
    %v870 = vld [vmem:[#allocation4 + $0x50] sm:$0xff]
    %v871 = vld [vmem:[#allocation4 + $0x58] sm:$0xff]
    %v872 = vld [vmem:[#allocation4 + $0x60] sm:$0xff]
    %v873 = vld [vmem:[#allocation4 + $0x68] sm:$0xff]
    %v874 = vld [vmem:[#allocation4 + $0x70] sm:$0xff]
    %v875 = vld [vmem:[#allocation4 + $0x78] sm:$0xff]
    %v876 = vld [vmem:[#allocation4 + $0x80] sm:$0xff]
    %v877 = vld [vmem:[#allocation4 + $0x88] sm:$0xff]
    %v878 = vld [vmem:[#allocation4 + $0x90] sm:$0xff]
    %v879 = vld [vmem:[#allocation4 + $0x98] sm:$0xff]
    %v880 = vld [vmem:[#allocation4 + $0xa0] sm:$0xff]
    %v881 = vld [vmem:[#allocation4 + $0xa8] sm:$0xff]
    %v882 = vld [vmem:[#allocation4 + $0xb0] sm:$0xff]
    %v883 = vld [vmem:[#allocation4 + $0xb8] sm:$0xff]
    %v884 = vld [vmem:[#allocation4 + $0xc0] sm:$0xff]
    %v885 = vld [vmem:[#allocation4 + $0xc8] sm:$0xff]
    %v886 = vld [vmem:[#allocation4 + $0xd0] sm:$0xff]
    %v887 = vld [vmem:[#allocation4 + $0xd8] sm:$0xff]
    %v888 = vld [vmem:[#allocation4 + $0xe0] sm:$0xff]
    %v889 = vld [vmem:[#allocation4 + $0xe8] sm:$0xff]
    %v890 = vld [vmem:[#allocation4 + $0xf0] sm:$0xff]
    %v891 = vld [vmem:[#allocation4 + $0xf8] sm:$0xff]
    %v892 = vld [vmem:[#allocation4 + $0x100] sm:$0xff]
    %v893 = vld [vmem:[#allocation4 + $0x108] sm:$0xff]
    %v894 = vld [vmem:[#allocation4 + $0x110] sm:$0xff]
    %v895 = vld [vmem:[#allocation4 + $0x118] sm:$0xff]
    %v896 = vld [vmem:[#allocation4 + $0x120] sm:$0xff]
    %v897 = vld [vmem:[#allocation4 + $0x128] sm:$0xff]
    %v898 = vld [vmem:[#allocation4 + $0x130] sm:$0xff]
    %v899 = vld [vmem:[#allocation4 + $0x138] sm:$0xff]
    %v900 = vld [vmem:[#allocation4 + $0x140] sm:$0xff]
    %v901 = vld [vmem:[#allocation4 + $0x148] sm:$0xff]
    %v902 = vld [vmem:[#allocation4 + $0x150] sm:$0xff]
    %v903 = vld [vmem:[#allocation4 + $0x158] sm:$0xff]
    %v904 = vld [vmem:[#allocation4 + $0x160] sm:$0xff]
    %v905 = vld [vmem:[#allocation4 + $0x168] sm:$0xff]
    %v906 = vld [vmem:[#allocation4 + $0x170] sm:$0xff]
    %v907 = vld [vmem:[#allocation4 + $0x178] sm:$0xff]
    %v908 = vld [vmem:[#allocation4 + $0x180] sm:$0xff]
    %v909 = vld [vmem:[#allocation4 + $0x188] sm:$0xff]
    %v910 = vld [vmem:[#allocation4 + $0x190] sm:$0xff]
    %v911 = vld [vmem:[#allocation4 + $0x198] sm:$0xff]
    %v912 = vld [vmem:[#allocation4 + $0x1a0] sm:$0xff]
    %v913 = vld [vmem:[#allocation4 + $0x1a8] sm:$0xff]
    %v914 = vld [vmem:[#allocation4 + $0x1b0] sm:$0xff]
    %v915 = vld [vmem:[#allocation4 + $0x1b8] sm:$0xff]
    %v916 = vld [vmem:[#allocation4 + $0x1c0] sm:$0xff]
    %v917 = vld [vmem:[#allocation4 + $0x1c8] sm:$0xff]
    %v918 = vld [vmem:[#allocation4 + $0x1d0] sm:$0xff]
    %v919 = vld [vmem:[#allocation4 + $0x1d8] sm:$0xff]
    %v920 = vld [vmem:[#allocation4 + $0x1e0] sm:$0xff]
    %v921 = vld [vmem:[#allocation4 + $0x1e8] sm:$0xff]
    %v922 = vld [vmem:[#allocation4 + $0x1f0] sm:$0xff]
    %v923 = vld [vmem:[#allocation4 + $0x1f8] sm:$0xff]
    %v924 = vld [vmem:[#allocation4 + $0x200] sm:$0xff]
    %v925 = vld [vmem:[#allocation4 + $0x208] sm:$0xff]
    %v926 = vld [vmem:[#allocation4 + $0x210] sm:$0xff]
    %v927 = vld [vmem:[#allocation4 + $0x218] sm:$0xff]
    %v928 = vld [vmem:[#allocation4 + $0x220] sm:$0xff]
    %v929 = vld [vmem:[#allocation4 + $0x228] sm:$0xff]
    %v930 = vld [vmem:[#allocation4 + $0x230] sm:$0xff]
    %v931 = vld [vmem:[#allocation4 + $0x238] sm:$0xff]
    %v932 = vld [vmem:[#allocation4 + $0x240] sm:$0xff]
    %v933 = vld [vmem:[#allocation4 + $0x248] sm:$0xff]
    %v934 = vld [vmem:[#allocation4 + $0x250] sm:$0xff]
    %v935 = vld [vmem:[#allocation4 + $0x258] sm:$0xff]
    %v936 = vld [vmem:[#allocation4 + $0x260] sm:$0xff]
    %v937 = vld [vmem:[#allocation4 + $0x268] sm:$0xff]
    %v938 = vld [vmem:[#allocation4 + $0x270] sm:$0xff]
    %v939 = vld [vmem:[#allocation4 + $0x278] sm:$0xff]
    %v940 = vld [vmem:[#allocation4 + $0x280] sm:$0xff]
    %v941 = vld [vmem:[#allocation4 + $0x288] sm:$0xff]
    %v942 = vld [vmem:[#allocation4 + $0x290] sm:$0xff]
    %v943 = vld [vmem:[#allocation4 + $0x298] sm:$0xff]
    %v944 = vld [vmem:[#allocation4 + $0x2a0] sm:$0xff]
    %v945 = vld [vmem:[#allocation4 + $0x2a8] sm:$0xff]
    %v946 = vld [vmem:[#allocation4 + $0x2b0] sm:$0xff]
    %v947 = vld [vmem:[#allocation4 + $0x2b8] sm:$0xff]
    %v948 = vld [vmem:[#allocation4 + $0x2c0] sm:$0xff]
    %v949 = vld [vmem:[#allocation4 + $0x2c8] sm:$0xff]
    %v950 = vld [vmem:[#allocation4 + $0x2d0] sm:$0xff]
    %v951 = vld [vmem:[#allocation4 + $0x2d8] sm:$0xff]
    %v952 = vld [vmem:[#allocation4 + $0x2e0] sm:$0xff]
    %v953 = vld [vmem:[#allocation4 + $0x2e8] sm:$0xff]
    %v954 = vld [vmem:[#allocation4 + $0x2f0] sm:$0xff]
    %v955 = vld [vmem:[#allocation4 + $0x2f8] sm:$0xff]
    %v957 = vsel %vm143, %v856, 0
    %959 = vmatprep.subr.mxu0 %v861
    %960 = vmatpush1.msra.mxu0 %v860
    %961 = vmatprep.subr.mxu0 %v865
    %962 = vmatpush1.msra.mxu0 %v864
    %963 = vmatprep.subr.mxu0 %v869
    %964 = vmatpush1.msra.mxu0 %v868
    %965 = vmatprep.subr.mxu0 %v873
    %966 = vmatpush1.msra.mxu0 %v872
    %967 = vmatprep.subr.mxu0 %v877
    %968 = vmatpush1.msra.mxu0 %v876
    %969 = vmatprep.subr.mxu0 %v881
    %970 = vmatpush1.msra.mxu0 %v880
    %971 = vmatprep.subr.mxu0 0.0
    %972 = vmatpush1.msra.mxu0 0.0
    %973 = vmatprep.subr.mxu0 0.0
    %974 = vmatpush1.msra.mxu0 0.0
    %975 = vmatprep.subr.mxu0 0.0
    %976 = vmatpush1.msra.mxu0 0.0
    %977 = vmatprep.subr.mxu0 0.0
    %978 = vmatpush1.msra.mxu0 0.0
    %979 = vmatprep.subr.mxu0 0.0
    %980 = vmatpush1.msra.mxu0 0.0
    %981 = vmatprep.subr.mxu0 0.0
    %982 = vmatpush1.msra.mxu0 0.0
    %983 = vmatprep.subr.mxu0 0.0
    %984 = vmatpush1.msra.mxu0 0.0
    %985 = vmatprep.subr.mxu0 0.0
    %986 = vmatpush1.msra.mxu0 0.0
    %987 = vmatprep.subr.mxu0 0.0
    %988 = vmatpush1.msra.mxu0 0.0
    %989 = vmatprep.subr.mxu0 0.0
    %990 = vmatpush1.msra.mxu0 0.0
    %991 = vmatprep.subr.mxu0 0.0
    %992 = vmatpush1.msra.mxu0 0.0
    %993 = vmatprep.subr.mxu0 0.0
    %994 = vmatpush1.msra.mxu0 0.0
    %995 = vmatprep.subr.mxu0 0.0
    %996 = vmatpush1.msra.mxu0 0.0
    %997 = vmatprep.subr.mxu0 0.0
    %998 = vmatpush1.msra.mxu0 0.0
    %999 = vmatprep.subr.mxu0 0.0
    %1000 = vmatpush1.msra.mxu0 0.0
    %1001 = vmatprep.subr.mxu0 0.0
    %1002 = vmatpush1.msra.mxu0 0.0
    %1003 = vmatprep.subr.mxu0 0.0
    %1004 = vmatpush1.msra.mxu0 0.0
    %1005 = vmatprep.subr.mxu0 0.0
    %1006 = vmatpush1.msra.mxu0 0.0
    %1007 = vmatprep.subr.mxu0 0.0
    %1008 = vmatpush1.msra.mxu0 0.0
    %1009 = vmatprep.subr.mxu0 0.0
    %1010 = vmatpush1.msra.mxu0 0.0
    %1011 = vmatprep.subr.mxu0 0.0
    %1012 = vmatpush1.msra.mxu0 0.0
    %1013 = vmatprep.subr.mxu0 0.0
    %1014 = vmatpush1.msra.mxu0 0.0
    %1015 = vmatprep.subr.mxu0 0.0
    %1016 = vmatpush1.msra.mxu0 0.0
    %1017 = vmatprep.subr.mxu0 0.0
    %1018 = vmatpush1.msra.mxu0 0.0
    %1019 = vmatprep.subr.mxu0 0.0
    %1020 = vmatpush1.msra.mxu0 0.0
    %1021 = vmatprep.subr.mxu0 0.0
    %1022 = vmatpush1.msra.mxu0 0.0
    %1023 = vmatprep.mubr.f32.mxu0 0.0
    %1024 = vmatmul.mubr.f32.gmra.mrb[0].mxu0 %v957
    %v1025 = vpop.f32.mrb[0].mxu0
    %v1026 = vadd.f32 0.0, %v1025
    %v1027 = vpop.f32.mrb[0].mxu0
    %v1028 = vadd.f32 0.0, %v1027
    %1029 = vdwg.mxu0
    %1030 = vmatprep.subr.mxu0 %v863
    %1031 = vmatpush1.msra.mxu0 %v862
    %1032 = vmatprep.subr.mxu0 %v867
    %1033 = vmatpush1.msra.mxu0 %v866
    %1034 = vmatprep.subr.mxu0 %v871
    %1035 = vmatpush1.msra.mxu0 %v870
    %1036 = vmatprep.subr.mxu0 %v875
    %1037 = vmatpush1.msra.mxu0 %v874
    %1038 = vmatprep.subr.mxu0 %v879
    %1039 = vmatpush1.msra.mxu0 %v878
    %1040 = vmatprep.subr.mxu0 %v883
    %1041 = vmatpush1.msra.mxu0 %v882
    %1042 = vmatprep.subr.mxu0 0.0
    %1043 = vmatpush1.msra.mxu0 0.0
    %1044 = vmatprep.subr.mxu0 0.0
    %1045 = vmatpush1.msra.mxu0 0.0
    %1046 = vmatprep.subr.mxu0 0.0
    %1047 = vmatpush1.msra.mxu0 0.0
    %1048 = vmatprep.subr.mxu0 0.0
    %1049 = vmatpush1.msra.mxu0 0.0
    %1050 = vmatprep.subr.mxu0 0.0
    %1051 = vmatpush1.msra.mxu0 0.0
    %1052 = vmatprep.subr.mxu0 0.0
    %1053 = vmatpush1.msra.mxu0 0.0
    %1054 = vmatprep.subr.mxu0 0.0
    %1055 = vmatpush1.msra.mxu0 0.0
    %1056 = vmatprep.subr.mxu0 0.0
    %1057 = vmatpush1.msra.mxu0 0.0
    %1058 = vmatprep.subr.mxu0 0.0
    %1059 = vmatpush1.msra.mxu0 0.0
    %1060 = vmatprep.subr.mxu0 0.0
    %1061 = vmatpush1.msra.mxu0 0.0
    %1062 = vmatprep.subr.mxu0 0.0
    %1063 = vmatpush1.msra.mxu0 0.0
    %1064 = vmatprep.subr.mxu0 0.0
    %1065 = vmatpush1.msra.mxu0 0.0
    %1066 = vmatprep.subr.mxu0 0.0
    %1067 = vmatpush1.msra.mxu0 0.0
    %1068 = vmatprep.subr.mxu0 0.0
    %1069 = vmatpush1.msra.mxu0 0.0
    %1070 = vmatprep.subr.mxu0 0.0
    %1071 = vmatpush1.msra.mxu0 0.0
    %1072 = vmatprep.subr.mxu0 0.0
    %1073 = vmatpush1.msra.mxu0 0.0
    %1074 = vmatprep.subr.mxu0 0.0
    %1075 = vmatpush1.msra.mxu0 0.0
    %1076 = vmatprep.subr.mxu0 0.0
    %1077 = vmatpush1.msra.mxu0 0.0
    %1078 = vmatprep.subr.mxu0 0.0
    %1079 = vmatpush1.msra.mxu0 0.0
    %1080 = vmatprep.subr.mxu0 0.0
    %1081 = vmatpush1.msra.mxu0 0.0
    %1082 = vmatprep.subr.mxu0 0.0
    %1083 = vmatpush1.msra.mxu0 0.0
    %1084 = vmatprep.subr.mxu0 0.0
    %1085 = vmatpush1.msra.mxu0 0.0
    %1086 = vmatprep.subr.mxu0 0.0
    %1087 = vmatpush1.msra.mxu0 0.0
    %1088 = vmatprep.subr.mxu0 0.0
    %1089 = vmatpush1.msra.mxu0 0.0
    %1090 = vmatprep.subr.mxu0 0.0
    %1091 = vmatpush1.msra.mxu0 0.0
    %1092 = vmatprep.subr.mxu0 0.0
    %1093 = vmatpush1.msra.mxu0 0.0
    %1094 = vmatprep.mubr.f32.mxu0 0.0
    %1095 = vmatmul.mubr.f32.gmra.mrb[0].mxu0 %v957
    %v1096 = vpop.f32.mrb[0].mxu0
    %v1097 = vadd.f32 0.0, %v1096
    %v1098 = vpop.f32.mrb[0].mxu0
    %v1099 = vadd.f32 0.0, %v1098
    %1100 = vdwg.mxu0
    %v1102 = vsel %vm143, %v857, 0
    %1104 = vmatprep.subr.mxu0 %v885
    %1105 = vmatpush1.msra.mxu0 %v884
    %1106 = vmatprep.subr.mxu0 %v889
    %1107 = vmatpush1.msra.mxu0 %v888
    %1108 = vmatprep.subr.mxu0 %v893
    %1109 = vmatpush1.msra.mxu0 %v892
    %1110 = vmatprep.subr.mxu0 %v897
    %1111 = vmatpush1.msra.mxu0 %v896
    %1112 = vmatprep.subr.mxu0 %v901
    %1113 = vmatpush1.msra.mxu0 %v900
    %1114 = vmatprep.subr.mxu0 %v905
    %1115 = vmatpush1.msra.mxu0 %v904
    %1116 = vmatprep.subr.mxu0 0.0
    %1117 = vmatpush1.msra.mxu0 0.0
    %1118 = vmatprep.subr.mxu0 0.0
    %1119 = vmatpush1.msra.mxu0 0.0
    %1120 = vmatprep.subr.mxu0 0.0
    %1121 = vmatpush1.msra.mxu0 0.0
    %1122 = vmatprep.subr.mxu0 0.0
    %1123 = vmatpush1.msra.mxu0 0.0
    %1124 = vmatprep.subr.mxu0 0.0
    %1125 = vmatpush1.msra.mxu0 0.0
    %1126 = vmatprep.subr.mxu0 0.0
    %1127 = vmatpush1.msra.mxu0 0.0
    %1128 = vmatprep.subr.mxu0 0.0
    %1129 = vmatpush1.msra.mxu0 0.0
    %1130 = vmatprep.subr.mxu0 0.0
    %1131 = vmatpush1.msra.mxu0 0.0
    %1132 = vmatprep.subr.mxu0 0.0
    %1133 = vmatpush1.msra.mxu0 0.0
    %1134 = vmatprep.subr.mxu0 0.0
    %1135 = vmatpush1.msra.mxu0 0.0
    %1136 = vmatprep.subr.mxu0 0.0
    %1137 = vmatpush1.msra.mxu0 0.0
    %1138 = vmatprep.subr.mxu0 0.0
    %1139 = vmatpush1.msra.mxu0 0.0
    %1140 = vmatprep.subr.mxu0 0.0
    %1141 = vmatpush1.msra.mxu0 0.0
    %1142 = vmatprep.subr.mxu0 0.0
    %1143 = vmatpush1.msra.mxu0 0.0
    %1144 = vmatprep.subr.mxu0 0.0
    %1145 = vmatpush1.msra.mxu0 0.0
    %1146 = vmatprep.subr.mxu0 0.0
    %1147 = vmatpush1.msra.mxu0 0.0
    %1148 = vmatprep.subr.mxu0 0.0
    %1149 = vmatpush1.msra.mxu0 0.0
    %1150 = vmatprep.subr.mxu0 0.0
    %1151 = vmatpush1.msra.mxu0 0.0
    %1152 = vmatprep.subr.mxu0 0.0
    %1153 = vmatpush1.msra.mxu0 0.0
    %1154 = vmatprep.subr.mxu0 0.0
    %1155 = vmatpush1.msra.mxu0 0.0
    %1156 = vmatprep.subr.mxu0 0.0
    %1157 = vmatpush1.msra.mxu0 0.0
    %1158 = vmatprep.subr.mxu0 0.0
    %1159 = vmatpush1.msra.mxu0 0.0
    %1160 = vmatprep.subr.mxu0 0.0
    %1161 = vmatpush1.msra.mxu0 0.0
    %1162 = vmatprep.subr.mxu0 0.0
    %1163 = vmatpush1.msra.mxu0 0.0
    %1164 = vmatprep.subr.mxu0 0.0
    %1165 = vmatpush1.msra.mxu0 0.0
    %1166 = vmatprep.subr.mxu0 0.0
    %1167 = vmatpush1.msra.mxu0 0.0
    %1168 = vmatprep.mubr.f32.mxu0 0.0
    %1169 = vmatmul.mubr.f32.gmra.mrb[0].mxu0 %v1102
    %v1170 = vpop.f32.mrb[0].mxu0
    %v1171 = vadd.f32 0.0, %v1170
    %v1172 = vpop.f32.mrb[0].mxu0
    %v1173 = vadd.f32 0.0, %v1172
    %1174 = vdwg.mxu0
    %1175 = vmatprep.subr.mxu0 %v887
    %1176 = vmatpush1.msra.mxu0 %v886
    %1177 = vmatprep.subr.mxu0 %v891
    %1178 = vmatpush1.msra.mxu0 %v890
    %1179 = vmatprep.subr.mxu0 %v895
    %1180 = vmatpush1.msra.mxu0 %v894
    %1181 = vmatprep.subr.mxu0 %v899
    %1182 = vmatpush1.msra.mxu0 %v898
    %1183 = vmatprep.subr.mxu0 %v903
    %1184 = vmatpush1.msra.mxu0 %v902
    %1185 = vmatprep.subr.mxu0 %v907
    %1186 = vmatpush1.msra.mxu0 %v906
    %1187 = vmatprep.subr.mxu0 0.0
    %1188 = vmatpush1.msra.mxu0 0.0
    %1189 = vmatprep.subr.mxu0 0.0
    %1190 = vmatpush1.msra.mxu0 0.0
    %1191 = vmatprep.subr.mxu0 0.0
    %1192 = vmatpush1.msra.mxu0 0.0
    %1193 = vmatprep.subr.mxu0 0.0
    %1194 = vmatpush1.msra.mxu0 0.0
    %1195 = vmatprep.subr.mxu0 0.0
    %1196 = vmatpush1.msra.mxu0 0.0
    %1197 = vmatprep.subr.mxu0 0.0
    %1198 = vmatpush1.msra.mxu0 0.0
    %1199 = vmatprep.subr.mxu0 0.0
    %1200 = vmatpush1.msra.mxu0 0.0
    %1201 = vmatprep.subr.mxu0 0.0
    %1202 = vmatpush1.msra.mxu0 0.0
    %1203 = vmatprep.subr.mxu0 0.0
    %1204 = vmatpush1.msra.mxu0 0.0
    %1205 = vmatprep.subr.mxu0 0.0
    %1206 = vmatpush1.msra.mxu0 0.0
    %1207 = vmatprep.subr.mxu0 0.0
    %1208 = vmatpush1.msra.mxu0 0.0
    %1209 = vmatprep.subr.mxu0 0.0
    %1210 = vmatpush1.msra.mxu0 0.0
    %1211 = vmatprep.subr.mxu0 0.0
    %1212 = vmatpush1.msra.mxu0 0.0
    %1213 = vmatprep.subr.mxu0 0.0
    %1214 = vmatpush1.msra.mxu0 0.0
    %1215 = vmatprep.subr.mxu0 0.0
    %1216 = vmatpush1.msra.mxu0 0.0
    %1217 = vmatprep.subr.mxu0 0.0
    %1218 = vmatpush1.msra.mxu0 0.0
    %1219 = vmatprep.subr.mxu0 0.0
    %1220 = vmatpush1.msra.mxu0 0.0
    %1221 = vmatprep.subr.mxu0 0.0
    %1222 = vmatpush1.msra.mxu0 0.0
    %1223 = vmatprep.subr.mxu0 0.0
    %1224 = vmatpush1.msra.mxu0 0.0
    %1225 = vmatprep.subr.mxu0 0.0
    %1226 = vmatpush1.msra.mxu0 0.0
    %1227 = vmatprep.subr.mxu0 0.0
    %1228 = vmatpush1.msra.mxu0 0.0
    %1229 = vmatprep.subr.mxu0 0.0
    %1230 = vmatpush1.msra.mxu0 0.0
    %1231 = vmatprep.subr.mxu0 0.0
    %1232 = vmatpush1.msra.mxu0 0.0
    %1233 = vmatprep.subr.mxu0 0.0
    %1234 = vmatpush1.msra.mxu0 0.0
    %1235 = vmatprep.subr.mxu0 0.0
    %1236 = vmatpush1.msra.mxu0 0.0
    %1237 = vmatprep.subr.mxu0 0.0
    %1238 = vmatpush1.msra.mxu0 0.0
    %1239 = vmatprep.mubr.f32.mxu0 0.0
    %1240 = vmatmul.mubr.f32.gmra.mrb[0].mxu0 %v1102
    %v1241 = vpop.f32.mrb[0].mxu0
    %v1242 = vadd.f32 0.0, %v1241
    %v1243 = vpop.f32.mrb[0].mxu0
    %v1244 = vadd.f32 0.0, %v1243
    %1245 = vdwg.mxu0
    %v1247 = vsel %vm143, %v858, 0
    %1249 = vmatprep.subr.mxu0 %v909
    %1250 = vmatpush1.msra.mxu0 %v908
    %1251 = vmatprep.subr.mxu0 %v913
    %1252 = vmatpush1.msra.mxu0 %v912
    %1253 = vmatprep.subr.mxu0 %v917
    %1254 = vmatpush1.msra.mxu0 %v916
    %1255 = vmatprep.subr.mxu0 %v921
    %1256 = vmatpush1.msra.mxu0 %v920
    %1257 = vmatprep.subr.mxu0 %v925
    %1258 = vmatpush1.msra.mxu0 %v924
    %1259 = vmatprep.subr.mxu0 %v929
    %1260 = vmatpush1.msra.mxu0 %v928
    %1261 = vmatprep.subr.mxu0 0.0
    %1262 = vmatpush1.msra.mxu0 0.0
    %1263 = vmatprep.subr.mxu0 0.0
    %1264 = vmatpush1.msra.mxu0 0.0
    %1265 = vmatprep.subr.mxu0 0.0
    %1266 = vmatpush1.msra.mxu0 0.0
    %1267 = vmatprep.subr.mxu0 0.0
    %1268 = vmatpush1.msra.mxu0 0.0
    %1269 = vmatprep.subr.mxu0 0.0
    %1270 = vmatpush1.msra.mxu0 0.0
    %1271 = vmatprep.subr.mxu0 0.0
    %1272 = vmatpush1.msra.mxu0 0.0
    %1273 = vmatprep.subr.mxu0 0.0
    %1274 = vmatpush1.msra.mxu0 0.0
    %1275 = vmatprep.subr.mxu0 0.0
    %1276 = vmatpush1.msra.mxu0 0.0
    %1277 = vmatprep.subr.mxu0 0.0
    %1278 = vmatpush1.msra.mxu0 0.0
    %1279 = vmatprep.subr.mxu0 0.0
    %1280 = vmatpush1.msra.mxu0 0.0
    %1281 = vmatprep.subr.mxu0 0.0
    %1282 = vmatpush1.msra.mxu0 0.0
    %1283 = vmatprep.subr.mxu0 0.0
    %1284 = vmatpush1.msra.mxu0 0.0
    %1285 = vmatprep.subr.mxu0 0.0
    %1286 = vmatpush1.msra.mxu0 0.0
    %1287 = vmatprep.subr.mxu0 0.0
    %1288 = vmatpush1.msra.mxu0 0.0
    %1289 = vmatprep.subr.mxu0 0.0
    %1290 = vmatpush1.msra.mxu0 0.0
    %1291 = vmatprep.subr.mxu0 0.0
    %1292 = vmatpush1.msra.mxu0 0.0
    %1293 = vmatprep.subr.mxu0 0.0
    %1294 = vmatpush1.msra.mxu0 0.0
    %1295 = vmatprep.subr.mxu0 0.0
    %1296 = vmatpush1.msra.mxu0 0.0
    %1297 = vmatprep.subr.mxu0 0.0
    %1298 = vmatpush1.msra.mxu0 0.0
    %1299 = vmatprep.subr.mxu0 0.0
    %1300 = vmatpush1.msra.mxu0 0.0
    %1301 = vmatprep.subr.mxu0 0.0
    %1302 = vmatpush1.msra.mxu0 0.0
    %1303 = vmatprep.subr.mxu0 0.0
    %1304 = vmatpush1.msra.mxu0 0.0
    %1305 = vmatprep.subr.mxu0 0.0
    %1306 = vmatpush1.msra.mxu0 0.0
    %1307 = vmatprep.subr.mxu0 0.0
    %1308 = vmatpush1.msra.mxu0 0.0
    %1309 = vmatprep.subr.mxu0 0.0
    %1310 = vmatpush1.msra.mxu0 0.0
    %1311 = vmatprep.subr.mxu0 0.0
    %1312 = vmatpush1.msra.mxu0 0.0
    %1313 = vmatprep.mubr.f32.mxu0 0.0
    %1314 = vmatmul.mubr.f32.gmra.mrb[0].mxu0 %v1247
    %v1315 = vpop.f32.mrb[0].mxu0
    %v1316 = vadd.f32 0.0, %v1315
    %v1317 = vpop.f32.mrb[0].mxu0
    %v1318 = vadd.f32 0.0, %v1317
    %1319 = vdwg.mxu0
    %1320 = vmatprep.subr.mxu0 %v911
    %1321 = vmatpush1.msra.mxu0 %v910
    %1322 = vmatprep.subr.mxu0 %v915
    %1323 = vmatpush1.msra.mxu0 %v914
    %1324 = vmatprep.subr.mxu0 %v919
    %1325 = vmatpush1.msra.mxu0 %v918
    %1326 = vmatprep.subr.mxu0 %v923
    %1327 = vmatpush1.msra.mxu0 %v922
    %1328 = vmatprep.subr.mxu0 %v927
    %1329 = vmatpush1.msra.mxu0 %v926
    %1330 = vmatprep.subr.mxu0 %v931
    %1331 = vmatpush1.msra.mxu0 %v930
    %1332 = vmatprep.subr.mxu0 0.0
    %1333 = vmatpush1.msra.mxu0 0.0
    %1334 = vmatprep.subr.mxu0 0.0
    %1335 = vmatpush1.msra.mxu0 0.0
    %1336 = vmatprep.subr.mxu0 0.0
    %1337 = vmatpush1.msra.mxu0 0.0
    %1338 = vmatprep.subr.mxu0 0.0
    %1339 = vmatpush1.msra.mxu0 0.0
    %1340 = vmatprep.subr.mxu0 0.0
    %1341 = vmatpush1.msra.mxu0 0.0
    %1342 = vmatprep.subr.mxu0 0.0
    %1343 = vmatpush1.msra.mxu0 0.0
    %1344 = vmatprep.subr.mxu0 0.0
    %1345 = vmatpush1.msra.mxu0 0.0
    %1346 = vmatprep.subr.mxu0 0.0
    %1347 = vmatpush1.msra.mxu0 0.0
    %1348 = vmatprep.subr.mxu0 0.0
    %1349 = vmatpush1.msra.mxu0 0.0
    %1350 = vmatprep.subr.mxu0 0.0
    %1351 = vmatpush1.msra.mxu0 0.0
    %1352 = vmatprep.subr.mxu0 0.0
    %1353 = vmatpush1.msra.mxu0 0.0
    %1354 = vmatprep.subr.mxu0 0.0
    %1355 = vmatpush1.msra.mxu0 0.0
    %1356 = vmatprep.subr.mxu0 0.0
    %1357 = vmatpush1.msra.mxu0 0.0
    %1358 = vmatprep.subr.mxu0 0.0
    %1359 = vmatpush1.msra.mxu0 0.0
    %1360 = vmatprep.subr.mxu0 0.0
    %1361 = vmatpush1.msra.mxu0 0.0
    %1362 = vmatprep.subr.mxu0 0.0
    %1363 = vmatpush1.msra.mxu0 0.0
    %1364 = vmatprep.subr.mxu0 0.0
    %1365 = vmatpush1.msra.mxu0 0.0
    %1366 = vmatprep.subr.mxu0 0.0
    %1367 = vmatpush1.msra.mxu0 0.0
    %1368 = vmatprep.subr.mxu0 0.0
    %1369 = vmatpush1.msra.mxu0 0.0
    %1370 = vmatprep.subr.mxu0 0.0
    %1371 = vmatpush1.msra.mxu0 0.0
    %1372 = vmatprep.subr.mxu0 0.0
    %1373 = vmatpush1.msra.mxu0 0.0
    %1374 = vmatprep.subr.mxu0 0.0
    %1375 = vmatpush1.msra.mxu0 0.0
    %1376 = vmatprep.subr.mxu0 0.0
    %1377 = vmatpush1.msra.mxu0 0.0
    %1378 = vmatprep.subr.mxu0 0.0
    %1379 = vmatpush1.msra.mxu0 0.0
    %1380 = vmatprep.subr.mxu0 0.0
    %1381 = vmatpush1.msra.mxu0 0.0
    %1382 = vmatprep.subr.mxu0 0.0
    %1383 = vmatpush1.msra.mxu0 0.0
    %1384 = vmatprep.mubr.f32.mxu0 0.0
    %1385 = vmatmul.mubr.f32.gmra.mrb[0].mxu0 %v1247
    %v1386 = vpop.f32.mrb[0].mxu0
    %v1387 = vadd.f32 0.0, %v1386
    %v1388 = vpop.f32.mrb[0].mxu0
    %v1389 = vadd.f32 0.0, %v1388
    %1390 = vdwg.mxu0
    %v1392 = vsel %vm143, %v859, 0
    %1394 = vmatprep.subr.mxu0 %v933
    %1395 = vmatpush1.msra.mxu0 %v932
    %1396 = vmatprep.subr.mxu0 %v937
    %1397 = vmatpush1.msra.mxu0 %v936
    %1398 = vmatprep.subr.mxu0 %v941
    %1399 = vmatpush1.msra.mxu0 %v940
    %1400 = vmatprep.subr.mxu0 %v945
    %1401 = vmatpush1.msra.mxu0 %v944
    %1402 = vmatprep.subr.mxu0 %v949
    %1403 = vmatpush1.msra.mxu0 %v948
    %1404 = vmatprep.subr.mxu0 %v953
    %1405 = vmatpush1.msra.mxu0 %v952
    %1406 = vmatprep.subr.mxu0 0.0
    %1407 = vmatpush1.msra.mxu0 0.0
    %1408 = vmatprep.subr.mxu0 0.0
    %1409 = vmatpush1.msra.mxu0 0.0
    %1410 = vmatprep.subr.mxu0 0.0
    %1411 = vmatpush1.msra.mxu0 0.0
    %1412 = vmatprep.subr.mxu0 0.0
    %1413 = vmatpush1.msra.mxu0 0.0
    %1414 = vmatprep.subr.mxu0 0.0
    %1415 = vmatpush1.msra.mxu0 0.0
    %1416 = vmatprep.subr.mxu0 0.0
    %1417 = vmatpush1.msra.mxu0 0.0
    %1418 = vmatprep.subr.mxu0 0.0
    %1419 = vmatpush1.msra.mxu0 0.0
    %1420 = vmatprep.subr.mxu0 0.0
    %1421 = vmatpush1.msra.mxu0 0.0
    %1422 = vmatprep.subr.mxu0 0.0
    %1423 = vmatpush1.msra.mxu0 0.0
    %1424 = vmatprep.subr.mxu0 0.0
    %1425 = vmatpush1.msra.mxu0 0.0
    %1426 = vmatprep.subr.mxu0 0.0
    %1427 = vmatpush1.msra.mxu0 0.0
    %1428 = vmatprep.subr.mxu0 0.0
    %1429 = vmatpush1.msra.mxu0 0.0
    %1430 = vmatprep.subr.mxu0 0.0
    %1431 = vmatpush1.msra.mxu0 0.0
    %1432 = vmatprep.subr.mxu0 0.0
    %1433 = vmatpush1.msra.mxu0 0.0
    %1434 = vmatprep.subr.mxu0 0.0
    %1435 = vmatpush1.msra.mxu0 0.0
    %1436 = vmatprep.subr.mxu0 0.0
    %1437 = vmatpush1.msra.mxu0 0.0
    %1438 = vmatprep.subr.mxu0 0.0
    %1439 = vmatpush1.msra.mxu0 0.0
    %1440 = vmatprep.subr.mxu0 0.0
    %1441 = vmatpush1.msra.mxu0 0.0
    %1442 = vmatprep.subr.mxu0 0.0
    %1443 = vmatpush1.msra.mxu0 0.0
    %1444 = vmatprep.subr.mxu0 0.0
    %1445 = vmatpush1.msra.mxu0 0.0
    %1446 = vmatprep.subr.mxu0 0.0
    %1447 = vmatpush1.msra.mxu0 0.0
    %1448 = vmatprep.subr.mxu0 0.0
    %1449 = vmatpush1.msra.mxu0 0.0
    %1450 = vmatprep.subr.mxu0 0.0
    %1451 = vmatpush1.msra.mxu0 0.0
    %1452 = vmatprep.subr.mxu0 0.0
    %1453 = vmatpush1.msra.mxu0 0.0
    %1454 = vmatprep.subr.mxu0 0.0
    %1455 = vmatpush1.msra.mxu0 0.0
    %1456 = vmatprep.subr.mxu0 0.0
    %1457 = vmatpush1.msra.mxu0 0.0
    %1458 = vmatprep.mubr.f32.mxu0 0.0
    %1459 = vmatmul.mubr.f32.gmra.mrb[0].mxu0 %v1392
    %v1460 = vpop.f32.mrb[0].mxu0
    %v1461 = vadd.f32 0.0, %v1460
    %v1462 = vpop.f32.mrb[0].mxu0
    %v1463 = vadd.f32 0.0, %v1462
    %1464 = vdwg.mxu0
    %1465 = vmatprep.subr.mxu0 %v935
    %1466 = vmatpush1.msra.mxu0 %v934
    %1467 = vmatprep.subr.mxu0 %v939
    %1468 = vmatpush1.msra.mxu0 %v938
    %1469 = vmatprep.subr.mxu0 %v943
    %1470 = vmatpush1.msra.mxu0 %v942
    %1471 = vmatprep.subr.mxu0 %v947
    %1472 = vmatpush1.msra.mxu0 %v946
    %1473 = vmatprep.subr.mxu0 %v951
    %1474 = vmatpush1.msra.mxu0 %v950
    %1475 = vmatprep.subr.mxu0 %v955
    %1476 = vmatpush1.msra.mxu0 %v954
    %1477 = vmatprep.subr.mxu0 0.0
    %1478 = vmatpush1.msra.mxu0 0.0
    %1479 = vmatprep.subr.mxu0 0.0
    %1480 = vmatpush1.msra.mxu0 0.0
    %1481 = vmatprep.subr.mxu0 0.0
    %1482 = vmatpush1.msra.mxu0 0.0
    %1483 = vmatprep.subr.mxu0 0.0
    %1484 = vmatpush1.msra.mxu0 0.0
    %1485 = vmatprep.subr.mxu0 0.0
    %1486 = vmatpush1.msra.mxu0 0.0
    %1487 = vmatprep.subr.mxu0 0.0
    %1488 = vmatpush1.msra.mxu0 0.0
    %1489 = vmatprep.subr.mxu0 0.0
    %1490 = vmatpush1.msra.mxu0 0.0
    %1491 = vmatprep.subr.mxu0 0.0
    %1492 = vmatpush1.msra.mxu0 0.0
    %1493 = vmatprep.subr.mxu0 0.0
    %1494 = vmatpush1.msra.mxu0 0.0
    %1495 = vmatprep.subr.mxu0 0.0
    %1496 = vmatpush1.msra.mxu0 0.0
    %1497 = vmatprep.subr.mxu0 0.0
    %1498 = vmatpush1.msra.mxu0 0.0
    %1499 = vmatprep.subr.mxu0 0.0
    %1500 = vmatpush1.msra.mxu0 0.0
    %1501 = vmatprep.subr.mxu0 0.0
    %1502 = vmatpush1.msra.mxu0 0.0
    %1503 = vmatprep.subr.mxu0 0.0
    %1504 = vmatpush1.msra.mxu0 0.0
    %1505 = vmatprep.subr.mxu0 0.0
    %1506 = vmatpush1.msra.mxu0 0.0
    %1507 = vmatprep.subr.mxu0 0.0
    %1508 = vmatpush1.msra.mxu0 0.0
    %1509 = vmatprep.subr.mxu0 0.0
    %1510 = vmatpush1.msra.mxu0 0.0
    %1511 = vmatprep.subr.mxu0 0.0
    %1512 = vmatpush1.msra.mxu0 0.0
    %1513 = vmatprep.subr.mxu0 0.0
    %1514 = vmatpush1.msra.mxu0 0.0
    %1515 = vmatprep.subr.mxu0 0.0
    %1516 = vmatpush1.msra.mxu0 0.0
    %1517 = vmatprep.subr.mxu0 0.0
    %1518 = vmatpush1.msra.mxu0 0.0
    %1519 = vmatprep.subr.mxu0 0.0
    %1520 = vmatpush1.msra.mxu0 0.0
    %1521 = vmatprep.subr.mxu0 0.0
    %1522 = vmatpush1.msra.mxu0 0.0
    %1523 = vmatprep.subr.mxu0 0.0
    %1524 = vmatpush1.msra.mxu0 0.0
    %1525 = vmatprep.subr.mxu0 0.0
    %1526 = vmatpush1.msra.mxu0 0.0
    %1527 = vmatprep.subr.mxu0 0.0
    %1528 = vmatpush1.msra.mxu0 0.0
    %1529 = vmatprep.mubr.f32.mxu0 0.0
    %1530 = vmatmul.mubr.f32.gmra.mrb[0].mxu0 %v1392
    %v1531 = vpop.f32.mrb[0].mxu0
    %v1532 = vadd.f32 0.0, %v1531
    %v1533 = vpop.f32.mrb[0].mxu0
    %v1534 = vadd.f32 0.0, %v1533
    %1535 = vdwg.mxu0
    %v1536 = vxor.u32 %v1026, 2147483648
    %v1537 = vxor.u32 %v1028, 2147483648
    %v1538 = vxor.u32 %v1097, 2147483648
    %v1539 = vxor.u32 %v1171, 2147483648
    %v1540 = vxor.u32 %v1173, 2147483648
    %v1541 = vxor.u32 %v1242, 2147483648
    %v1542 = vxor.u32 %v1316, 2147483648
    %v1543 = vxor.u32 %v1318, 2147483648
    %v1544 = vxor.u32 %v1387, 2147483648
    %v1545 = vxor.u32 %v1461, 2147483648
    %v1546 = vxor.u32 %v1463, 2147483648
    %v1547 = vxor.u32 %v1532, 2147483648
    %v1548 = vmul.f32 %v1536, 1.442695
    %v1549 = vpow.pop %v1548
    %v1550 = vmul.f32 %v1537, 1.442695
    %v1551 = vpow.pop %v1550
    %v1552 = vmul.f32 %v1538, 1.442695
    %v1553 = vpow.pop %v1552
    %v1554 = vmul.f32 %v1539, 1.442695
    %v1555 = vpow.pop %v1554
    %v1556 = vmul.f32 %v1540, 1.442695
    %v1557 = vpow.pop %v1556
    %v1558 = vmul.f32 %v1541, 1.442695
    %v1559 = vpow.pop %v1558
    %v1560 = vmul.f32 %v1542, 1.442695
    %v1561 = vpow.pop %v1560
    %v1562 = vmul.f32 %v1543, 1.442695
    %v1563 = vpow.pop %v1562
    %v1564 = vmul.f32 %v1544, 1.442695
    %v1565 = vpow.pop %v1564
    %v1566 = vmul.f32 %v1545, 1.442695
    %v1567 = vpow.pop %v1566
    %v1568 = vmul.f32 %v1546, 1.442695
    %v1569 = vpow.pop %v1568
    %v1570 = vmul.f32 %v1547, 1.442695
    %v1571 = vpow.pop %v1570
    %v1572 = vadd.f32 %v1549, 1.0
    %v1573 = vadd.f32 %v1551, 1.0
    %v1574 = vadd.f32 %v1553, 1.0
    %v1575 = vadd.f32 %v1555, 1.0
    %v1576 = vadd.f32 %v1557, 1.0
    %v1577 = vadd.f32 %v1559, 1.0
    %v1578 = vadd.f32 %v1561, 1.0
    %v1579 = vadd.f32 %v1563, 1.0
    %v1580 = vadd.f32 %v1565, 1.0
    %v1581 = vadd.f32 %v1567, 1.0
    %v1582 = vadd.f32 %v1569, 1.0
    %v1583 = vadd.f32 %v1571, 1.0
    %v1584 = vrcp.pop %v1572
    %v1585 = vmul.f32 1.0, %v1584
    %v1586 = vrcp.pop %v1573
    %v1587 = vmul.f32 1.0, %v1586
    %v1588 = vrcp.pop %v1574
    %v1589 = vmul.f32 1.0, %v1588
    %v1590 = vrcp.pop %v1575
    %v1591 = vmul.f32 1.0, %v1590
    %v1592 = vrcp.pop %v1576
    %v1593 = vmul.f32 1.0, %v1592
    %v1594 = vrcp.pop %v1577
    %v1595 = vmul.f32 1.0, %v1594
    %v1596 = vrcp.pop %v1578
    %v1597 = vmul.f32 1.0, %v1596
    %v1598 = vrcp.pop %v1579
    %v1599 = vmul.f32 1.0, %v1598
    %v1600 = vrcp.pop %v1580
    %v1601 = vmul.f32 1.0, %v1600
    %v1602 = vrcp.pop %v1581
    %v1603 = vmul.f32 1.0, %v1602
    %v1604 = vrcp.pop %v1582
    %v1605 = vmul.f32 1.0, %v1604
    %v1606 = vrcp.pop %v1583
    %v1607 = vmul.f32 1.0, %v1606
    %v1608 = vtanh.pop %v1099
    %v1609 = vtanh.pop %v1244
    %v1610 = vtanh.pop %v1389
    %v1611 = vtanh.pop %v1534
    %v1612 = vmul.f32 %v1587, %v820
    %v1613 = vmul.f32 %v1593, %v821
    %v1614 = vmul.f32 %v1599, %v822
    %v1615 = vmul.f32 %v1605, %v823
    %v1616 = vmul.f32 %v1585, %v1608
    %v1617 = vmul.f32 %v1591, %v1609
    %v1618 = vmul.f32 %v1597, %v1610
    %v1619 = vmul.f32 %v1603, %v1611
    %v1620 = vadd.f32 %v1612, %v1616
    %v1621 = vadd.f32 %v1613, %v1617
    %v1622 = vadd.f32 %v1614, %v1618
    %v1623 = vadd.f32 %v1615, %v1619
    %v1624 = vtanh.pop %v1620
    %v1625 = vtanh.pop %v1621
    %v1626 = vtanh.pop %v1622
    %v1627 = vtanh.pop %v1623
    %v1628 = vmul.f32 %v1589, %v1624
    %v1629 = vmul.f32 %v1595, %v1625
    %v1630 = vmul.f32 %v1601, %v1626
    %v1631 = vmul.f32 %v1607, %v1627
    %v1632 = vsel 1, %v1620, %v820
    %v1633 = vsel 1, %v1621, %v821
    %v1634 = vsel 0, %v1622, %v822
    %v1635 = vsel 0, %v1623, %v823
    %v1636 = vld [vmem:[#allocation2] sm:$0x3]
    %v1637 = vld [vmem:[#allocation2 + $0x2] sm:$0x3]
    %v1638 = vld [vmem:[#allocation2 + $0x4] sm:$0x3]
    %v1639 = vld [vmem:[#allocation2 + $0x6] sm:$0x3]
    %v1640 = vsel 1, %v1628, %v1636
    %v1641 = vsel 1, %v1629, %v1637
    %v1642 = vsel 0, %v1630, %v1638
    %v1643 = vsel 0, %v1631, %v1639
    %1644 = vst.msk [vmem:[#allocation2] sm:$0x3] %vm832, %v1640
    %1645 = vst.msk [vmem:[#allocation2 + $0x2] sm:$0x3] %vm832, %v1641
    %1646 = vst.msk [vmem:[#allocation2 + $0x4] sm:$0x3] %vm832, %v1642
    %1647 = vst.msk [vmem:[#allocation2 + $0x6] sm:$0x3] %vm832, %v1643
    %1651 = vrot.lane.b32.xlu0 %v1628, 20
    %v1652 = vpop.permute.xlu0 %1651
    %1653 = vrot.lane.b32.xlu0 %v1629, 20
    %v1654 = vpop.permute.xlu0 %1653
    %1655 = vrot.lane.b32.xlu0 %v1630, 20
    %v1656 = vpop.permute.xlu0 %1655
    %1660 = vst.msk [vmem:[%s849] sm:$0x3] %vm41, %v1652
    %1661 = vst.msk [vmem:[%s849 + $0x2] sm:$0x3] %vm41, %v1654
    %1662 = vst.msk [vmem:[%s849 + $0x4] sm:$0x3] %vm41, %v1656
    %s1663 = scalar_lea.vmem %s0, 4
    %v1664 = vld [vmem:[%s1663] sm:$0x3]
    %1665 = vst.msk [vmem:[#allocation2] sm:$0x3] %vm41, %v1664
    %v1666 = vld [vmem:[#allocation2] sm:$0x3]
    %v1667 = vld [vmem:[#allocation2 + $0x2] sm:$0x3]
    %v1668 = vld [vmem:[#allocation2 + $0x4] sm:$0x3]
    %v1669 = vld [vmem:[#allocation2 + $0x6] sm:$0x3]
    %v1670 = vld [vmem:[#allocation4] sm:$0xff]
    %v1671 = vld [vmem:[#allocation4 + $0x8] sm:$0xff]
    %v1672 = vld [vmem:[#allocation4 + $0x10] sm:$0xff]
    %v1673 = vld [vmem:[#allocation4 + $0x18] sm:$0xff]
    %v1674 = vld [vmem:[#allocation4 + $0x20] sm:$0xff]
    %v1675 = vld [vmem:[#allocation4 + $0x28] sm:$0xff]
    %v1676 = vld [vmem:[#allocation4 + $0x30] sm:$0xff]
    %v1677 = vld [vmem:[#allocation4 + $0x38] sm:$0xff]
    %v1678 = vld [vmem:[#allocation4 + $0x40] sm:$0xff]
    %v1679 = vld [vmem:[#allocation4 + $0x48] sm:$0xff]
    %v1680 = vld [vmem:[#allocation4 + $0x50] sm:$0xff]
    %v1681 = vld [vmem:[#allocation4 + $0x58] sm:$0xff]
    %v1682 = vld [vmem:[#allocation4 + $0x60] sm:$0xff]
    %v1683 = vld [vmem:[#allocation4 + $0x68] sm:$0xff]
    %v1684 = vld [vmem:[#allocation4 + $0x70] sm:$0xff]
    %v1685 = vld [vmem:[#allocation4 + $0x78] sm:$0xff]
    %v1686 = vld [vmem:[#allocation4 + $0x80] sm:$0xff]
    %v1687 = vld [vmem:[#allocation4 + $0x88] sm:$0xff]
    %v1688 = vld [vmem:[#allocation4 + $0x90] sm:$0xff]
    %v1689 = vld [vmem:[#allocation4 + $0x98] sm:$0xff]
    %v1690 = vld [vmem:[#allocation4 + $0xa0] sm:$0xff]
    %v1691 = vld [vmem:[#allocation4 + $0xa8] sm:$0xff]
    %v1692 = vld [vmem:[#allocation4 + $0xb0] sm:$0xff]
    %v1693 = vld [vmem:[#allocation4 + $0xb8] sm:$0xff]
    %v1694 = vld [vmem:[#allocation4 + $0xc0] sm:$0xff]
    %v1695 = vld [vmem:[#allocation4 + $0xc8] sm:$0xff]
    %v1696 = vld [vmem:[#allocation4 + $0xd0] sm:$0xff]
    %v1697 = vld [vmem:[#allocation4 + $0xd8] sm:$0xff]
    %v1698 = vld [vmem:[#allocation4 + $0xe0] sm:$0xff]
    %v1699 = vld [vmem:[#allocation4 + $0xe8] sm:$0xff]
    %v1700 = vld [vmem:[#allocation4 + $0xf0] sm:$0xff]
    %v1701 = vld [vmem:[#allocation4 + $0xf8] sm:$0xff]
    %v1702 = vld [vmem:[#allocation4 + $0x100] sm:$0xff]
    %v1703 = vld [vmem:[#allocation4 + $0x108] sm:$0xff]
    %v1704 = vld [vmem:[#allocation4 + $0x110] sm:$0xff]
    %v1705 = vld [vmem:[#allocation4 + $0x118] sm:$0xff]
    %v1706 = vld [vmem:[#allocation4 + $0x120] sm:$0xff]
    %v1707 = vld [vmem:[#allocation4 + $0x128] sm:$0xff]
    %v1708 = vld [vmem:[#allocation4 + $0x130] sm:$0xff]
    %v1709 = vld [vmem:[#allocation4 + $0x138] sm:$0xff]
    %v1710 = vld [vmem:[#allocation4 + $0x140] sm:$0xff]
    %v1711 = vld [vmem:[#allocation4 + $0x148] sm:$0xff]
    %v1712 = vld [vmem:[#allocation4 + $0x150] sm:$0xff]
    %v1713 = vld [vmem:[#allocation4 + $0x158] sm:$0xff]
    %v1714 = vld [vmem:[#allocation4 + $0x160] sm:$0xff]
    %v1715 = vld [vmem:[#allocation4 + $0x168] sm:$0xff]
    %v1716 = vld [vmem:[#allocation4 + $0x170] sm:$0xff]
    %v1717 = vld [vmem:[#allocation4 + $0x178] sm:$0xff]
    %v1718 = vld [vmem:[#allocation4 + $0x180] sm:$0xff]
    %v1719 = vld [vmem:[#allocation4 + $0x188] sm:$0xff]
    %v1720 = vld [vmem:[#allocation4 + $0x190] sm:$0xff]
    %v1721 = vld [vmem:[#allocation4 + $0x198] sm:$0xff]
    %v1722 = vld [vmem:[#allocation4 + $0x1a0] sm:$0xff]
    %v1723 = vld [vmem:[#allocation4 + $0x1a8] sm:$0xff]
    %v1724 = vld [vmem:[#allocation4 + $0x1b0] sm:$0xff]
    %v1725 = vld [vmem:[#allocation4 + $0x1b8] sm:$0xff]
    %v1726 = vld [vmem:[#allocation4 + $0x1c0] sm:$0xff]
    %v1727 = vld [vmem:[#allocation4 + $0x1c8] sm:$0xff]
    %v1728 = vld [vmem:[#allocation4 + $0x1d0] sm:$0xff]
    %v1729 = vld [vmem:[#allocation4 + $0x1d8] sm:$0xff]
    %v1730 = vld [vmem:[#allocation4 + $0x1e0] sm:$0xff]
    %v1731 = vld [vmem:[#allocation4 + $0x1e8] sm:$0xff]
    %v1732 = vld [vmem:[#allocation4 + $0x1f0] sm:$0xff]
    %v1733 = vld [vmem:[#allocation4 + $0x1f8] sm:$0xff]
    %v1734 = vld [vmem:[#allocation4 + $0x200] sm:$0xff]
    %v1735 = vld [vmem:[#allocation4 + $0x208] sm:$0xff]
    %v1736 = vld [vmem:[#allocation4 + $0x210] sm:$0xff]
    %v1737 = vld [vmem:[#allocation4 + $0x218] sm:$0xff]
    %v1738 = vld [vmem:[#allocation4 + $0x220] sm:$0xff]
    %v1739 = vld [vmem:[#allocation4 + $0x228] sm:$0xff]
    %v1740 = vld [vmem:[#allocation4 + $0x230] sm:$0xff]
    %v1741 = vld [vmem:[#allocation4 + $0x238] sm:$0xff]
    %v1742 = vld [vmem:[#allocation4 + $0x240] sm:$0xff]
    %v1743 = vld [vmem:[#allocation4 + $0x248] sm:$0xff]
    %v1744 = vld [vmem:[#allocation4 + $0x250] sm:$0xff]
    %v1745 = vld [vmem:[#allocation4 + $0x258] sm:$0xff]
    %v1746 = vld [vmem:[#allocation4 + $0x260] sm:$0xff]
    %v1747 = vld [vmem:[#allocation4 + $0x268] sm:$0xff]
    %v1748 = vld [vmem:[#allocation4 + $0x270] sm:$0xff]
    %v1749 = vld [vmem:[#allocation4 + $0x278] sm:$0xff]
    %v1750 = vld [vmem:[#allocation4 + $0x280] sm:$0xff]
    %v1751 = vld [vmem:[#allocation4 + $0x288] sm:$0xff]
    %v1752 = vld [vmem:[#allocation4 + $0x290] sm:$0xff]
    %v1753 = vld [vmem:[#allocation4 + $0x298] sm:$0xff]
    %v1754 = vld [vmem:[#allocation4 + $0x2a0] sm:$0xff]
    %v1755 = vld [vmem:[#allocation4 + $0x2a8] sm:$0xff]
    %v1756 = vld [vmem:[#allocation4 + $0x2b0] sm:$0xff]
    %v1757 = vld [vmem:[#allocation4 + $0x2b8] sm:$0xff]
    %v1758 = vld [vmem:[#allocation4 + $0x2c0] sm:$0xff]
    %v1759 = vld [vmem:[#allocation4 + $0x2c8] sm:$0xff]
    %v1760 = vld [vmem:[#allocation4 + $0x2d0] sm:$0xff]
    %v1761 = vld [vmem:[#allocation4 + $0x2d8] sm:$0xff]
    %v1762 = vld [vmem:[#allocation4 + $0x2e0] sm:$0xff]
    %v1763 = vld [vmem:[#allocation4 + $0x2e8] sm:$0xff]
    %v1764 = vld [vmem:[#allocation4 + $0x2f0] sm:$0xff]
    %v1765 = vld [vmem:[#allocation4 + $0x2f8] sm:$0xff]
    %v1767 = vsel %vm143, %v1666, 0
    %1769 = vmatprep.subr.mxu0 %v1671
    %1770 = vmatpush1.msra.mxu0 %v1670
    %1771 = vmatprep.subr.mxu0 %v1675
    %1772 = vmatpush1.msra.mxu0 %v1674
    %1773 = vmatprep.subr.mxu0 %v1679
    %1774 = vmatpush1.msra.mxu0 %v1678
    %1775 = vmatprep.subr.mxu0 %v1683
    %1776 = vmatpush1.msra.mxu0 %v1682
    %1777 = vmatprep.subr.mxu0 %v1687
    %1778 = vmatpush1.msra.mxu0 %v1686
    %1779 = vmatprep.subr.mxu0 %v1691
    %1780 = vmatpush1.msra.mxu0 %v1690
    %1781 = vmatprep.subr.mxu0 0.0
    %1782 = vmatpush1.msra.mxu0 0.0
    %1783 = vmatprep.subr.mxu0 0.0
    %1784 = vmatpush1.msra.mxu0 0.0
    %1785 = vmatprep.subr.mxu0 0.0
    %1786 = vmatpush1.msra.mxu0 0.0
    %1787 = vmatprep.subr.mxu0 0.0
    %1788 = vmatpush1.msra.mxu0 0.0
    %1789 = vmatprep.subr.mxu0 0.0
    %1790 = vmatpush1.msra.mxu0 0.0
    %1791 = vmatprep.subr.mxu0 0.0
    %1792 = vmatpush1.msra.mxu0 0.0
    %1793 = vmatprep.subr.mxu0 0.0
    %1794 = vmatpush1.msra.mxu0 0.0
    %1795 = vmatprep.subr.mxu0 0.0
    %1796 = vmatpush1.msra.mxu0 0.0
    %1797 = vmatprep.subr.mxu0 0.0
    %1798 = vmatpush1.msra.mxu0 0.0
    %1799 = vmatprep.subr.mxu0 0.0
    %1800 = vmatpush1.msra.mxu0 0.0
    %1801 = vmatprep.subr.mxu0 0.0
    %1802 = vmatpush1.msra.mxu0 0.0
    %1803 = vmatprep.subr.mxu0 0.0
    %1804 = vmatpush1.msra.mxu0 0.0
    %1805 = vmatprep.subr.mxu0 0.0
    %1806 = vmatpush1.msra.mxu0 0.0
    %1807 = vmatprep.subr.mxu0 0.0
    %1808 = vmatpush1.msra.mxu0 0.0
    %1809 = vmatprep.subr.mxu0 0.0
    %1810 = vmatpush1.msra.mxu0 0.0
    %1811 = vmatprep.subr.mxu0 0.0
    %1812 = vmatpush1.msra.mxu0 0.0
    %1813 = vmatprep.subr.mxu0 0.0
    %1814 = vmatpush1.msra.mxu0 0.0
    %1815 = vmatprep.subr.mxu0 0.0
    %1816 = vmatpush1.msra.mxu0 0.0
    %1817 = vmatprep.subr.mxu0 0.0
    %1818 = vmatpush1.msra.mxu0 0.0
    %1819 = vmatprep.subr.mxu0 0.0
    %1820 = vmatpush1.msra.mxu0 0.0
    %1821 = vmatprep.subr.mxu0 0.0
    %1822 = vmatpush1.msra.mxu0 0.0
    %1823 = vmatprep.subr.mxu0 0.0
    %1824 = vmatpush1.msra.mxu0 0.0
    %1825 = vmatprep.subr.mxu0 0.0
    %1826 = vmatpush1.msra.mxu0 0.0
    %1827 = vmatprep.subr.mxu0 0.0
    %1828 = vmatpush1.msra.mxu0 0.0
    %1829 = vmatprep.subr.mxu0 0.0
    %1830 = vmatpush1.msra.mxu0 0.0
    %1831 = vmatprep.subr.mxu0 0.0
    %1832 = vmatpush1.msra.mxu0 0.0
    %1833 = vmatprep.mubr.f32.mxu0 0.0
    %1834 = vmatmul.mubr.f32.gmra.mrb[0].mxu0 %v1767
    %v1835 = vpop.f32.mrb[0].mxu0
    %v1836 = vadd.f32 0.0, %v1835
    %v1837 = vpop.f32.mrb[0].mxu0
    %v1838 = vadd.f32 0.0, %v1837
    %1839 = vdwg.mxu0
    %1840 = vmatprep.subr.mxu0 %v1673
    %1841 = vmatpush1.msra.mxu0 %v1672
    %1842 = vmatprep.subr.mxu0 %v1677
    %1843 = vmatpush1.msra.mxu0 %v1676
    %1844 = vmatprep.subr.mxu0 %v1681
    %1845 = vmatpush1.msra.mxu0 %v1680
    %1846 = vmatprep.subr.mxu0 %v1685
    %1847 = vmatpush1.msra.mxu0 %v1684
    %1848 = vmatprep.subr.mxu0 %v1689
    %1849 = vmatpush1.msra.mxu0 %v1688
    %1850 = vmatprep.subr.mxu0 %v1693
    %1851 = vmatpush1.msra.mxu0 %v1692
    %1852 = vmatprep.subr.mxu0 0.0
    %1853 = vmatpush1.msra.mxu0 0.0
    %1854 = vmatprep.subr.mxu0 0.0
    %1855 = vmatpush1.msra.mxu0 0.0
    %1856 = vmatprep.subr.mxu0 0.0
    %1857 = vmatpush1.msra.mxu0 0.0
    %1858 = vmatprep.subr.mxu0 0.0
    %1859 = vmatpush1.msra.mxu0 0.0
    %1860 = vmatprep.subr.mxu0 0.0
    %1861 = vmatpush1.msra.mxu0 0.0
    %1862 = vmatprep.subr.mxu0 0.0
    %1863 = vmatpush1.msra.mxu0 0.0
    %1864 = vmatprep.subr.mxu0 0.0
    %1865 = vmatpush1.msra.mxu0 0.0
    %1866 = vmatprep.subr.mxu0 0.0
    %1867 = vmatpush1.msra.mxu0 0.0
    %1868 = vmatprep.subr.mxu0 0.0
    %1869 = vmatpush1.msra.mxu0 0.0
    %1870 = vmatprep.subr.mxu0 0.0
    %1871 = vmatpush1.msra.mxu0 0.0
    %1872 = vmatprep.subr.mxu0 0.0
    %1873 = vmatpush1.msra.mxu0 0.0
    %1874 = vmatprep.subr.mxu0 0.0
    %1875 = vmatpush1.msra.mxu0 0.0
    %1876 = vmatprep.subr.mxu0 0.0
    %1877 = vmatpush1.msra.mxu0 0.0
    %1878 = vmatprep.subr.mxu0 0.0
    %1879 = vmatpush1.msra.mxu0 0.0
    %1880 = vmatprep.subr.mxu0 0.0
    %1881 = vmatpush1.msra.mxu0 0.0
    %1882 = vmatprep.subr.mxu0 0.0
    %1883 = vmatpush1.msra.mxu0 0.0
    %1884 = vmatprep.subr.mxu0 0.0
    %1885 = vmatpush1.msra.mxu0 0.0
    %1886 = vmatprep.subr.mxu0 0.0
    %1887 = vmatpush1.msra.mxu0 0.0
    %1888 = vmatprep.subr.mxu0 0.0
    %1889 = vmatpush1.msra.mxu0 0.0
    %1890 = vmatprep.subr.mxu0 0.0
    %1891 = vmatpush1.msra.mxu0 0.0
    %1892 = vmatprep.subr.mxu0 0.0
    %1893 = vmatpush1.msra.mxu0 0.0
    %1894 = vmatprep.subr.mxu0 0.0
    %1895 = vmatpush1.msra.mxu0 0.0
    %1896 = vmatprep.subr.mxu0 0.0
    %1897 = vmatpush1.msra.mxu0 0.0
    %1898 = vmatprep.subr.mxu0 0.0
    %1899 = vmatpush1.msra.mxu0 0.0
    %1900 = vmatprep.subr.mxu0 0.0
    %1901 = vmatpush1.msra.mxu0 0.0
    %1902 = vmatprep.subr.mxu0 0.0
    %1903 = vmatpush1.msra.mxu0 0.0
    %1904 = vmatprep.mubr.f32.mxu0 0.0
    %1905 = vmatmul.mubr.f32.gmra.mrb[0].mxu0 %v1767
    %v1906 = vpop.f32.mrb[0].mxu0
    %v1907 = vadd.f32 0.0, %v1906
    %v1908 = vpop.f32.mrb[0].mxu0
    %v1909 = vadd.f32 0.0, %v1908
    %1910 = vdwg.mxu0
    %v1912 = vsel %vm143, %v1667, 0
    %1914 = vmatprep.subr.mxu0 %v1695
    %1915 = vmatpush1.msra.mxu0 %v1694
    %1916 = vmatprep.subr.mxu0 %v1699
    %1917 = vmatpush1.msra.mxu0 %v1698
    %1918 = vmatprep.subr.mxu0 %v1703
    %1919 = vmatpush1.msra.mxu0 %v1702
    %1920 = vmatprep.subr.mxu0 %v1707
    %1921 = vmatpush1.msra.mxu0 %v1706
    %1922 = vmatprep.subr.mxu0 %v1711
    %1923 = vmatpush1.msra.mxu0 %v1710
    %1924 = vmatprep.subr.mxu0 %v1715
    %1925 = vmatpush1.msra.mxu0 %v1714
    %1926 = vmatprep.subr.mxu0 0.0
    %1927 = vmatpush1.msra.mxu0 0.0
    %1928 = vmatprep.subr.mxu0 0.0
    %1929 = vmatpush1.msra.mxu0 0.0
    %1930 = vmatprep.subr.mxu0 0.0
    %1931 = vmatpush1.msra.mxu0 0.0
    %1932 = vmatprep.subr.mxu0 0.0
    %1933 = vmatpush1.msra.mxu0 0.0
    %1934 = vmatprep.subr.mxu0 0.0
    %1935 = vmatpush1.msra.mxu0 0.0
    %1936 = vmatprep.subr.mxu0 0.0
    %1937 = vmatpush1.msra.mxu0 0.0
    %1938 = vmatprep.subr.mxu0 0.0
    %1939 = vmatpush1.msra.mxu0 0.0
    %1940 = vmatprep.subr.mxu0 0.0
    %1941 = vmatpush1.msra.mxu0 0.0
    %1942 = vmatprep.subr.mxu0 0.0
    %1943 = vmatpush1.msra.mxu0 0.0
    %1944 = vmatprep.subr.mxu0 0.0
    %1945 = vmatpush1.msra.mxu0 0.0
    %1946 = vmatprep.subr.mxu0 0.0
    %1947 = vmatpush1.msra.mxu0 0.0
    %1948 = vmatprep.subr.mxu0 0.0
    %1949 = vmatpush1.msra.mxu0 0.0
    %1950 = vmatprep.subr.mxu0 0.0
    %1951 = vmatpush1.msra.mxu0 0.0
    %1952 = vmatprep.subr.mxu0 0.0
    %1953 = vmatpush1.msra.mxu0 0.0
    %1954 = vmatprep.subr.mxu0 0.0
    %1955 = vmatpush1.msra.mxu0 0.0
    %1956 = vmatprep.subr.mxu0 0.0
    %1957 = vmatpush1.msra.mxu0 0.0
    %1958 = vmatprep.subr.mxu0 0.0
    %1959 = vmatpush1.msra.mxu0 0.0
    %1960 = vmatprep.subr.mxu0 0.0
    %1961 = vmatpush1.msra.mxu0 0.0
    %1962 = vmatprep.subr.mxu0 0.0
    %1963 = vmatpush1.msra.mxu0 0.0
    %1964 = vmatprep.subr.mxu0 0.0
    %1965 = vmatpush1.msra.mxu0 0.0
    %1966 = vmatprep.subr.mxu0 0.0
    %1967 = vmatpush1.msra.mxu0 0.0
    %1968 = vmatprep.subr.mxu0 0.0
    %1969 = vmatpush1.msra.mxu0 0.0
    %1970 = vmatprep.subr.mxu0 0.0
    %1971 = vmatpush1.msra.mxu0 0.0
    %1972 = vmatprep.subr.mxu0 0.0
    %1973 = vmatpush1.msra.mxu0 0.0
    %1974 = vmatprep.subr.mxu0 0.0
    %1975 = vmatpush1.msra.mxu0 0.0
    %1976 = vmatprep.subr.mxu0 0.0
    %1977 = vmatpush1.msra.mxu0 0.0
    %1978 = vmatprep.mubr.f32.mxu0 0.0
    %1979 = vmatmul.mubr.f32.gmra.mrb[0].mxu0 %v1912
    %v1980 = vpop.f32.mrb[0].mxu0
    %v1981 = vadd.f32 0.0, %v1980
    %v1982 = vpop.f32.mrb[0].mxu0
    %v1983 = vadd.f32 0.0, %v1982
    %1984 = vdwg.mxu0
    %1985 = vmatprep.subr.mxu0 %v1697
    %1986 = vmatpush1.msra.mxu0 %v1696
    %1987 = vmatprep.subr.mxu0 %v1701
    %1988 = vmatpush1.msra.mxu0 %v1700
    %1989 = vmatprep.subr.mxu0 %v1705
    %1990 = vmatpush1.msra.mxu0 %v1704
    %1991 = vmatprep.subr.mxu0 %v1709
    %1992 = vmatpush1.msra.mxu0 %v1708
    %1993 = vmatprep.subr.mxu0 %v1713
    %1994 = vmatpush1.msra.mxu0 %v1712
    %1995 = vmatprep.subr.mxu0 %v1717
    %1996 = vmatpush1.msra.mxu0 %v1716
    %1997 = vmatprep.subr.mxu0 0.0
    %1998 = vmatpush1.msra.mxu0 0.0
    %1999 = vmatprep.subr.mxu0 0.0
    %2000 = vmatpush1.msra.mxu0 0.0
    %2001 = vmatprep.subr.mxu0 0.0
    %2002 = vmatpush1.msra.mxu0 0.0
    %2003 = vmatprep.subr.mxu0 0.0
    %2004 = vmatpush1.msra.mxu0 0.0
    %2005 = vmatprep.subr.mxu0 0.0
    %2006 = vmatpush1.msra.mxu0 0.0
    %2007 = vmatprep.subr.mxu0 0.0
    %2008 = vmatpush1.msra.mxu0 0.0
    %2009 = vmatprep.subr.mxu0 0.0
    %2010 = vmatpush1.msra.mxu0 0.0
    %2011 = vmatprep.subr.mxu0 0.0
    %2012 = vmatpush1.msra.mxu0 0.0
    %2013 = vmatprep.subr.mxu0 0.0
    %2014 = vmatpush1.msra.mxu0 0.0
    %2015 = vmatprep.subr.mxu0 0.0
    %2016 = vmatpush1.msra.mxu0 0.0
    %2017 = vmatprep.subr.mxu0 0.0
    %2018 = vmatpush1.msra.mxu0 0.0
    %2019 = vmatprep.subr.mxu0 0.0
    %2020 = vmatpush1.msra.mxu0 0.0
    %2021 = vmatprep.subr.mxu0 0.0
    %2022 = vmatpush1.msra.mxu0 0.0
    %2023 = vmatprep.subr.mxu0 0.0
    %2024 = vmatpush1.msra.mxu0 0.0
    %2025 = vmatprep.subr.mxu0 0.0
    %2026 = vmatpush1.msra.mxu0 0.0
    %2027 = vmatprep.subr.mxu0 0.0
    %2028 = vmatpush1.msra.mxu0 0.0
    %2029 = vmatprep.subr.mxu0 0.0
    %2030 = vmatpush1.msra.mxu0 0.0
    %2031 = vmatprep.subr.mxu0 0.0
    %2032 = vmatpush1.msra.mxu0 0.0
    %2033 = vmatprep.subr.mxu0 0.0
    %2034 = vmatpush1.msra.mxu0 0.0
    %2035 = vmatprep.subr.mxu0 0.0
    %2036 = vmatpush1.msra.mxu0 0.0
    %2037 = vmatprep.subr.mxu0 0.0
    %2038 = vmatpush1.msra.mxu0 0.0
    %2039 = vmatprep.subr.mxu0 0.0
    %2040 = vmatpush1.msra.mxu0 0.0
    %2041 = vmatprep.subr.mxu0 0.0
    %2042 = vmatpush1.msra.mxu0 0.0
    %2043 = vmatprep.subr.mxu0 0.0
    %2044 = vmatpush1.msra.mxu0 0.0
    %2045 = vmatprep.subr.mxu0 0.0
    %2046 = vmatpush1.msra.mxu0 0.0
    %2047 = vmatprep.subr.mxu0 0.0
    %2048 = vmatpush1.msra.mxu0 0.0
    %2049 = vmatprep.mubr.f32.mxu0 0.0
    %2050 = vmatmul.mubr.f32.gmra.mrb[0].mxu0 %v1912
    %v2051 = vpop.f32.mrb[0].mxu0
    %v2052 = vadd.f32 0.0, %v2051
    %v2053 = vpop.f32.mrb[0].mxu0
    %v2054 = vadd.f32 0.0, %v2053
    %2055 = vdwg.mxu0
    %v2057 = vsel %vm143, %v1668, 0
    %2059 = vmatprep.subr.mxu0 %v1719
    %2060 = vmatpush1.msra.mxu0 %v1718
    %2061 = vmatprep.subr.mxu0 %v1723
    %2062 = vmatpush1.msra.mxu0 %v1722
    %2063 = vmatprep.subr.mxu0 %v1727
    %2064 = vmatpush1.msra.mxu0 %v1726
    %2065 = vmatprep.subr.mxu0 %v1731
    %2066 = vmatpush1.msra.mxu0 %v1730
    %2067 = vmatprep.subr.mxu0 %v1735
    %2068 = vmatpush1.msra.mxu0 %v1734
    %2069 = vmatprep.subr.mxu0 %v1739
    %2070 = vmatpush1.msra.mxu0 %v1738
    %2071 = vmatprep.subr.mxu0 0.0
    %2072 = vmatpush1.msra.mxu0 0.0
    %2073 = vmatprep.subr.mxu0 0.0
    %2074 = vmatpush1.msra.mxu0 0.0
    %2075 = vmatprep.subr.mxu0 0.0
    %2076 = vmatpush1.msra.mxu0 0.0
    %2077 = vmatprep.subr.mxu0 0.0
    %2078 = vmatpush1.msra.mxu0 0.0
    %2079 = vmatprep.subr.mxu0 0.0
    %2080 = vmatpush1.msra.mxu0 0.0
    %2081 = vmatprep.subr.mxu0 0.0
    %2082 = vmatpush1.msra.mxu0 0.0
    %2083 = vmatprep.subr.mxu0 0.0
    %2084 = vmatpush1.msra.mxu0 0.0
    %2085 = vmatprep.subr.mxu0 0.0
    %2086 = vmatpush1.msra.mxu0 0.0
    %2087 = vmatprep.subr.mxu0 0.0
    %2088 = vmatpush1.msra.mxu0 0.0
    %2089 = vmatprep.subr.mxu0 0.0
    %2090 = vmatpush1.msra.mxu0 0.0
    %2091 = vmatprep.subr.mxu0 0.0
    %2092 = vmatpush1.msra.mxu0 0.0
    %2093 = vmatprep.subr.mxu0 0.0
    %2094 = vmatpush1.msra.mxu0 0.0
    %2095 = vmatprep.subr.mxu0 0.0
    %2096 = vmatpush1.msra.mxu0 0.0
    %2097 = vmatprep.subr.mxu0 0.0
    %2098 = vmatpush1.msra.mxu0 0.0
    %2099 = vmatprep.subr.mxu0 0.0
    %2100 = vmatpush1.msra.mxu0 0.0
    %2101 = vmatprep.subr.mxu0 0.0
    %2102 = vmatpush1.msra.mxu0 0.0
    %2103 = vmatprep.subr.mxu0 0.0
    %2104 = vmatpush1.msra.mxu0 0.0
    %2105 = vmatprep.subr.mxu0 0.0
    %2106 = vmatpush1.msra.mxu0 0.0
    %2107 = vmatprep.subr.mxu0 0.0
    %2108 = vmatpush1.msra.mxu0 0.0
    %2109 = vmatprep.subr.mxu0 0.0
    %2110 = vmatpush1.msra.mxu0 0.0
    %2111 = vmatprep.subr.mxu0 0.0
    %2112 = vmatpush1.msra.mxu0 0.0
    %2113 = vmatprep.subr.mxu0 0.0
    %2114 = vmatpush1.msra.mxu0 0.0
    %2115 = vmatprep.subr.mxu0 0.0
    %2116 = vmatpush1.msra.mxu0 0.0
    %2117 = vmatprep.subr.mxu0 0.0
    %2118 = vmatpush1.msra.mxu0 0.0
    %2119 = vmatprep.subr.mxu0 0.0
    %2120 = vmatpush1.msra.mxu0 0.0
    %2121 = vmatprep.subr.mxu0 0.0
    %2122 = vmatpush1.msra.mxu0 0.0
    %2123 = vmatprep.mubr.f32.mxu0 0.0
    %2124 = vmatmul.mubr.f32.gmra.mrb[0].mxu0 %v2057
    %v2125 = vpop.f32.mrb[0].mxu0
    %v2126 = vadd.f32 0.0, %v2125
    %v2127 = vpop.f32.mrb[0].mxu0
    %v2128 = vadd.f32 0.0, %v2127
    %2129 = vdwg.mxu0
    %2130 = vmatprep.subr.mxu0 %v1721
    %2131 = vmatpush1.msra.mxu0 %v1720
    %2132 = vmatprep.subr.mxu0 %v1725
    %2133 = vmatpush1.msra.mxu0 %v1724
    %2134 = vmatprep.subr.mxu0 %v1729
    %2135 = vmatpush1.msra.mxu0 %v1728
    %2136 = vmatprep.subr.mxu0 %v1733
    %2137 = vmatpush1.msra.mxu0 %v1732
    %2138 = vmatprep.subr.mxu0 %v1737
    %2139 = vmatpush1.msra.mxu0 %v1736
    %2140 = vmatprep.subr.mxu0 %v1741
    %2141 = vmatpush1.msra.mxu0 %v1740
    %2142 = vmatprep.subr.mxu0 0.0
    %2143 = vmatpush1.msra.mxu0 0.0
    %2144 = vmatprep.subr.mxu0 0.0
    %2145 = vmatpush1.msra.mxu0 0.0
    %2146 = vmatprep.subr.mxu0 0.0
    %2147 = vmatpush1.msra.mxu0 0.0
    %2148 = vmatprep.subr.mxu0 0.0
    %2149 = vmatpush1.msra.mxu0 0.0
    %2150 = vmatprep.subr.mxu0 0.0
    %2151 = vmatpush1.msra.mxu0 0.0
    %2152 = vmatprep.subr.mxu0 0.0
    %2153 = vmatpush1.msra.mxu0 0.0
    %2154 = vmatprep.subr.mxu0 0.0
    %2155 = vmatpush1.msra.mxu0 0.0
    %2156 = vmatprep.subr.mxu0 0.0
    %2157 = vmatpush1.msra.mxu0 0.0
    %2158 = vmatprep.subr.mxu0 0.0
    %2159 = vmatpush1.msra.mxu0 0.0
    %2160 = vmatprep.subr.mxu0 0.0
    %2161 = vmatpush1.msra.mxu0 0.0
    %2162 = vmatprep.subr.mxu0 0.0
    %2163 = vmatpush1.msra.mxu0 0.0
    %2164 = vmatprep.subr.mxu0 0.0
    %2165 = vmatpush1.msra.mxu0 0.0
    %2166 = vmatprep.subr.mxu0 0.0
    %2167 = vmatpush1.msra.mxu0 0.0
    %2168 = vmatprep.subr.mxu0 0.0
    %2169 = vmatpush1.msra.mxu0 0.0
    %2170 = vmatprep.subr.mxu0 0.0
    %2171 = vmatpush1.msra.mxu0 0.0
    %2172 = vmatprep.subr.mxu0 0.0
    %2173 = vmatpush1.msra.mxu0 0.0
    %2174 = vmatprep.subr.mxu0 0.0
    %2175 = vmatpush1.msra.mxu0 0.0
    %2176 = vmatprep.subr.mxu0 0.0
    %2177 = vmatpush1.msra.mxu0 0.0
    %2178 = vmatprep.subr.mxu0 0.0
    %2179 = vmatpush1.msra.mxu0 0.0
    %2180 = vmatprep.subr.mxu0 0.0
    %2181 = vmatpush1.msra.mxu0 0.0
    %2182 = vmatprep.subr.mxu0 0.0
    %2183 = vmatpush1.msra.mxu0 0.0
    %2184 = vmatprep.subr.mxu0 0.0
    %2185 = vmatpush1.msra.mxu0 0.0
    %2186 = vmatprep.subr.mxu0 0.0
    %2187 = vmatpush1.msra.mxu0 0.0
    %2188 = vmatprep.subr.mxu0 0.0
    %2189 = vmatpush1.msra.mxu0 0.0
    %2190 = vmatprep.subr.mxu0 0.0
    %2191 = vmatpush1.msra.mxu0 0.0
    %2192 = vmatprep.subr.mxu0 0.0
    %2193 = vmatpush1.msra.mxu0 0.0
    %2194 = vmatprep.mubr.f32.mxu0 0.0
    %2195 = vmatmul.mubr.f32.gmra.mrb[0].mxu0 %v2057
    %v2196 = vpop.f32.mrb[0].mxu0
    %v2197 = vadd.f32 0.0, %v2196
    %v2198 = vpop.f32.mrb[0].mxu0
    %v2199 = vadd.f32 0.0, %v2198
    %2200 = vdwg.mxu0
    %v2202 = vsel %vm143, %v1669, 0
    %2204 = vmatprep.subr.mxu0 %v1743
    %2205 = vmatpush1.msra.mxu0 %v1742
    %2206 = vmatprep.subr.mxu0 %v1747
    %2207 = vmatpush1.msra.mxu0 %v1746
    %2208 = vmatprep.subr.mxu0 %v1751
    %2209 = vmatpush1.msra.mxu0 %v1750
    %2210 = vmatprep.subr.mxu0 %v1755
    %2211 = vmatpush1.msra.mxu0 %v1754
    %2212 = vmatprep.subr.mxu0 %v1759
    %2213 = vmatpush1.msra.mxu0 %v1758
    %2214 = vmatprep.subr.mxu0 %v1763
    %2215 = vmatpush1.msra.mxu0 %v1762
    %2216 = vmatprep.subr.mxu0 0.0
    %2217 = vmatpush1.msra.mxu0 0.0
    %2218 = vmatprep.subr.mxu0 0.0
    %2219 = vmatpush1.msra.mxu0 0.0
    %2220 = vmatprep.subr.mxu0 0.0
    %2221 = vmatpush1.msra.mxu0 0.0
    %2222 = vmatprep.subr.mxu0 0.0
    %2223 = vmatpush1.msra.mxu0 0.0
    %2224 = vmatprep.subr.mxu0 0.0
    %2225 = vmatpush1.msra.mxu0 0.0
    %2226 = vmatprep.subr.mxu0 0.0
    %2227 = vmatpush1.msra.mxu0 0.0
    %2228 = vmatprep.subr.mxu0 0.0
    %2229 = vmatpush1.msra.mxu0 0.0
    %2230 = vmatprep.subr.mxu0 0.0
    %2231 = vmatpush1.msra.mxu0 0.0
    %2232 = vmatprep.subr.mxu0 0.0
    %2233 = vmatpush1.msra.mxu0 0.0
    %2234 = vmatprep.subr.mxu0 0.0
    %2235 = vmatpush1.msra.mxu0 0.0
    %2236 = vmatprep.subr.mxu0 0.0
    %2237 = vmatpush1.msra.mxu0 0.0
    %2238 = vmatprep.subr.mxu0 0.0
    %2239 = vmatpush1.msra.mxu0 0.0
    %2240 = vmatprep.subr.mxu0 0.0
    %2241 = vmatpush1.msra.mxu0 0.0
    %2242 = vmatprep.subr.mxu0 0.0
    %2243 = vmatpush1.msra.mxu0 0.0
    %2244 = vmatprep.subr.mxu0 0.0
    %2245 = vmatpush1.msra.mxu0 0.0
    %2246 = vmatprep.subr.mxu0 0.0
    %2247 = vmatpush1.msra.mxu0 0.0
    %2248 = vmatprep.subr.mxu0 0.0
    %2249 = vmatpush1.msra.mxu0 0.0
    %2250 = vmatprep.subr.mxu0 0.0
    %2251 = vmatpush1.msra.mxu0 0.0
    %2252 = vmatprep.subr.mxu0 0.0
    %2253 = vmatpush1.msra.mxu0 0.0
    %2254 = vmatprep.subr.mxu0 0.0
    %2255 = vmatpush1.msra.mxu0 0.0
    %2256 = vmatprep.subr.mxu0 0.0
    %2257 = vmatpush1.msra.mxu0 0.0
    %2258 = vmatprep.subr.mxu0 0.0
    %2259 = vmatpush1.msra.mxu0 0.0
    %2260 = vmatprep.subr.mxu0 0.0
    %2261 = vmatpush1.msra.mxu0 0.0
    %2262 = vmatprep.subr.mxu0 0.0
    %2263 = vmatpush1.msra.mxu0 0.0
    %2264 = vmatprep.subr.mxu0 0.0
    %2265 = vmatpush1.msra.mxu0 0.0
    %2266 = vmatprep.subr.mxu0 0.0
    %2267 = vmatpush1.msra.mxu0 0.0
    %2268 = vmatprep.mubr.f32.mxu0 0.0
    %2269 = vmatmul.mubr.f32.gmra.mrb[0].mxu0 %v2202
    %v2270 = vpop.f32.mrb[0].mxu0
    %v2271 = vadd.f32 0.0, %v2270
    %v2272 = vpop.f32.mrb[0].mxu0
    %v2273 = vadd.f32 0.0, %v2272
    %2274 = vdwg.mxu0
    %2275 = vmatprep.subr.mxu0 %v1745
    %2276 = vmatpush1.msra.mxu0 %v1744
    %2277 = vmatprep.subr.mxu0 %v1749
    %2278 = vmatpush1.msra.mxu0 %v1748
    %2279 = vmatprep.subr.mxu0 %v1753
    %2280 = vmatpush1.msra.mxu0 %v1752
    %2281 = vmatprep.subr.mxu0 %v1757
    %2282 = vmatpush1.msra.mxu0 %v1756
    %2283 = vmatprep.subr.mxu0 %v1761
    %2284 = vmatpush1.msra.mxu0 %v1760
    %2285 = vmatprep.subr.mxu0 %v1765
    %2286 = vmatpush1.msra.mxu0 %v1764
    %2287 = vmatprep.subr.mxu0 0.0
    %2288 = vmatpush1.msra.mxu0 0.0
    %2289 = vmatprep.subr.mxu0 0.0
    %2290 = vmatpush1.msra.mxu0 0.0
    %2291 = vmatprep.subr.mxu0 0.0
    %2292 = vmatpush1.msra.mxu0 0.0
    %2293 = vmatprep.subr.mxu0 0.0
    %2294 = vmatpush1.msra.mxu0 0.0
    %2295 = vmatprep.subr.mxu0 0.0
    %2296 = vmatpush1.msra.mxu0 0.0
    %2297 = vmatprep.subr.mxu0 0.0
    %2298 = vmatpush1.msra.mxu0 0.0
    %2299 = vmatprep.subr.mxu0 0.0
    %2300 = vmatpush1.msra.mxu0 0.0
    %2301 = vmatprep.subr.mxu0 0.0
    %2302 = vmatpush1.msra.mxu0 0.0
    %2303 = vmatprep.subr.mxu0 0.0
    %2304 = vmatpush1.msra.mxu0 0.0
    %2305 = vmatprep.subr.mxu0 0.0
    %2306 = vmatpush1.msra.mxu0 0.0
    %2307 = vmatprep.subr.mxu0 0.0
    %2308 = vmatpush1.msra.mxu0 0.0
    %2309 = vmatprep.subr.mxu0 0.0
    %2310 = vmatpush1.msra.mxu0 0.0
    %2311 = vmatprep.subr.mxu0 0.0
    %2312 = vmatpush1.msra.mxu0 0.0
    %2313 = vmatprep.subr.mxu0 0.0
    %2314 = vmatpush1.msra.mxu0 0.0
    %2315 = vmatprep.subr.mxu0 0.0
    %2316 = vmatpush1.msra.mxu0 0.0
    %2317 = vmatprep.subr.mxu0 0.0
    %2318 = vmatpush1.msra.mxu0 0.0
    %2319 = vmatprep.subr.mxu0 0.0
    %2320 = vmatpush1.msra.mxu0 0.0
    %2321 = vmatprep.subr.mxu0 0.0
    %2322 = vmatpush1.msra.mxu0 0.0
    %2323 = vmatprep.subr.mxu0 0.0
    %2324 = vmatpush1.msra.mxu0 0.0
    %2325 = vmatprep.subr.mxu0 0.0
    %2326 = vmatpush1.msra.mxu0 0.0
    %2327 = vmatprep.subr.mxu0 0.0
    %2328 = vmatpush1.msra.mxu0 0.0
    %2329 = vmatprep.subr.mxu0 0.0
    %2330 = vmatpush1.msra.mxu0 0.0
    %2331 = vmatprep.subr.mxu0 0.0
    %2332 = vmatpush1.msra.mxu0 0.0
    %2333 = vmatprep.subr.mxu0 0.0
    %2334 = vmatpush1.msra.mxu0 0.0
    %2335 = vmatprep.subr.mxu0 0.0
    %2336 = vmatpush1.msra.mxu0 0.0
    %2337 = vmatprep.subr.mxu0 0.0
    %2338 = vmatpush1.msra.mxu0 0.0
    %2339 = vmatprep.mubr.f32.mxu0 0.0
    %2340 = vmatmul.mubr.f32.gmra.mrb[0].mxu0 %v2202
    %v2341 = vpop.f32.mrb[0].mxu0
    %v2342 = vadd.f32 0.0, %v2341
    %v2343 = vpop.f32.mrb[0].mxu0
    %v2344 = vadd.f32 0.0, %v2343
    %2345 = vdwg.mxu0
    %v2346 = vxor.u32 %v1836, 2147483648
    %v2347 = vxor.u32 %v1838, 2147483648
    %v2348 = vxor.u32 %v1907, 2147483648
    %v2349 = vxor.u32 %v1981, 2147483648
    %v2350 = vxor.u32 %v1983, 2147483648
    %v2351 = vxor.u32 %v2052, 2147483648
    %v2352 = vxor.u32 %v2126, 2147483648
    %v2353 = vxor.u32 %v2128, 2147483648
    %v2354 = vxor.u32 %v2197, 2147483648
    %v2355 = vxor.u32 %v2271, 2147483648
    %v2356 = vxor.u32 %v2273, 2147483648
    %v2357 = vxor.u32 %v2342, 2147483648
    %v2358 = vmul.f32 %v2346, 1.442695
    %v2359 = vpow.pop %v2358
    %v2360 = vmul.f32 %v2347, 1.442695
    %v2361 = vpow.pop %v2360
    %v2362 = vmul.f32 %v2348, 1.442695
    %v2363 = vpow.pop %v2362
    %v2364 = vmul.f32 %v2349, 1.442695
    %v2365 = vpow.pop %v2364
    %v2366 = vmul.f32 %v2350, 1.442695
    %v2367 = vpow.pop %v2366
    %v2368 = vmul.f32 %v2351, 1.442695
    %v2369 = vpow.pop %v2368
    %v2370 = vmul.f32 %v2352, 1.442695
    %v2371 = vpow.pop %v2370
    %v2372 = vmul.f32 %v2353, 1.442695
    %v2373 = vpow.pop %v2372
    %v2374 = vmul.f32 %v2354, 1.442695
    %v2375 = vpow.pop %v2374
    %v2376 = vmul.f32 %v2355, 1.442695
    %v2377 = vpow.pop %v2376
    %v2378 = vmul.f32 %v2356, 1.442695
    %v2379 = vpow.pop %v2378
    %v2380 = vmul.f32 %v2357, 1.442695
    %v2381 = vpow.pop %v2380
    %v2382 = vadd.f32 %v2359, 1.0
    %v2383 = vadd.f32 %v2361, 1.0
    %v2384 = vadd.f32 %v2363, 1.0
    %v2385 = vadd.f32 %v2365, 1.0
    %v2386 = vadd.f32 %v2367, 1.0
    %v2387 = vadd.f32 %v2369, 1.0
    %v2388 = vadd.f32 %v2371, 1.0
    %v2389 = vadd.f32 %v2373, 1.0
    %v2390 = vadd.f32 %v2375, 1.0
    %v2391 = vadd.f32 %v2377, 1.0
    %v2392 = vadd.f32 %v2379, 1.0
    %v2393 = vadd.f32 %v2381, 1.0
    %v2394 = vrcp.pop %v2382
    %v2395 = vmul.f32 1.0, %v2394
    %v2396 = vrcp.pop %v2383
    %v2397 = vmul.f32 1.0, %v2396
    %v2398 = vrcp.pop %v2384
    %v2399 = vmul.f32 1.0, %v2398
    %v2400 = vrcp.pop %v2385
    %v2401 = vmul.f32 1.0, %v2400
    %v2402 = vrcp.pop %v2386
    %v2403 = vmul.f32 1.0, %v2402
    %v2404 = vrcp.pop %v2387
    %v2405 = vmul.f32 1.0, %v2404
    %v2406 = vrcp.pop %v2388
    %v2407 = vmul.f32 1.0, %v2406
    %v2408 = vrcp.pop %v2389
    %v2409 = vmul.f32 1.0, %v2408
    %v2410 = vrcp.pop %v2390
    %v2411 = vmul.f32 1.0, %v2410
    %v2412 = vrcp.pop %v2391
    %v2413 = vmul.f32 1.0, %v2412
    %v2414 = vrcp.pop %v2392
    %v2415 = vmul.f32 1.0, %v2414
    %v2416 = vrcp.pop %v2393
    %v2417 = vmul.f32 1.0, %v2416
    %v2418 = vtanh.pop %v1909
    %v2419 = vtanh.pop %v2054
    %v2420 = vtanh.pop %v2199
    %v2421 = vtanh.pop %v2344
    %v2422 = vmul.f32 %v2397, %v1632
    %v2423 = vmul.f32 %v2403, %v1633
    %v2424 = vmul.f32 %v2409, %v1634
    %v2425 = vmul.f32 %v2415, %v1635
    %v2426 = vmul.f32 %v2395, %v2418
    %v2427 = vmul.f32 %v2401, %v2419
    %v2428 = vmul.f32 %v2407, %v2420
    %v2429 = vmul.f32 %v2413, %v2421
    %v2430 = vadd.f32 %v2422, %v2426
    %v2431 = vadd.f32 %v2423, %v2427
    %v2432 = vadd.f32 %v2424, %v2428
    %v2433 = vadd.f32 %v2425, %v2429
    %v2434 = vtanh.pop %v2430
    %v2435 = vtanh.pop %v2431
    %v2436 = vtanh.pop %v2432
    %v2437 = vtanh.pop %v2433
    %v2438 = vmul.f32 %v2399, %v2434
    %v2439 = vmul.f32 %v2405, %v2435
    %v2440 = vmul.f32 %v2411, %v2436
    %v2441 = vmul.f32 %v2417, %v2437
    %v2442 = vsel 1, %v2430, %v1632
    %v2443 = vsel 1, %v2431, %v1633
    %v2444 = vsel 1, %v2432, %v1634
    %v2445 = vsel 0, %v2433, %v1635
    %v2446 = vld [vmem:[#allocation2] sm:$0x3]
    %v2447 = vld [vmem:[#allocation2 + $0x2] sm:$0x3]
    %v2448 = vld [vmem:[#allocation2 + $0x4] sm:$0x3]
    %v2449 = vld [vmem:[#allocation2 + $0x6] sm:$0x3]
    %v2450 = vsel 1, %v2438, %v2446
    %v2451 = vsel 1, %v2439, %v2447
    %v2452 = vsel 1, %v2440, %v2448
    %v2453 = vsel 0, %v2441, %v2449
    %2454 = vst.msk [vmem:[#allocation2] sm:$0x3] %vm832, %v2450
    %2455 = vst.msk [vmem:[#allocation2 + $0x2] sm:$0x3] %vm832, %v2451
    %2456 = vst.msk [vmem:[#allocation2 + $0x4] sm:$0x3] %vm832, %v2452
    %2457 = vst.msk [vmem:[#allocation2 + $0x6] sm:$0x3] %vm832, %v2453
    %2461 = vrot.lane.b32.xlu0 %v2438, 20
    %v2462 = vpop.permute.xlu0 %2461
    %2463 = vrot.lane.b32.xlu0 %v2439, 20
    %v2464 = vpop.permute.xlu0 %2463
    %2465 = vrot.lane.b32.xlu0 %v2440, 20
    %v2466 = vpop.permute.xlu0 %2465
    %2470 = vst.msk [vmem:[%s849] sm:$0x3] %vm41, %v2462
    %2471 = vst.msk [vmem:[%s849 + $0x2] sm:$0x3] %vm41, %v2464
    %2472 = vst.msk [vmem:[%s849 + $0x4] sm:$0x3] %vm41, %v2466
    %s2473 = scalar_lea.vmem %s0, 6
    %v2474 = vld [vmem:[%s2473] sm:$0x3]
    %2475 = vst.msk [vmem:[#allocation2] sm:$0x3] %vm41, %v2474
    %v2476 = vld [vmem:[#allocation2] sm:$0x3]
    %v2477 = vld [vmem:[#allocation2 + $0x2] sm:$0x3]
    %v2478 = vld [vmem:[#allocation2 + $0x4] sm:$0x3]
    %v2479 = vld [vmem:[#allocation2 + $0x6] sm:$0x3]
    %v2480 = vld [vmem:[#allocation4] sm:$0xff]
    %v2481 = vld [vmem:[#allocation4 + $0x8] sm:$0xff]
    %v2482 = vld [vmem:[#allocation4 + $0x10] sm:$0xff]
    %v2483 = vld [vmem:[#allocation4 + $0x18] sm:$0xff]
    %v2484 = vld [vmem:[#allocation4 + $0x20] sm:$0xff]
    %v2485 = vld [vmem:[#allocation4 + $0x28] sm:$0xff]
    %v2486 = vld [vmem:[#allocation4 + $0x30] sm:$0xff]
    %v2487 = vld [vmem:[#allocation4 + $0x38] sm:$0xff]
    %v2488 = vld [vmem:[#allocation4 + $0x40] sm:$0xff]
    %v2489 = vld [vmem:[#allocation4 + $0x48] sm:$0xff]
    %v2490 = vld [vmem:[#allocation4 + $0x50] sm:$0xff]
    %v2491 = vld [vmem:[#allocation4 + $0x58] sm:$0xff]
    %v2492 = vld [vmem:[#allocation4 + $0x60] sm:$0xff]
    %v2493 = vld [vmem:[#allocation4 + $0x68] sm:$0xff]
    %v2494 = vld [vmem:[#allocation4 + $0x70] sm:$0xff]
    %v2495 = vld [vmem:[#allocation4 + $0x78] sm:$0xff]
    %v2496 = vld [vmem:[#allocation4 + $0x80] sm:$0xff]
    %v2497 = vld [vmem:[#allocation4 + $0x88] sm:$0xff]
    %v2498 = vld [vmem:[#allocation4 + $0x90] sm:$0xff]
    %v2499 = vld [vmem:[#allocation4 + $0x98] sm:$0xff]
    %v2500 = vld [vmem:[#allocation4 + $0xa0] sm:$0xff]
    %v2501 = vld [vmem:[#allocation4 + $0xa8] sm:$0xff]
    %v2502 = vld [vmem:[#allocation4 + $0xb0] sm:$0xff]
    %v2503 = vld [vmem:[#allocation4 + $0xb8] sm:$0xff]
    %v2504 = vld [vmem:[#allocation4 + $0xc0] sm:$0xff]
    %v2505 = vld [vmem:[#allocation4 + $0xc8] sm:$0xff]
    %v2506 = vld [vmem:[#allocation4 + $0xd0] sm:$0xff]
    %v2507 = vld [vmem:[#allocation4 + $0xd8] sm:$0xff]
    %v2508 = vld [vmem:[#allocation4 + $0xe0] sm:$0xff]
    %v2509 = vld [vmem:[#allocation4 + $0xe8] sm:$0xff]
    %v2510 = vld [vmem:[#allocation4 + $0xf0] sm:$0xff]
    %v2511 = vld [vmem:[#allocation4 + $0xf8] sm:$0xff]
    %v2512 = vld [vmem:[#allocation4 + $0x100] sm:$0xff]
    %v2513 = vld [vmem:[#allocation4 + $0x108] sm:$0xff]
    %v2514 = vld [vmem:[#allocation4 + $0x110] sm:$0xff]
    %v2515 = vld [vmem:[#allocation4 + $0x118] sm:$0xff]
    %v2516 = vld [vmem:[#allocation4 + $0x120] sm:$0xff]
    %v2517 = vld [vmem:[#allocation4 + $0x128] sm:$0xff]
    %v2518 = vld [vmem:[#allocation4 + $0x130] sm:$0xff]
    %v2519 = vld [vmem:[#allocation4 + $0x138] sm:$0xff]
    %v2520 = vld [vmem:[#allocation4 + $0x140] sm:$0xff]
    %v2521 = vld [vmem:[#allocation4 + $0x148] sm:$0xff]
    %v2522 = vld [vmem:[#allocation4 + $0x150] sm:$0xff]
    %v2523 = vld [vmem:[#allocation4 + $0x158] sm:$0xff]
    %v2524 = vld [vmem:[#allocation4 + $0x160] sm:$0xff]
    %v2525 = vld [vmem:[#allocation4 + $0x168] sm:$0xff]
    %v2526 = vld [vmem:[#allocation4 + $0x170] sm:$0xff]
    %v2527 = vld [vmem:[#allocation4 + $0x178] sm:$0xff]
    %v2528 = vld [vmem:[#allocation4 + $0x180] sm:$0xff]
    %v2529 = vld [vmem:[#allocation4 + $0x188] sm:$0xff]
    %v2530 = vld [vmem:[#allocation4 + $0x190] sm:$0xff]
    %v2531 = vld [vmem:[#allocation4 + $0x198] sm:$0xff]
    %v2532 = vld [vmem:[#allocation4 + $0x1a0] sm:$0xff]
    %v2533 = vld [vmem:[#allocation4 + $0x1a8] sm:$0xff]
    %v2534 = vld [vmem:[#allocation4 + $0x1b0] sm:$0xff]
    %v2535 = vld [vmem:[#allocation4 + $0x1b8] sm:$0xff]
    %v2536 = vld [vmem:[#allocation4 + $0x1c0] sm:$0xff]
    %v2537 = vld [vmem:[#allocation4 + $0x1c8] sm:$0xff]
    %v2538 = vld [vmem:[#allocation4 + $0x1d0] sm:$0xff]
    %v2539 = vld [vmem:[#allocation4 + $0x1d8] sm:$0xff]
    %v2540 = vld [vmem:[#allocation4 + $0x1e0] sm:$0xff]
    %v2541 = vld [vmem:[#allocation4 + $0x1e8] sm:$0xff]
    %v2542 = vld [vmem:[#allocation4 + $0x1f0] sm:$0xff]
    %v2543 = vld [vmem:[#allocation4 + $0x1f8] sm:$0xff]
    %v2544 = vld [vmem:[#allocation4 + $0x200] sm:$0xff]
    %v2545 = vld [vmem:[#allocation4 + $0x208] sm:$0xff]
    %v2546 = vld [vmem:[#allocation4 + $0x210] sm:$0xff]
    %v2547 = vld [vmem:[#allocation4 + $0x218] sm:$0xff]
    %v2548 = vld [vmem:[#allocation4 + $0x220] sm:$0xff]
    %v2549 = vld [vmem:[#allocation4 + $0x228] sm:$0xff]
    %v2550 = vld [vmem:[#allocation4 + $0x230] sm:$0xff]
    %v2551 = vld [vmem:[#allocation4 + $0x238] sm:$0xff]
    %v2552 = vld [vmem:[#allocation4 + $0x240] sm:$0xff]
    %v2553 = vld [vmem:[#allocation4 + $0x248] sm:$0xff]
    %v2554 = vld [vmem:[#allocation4 + $0x250] sm:$0xff]
    %v2555 = vld [vmem:[#allocation4 + $0x258] sm:$0xff]
    %v2556 = vld [vmem:[#allocation4 + $0x260] sm:$0xff]
    %v2557 = vld [vmem:[#allocation4 + $0x268] sm:$0xff]
    %v2558 = vld [vmem:[#allocation4 + $0x270] sm:$0xff]
    %v2559 = vld [vmem:[#allocation4 + $0x278] sm:$0xff]
    %v2560 = vld [vmem:[#allocation4 + $0x280] sm:$0xff]
    %v2561 = vld [vmem:[#allocation4 + $0x288] sm:$0xff]
    %v2562 = vld [vmem:[#allocation4 + $0x290] sm:$0xff]
    %v2563 = vld [vmem:[#allocation4 + $0x298] sm:$0xff]
    %v2564 = vld [vmem:[#allocation4 + $0x2a0] sm:$0xff]
    %v2565 = vld [vmem:[#allocation4 + $0x2a8] sm:$0xff]
    %v2566 = vld [vmem:[#allocation4 + $0x2b0] sm:$0xff]
    %v2567 = vld [vmem:[#allocation4 + $0x2b8] sm:$0xff]
    %v2568 = vld [vmem:[#allocation4 + $0x2c0] sm:$0xff]
    %v2569 = vld [vmem:[#allocation4 + $0x2c8] sm:$0xff]
    %v2570 = vld [vmem:[#allocation4 + $0x2d0] sm:$0xff]
    %v2571 = vld [vmem:[#allocation4 + $0x2d8] sm:$0xff]
    %v2572 = vld [vmem:[#allocation4 + $0x2e0] sm:$0xff]
    %v2573 = vld [vmem:[#allocation4 + $0x2e8] sm:$0xff]
    %v2574 = vld [vmem:[#allocation4 + $0x2f0] sm:$0xff]
    %v2575 = vld [vmem:[#allocation4 + $0x2f8] sm:$0xff]
    %v2577 = vsel %vm143, %v2476, 0
    %2579 = vmatprep.subr.mxu0 %v2481
    %2580 = vmatpush1.msra.mxu0 %v2480
    %2581 = vmatprep.subr.mxu0 %v2485
    %2582 = vmatpush1.msra.mxu0 %v2484
    %2583 = vmatprep.subr.mxu0 %v2489
    %2584 = vmatpush1.msra.mxu0 %v2488
    %2585 = vmatprep.subr.mxu0 %v2493
    %2586 = vmatpush1.msra.mxu0 %v2492
    %2587 = vmatprep.subr.mxu0 %v2497
    %2588 = vmatpush1.msra.mxu0 %v2496
    %2589 = vmatprep.subr.mxu0 %v2501
    %2590 = vmatpush1.msra.mxu0 %v2500
    %2591 = vmatprep.subr.mxu0 0.0
    %2592 = vmatpush1.msra.mxu0 0.0
    %2593 = vmatprep.subr.mxu0 0.0
    %2594 = vmatpush1.msra.mxu0 0.0
    %2595 = vmatprep.subr.mxu0 0.0
    %2596 = vmatpush1.msra.mxu0 0.0
    %2597 = vmatprep.subr.mxu0 0.0
    %2598 = vmatpush1.msra.mxu0 0.0
    %2599 = vmatprep.subr.mxu0 0.0
    %2600 = vmatpush1.msra.mxu0 0.0
    %2601 = vmatprep.subr.mxu0 0.0
    %2602 = vmatpush1.msra.mxu0 0.0
    %2603 = vmatprep.subr.mxu0 0.0
    %2604 = vmatpush1.msra.mxu0 0.0
    %2605 = vmatprep.subr.mxu0 0.0
    %2606 = vmatpush1.msra.mxu0 0.0
    %2607 = vmatprep.subr.mxu0 0.0
    %2608 = vmatpush1.msra.mxu0 0.0
    %2609 = vmatprep.subr.mxu0 0.0
    %2610 = vmatpush1.msra.mxu0 0.0
    %2611 = vmatprep.subr.mxu0 0.0
    %2612 = vmatpush1.msra.mxu0 0.0
    %2613 = vmatprep.subr.mxu0 0.0
    %2614 = vmatpush1.msra.mxu0 0.0
    %2615 = vmatprep.subr.mxu0 0.0
    %2616 = vmatpush1.msra.mxu0 0.0
    %2617 = vmatprep.subr.mxu0 0.0
    %2618 = vmatpush1.msra.mxu0 0.0
    %2619 = vmatprep.subr.mxu0 0.0
    %2620 = vmatpush1.msra.mxu0 0.0
    %2621 = vmatprep.subr.mxu0 0.0
    %2622 = vmatpush1.msra.mxu0 0.0
    %2623 = vmatprep.subr.mxu0 0.0
    %2624 = vmatpush1.msra.mxu0 0.0
    %2625 = vmatprep.subr.mxu0 0.0
    %2626 = vmatpush1.msra.mxu0 0.0
    %2627 = vmatprep.subr.mxu0 0.0
    %2628 = vmatpush1.msra.mxu0 0.0
    %2629 = vmatprep.subr.mxu0 0.0
    %2630 = vmatpush1.msra.mxu0 0.0
    %2631 = vmatprep.subr.mxu0 0.0
    %2632 = vmatpush1.msra.mxu0 0.0
    %2633 = vmatprep.subr.mxu0 0.0
    %2634 = vmatpush1.msra.mxu0 0.0
    %2635 = vmatprep.subr.mxu0 0.0
    %2636 = vmatpush1.msra.mxu0 0.0
    %2637 = vmatprep.subr.mxu0 0.0
    %2638 = vmatpush1.msra.mxu0 0.0
    %2639 = vmatprep.subr.mxu0 0.0
    %2640 = vmatpush1.msra.mxu0 0.0
    %2641 = vmatprep.subr.mxu0 0.0
    %2642 = vmatpush1.msra.mxu0 0.0
    %2643 = vmatprep.mubr.f32.mxu0 0.0
    %2644 = vmatmul.mubr.f32.gmra.mrb[0].mxu0 %v2577
    %v2645 = vpop.f32.mrb[0].mxu0
    %v2646 = vadd.f32 0.0, %v2645
    %v2647 = vpop.f32.mrb[0].mxu0
    %v2648 = vadd.f32 0.0, %v2647
    %2649 = vdwg.mxu0
    %2650 = vmatprep.subr.mxu0 %v2483
    %2651 = vmatpush1.msra.mxu0 %v2482
    %2652 = vmatprep.subr.mxu0 %v2487
    %2653 = vmatpush1.msra.mxu0 %v2486
    %2654 = vmatprep.subr.mxu0 %v2491
    %2655 = vmatpush1.msra.mxu0 %v2490
    %2656 = vmatprep.subr.mxu0 %v2495
    %2657 = vmatpush1.msra.mxu0 %v2494
    %2658 = vmatprep.subr.mxu0 %v2499
    %2659 = vmatpush1.msra.mxu0 %v2498
    %2660 = vmatprep.subr.mxu0 %v2503
    %2661 = vmatpush1.msra.mxu0 %v2502
    %2662 = vmatprep.subr.mxu0 0.0
    %2663 = vmatpush1.msra.mxu0 0.0
    %2664 = vmatprep.subr.mxu0 0.0
    %2665 = vmatpush1.msra.mxu0 0.0
    %2666 = vmatprep.subr.mxu0 0.0
    %2667 = vmatpush1.msra.mxu0 0.0
    %2668 = vmatprep.subr.mxu0 0.0
    %2669 = vmatpush1.msra.mxu0 0.0
    %2670 = vmatprep.subr.mxu0 0.0
    %2671 = vmatpush1.msra.mxu0 0.0
    %2672 = vmatprep.subr.mxu0 0.0
    %2673 = vmatpush1.msra.mxu0 0.0
    %2674 = vmatprep.subr.mxu0 0.0
    %2675 = vmatpush1.msra.mxu0 0.0
    %2676 = vmatprep.subr.mxu0 0.0
    %2677 = vmatpush1.msra.mxu0 0.0
    %2678 = vmatprep.subr.mxu0 0.0
    %2679 = vmatpush1.msra.mxu0 0.0
    %2680 = vmatprep.subr.mxu0 0.0
    %2681 = vmatpush1.msra.mxu0 0.0
    %2682 = vmatprep.subr.mxu0 0.0
    %2683 = vmatpush1.msra.mxu0 0.0
    %2684 = vmatprep.subr.mxu0 0.0
    %2685 = vmatpush1.msra.mxu0 0.0
    %2686 = vmatprep.subr.mxu0 0.0
    %2687 = vmatpush1.msra.mxu0 0.0
    %2688 = vmatprep.subr.mxu0 0.0
    %2689 = vmatpush1.msra.mxu0 0.0
    %2690 = vmatprep.subr.mxu0 0.0
    %2691 = vmatpush1.msra.mxu0 0.0
    %2692 = vmatprep.subr.mxu0 0.0
    %2693 = vmatpush1.msra.mxu0 0.0
    %2694 = vmatprep.subr.mxu0 0.0
    %2695 = vmatpush1.msra.mxu0 0.0
    %2696 = vmatprep.subr.mxu0 0.0
    %2697 = vmatpush1.msra.mxu0 0.0
    %2698 = vmatprep.subr.mxu0 0.0
    %2699 = vmatpush1.msra.mxu0 0.0
    %2700 = vmatprep.subr.mxu0 0.0
    %2701 = vmatpush1.msra.mxu0 0.0
    %2702 = vmatprep.subr.mxu0 0.0
    %2703 = vmatpush1.msra.mxu0 0.0
    %2704 = vmatprep.subr.mxu0 0.0
    %2705 = vmatpush1.msra.mxu0 0.0
    %2706 = vmatprep.subr.mxu0 0.0
    %2707 = vmatpush1.msra.mxu0 0.0
    %2708 = vmatprep.subr.mxu0 0.0
    %2709 = vmatpush1.msra.mxu0 0.0
    %2710 = vmatprep.subr.mxu0 0.0
    %2711 = vmatpush1.msra.mxu0 0.0
    %2712 = vmatprep.subr.mxu0 0.0
    %2713 = vmatpush1.msra.mxu0 0.0
    %2714 = vmatprep.mubr.f32.mxu0 0.0
    %2715 = vmatmul.mubr.f32.gmra.mrb[0].mxu0 %v2577
    %v2716 = vpop.f32.mrb[0].mxu0
    %v2717 = vadd.f32 0.0, %v2716
    %v2718 = vpop.f32.mrb[0].mxu0
    %v2719 = vadd.f32 0.0, %v2718
    %2720 = vdwg.mxu0
    %v2722 = vsel %vm143, %v2477, 0
    %2724 = vmatprep.subr.mxu0 %v2505
    %2725 = vmatpush1.msra.mxu0 %v2504
    %2726 = vmatprep.subr.mxu0 %v2509
    %2727 = vmatpush1.msra.mxu0 %v2508
    %2728 = vmatprep.subr.mxu0 %v2513
    %2729 = vmatpush1.msra.mxu0 %v2512
    %2730 = vmatprep.subr.mxu0 %v2517
    %2731 = vmatpush1.msra.mxu0 %v2516
    %2732 = vmatprep.subr.mxu0 %v2521
    %2733 = vmatpush1.msra.mxu0 %v2520
    %2734 = vmatprep.subr.mxu0 %v2525
    %2735 = vmatpush1.msra.mxu0 %v2524
    %2736 = vmatprep.subr.mxu0 0.0
    %2737 = vmatpush1.msra.mxu0 0.0
    %2738 = vmatprep.subr.mxu0 0.0
    %2739 = vmatpush1.msra.mxu0 0.0
    %2740 = vmatprep.subr.mxu0 0.0
    %2741 = vmatpush1.msra.mxu0 0.0
    %2742 = vmatprep.subr.mxu0 0.0
    %2743 = vmatpush1.msra.mxu0 0.0
    %2744 = vmatprep.subr.mxu0 0.0
    %2745 = vmatpush1.msra.mxu0 0.0
    %2746 = vmatprep.subr.mxu0 0.0
    %2747 = vmatpush1.msra.mxu0 0.0
    %2748 = vmatprep.subr.mxu0 0.0
    %2749 = vmatpush1.msra.mxu0 0.0
    %2750 = vmatprep.subr.mxu0 0.0
    %2751 = vmatpush1.msra.mxu0 0.0
    %2752 = vmatprep.subr.mxu0 0.0
    %2753 = vmatpush1.msra.mxu0 0.0
    %2754 = vmatprep.subr.mxu0 0.0
    %2755 = vmatpush1.msra.mxu0 0.0
    %2756 = vmatprep.subr.mxu0 0.0
    %2757 = vmatpush1.msra.mxu0 0.0
    %2758 = vmatprep.subr.mxu0 0.0
    %2759 = vmatpush1.msra.mxu0 0.0
    %2760 = vmatprep.subr.mxu0 0.0
    %2761 = vmatpush1.msra.mxu0 0.0
    %2762 = vmatprep.subr.mxu0 0.0
    %2763 = vmatpush1.msra.mxu0 0.0
    %2764 = vmatprep.subr.mxu0 0.0
    %2765 = vmatpush1.msra.mxu0 0.0
    %2766 = vmatprep.subr.mxu0 0.0
    %2767 = vmatpush1.msra.mxu0 0.0
    %2768 = vmatprep.subr.mxu0 0.0
    %2769 = vmatpush1.msra.mxu0 0.0
    %2770 = vmatprep.subr.mxu0 0.0
    %2771 = vmatpush1.msra.mxu0 0.0
    %2772 = vmatprep.subr.mxu0 0.0
    %2773 = vmatpush1.msra.mxu0 0.0
    %2774 = vmatprep.subr.mxu0 0.0
    %2775 = vmatpush1.msra.mxu0 0.0
    %2776 = vmatprep.subr.mxu0 0.0
    %2777 = vmatpush1.msra.mxu0 0.0
    %2778 = vmatprep.subr.mxu0 0.0
    %2779 = vmatpush1.msra.mxu0 0.0
    %2780 = vmatprep.subr.mxu0 0.0
    %2781 = vmatpush1.msra.mxu0 0.0
    %2782 = vmatprep.subr.mxu0 0.0
    %2783 = vmatpush1.msra.mxu0 0.0
    %2784 = vmatprep.subr.mxu0 0.0
    %2785 = vmatpush1.msra.mxu0 0.0
    %2786 = vmatprep.subr.mxu0 0.0
    %2787 = vmatpush1.msra.mxu0 0.0
    %2788 = vmatprep.mubr.f32.mxu0 0.0
    %2789 = vmatmul.mubr.f32.gmra.mrb[0].mxu0 %v2722
    %v2790 = vpop.f32.mrb[0].mxu0
    %v2791 = vadd.f32 0.0, %v2790
    %v2792 = vpop.f32.mrb[0].mxu0
    %v2793 = vadd.f32 0.0, %v2792
    %2794 = vdwg.mxu0
    %2795 = vmatprep.subr.mxu0 %v2507
    %2796 = vmatpush1.msra.mxu0 %v2506
    %2797 = vmatprep.subr.mxu0 %v2511
    %2798 = vmatpush1.msra.mxu0 %v2510
    %2799 = vmatprep.subr.mxu0 %v2515
    %2800 = vmatpush1.msra.mxu0 %v2514
    %2801 = vmatprep.subr.mxu0 %v2519
    %2802 = vmatpush1.msra.mxu0 %v2518
    %2803 = vmatprep.subr.mxu0 %v2523
    %2804 = vmatpush1.msra.mxu0 %v2522
    %2805 = vmatprep.subr.mxu0 %v2527
    %2806 = vmatpush1.msra.mxu0 %v2526
    %2807 = vmatprep.subr.mxu0 0.0
    %2808 = vmatpush1.msra.mxu0 0.0
    %2809 = vmatprep.subr.mxu0 0.0
    %2810 = vmatpush1.msra.mxu0 0.0
    %2811 = vmatprep.subr.mxu0 0.0
    %2812 = vmatpush1.msra.mxu0 0.0
    %2813 = vmatprep.subr.mxu0 0.0
    %2814 = vmatpush1.msra.mxu0 0.0
    %2815 = vmatprep.subr.mxu0 0.0
    %2816 = vmatpush1.msra.mxu0 0.0
    %2817 = vmatprep.subr.mxu0 0.0
    %2818 = vmatpush1.msra.mxu0 0.0
    %2819 = vmatprep.subr.mxu0 0.0
    %2820 = vmatpush1.msra.mxu0 0.0
    %2821 = vmatprep.subr.mxu0 0.0
    %2822 = vmatpush1.msra.mxu0 0.0
    %2823 = vmatprep.subr.mxu0 0.0
    %2824 = vmatpush1.msra.mxu0 0.0
    %2825 = vmatprep.subr.mxu0 0.0
    %2826 = vmatpush1.msra.mxu0 0.0
    %2827 = vmatprep.subr.mxu0 0.0
    %2828 = vmatpush1.msra.mxu0 0.0
    %2829 = vmatprep.subr.mxu0 0.0
    %2830 = vmatpush1.msra.mxu0 0.0
    %2831 = vmatprep.subr.mxu0 0.0
    %2832 = vmatpush1.msra.mxu0 0.0
    %2833 = vmatprep.subr.mxu0 0.0
    %2834 = vmatpush1.msra.mxu0 0.0
    %2835 = vmatprep.subr.mxu0 0.0
    %2836 = vmatpush1.msra.mxu0 0.0
    %2837 = vmatprep.subr.mxu0 0.0
    %2838 = vmatpush1.msra.mxu0 0.0
    %2839 = vmatprep.subr.mxu0 0.0
    %2840 = vmatpush1.msra.mxu0 0.0
    %2841 = vmatprep.subr.mxu0 0.0
    %2842 = vmatpush1.msra.mxu0 0.0
    %2843 = vmatprep.subr.mxu0 0.0
    %2844 = vmatpush1.msra.mxu0 0.0
    %2845 = vmatprep.subr.mxu0 0.0
    %2846 = vmatpush1.msra.mxu0 0.0
    %2847 = vmatprep.subr.mxu0 0.0
    %2848 = vmatpush1.msra.mxu0 0.0
    %2849 = vmatprep.subr.mxu0 0.0
    %2850 = vmatpush1.msra.mxu0 0.0
    %2851 = vmatprep.subr.mxu0 0.0
    %2852 = vmatpush1.msra.mxu0 0.0
    %2853 = vmatprep.subr.mxu0 0.0
    %2854 = vmatpush1.msra.mxu0 0.0
    %2855 = vmatprep.subr.mxu0 0.0
    %2856 = vmatpush1.msra.mxu0 0.0
    %2857 = vmatprep.subr.mxu0 0.0
    %2858 = vmatpush1.msra.mxu0 0.0
    %2859 = vmatprep.mubr.f32.mxu0 0.0
    %2860 = vmatmul.mubr.f32.gmra.mrb[0].mxu0 %v2722
    %v2861 = vpop.f32.mrb[0].mxu0
    %v2862 = vadd.f32 0.0, %v2861
    %v2863 = vpop.f32.mrb[0].mxu0
    %v2864 = vadd.f32 0.0, %v2863
    %2865 = vdwg.mxu0
    %v2867 = vsel %vm143, %v2478, 0
    %2869 = vmatprep.subr.mxu0 %v2529
    %2870 = vmatpush1.msra.mxu0 %v2528
    %2871 = vmatprep.subr.mxu0 %v2533
    %2872 = vmatpush1.msra.mxu0 %v2532
    %2873 = vmatprep.subr.mxu0 %v2537
    %2874 = vmatpush1.msra.mxu0 %v2536
    %2875 = vmatprep.subr.mxu0 %v2541
    %2876 = vmatpush1.msra.mxu0 %v2540
    %2877 = vmatprep.subr.mxu0 %v2545
    %2878 = vmatpush1.msra.mxu0 %v2544
    %2879 = vmatprep.subr.mxu0 %v2549
    %2880 = vmatpush1.msra.mxu0 %v2548
    %2881 = vmatprep.subr.mxu0 0.0
    %2882 = vmatpush1.msra.mxu0 0.0
    %2883 = vmatprep.subr.mxu0 0.0
    %2884 = vmatpush1.msra.mxu0 0.0
    %2885 = vmatprep.subr.mxu0 0.0
    %2886 = vmatpush1.msra.mxu0 0.0
    %2887 = vmatprep.subr.mxu0 0.0
    %2888 = vmatpush1.msra.mxu0 0.0
    %2889 = vmatprep.subr.mxu0 0.0
    %2890 = vmatpush1.msra.mxu0 0.0
    %2891 = vmatprep.subr.mxu0 0.0
    %2892 = vmatpush1.msra.mxu0 0.0
    %2893 = vmatprep.subr.mxu0 0.0
    %2894 = vmatpush1.msra.mxu0 0.0
    %2895 = vmatprep.subr.mxu0 0.0
    %2896 = vmatpush1.msra.mxu0 0.0
    %2897 = vmatprep.subr.mxu0 0.0
    %2898 = vmatpush1.msra.mxu0 0.0
    %2899 = vmatprep.subr.mxu0 0.0
    %2900 = vmatpush1.msra.mxu0 0.0
    %2901 = vmatprep.subr.mxu0 0.0
    %2902 = vmatpush1.msra.mxu0 0.0
    %2903 = vmatprep.subr.mxu0 0.0
    %2904 = vmatpush1.msra.mxu0 0.0
    %2905 = vmatprep.subr.mxu0 0.0
    %2906 = vmatpush1.msra.mxu0 0.0
    %2907 = vmatprep.subr.mxu0 0.0
    %2908 = vmatpush1.msra.mxu0 0.0
    %2909 = vmatprep.subr.mxu0 0.0
    %2910 = vmatpush1.msra.mxu0 0.0
    %2911 = vmatprep.subr.mxu0 0.0
    %2912 = vmatpush1.msra.mxu0 0.0
    %2913 = vmatprep.subr.mxu0 0.0
    %2914 = vmatpush1.msra.mxu0 0.0
    %2915 = vmatprep.subr.mxu0 0.0
    %2916 = vmatpush1.msra.mxu0 0.0
    %2917 = vmatprep.subr.mxu0 0.0
    %2918 = vmatpush1.msra.mxu0 0.0
    %2919 = vmatprep.subr.mxu0 0.0
    %2920 = vmatpush1.msra.mxu0 0.0
    %2921 = vmatprep.subr.mxu0 0.0
    %2922 = vmatpush1.msra.mxu0 0.0
    %2923 = vmatprep.subr.mxu0 0.0
    %2924 = vmatpush1.msra.mxu0 0.0
    %2925 = vmatprep.subr.mxu0 0.0
    %2926 = vmatpush1.msra.mxu0 0.0
    %2927 = vmatprep.subr.mxu0 0.0
    %2928 = vmatpush1.msra.mxu0 0.0
    %2929 = vmatprep.subr.mxu0 0.0
    %2930 = vmatpush1.msra.mxu0 0.0
    %2931 = vmatprep.subr.mxu0 0.0
    %2932 = vmatpush1.msra.mxu0 0.0
    %2933 = vmatprep.mubr.f32.mxu0 0.0
    %2934 = vmatmul.mubr.f32.gmra.mrb[0].mxu0 %v2867
    %v2935 = vpop.f32.mrb[0].mxu0
    %v2936 = vadd.f32 0.0, %v2935
    %v2937 = vpop.f32.mrb[0].mxu0
    %v2938 = vadd.f32 0.0, %v2937
    %2939 = vdwg.mxu0
    %2940 = vmatprep.subr.mxu0 %v2531
    %2941 = vmatpush1.msra.mxu0 %v2530
    %2942 = vmatprep.subr.mxu0 %v2535
    %2943 = vmatpush1.msra.mxu0 %v2534
    %2944 = vmatprep.subr.mxu0 %v2539
    %2945 = vmatpush1.msra.mxu0 %v2538
    %2946 = vmatprep.subr.mxu0 %v2543
    %2947 = vmatpush1.msra.mxu0 %v2542
    %2948 = vmatprep.subr.mxu0 %v2547
    %2949 = vmatpush1.msra.mxu0 %v2546
    %2950 = vmatprep.subr.mxu0 %v2551
    %2951 = vmatpush1.msra.mxu0 %v2550
    %2952 = vmatprep.subr.mxu0 0.0
    %2953 = vmatpush1.msra.mxu0 0.0
    %2954 = vmatprep.subr.mxu0 0.0
    %2955 = vmatpush1.msra.mxu0 0.0
    %2956 = vmatprep.subr.mxu0 0.0
    %2957 = vmatpush1.msra.mxu0 0.0
    %2958 = vmatprep.subr.mxu0 0.0
    %2959 = vmatpush1.msra.mxu0 0.0
    %2960 = vmatprep.subr.mxu0 0.0
    %2961 = vmatpush1.msra.mxu0 0.0
    %2962 = vmatprep.subr.mxu0 0.0
    %2963 = vmatpush1.msra.mxu0 0.0
    %2964 = vmatprep.subr.mxu0 0.0
    %2965 = vmatpush1.msra.mxu0 0.0
    %2966 = vmatprep.subr.mxu0 0.0
    %2967 = vmatpush1.msra.mxu0 0.0
    %2968 = vmatprep.subr.mxu0 0.0
    %2969 = vmatpush1.msra.mxu0 0.0
    %2970 = vmatprep.subr.mxu0 0.0
    %2971 = vmatpush1.msra.mxu0 0.0
    %2972 = vmatprep.subr.mxu0 0.0
    %2973 = vmatpush1.msra.mxu0 0.0
    %2974 = vmatprep.subr.mxu0 0.0
    %2975 = vmatpush1.msra.mxu0 0.0
    %2976 = vmatprep.subr.mxu0 0.0
    %2977 = vmatpush1.msra.mxu0 0.0
    %2978 = vmatprep.subr.mxu0 0.0
    %2979 = vmatpush1.msra.mxu0 0.0
    %2980 = vmatprep.subr.mxu0 0.0
    %2981 = vmatpush1.msra.mxu0 0.0
    %2982 = vmatprep.subr.mxu0 0.0
    %2983 = vmatpush1.msra.mxu0 0.0
    %2984 = vmatprep.subr.mxu0 0.0
    %2985 = vmatpush1.msra.mxu0 0.0
    %2986 = vmatprep.subr.mxu0 0.0
    %2987 = vmatpush1.msra.mxu0 0.0
    %2988 = vmatprep.subr.mxu0 0.0
    %2989 = vmatpush1.msra.mxu0 0.0
    %2990 = vmatprep.subr.mxu0 0.0
    %2991 = vmatpush1.msra.mxu0 0.0
    %2992 = vmatprep.subr.mxu0 0.0
    %2993 = vmatpush1.msra.mxu0 0.0
    %2994 = vmatprep.subr.mxu0 0.0
    %2995 = vmatpush1.msra.mxu0 0.0
    %2996 = vmatprep.subr.mxu0 0.0
    %2997 = vmatpush1.msra.mxu0 0.0
    %2998 = vmatprep.subr.mxu0 0.0
    %2999 = vmatpush1.msra.mxu0 0.0
    %3000 = vmatprep.subr.mxu0 0.0
    %3001 = vmatpush1.msra.mxu0 0.0
    %3002 = vmatprep.subr.mxu0 0.0
    %3003 = vmatpush1.msra.mxu0 0.0
    %3004 = vmatprep.mubr.f32.mxu0 0.0
    %3005 = vmatmul.mubr.f32.gmra.mrb[0].mxu0 %v2867
    %v3006 = vpop.f32.mrb[0].mxu0
    %v3007 = vadd.f32 0.0, %v3006
    %v3008 = vpop.f32.mrb[0].mxu0
    %v3009 = vadd.f32 0.0, %v3008
    %3010 = vdwg.mxu0
    %v3012 = vsel %vm143, %v2479, 0
    %3014 = vmatprep.subr.mxu0 %v2553
    %3015 = vmatpush1.msra.mxu0 %v2552
    %3016 = vmatprep.subr.mxu0 %v2557
    %3017 = vmatpush1.msra.mxu0 %v2556
    %3018 = vmatprep.subr.mxu0 %v2561
    %3019 = vmatpush1.msra.mxu0 %v2560
    %3020 = vmatprep.subr.mxu0 %v2565
    %3021 = vmatpush1.msra.mxu0 %v2564
    %3022 = vmatprep.subr.mxu0 %v2569
    %3023 = vmatpush1.msra.mxu0 %v2568
    %3024 = vmatprep.subr.mxu0 %v2573
    %3025 = vmatpush1.msra.mxu0 %v2572
    %3026 = vmatprep.subr.mxu0 0.0
    %3027 = vmatpush1.msra.mxu0 0.0
    %3028 = vmatprep.subr.mxu0 0.0
    %3029 = vmatpush1.msra.mxu0 0.0
    %3030 = vmatprep.subr.mxu0 0.0
    %3031 = vmatpush1.msra.mxu0 0.0
    %3032 = vmatprep.subr.mxu0 0.0
    %3033 = vmatpush1.msra.mxu0 0.0
    %3034 = vmatprep.subr.mxu0 0.0
    %3035 = vmatpush1.msra.mxu0 0.0
    %3036 = vmatprep.subr.mxu0 0.0
    %3037 = vmatpush1.msra.mxu0 0.0
    %3038 = vmatprep.subr.mxu0 0.0
    %3039 = vmatpush1.msra.mxu0 0.0
    %3040 = vmatprep.subr.mxu0 0.0
    %3041 = vmatpush1.msra.mxu0 0.0
    %3042 = vmatprep.subr.mxu0 0.0
    %3043 = vmatpush1.msra.mxu0 0.0
    %3044 = vmatprep.subr.mxu0 0.0
    %3045 = vmatpush1.msra.mxu0 0.0
    %3046 = vmatprep.subr.mxu0 0.0
    %3047 = vmatpush1.msra.mxu0 0.0
    %3048 = vmatprep.subr.mxu0 0.0
    %3049 = vmatpush1.msra.mxu0 0.0
    %3050 = vmatprep.subr.mxu0 0.0
    %3051 = vmatpush1.msra.mxu0 0.0
    %3052 = vmatprep.subr.mxu0 0.0
    %3053 = vmatpush1.msra.mxu0 0.0
    %3054 = vmatprep.subr.mxu0 0.0
    %3055 = vmatpush1.msra.mxu0 0.0
    %3056 = vmatprep.subr.mxu0 0.0
    %3057 = vmatpush1.msra.mxu0 0.0
    %3058 = vmatprep.subr.mxu0 0.0
    %3059 = vmatpush1.msra.mxu0 0.0
    %3060 = vmatprep.subr.mxu0 0.0
    %3061 = vmatpush1.msra.mxu0 0.0
    %3062 = vmatprep.subr.mxu0 0.0
    %3063 = vmatpush1.msra.mxu0 0.0
    %3064 = vmatprep.subr.mxu0 0.0
    %3065 = vmatpush1.msra.mxu0 0.0
    %3066 = vmatprep.subr.mxu0 0.0
    %3067 = vmatpush1.msra.mxu0 0.0
    %3068 = vmatprep.subr.mxu0 0.0
    %3069 = vmatpush1.msra.mxu0 0.0
    %3070 = vmatprep.subr.mxu0 0.0
    %3071 = vmatpush1.msra.mxu0 0.0
    %3072 = vmatprep.subr.mxu0 0.0
    %3073 = vmatpush1.msra.mxu0 0.0
    %3074 = vmatprep.subr.mxu0 0.0
    %3075 = vmatpush1.msra.mxu0 0.0
    %3076 = vmatprep.subr.mxu0 0.0
    %3077 = vmatpush1.msra.mxu0 0.0
    %3078 = vmatprep.mubr.f32.mxu0 0.0
    %3079 = vmatmul.mubr.f32.gmra.mrb[0].mxu0 %v3012
    %v3080 = vpop.f32.mrb[0].mxu0
    %v3081 = vadd.f32 0.0, %v3080
    %v3082 = vpop.f32.mrb[0].mxu0
    %v3083 = vadd.f32 0.0, %v3082
    %3084 = vdwg.mxu0
    %3085 = vmatprep.subr.mxu0 %v2555
    %3086 = vmatpush1.msra.mxu0 %v2554
    %3087 = vmatprep.subr.mxu0 %v2559
    %3088 = vmatpush1.msra.mxu0 %v2558
    %3089 = vmatprep.subr.mxu0 %v2563
    %3090 = vmatpush1.msra.mxu0 %v2562
    %3091 = vmatprep.subr.mxu0 %v2567
    %3092 = vmatpush1.msra.mxu0 %v2566
    %3093 = vmatprep.subr.mxu0 %v2571
    %3094 = vmatpush1.msra.mxu0 %v2570
    %3095 = vmatprep.subr.mxu0 %v2575
    %3096 = vmatpush1.msra.mxu0 %v2574
    %3097 = vmatprep.subr.mxu0 0.0
    %3098 = vmatpush1.msra.mxu0 0.0
    %3099 = vmatprep.subr.mxu0 0.0
    %3100 = vmatpush1.msra.mxu0 0.0
    %3101 = vmatprep.subr.mxu0 0.0
    %3102 = vmatpush1.msra.mxu0 0.0
    %3103 = vmatprep.subr.mxu0 0.0
    %3104 = vmatpush1.msra.mxu0 0.0
    %3105 = vmatprep.subr.mxu0 0.0
    %3106 = vmatpush1.msra.mxu0 0.0
    %3107 = vmatprep.subr.mxu0 0.0
    %3108 = vmatpush1.msra.mxu0 0.0
    %3109 = vmatprep.subr.mxu0 0.0
    %3110 = vmatpush1.msra.mxu0 0.0
    %3111 = vmatprep.subr.mxu0 0.0
    %3112 = vmatpush1.msra.mxu0 0.0
    %3113 = vmatprep.subr.mxu0 0.0
    %3114 = vmatpush1.msra.mxu0 0.0
    %3115 = vmatprep.subr.mxu0 0.0
    %3116 = vmatpush1.msra.mxu0 0.0
    %3117 = vmatprep.subr.mxu0 0.0
    %3118 = vmatpush1.msra.mxu0 0.0
    %3119 = vmatprep.subr.mxu0 0.0
    %3120 = vmatpush1.msra.mxu0 0.0
    %3121 = vmatprep.subr.mxu0 0.0
    %3122 = vmatpush1.msra.mxu0 0.0
    %3123 = vmatprep.subr.mxu0 0.0
    %3124 = vmatpush1.msra.mxu0 0.0
    %3125 = vmatprep.subr.mxu0 0.0
    %3126 = vmatpush1.msra.mxu0 0.0
    %3127 = vmatprep.subr.mxu0 0.0
    %3128 = vmatpush1.msra.mxu0 0.0
    %3129 = vmatprep.subr.mxu0 0.0
    %3130 = vmatpush1.msra.mxu0 0.0
    %3131 = vmatprep.subr.mxu0 0.0
    %3132 = vmatpush1.msra.mxu0 0.0
    %3133 = vmatprep.subr.mxu0 0.0
    %3134 = vmatpush1.msra.mxu0 0.0
    %3135 = vmatprep.subr.mxu0 0.0
    %3136 = vmatpush1.msra.mxu0 0.0
    %3137 = vmatprep.subr.mxu0 0.0
    %3138 = vmatpush1.msra.mxu0 0.0
    %3139 = vmatprep.subr.mxu0 0.0
    %3140 = vmatpush1.msra.mxu0 0.0
    %3141 = vmatprep.subr.mxu0 0.0
    %3142 = vmatpush1.msra.mxu0 0.0
    %3143 = vmatprep.subr.mxu0 0.0
    %3144 = vmatpush1.msra.mxu0 0.0
    %3145 = vmatprep.subr.mxu0 0.0
    %3146 = vmatpush1.msra.mxu0 0.0
    %3147 = vmatprep.subr.mxu0 0.0
    %3148 = vmatpush1.msra.mxu0 0.0
    %3149 = vmatprep.mubr.f32.mxu0 0.0
    %3150 = vmatmul.mubr.f32.gmra.mrb[0].mxu0 %v3012
    %v3151 = vpop.f32.mrb[0].mxu0
    %v3152 = vadd.f32 0.0, %v3151
    %v3153 = vpop.f32.mrb[0].mxu0
    %v3154 = vadd.f32 0.0, %v3153
    %3155 = vdwg.mxu0
    %v3156 = vxor.u32 %v2646, 2147483648
    %v3157 = vxor.u32 %v2648, 2147483648
    %v3158 = vxor.u32 %v2717, 2147483648
    %v3159 = vxor.u32 %v2791, 2147483648
    %v3160 = vxor.u32 %v2793, 2147483648
    %v3161 = vxor.u32 %v2862, 2147483648
    %v3162 = vxor.u32 %v2936, 2147483648
    %v3163 = vxor.u32 %v2938, 2147483648
    %v3164 = vxor.u32 %v3007, 2147483648
    %v3165 = vxor.u32 %v3081, 2147483648
    %v3166 = vxor.u32 %v3083, 2147483648
    %v3167 = vxor.u32 %v3152, 2147483648
    %v3168 = vmul.f32 %v3156, 1.442695
    %v3169 = vpow.pop %v3168
    %v3170 = vmul.f32 %v3157, 1.442695
    %v3171 = vpow.pop %v3170
    %v3172 = vmul.f32 %v3158, 1.442695
    %v3173 = vpow.pop %v3172
    %v3174 = vmul.f32 %v3159, 1.442695
    %v3175 = vpow.pop %v3174
    %v3176 = vmul.f32 %v3160, 1.442695
    %v3177 = vpow.pop %v3176
    %v3178 = vmul.f32 %v3161, 1.442695
    %v3179 = vpow.pop %v3178
    %v3180 = vmul.f32 %v3162, 1.442695
    %v3181 = vpow.pop %v3180
    %v3182 = vmul.f32 %v3163, 1.442695
    %v3183 = vpow.pop %v3182
    %v3184 = vmul.f32 %v3164, 1.442695
    %v3185 = vpow.pop %v3184
    %v3186 = vmul.f32 %v3165, 1.442695
    %v3187 = vpow.pop %v3186
    %v3188 = vmul.f32 %v3166, 1.442695
    %v3189 = vpow.pop %v3188
    %v3190 = vmul.f32 %v3167, 1.442695
    %v3191 = vpow.pop %v3190
    %v3192 = vadd.f32 %v3169, 1.0
    %v3193 = vadd.f32 %v3171, 1.0
    %v3194 = vadd.f32 %v3173, 1.0
    %v3195 = vadd.f32 %v3175, 1.0
    %v3196 = vadd.f32 %v3177, 1.0
    %v3197 = vadd.f32 %v3179, 1.0
    %v3198 = vadd.f32 %v3181, 1.0
    %v3199 = vadd.f32 %v3183, 1.0
    %v3200 = vadd.f32 %v3185, 1.0
    %v3201 = vadd.f32 %v3187, 1.0
    %v3202 = vadd.f32 %v3189, 1.0
    %v3203 = vadd.f32 %v3191, 1.0
    %v3204 = vrcp.pop %v3192
    %v3205 = vmul.f32 1.0, %v3204
    %v3206 = vrcp.pop %v3193
    %v3207 = vmul.f32 1.0, %v3206
    %v3208 = vrcp.pop %v3194
    %v3209 = vmul.f32 1.0, %v3208
    %v3210 = vrcp.pop %v3195
    %v3211 = vmul.f32 1.0, %v3210
    %v3212 = vrcp.pop %v3196
    %v3213 = vmul.f32 1.0, %v3212
    %v3214 = vrcp.pop %v3197
    %v3215 = vmul.f32 1.0, %v3214
    %v3216 = vrcp.pop %v3198
    %v3217 = vmul.f32 1.0, %v3216
    %v3218 = vrcp.pop %v3199
    %v3219 = vmul.f32 1.0, %v3218
    %v3220 = vrcp.pop %v3200
    %v3221 = vmul.f32 1.0, %v3220
    %v3222 = vrcp.pop %v3201
    %v3223 = vmul.f32 1.0, %v3222
    %v3224 = vrcp.pop %v3202
    %v3225 = vmul.f32 1.0, %v3224
    %v3226 = vrcp.pop %v3203
    %v3227 = vmul.f32 1.0, %v3226
    %v3228 = vtanh.pop %v2719
    %v3229 = vtanh.pop %v2864
    %v3230 = vtanh.pop %v3009
    %v3231 = vtanh.pop %v3154
    %v3232 = vmul.f32 %v3207, %v2442
    %v3233 = vmul.f32 %v3213, %v2443
    %v3234 = vmul.f32 %v3219, %v2444
    %v3235 = vmul.f32 %v3225, %v2445
    %v3236 = vmul.f32 %v3205, %v3228
    %v3237 = vmul.f32 %v3211, %v3229
    %v3238 = vmul.f32 %v3217, %v3230
    %v3239 = vmul.f32 %v3223, %v3231
    %v3240 = vadd.f32 %v3232, %v3236
    %v3241 = vadd.f32 %v3233, %v3237
    %v3242 = vadd.f32 %v3234, %v3238
    %v3243 = vadd.f32 %v3235, %v3239
    %v3244 = vtanh.pop %v3240
    %v3245 = vtanh.pop %v3241
    %v3246 = vtanh.pop %v3242
    %v3247 = vtanh.pop %v3243
    %v3248 = vmul.f32 %v3209, %v3244
    %v3249 = vmul.f32 %v3215, %v3245
    %v3250 = vmul.f32 %v3221, %v3246
    %v3251 = vmul.f32 %v3227, %v3247
    %3252 = vst.msk [vmem:[#allocation2] sm:$0x3] %vm832, %v3248
    %3253 = vst.msk [vmem:[#allocation2 + $0x2] sm:$0x3] %vm832, %v3249
    %3254 = vst.msk [vmem:[#allocation2 + $0x4] sm:$0x3] %vm832, %v3250
    %3255 = vst.msk [vmem:[#allocation2 + $0x6] sm:$0x3] %vm832, %v3251
    %3259 = vrot.lane.b32.xlu0 %v3248, 20
    %v3260 = vpop.permute.xlu0 %3259
    %3261 = vrot.lane.b32.xlu0 %v3249, 20
    %v3262 = vpop.permute.xlu0 %3261
    %3263 = vrot.lane.b32.xlu0 %v3250, 20
    %v3264 = vpop.permute.xlu0 %3263
    %3268 = vst.msk [vmem:[%s849] sm:$0x3] %vm41, %v3260
    %3269 = vst.msk [vmem:[%s849 + $0x2] sm:$0x3] %vm41, %v3262
    %3270 = vst.msk [vmem:[%s849 + $0x4] sm:$0x3] %vm41, %v3264
    %3271 = vst.msk [vmem:[#allocation3] sm:$0x3] %vm832, %v3251
    %s3272 = scalar_lea.vmem %s0, 8
    %v3273 = vld [vmem:[%s3272] sm:$0x3]
    %3274 = vst.msk [vmem:[#allocation2] sm:$0x3] %vm41, %v3273
    %v3275 = vld [vmem:[#allocation2] sm:$0x3]
    %v3276 = vld [vmem:[#allocation2 + $0x2] sm:$0x3]
    %v3277 = vld [vmem:[#allocation2 + $0x4] sm:$0x3]
    %v3278 = vld [vmem:[#allocation2 + $0x6] sm:$0x3]
    %v3279 = vld [vmem:[#allocation4] sm:$0xff]
    %v3280 = vld [vmem:[#allocation4 + $0x8] sm:$0xff]
    %v3281 = vld [vmem:[#allocation4 + $0x10] sm:$0xff]
    %v3282 = vld [vmem:[#allocation4 + $0x18] sm:$0xff]
    %v3283 = vld [vmem:[#allocation4 + $0x20] sm:$0xff]
    %v3284 = vld [vmem:[#allocation4 + $0x28] sm:$0xff]
    %v3285 = vld [vmem:[#allocation4 + $0x30] sm:$0xff]
    %v3286 = vld [vmem:[#allocation4 + $0x38] sm:$0xff]
    %v3287 = vld [vmem:[#allocation4 + $0x40] sm:$0xff]
    %v3288 = vld [vmem:[#allocation4 + $0x48] sm:$0xff]
    %v3289 = vld [vmem:[#allocation4 + $0x50] sm:$0xff]
    %v3290 = vld [vmem:[#allocation4 + $0x58] sm:$0xff]
    %v3291 = vld [vmem:[#allocation4 + $0x60] sm:$0xff]
    %v3292 = vld [vmem:[#allocation4 + $0x68] sm:$0xff]
    %v3293 = vld [vmem:[#allocation4 + $0x70] sm:$0xff]
    %v3294 = vld [vmem:[#allocation4 + $0x78] sm:$0xff]
    %v3295 = vld [vmem:[#allocation4 + $0x80] sm:$0xff]
    %v3296 = vld [vmem:[#allocation4 + $0x88] sm:$0xff]
    %v3297 = vld [vmem:[#allocation4 + $0x90] sm:$0xff]
    %v3298 = vld [vmem:[#allocation4 + $0x98] sm:$0xff]
    %v3299 = vld [vmem:[#allocation4 + $0xa0] sm:$0xff]
    %v3300 = vld [vmem:[#allocation4 + $0xa8] sm:$0xff]
    %v3301 = vld [vmem:[#allocation4 + $0xb0] sm:$0xff]
    %v3302 = vld [vmem:[#allocation4 + $0xb8] sm:$0xff]
    %v3303 = vld [vmem:[#allocation4 + $0xc0] sm:$0xff]
    %v3304 = vld [vmem:[#allocation4 + $0xc8] sm:$0xff]
    %v3305 = vld [vmem:[#allocation4 + $0xd0] sm:$0xff]
    %v3306 = vld [vmem:[#allocation4 + $0xd8] sm:$0xff]
    %v3307 = vld [vmem:[#allocation4 + $0xe0] sm:$0xff]
    %v3308 = vld [vmem:[#allocation4 + $0xe8] sm:$0xff]
    %v3309 = vld [vmem:[#allocation4 + $0xf0] sm:$0xff]
    %v3310 = vld [vmem:[#allocation4 + $0xf8] sm:$0xff]
    %v3311 = vld [vmem:[#allocation4 + $0x100] sm:$0xff]
    %v3312 = vld [vmem:[#allocation4 + $0x108] sm:$0xff]
    %v3313 = vld [vmem:[#allocation4 + $0x110] sm:$0xff]
    %v3314 = vld [vmem:[#allocation4 + $0x118] sm:$0xff]
    %v3315 = vld [vmem:[#allocation4 + $0x120] sm:$0xff]
    %v3316 = vld [vmem:[#allocation4 + $0x128] sm:$0xff]
    %v3317 = vld [vmem:[#allocation4 + $0x130] sm:$0xff]
    %v3318 = vld [vmem:[#allocation4 + $0x138] sm:$0xff]
    %v3319 = vld [vmem:[#allocation4 + $0x140] sm:$0xff]
    %v3320 = vld [vmem:[#allocation4 + $0x148] sm:$0xff]
    %v3321 = vld [vmem:[#allocation4 + $0x150] sm:$0xff]
    %v3322 = vld [vmem:[#allocation4 + $0x158] sm:$0xff]
    %v3323 = vld [vmem:[#allocation4 + $0x160] sm:$0xff]
    %v3324 = vld [vmem:[#allocation4 + $0x168] sm:$0xff]
    %v3325 = vld [vmem:[#allocation4 + $0x170] sm:$0xff]
    %v3326 = vld [vmem:[#allocation4 + $0x178] sm:$0xff]
    %v3327 = vld [vmem:[#allocation4 + $0x180] sm:$0xff]
    %v3328 = vld [vmem:[#allocation4 + $0x188] sm:$0xff]
    %v3329 = vld [vmem:[#allocation4 + $0x190] sm:$0xff]
    %v3330 = vld [vmem:[#allocation4 + $0x198] sm:$0xff]
    %v3331 = vld [vmem:[#allocation4 + $0x1a0] sm:$0xff]
    %v3332 = vld [vmem:[#allocation4 + $0x1a8] sm:$0xff]
    %v3333 = vld [vmem:[#allocation4 + $0x1b0] sm:$0xff]
    %v3334 = vld [vmem:[#allocation4 + $0x1b8] sm:$0xff]
    %v3335 = vld [vmem:[#allocation4 + $0x1c0] sm:$0xff]
    %v3336 = vld [vmem:[#allocation4 + $0x1c8] sm:$0xff]
    %v3337 = vld [vmem:[#allocation4 + $0x1d0] sm:$0xff]
    %v3338 = vld [vmem:[#allocation4 + $0x1d8] sm:$0xff]
    %v3339 = vld [vmem:[#allocation4 + $0x1e0] sm:$0xff]
    %v3340 = vld [vmem:[#allocation4 + $0x1e8] sm:$0xff]
    %v3341 = vld [vmem:[#allocation4 + $0x1f0] sm:$0xff]
    %v3342 = vld [vmem:[#allocation4 + $0x1f8] sm:$0xff]
    %v3343 = vld [vmem:[#allocation4 + $0x200] sm:$0xff]
    %v3344 = vld [vmem:[#allocation4 + $0x208] sm:$0xff]
    %v3345 = vld [vmem:[#allocation4 + $0x210] sm:$0xff]
    %v3346 = vld [vmem:[#allocation4 + $0x218] sm:$0xff]
    %v3347 = vld [vmem:[#allocation4 + $0x220] sm:$0xff]
    %v3348 = vld [vmem:[#allocation4 + $0x228] sm:$0xff]
    %v3349 = vld [vmem:[#allocation4 + $0x230] sm:$0xff]
    %v3350 = vld [vmem:[#allocation4 + $0x238] sm:$0xff]
    %v3351 = vld [vmem:[#allocation4 + $0x240] sm:$0xff]
    %v3352 = vld [vmem:[#allocation4 + $0x248] sm:$0xff]
    %v3353 = vld [vmem:[#allocation4 + $0x250] sm:$0xff]
    %v3354 = vld [vmem:[#allocation4 + $0x258] sm:$0xff]
    %v3355 = vld [vmem:[#allocation4 + $0x260] sm:$0xff]
    %v3356 = vld [vmem:[#allocation4 + $0x268] sm:$0xff]
    %v3357 = vld [vmem:[#allocation4 + $0x270] sm:$0xff]
    %v3358 = vld [vmem:[#allocation4 + $0x278] sm:$0xff]
    %v3359 = vld [vmem:[#allocation4 + $0x280] sm:$0xff]
    %v3360 = vld [vmem:[#allocation4 + $0x288] sm:$0xff]
    %v3361 = vld [vmem:[#allocation4 + $0x290] sm:$0xff]
    %v3362 = vld [vmem:[#allocation4 + $0x298] sm:$0xff]
    %v3363 = vld [vmem:[#allocation4 + $0x2a0] sm:$0xff]
    %v3364 = vld [vmem:[#allocation4 + $0x2a8] sm:$0xff]
    %v3365 = vld [vmem:[#allocation4 + $0x2b0] sm:$0xff]
    %v3366 = vld [vmem:[#allocation4 + $0x2b8] sm:$0xff]
    %v3367 = vld [vmem:[#allocation4 + $0x2c0] sm:$0xff]
    %v3368 = vld [vmem:[#allocation4 + $0x2c8] sm:$0xff]
    %v3369 = vld [vmem:[#allocation4 + $0x2d0] sm:$0xff]
    %v3370 = vld [vmem:[#allocation4 + $0x2d8] sm:$0xff]
    %v3371 = vld [vmem:[#allocation4 + $0x2e0] sm:$0xff]
    %v3372 = vld [vmem:[#allocation4 + $0x2e8] sm:$0xff]
    %v3373 = vld [vmem:[#allocation4 + $0x2f0] sm:$0xff]
    %v3374 = vld [vmem:[#allocation4 + $0x2f8] sm:$0xff]
    %v3376 = vsel %vm143, %v3275, 0
    %3378 = vmatprep.subr.mxu0 %v3280
    %3379 = vmatpush1.msra.mxu0 %v3279
    %3380 = vmatprep.subr.mxu0 %v3284
    %3381 = vmatpush1.msra.mxu0 %v3283
    %3382 = vmatprep.subr.mxu0 %v3288
    %3383 = vmatpush1.msra.mxu0 %v3287
    %3384 = vmatprep.subr.mxu0 %v3292
    %3385 = vmatpush1.msra.mxu0 %v3291
    %3386 = vmatprep.subr.mxu0 %v3296
    %3387 = vmatpush1.msra.mxu0 %v3295
    %3388 = vmatprep.subr.mxu0 %v3300
    %3389 = vmatpush1.msra.mxu0 %v3299
    %3390 = vmatprep.subr.mxu0 0.0
    %3391 = vmatpush1.msra.mxu0 0.0
    %3392 = vmatprep.subr.mxu0 0.0
    %3393 = vmatpush1.msra.mxu0 0.0
    %3394 = vmatprep.subr.mxu0 0.0
    %3395 = vmatpush1.msra.mxu0 0.0
    %3396 = vmatprep.subr.mxu0 0.0
    %3397 = vmatpush1.msra.mxu0 0.0
    %3398 = vmatprep.subr.mxu0 0.0
    %3399 = vmatpush1.msra.mxu0 0.0
    %3400 = vmatprep.subr.mxu0 0.0
    %3401 = vmatpush1.msra.mxu0 0.0
    %3402 = vmatprep.subr.mxu0 0.0
    %3403 = vmatpush1.msra.mxu0 0.0
    %3404 = vmatprep.subr.mxu0 0.0
    %3405 = vmatpush1.msra.mxu0 0.0
    %3406 = vmatprep.subr.mxu0 0.0
    %3407 = vmatpush1.msra.mxu0 0.0
    %3408 = vmatprep.subr.mxu0 0.0
    %3409 = vmatpush1.msra.mxu0 0.0
    %3410 = vmatprep.subr.mxu0 0.0
    %3411 = vmatpush1.msra.mxu0 0.0
    %3412 = vmatprep.subr.mxu0 0.0
    %3413 = vmatpush1.msra.mxu0 0.0
    %3414 = vmatprep.subr.mxu0 0.0
    %3415 = vmatpush1.msra.mxu0 0.0
    %3416 = vmatprep.subr.mxu0 0.0
    %3417 = vmatpush1.msra.mxu0 0.0
    %3418 = vmatprep.subr.mxu0 0.0
    %3419 = vmatpush1.msra.mxu0 0.0
    %3420 = vmatprep.subr.mxu0 0.0
    %3421 = vmatpush1.msra.mxu0 0.0
    %3422 = vmatprep.subr.mxu0 0.0
    %3423 = vmatpush1.msra.mxu0 0.0
    %3424 = vmatprep.subr.mxu0 0.0
    %3425 = vmatpush1.msra.mxu0 0.0
    %3426 = vmatprep.subr.mxu0 0.0
    %3427 = vmatpush1.msra.mxu0 0.0
    %3428 = vmatprep.subr.mxu0 0.0
    %3429 = vmatpush1.msra.mxu0 0.0
    %3430 = vmatprep.subr.mxu0 0.0
    %3431 = vmatpush1.msra.mxu0 0.0
    %3432 = vmatprep.subr.mxu0 0.0
    %3433 = vmatpush1.msra.mxu0 0.0
    %3434 = vmatprep.subr.mxu0 0.0
    %3435 = vmatpush1.msra.mxu0 0.0
    %3436 = vmatprep.subr.mxu0 0.0
    %3437 = vmatpush1.msra.mxu0 0.0
    %3438 = vmatprep.subr.mxu0 0.0
    %3439 = vmatpush1.msra.mxu0 0.0
    %3440 = vmatprep.subr.mxu0 0.0
    %3441 = vmatpush1.msra.mxu0 0.0
    %3442 = vmatprep.mubr.f32.mxu0 0.0
    %3443 = vmatmul.mubr.f32.gmra.mrb[0].mxu0 %v3376
    %v3444 = vpop.f32.mrb[0].mxu0
    %v3445 = vadd.f32 0.0, %v3444
    %v3446 = vpop.f32.mrb[0].mxu0
    %v3447 = vadd.f32 0.0, %v3446
    %3448 = vdwg.mxu0
    %3449 = vmatprep.subr.mxu0 %v3282
    %3450 = vmatpush1.msra.mxu0 %v3281
    %3451 = vmatprep.subr.mxu0 %v3286
    %3452 = vmatpush1.msra.mxu0 %v3285
    %3453 = vmatprep.subr.mxu0 %v3290
    %3454 = vmatpush1.msra.mxu0 %v3289
    %3455 = vmatprep.subr.mxu0 %v3294
    %3456 = vmatpush1.msra.mxu0 %v3293
    %3457 = vmatprep.subr.mxu0 %v3298
    %3458 = vmatpush1.msra.mxu0 %v3297
    %3459 = vmatprep.subr.mxu0 %v3302
    %3460 = vmatpush1.msra.mxu0 %v3301
    %3461 = vmatprep.subr.mxu0 0.0
    %3462 = vmatpush1.msra.mxu0 0.0
    %3463 = vmatprep.subr.mxu0 0.0
    %3464 = vmatpush1.msra.mxu0 0.0
    %3465 = vmatprep.subr.mxu0 0.0
    %3466 = vmatpush1.msra.mxu0 0.0
    %3467 = vmatprep.subr.mxu0 0.0
    %3468 = vmatpush1.msra.mxu0 0.0
    %3469 = vmatprep.subr.mxu0 0.0
    %3470 = vmatpush1.msra.mxu0 0.0
    %3471 = vmatprep.subr.mxu0 0.0
    %3472 = vmatpush1.msra.mxu0 0.0
    %3473 = vmatprep.subr.mxu0 0.0
    %3474 = vmatpush1.msra.mxu0 0.0
    %3475 = vmatprep.subr.mxu0 0.0
    %3476 = vmatpush1.msra.mxu0 0.0
    %3477 = vmatprep.subr.mxu0 0.0
    %3478 = vmatpush1.msra.mxu0 0.0
    %3479 = vmatprep.subr.mxu0 0.0
    %3480 = vmatpush1.msra.mxu0 0.0
    %3481 = vmatprep.subr.mxu0 0.0
    %3482 = vmatpush1.msra.mxu0 0.0
    %3483 = vmatprep.subr.mxu0 0.0
    %3484 = vmatpush1.msra.mxu0 0.0
    %3485 = vmatprep.subr.mxu0 0.0
    %3486 = vmatpush1.msra.mxu0 0.0
    %3487 = vmatprep.subr.mxu0 0.0
    %3488 = vmatpush1.msra.mxu0 0.0
    %3489 = vmatprep.subr.mxu0 0.0
    %3490 = vmatpush1.msra.mxu0 0.0
    %3491 = vmatprep.subr.mxu0 0.0
    %3492 = vmatpush1.msra.mxu0 0.0
    %3493 = vmatprep.subr.mxu0 0.0
    %3494 = vmatpush1.msra.mxu0 0.0
    %3495 = vmatprep.subr.mxu0 0.0
    %3496 = vmatpush1.msra.mxu0 0.0
    %3497 = vmatprep.subr.mxu0 0.0
    %3498 = vmatpush1.msra.mxu0 0.0
    %3499 = vmatprep.subr.mxu0 0.0
    %3500 = vmatpush1.msra.mxu0 0.0
    %3501 = vmatprep.subr.mxu0 0.0
    %3502 = vmatpush1.msra.mxu0 0.0
    %3503 = vmatprep.subr.mxu0 0.0
    %3504 = vmatpush1.msra.mxu0 0.0
    %3505 = vmatprep.subr.mxu0 0.0
    %3506 = vmatpush1.msra.mxu0 0.0
    %3507 = vmatprep.subr.mxu0 0.0
    %3508 = vmatpush1.msra.mxu0 0.0
    %3509 = vmatprep.subr.mxu0 0.0
    %3510 = vmatpush1.msra.mxu0 0.0
    %3511 = vmatprep.subr.mxu0 0.0
    %3512 = vmatpush1.msra.mxu0 0.0
    %3513 = vmatprep.mubr.f32.mxu0 0.0
    %3514 = vmatmul.mubr.f32.gmra.mrb[0].mxu0 %v3376
    %v3515 = vpop.f32.mrb[0].mxu0
    %v3516 = vadd.f32 0.0, %v3515
    %v3517 = vpop.f32.mrb[0].mxu0
    %v3518 = vadd.f32 0.0, %v3517
    %3519 = vdwg.mxu0
    %v3521 = vsel %vm143, %v3276, 0
    %3523 = vmatprep.subr.mxu0 %v3304
    %3524 = vmatpush1.msra.mxu0 %v3303
    %3525 = vmatprep.subr.mxu0 %v3308
    %3526 = vmatpush1.msra.mxu0 %v3307
    %3527 = vmatprep.subr.mxu0 %v3312
    %3528 = vmatpush1.msra.mxu0 %v3311
    %3529 = vmatprep.subr.mxu0 %v3316
    %3530 = vmatpush1.msra.mxu0 %v3315
    %3531 = vmatprep.subr.mxu0 %v3320
    %3532 = vmatpush1.msra.mxu0 %v3319
    %3533 = vmatprep.subr.mxu0 %v3324
    %3534 = vmatpush1.msra.mxu0 %v3323
    %3535 = vmatprep.subr.mxu0 0.0
    %3536 = vmatpush1.msra.mxu0 0.0
    %3537 = vmatprep.subr.mxu0 0.0
    %3538 = vmatpush1.msra.mxu0 0.0
    %3539 = vmatprep.subr.mxu0 0.0
    %3540 = vmatpush1.msra.mxu0 0.0
    %3541 = vmatprep.subr.mxu0 0.0
    %3542 = vmatpush1.msra.mxu0 0.0
    %3543 = vmatprep.subr.mxu0 0.0
    %3544 = vmatpush1.msra.mxu0 0.0
    %3545 = vmatprep.subr.mxu0 0.0
    %3546 = vmatpush1.msra.mxu0 0.0
    %3547 = vmatprep.subr.mxu0 0.0
    %3548 = vmatpush1.msra.mxu0 0.0
    %3549 = vmatprep.subr.mxu0 0.0
    %3550 = vmatpush1.msra.mxu0 0.0
    %3551 = vmatprep.subr.mxu0 0.0
    %3552 = vmatpush1.msra.mxu0 0.0
    %3553 = vmatprep.subr.mxu0 0.0
    %3554 = vmatpush1.msra.mxu0 0.0
    %3555 = vmatprep.subr.mxu0 0.0
    %3556 = vmatpush1.msra.mxu0 0.0
    %3557 = vmatprep.subr.mxu0 0.0
    %3558 = vmatpush1.msra.mxu0 0.0
    %3559 = vmatprep.subr.mxu0 0.0
    %3560 = vmatpush1.msra.mxu0 0.0
    %3561 = vmatprep.subr.mxu0 0.0
    %3562 = vmatpush1.msra.mxu0 0.0
    %3563 = vmatprep.subr.mxu0 0.0
    %3564 = vmatpush1.msra.mxu0 0.0
    %3565 = vmatprep.subr.mxu0 0.0
    %3566 = vmatpush1.msra.mxu0 0.0
    %3567 = vmatprep.subr.mxu0 0.0
    %3568 = vmatpush1.msra.mxu0 0.0
    %3569 = vmatprep.subr.mxu0 0.0
    %3570 = vmatpush1.msra.mxu0 0.0
    %3571 = vmatprep.subr.mxu0 0.0
    %3572 = vmatpush1.msra.mxu0 0.0
    %3573 = vmatprep.subr.mxu0 0.0
    %3574 = vmatpush1.msra.mxu0 0.0
    %3575 = vmatprep.subr.mxu0 0.0
    %3576 = vmatpush1.msra.mxu0 0.0
    %3577 = vmatprep.subr.mxu0 0.0
    %3578 = vmatpush1.msra.mxu0 0.0
    %3579 = vmatprep.subr.mxu0 0.0
    %3580 = vmatpush1.msra.mxu0 0.0
    %3581 = vmatprep.subr.mxu0 0.0
    %3582 = vmatpush1.msra.mxu0 0.0
    %3583 = vmatprep.subr.mxu0 0.0
    %3584 = vmatpush1.msra.mxu0 0.0
    %3585 = vmatprep.subr.mxu0 0.0
    %3586 = vmatpush1.msra.mxu0 0.0
    %3587 = vmatprep.mubr.f32.mxu0 0.0
    %3588 = vmatmul.mubr.f32.gmra.mrb[0].mxu0 %v3521
    %v3589 = vpop.f32.mrb[0].mxu0
    %v3590 = vadd.f32 0.0, %v3589
    %v3591 = vpop.f32.mrb[0].mxu0
    %v3592 = vadd.f32 0.0, %v3591
    %3593 = vdwg.mxu0
    %3594 = vmatprep.subr.mxu0 %v3306
    %3595 = vmatpush1.msra.mxu0 %v3305
    %3596 = vmatprep.subr.mxu0 %v3310
    %3597 = vmatpush1.msra.mxu0 %v3309
    %3598 = vmatprep.subr.mxu0 %v3314
    %3599 = vmatpush1.msra.mxu0 %v3313
    %3600 = vmatprep.subr.mxu0 %v3318
    %3601 = vmatpush1.msra.mxu0 %v3317
    %3602 = vmatprep.subr.mxu0 %v3322
    %3603 = vmatpush1.msra.mxu0 %v3321
    %3604 = vmatprep.subr.mxu0 %v3326
    %3605 = vmatpush1.msra.mxu0 %v3325
    %3606 = vmatprep.subr.mxu0 0.0
    %3607 = vmatpush1.msra.mxu0 0.0
    %3608 = vmatprep.subr.mxu0 0.0
    %3609 = vmatpush1.msra.mxu0 0.0
    %3610 = vmatprep.subr.mxu0 0.0
    %3611 = vmatpush1.msra.mxu0 0.0
    %3612 = vmatprep.subr.mxu0 0.0
    %3613 = vmatpush1.msra.mxu0 0.0
    %3614 = vmatprep.subr.mxu0 0.0
    %3615 = vmatpush1.msra.mxu0 0.0
    %3616 = vmatprep.subr.mxu0 0.0
    %3617 = vmatpush1.msra.mxu0 0.0
    %3618 = vmatprep.subr.mxu0 0.0
    %3619 = vmatpush1.msra.mxu0 0.0
    %3620 = vmatprep.subr.mxu0 0.0
    %3621 = vmatpush1.msra.mxu0 0.0
    %3622 = vmatprep.subr.mxu0 0.0
    %3623 = vmatpush1.msra.mxu0 0.0
    %3624 = vmatprep.subr.mxu0 0.0
    %3625 = vmatpush1.msra.mxu0 0.0
    %3626 = vmatprep.subr.mxu0 0.0
    %3627 = vmatpush1.msra.mxu0 0.0
    %3628 = vmatprep.subr.mxu0 0.0
    %3629 = vmatpush1.msra.mxu0 0.0
    %3630 = vmatprep.subr.mxu0 0.0
    %3631 = vmatpush1.msra.mxu0 0.0
    %3632 = vmatprep.subr.mxu0 0.0
    %3633 = vmatpush1.msra.mxu0 0.0
    %3634 = vmatprep.subr.mxu0 0.0
    %3635 = vmatpush1.msra.mxu0 0.0
    %3636 = vmatprep.subr.mxu0 0.0
    %3637 = vmatpush1.msra.mxu0 0.0
    %3638 = vmatprep.subr.mxu0 0.0
    %3639 = vmatpush1.msra.mxu0 0.0
    %3640 = vmatprep.subr.mxu0 0.0
    %3641 = vmatpush1.msra.mxu0 0.0
    %3642 = vmatprep.subr.mxu0 0.0
    %3643 = vmatpush1.msra.mxu0 0.0
    %3644 = vmatprep.subr.mxu0 0.0
    %3645 = vmatpush1.msra.mxu0 0.0
    %3646 = vmatprep.subr.mxu0 0.0
    %3647 = vmatpush1.msra.mxu0 0.0
    %3648 = vmatprep.subr.mxu0 0.0
    %3649 = vmatpush1.msra.mxu0 0.0
    %3650 = vmatprep.subr.mxu0 0.0
    %3651 = vmatpush1.msra.mxu0 0.0
    %3652 = vmatprep.subr.mxu0 0.0
    %3653 = vmatpush1.msra.mxu0 0.0
    %3654 = vmatprep.subr.mxu0 0.0
    %3655 = vmatpush1.msra.mxu0 0.0
    %3656 = vmatprep.subr.mxu0 0.0
    %3657 = vmatpush1.msra.mxu0 0.0
    %3658 = vmatprep.mubr.f32.mxu0 0.0
    %3659 = vmatmul.mubr.f32.gmra.mrb[0].mxu0 %v3521
    %v3660 = vpop.f32.mrb[0].mxu0
    %v3661 = vadd.f32 0.0, %v3660
    %v3662 = vpop.f32.mrb[0].mxu0
    %v3663 = vadd.f32 0.0, %v3662
    %3664 = vdwg.mxu0
    %v3666 = vsel %vm143, %v3277, 0
    %3668 = vmatprep.subr.mxu0 %v3328
    %3669 = vmatpush1.msra.mxu0 %v3327
    %3670 = vmatprep.subr.mxu0 %v3332
    %3671 = vmatpush1.msra.mxu0 %v3331
    %3672 = vmatprep.subr.mxu0 %v3336
    %3673 = vmatpush1.msra.mxu0 %v3335
    %3674 = vmatprep.subr.mxu0 %v3340
    %3675 = vmatpush1.msra.mxu0 %v3339
    %3676 = vmatprep.subr.mxu0 %v3344
    %3677 = vmatpush1.msra.mxu0 %v3343
    %3678 = vmatprep.subr.mxu0 %v3348
    %3679 = vmatpush1.msra.mxu0 %v3347
    %3680 = vmatprep.subr.mxu0 0.0
    %3681 = vmatpush1.msra.mxu0 0.0
    %3682 = vmatprep.subr.mxu0 0.0
    %3683 = vmatpush1.msra.mxu0 0.0
    %3684 = vmatprep.subr.mxu0 0.0
    %3685 = vmatpush1.msra.mxu0 0.0
    %3686 = vmatprep.subr.mxu0 0.0
    %3687 = vmatpush1.msra.mxu0 0.0
    %3688 = vmatprep.subr.mxu0 0.0
    %3689 = vmatpush1.msra.mxu0 0.0
    %3690 = vmatprep.subr.mxu0 0.0
    %3691 = vmatpush1.msra.mxu0 0.0
    %3692 = vmatprep.subr.mxu0 0.0
    %3693 = vmatpush1.msra.mxu0 0.0
    %3694 = vmatprep.subr.mxu0 0.0
    %3695 = vmatpush1.msra.mxu0 0.0
    %3696 = vmatprep.subr.mxu0 0.0
    %3697 = vmatpush1.msra.mxu0 0.0
    %3698 = vmatprep.subr.mxu0 0.0
    %3699 = vmatpush1.msra.mxu0 0.0
    %3700 = vmatprep.subr.mxu0 0.0
    %3701 = vmatpush1.msra.mxu0 0.0
    %3702 = vmatprep.subr.mxu0 0.0
    %3703 = vmatpush1.msra.mxu0 0.0
    %3704 = vmatprep.subr.mxu0 0.0
    %3705 = vmatpush1.msra.mxu0 0.0
    %3706 = vmatprep.subr.mxu0 0.0
    %3707 = vmatpush1.msra.mxu0 0.0
    %3708 = vmatprep.subr.mxu0 0.0
    %3709 = vmatpush1.msra.mxu0 0.0
    %3710 = vmatprep.subr.mxu0 0.0
    %3711 = vmatpush1.msra.mxu0 0.0
    %3712 = vmatprep.subr.mxu0 0.0
    %3713 = vmatpush1.msra.mxu0 0.0
    %3714 = vmatprep.subr.mxu0 0.0
    %3715 = vmatpush1.msra.mxu0 0.0
    %3716 = vmatprep.subr.mxu0 0.0
    %3717 = vmatpush1.msra.mxu0 0.0
    %3718 = vmatprep.subr.mxu0 0.0
    %3719 = vmatpush1.msra.mxu0 0.0
    %3720 = vmatprep.subr.mxu0 0.0
    %3721 = vmatpush1.msra.mxu0 0.0
    %3722 = vmatprep.subr.mxu0 0.0
    %3723 = vmatpush1.msra.mxu0 0.0
    %3724 = vmatprep.subr.mxu0 0.0
    %3725 = vmatpush1.msra.mxu0 0.0
    %3726 = vmatprep.subr.mxu0 0.0
    %3727 = vmatpush1.msra.mxu0 0.0
    %3728 = vmatprep.subr.mxu0 0.0
    %3729 = vmatpush1.msra.mxu0 0.0
    %3730 = vmatprep.subr.mxu0 0.0
    %3731 = vmatpush1.msra.mxu0 0.0
    %3732 = vmatprep.mubr.f32.mxu0 0.0
    %3733 = vmatmul.mubr.f32.gmra.mrb[0].mxu0 %v3666
    %v3734 = vpop.f32.mrb[0].mxu0
    %v3735 = vadd.f32 0.0, %v3734
    %v3736 = vpop.f32.mrb[0].mxu0
    %v3737 = vadd.f32 0.0, %v3736
    %3738 = vdwg.mxu0
    %3739 = vmatprep.subr.mxu0 %v3330
    %3740 = vmatpush1.msra.mxu0 %v3329
    %3741 = vmatprep.subr.mxu0 %v3334
    %3742 = vmatpush1.msra.mxu0 %v3333
    %3743 = vmatprep.subr.mxu0 %v3338
    %3744 = vmatpush1.msra.mxu0 %v3337
    %3745 = vmatprep.subr.mxu0 %v3342
    %3746 = vmatpush1.msra.mxu0 %v3341
    %3747 = vmatprep.subr.mxu0 %v3346
    %3748 = vmatpush1.msra.mxu0 %v3345
    %3749 = vmatprep.subr.mxu0 %v3350
    %3750 = vmatpush1.msra.mxu0 %v3349
    %3751 = vmatprep.subr.mxu0 0.0
    %3752 = vmatpush1.msra.mxu0 0.0
    %3753 = vmatprep.subr.mxu0 0.0
    %3754 = vmatpush1.msra.mxu0 0.0
    %3755 = vmatprep.subr.mxu0 0.0
    %3756 = vmatpush1.msra.mxu0 0.0
    %3757 = vmatprep.subr.mxu0 0.0
    %3758 = vmatpush1.msra.mxu0 0.0
    %3759 = vmatprep.subr.mxu0 0.0
    %3760 = vmatpush1.msra.mxu0 0.0
    %3761 = vmatprep.subr.mxu0 0.0
    %3762 = vmatpush1.msra.mxu0 0.0
    %3763 = vmatprep.subr.mxu0 0.0
    %3764 = vmatpush1.msra.mxu0 0.0
    %3765 = vmatprep.subr.mxu0 0.0
    %3766 = vmatpush1.msra.mxu0 0.0
    %3767 = vmatprep.subr.mxu0 0.0
    %3768 = vmatpush1.msra.mxu0 0.0
    %3769 = vmatprep.subr.mxu0 0.0
    %3770 = vmatpush1.msra.mxu0 0.0
    %3771 = vmatprep.subr.mxu0 0.0
    %3772 = vmatpush1.msra.mxu0 0.0
    %3773 = vmatprep.subr.mxu0 0.0
    %3774 = vmatpush1.msra.mxu0 0.0
    %3775 = vmatprep.subr.mxu0 0.0
    %3776 = vmatpush1.msra.mxu0 0.0
    %3777 = vmatprep.subr.mxu0 0.0
    %3778 = vmatpush1.msra.mxu0 0.0
    %3779 = vmatprep.subr.mxu0 0.0
    %3780 = vmatpush1.msra.mxu0 0.0
    %3781 = vmatprep.subr.mxu0 0.0
    %3782 = vmatpush1.msra.mxu0 0.0
    %3783 = vmatprep.subr.mxu0 0.0
    %3784 = vmatpush1.msra.mxu0 0.0
    %3785 = vmatprep.subr.mxu0 0.0
    %3786 = vmatpush1.msra.mxu0 0.0
    %3787 = vmatprep.subr.mxu0 0.0
    %3788 = vmatpush1.msra.mxu0 0.0
    %3789 = vmatprep.subr.mxu0 0.0
    %3790 = vmatpush1.msra.mxu0 0.0
    %3791 = vmatprep.subr.mxu0 0.0
    %3792 = vmatpush1.msra.mxu0 0.0
    %3793 = vmatprep.subr.mxu0 0.0
    %3794 = vmatpush1.msra.mxu0 0.0
    %3795 = vmatprep.subr.mxu0 0.0
    %3796 = vmatpush1.msra.mxu0 0.0
    %3797 = vmatprep.subr.mxu0 0.0
    %3798 = vmatpush1.msra.mxu0 0.0
    %3799 = vmatprep.subr.mxu0 0.0
    %3800 = vmatpush1.msra.mxu0 0.0
    %3801 = vmatprep.subr.mxu0 0.0
    %3802 = vmatpush1.msra.mxu0 0.0
    %3803 = vmatprep.mubr.f32.mxu0 0.0
    %3804 = vmatmul.mubr.f32.gmra.mrb[0].mxu0 %v3666
    %v3805 = vpop.f32.mrb[0].mxu0
    %v3806 = vadd.f32 0.0, %v3805
    %v3807 = vpop.f32.mrb[0].mxu0
    %v3808 = vadd.f32 0.0, %v3807
    %3809 = vdwg.mxu0
    %v3811 = vsel %vm143, %v3278, 0
    %3813 = vmatprep.subr.mxu0 %v3352
    %3814 = vmatpush1.msra.mxu0 %v3351
    %3815 = vmatprep.subr.mxu0 %v3356
    %3816 = vmatpush1.msra.mxu0 %v3355
    %3817 = vmatprep.subr.mxu0 %v3360
    %3818 = vmatpush1.msra.mxu0 %v3359
    %3819 = vmatprep.subr.mxu0 %v3364
    %3820 = vmatpush1.msra.mxu0 %v3363
    %3821 = vmatprep.subr.mxu0 %v3368
    %3822 = vmatpush1.msra.mxu0 %v3367
    %3823 = vmatprep.subr.mxu0 %v3372
    %3824 = vmatpush1.msra.mxu0 %v3371
    %3825 = vmatprep.subr.mxu0 0.0
    %3826 = vmatpush1.msra.mxu0 0.0
    %3827 = vmatprep.subr.mxu0 0.0
    %3828 = vmatpush1.msra.mxu0 0.0
    %3829 = vmatprep.subr.mxu0 0.0
    %3830 = vmatpush1.msra.mxu0 0.0
    %3831 = vmatprep.subr.mxu0 0.0
    %3832 = vmatpush1.msra.mxu0 0.0
    %3833 = vmatprep.subr.mxu0 0.0
    %3834 = vmatpush1.msra.mxu0 0.0
    %3835 = vmatprep.subr.mxu0 0.0
    %3836 = vmatpush1.msra.mxu0 0.0
    %3837 = vmatprep.subr.mxu0 0.0
    %3838 = vmatpush1.msra.mxu0 0.0
    %3839 = vmatprep.subr.mxu0 0.0
    %3840 = vmatpush1.msra.mxu0 0.0
    %3841 = vmatprep.subr.mxu0 0.0
    %3842 = vmatpush1.msra.mxu0 0.0
    %3843 = vmatprep.subr.mxu0 0.0
    %3844 = vmatpush1.msra.mxu0 0.0
    %3845 = vmatprep.subr.mxu0 0.0
    %3846 = vmatpush1.msra.mxu0 0.0
    %3847 = vmatprep.subr.mxu0 0.0
    %3848 = vmatpush1.msra.mxu0 0.0
    %3849 = vmatprep.subr.mxu0 0.0
    %3850 = vmatpush1.msra.mxu0 0.0
    %3851 = vmatprep.subr.mxu0 0.0
    %3852 = vmatpush1.msra.mxu0 0.0
    %3853 = vmatprep.subr.mxu0 0.0
    %3854 = vmatpush1.msra.mxu0 0.0
    %3855 = vmatprep.subr.mxu0 0.0
    %3856 = vmatpush1.msra.mxu0 0.0
    %3857 = vmatprep.subr.mxu0 0.0
    %3858 = vmatpush1.msra.mxu0 0.0
    %3859 = vmatprep.subr.mxu0 0.0
    %3860 = vmatpush1.msra.mxu0 0.0
    %3861 = vmatprep.subr.mxu0 0.0
    %3862 = vmatpush1.msra.mxu0 0.0
    %3863 = vmatprep.subr.mxu0 0.0
    %3864 = vmatpush1.msra.mxu0 0.0
    %3865 = vmatprep.subr.mxu0 0.0
    %3866 = vmatpush1.msra.mxu0 0.0
    %3867 = vmatprep.subr.mxu0 0.0
    %3868 = vmatpush1.msra.mxu0 0.0
    %3869 = vmatprep.subr.mxu0 0.0
    %3870 = vmatpush1.msra.mxu0 0.0
    %3871 = vmatprep.subr.mxu0 0.0
    %3872 = vmatpush1.msra.mxu0 0.0
    %3873 = vmatprep.subr.mxu0 0.0
    %3874 = vmatpush1.msra.mxu0 0.0
    %3875 = vmatprep.subr.mxu0 0.0
    %3876 = vmatpush1.msra.mxu0 0.0
    %3877 = vmatprep.mubr.f32.mxu0 0.0
    %3878 = vmatmul.mubr.f32.gmra.mrb[0].mxu0 %v3811
    %v3879 = vpop.f32.mrb[0].mxu0
    %v3880 = vadd.f32 0.0, %v3879
    %v3881 = vpop.f32.mrb[0].mxu0
    %v3882 = vadd.f32 0.0, %v3881
    %3883 = vdwg.mxu0
    %3884 = vmatprep.subr.mxu0 %v3354
    %3885 = vmatpush1.msra.mxu0 %v3353
    %3886 = vmatprep.subr.mxu0 %v3358
    %3887 = vmatpush1.msra.mxu0 %v3357
    %3888 = vmatprep.subr.mxu0 %v3362
    %3889 = vmatpush1.msra.mxu0 %v3361
    %3890 = vmatprep.subr.mxu0 %v3366
    %3891 = vmatpush1.msra.mxu0 %v3365
    %3892 = vmatprep.subr.mxu0 %v3370
    %3893 = vmatpush1.msra.mxu0 %v3369
    %3894 = vmatprep.subr.mxu0 %v3374
    %3895 = vmatpush1.msra.mxu0 %v3373
    %3896 = vmatprep.subr.mxu0 0.0
    %3897 = vmatpush1.msra.mxu0 0.0
    %3898 = vmatprep.subr.mxu0 0.0
    %3899 = vmatpush1.msra.mxu0 0.0
    %3900 = vmatprep.subr.mxu0 0.0
    %3901 = vmatpush1.msra.mxu0 0.0
    %3902 = vmatprep.subr.mxu0 0.0
    %3903 = vmatpush1.msra.mxu0 0.0
    %3904 = vmatprep.subr.mxu0 0.0
    %3905 = vmatpush1.msra.mxu0 0.0
    %3906 = vmatprep.subr.mxu0 0.0
    %3907 = vmatpush1.msra.mxu0 0.0
    %3908 = vmatprep.subr.mxu0 0.0
    %3909 = vmatpush1.msra.mxu0 0.0
    %3910 = vmatprep.subr.mxu0 0.0
    %3911 = vmatpush1.msra.mxu0 0.0
    %3912 = vmatprep.subr.mxu0 0.0
    %3913 = vmatpush1.msra.mxu0 0.0
    %3914 = vmatprep.subr.mxu0 0.0
    %3915 = vmatpush1.msra.mxu0 0.0
    %3916 = vmatprep.subr.mxu0 0.0
    %3917 = vmatpush1.msra.mxu0 0.0
    %3918 = vmatprep.subr.mxu0 0.0
    %3919 = vmatpush1.msra.mxu0 0.0
    %3920 = vmatprep.subr.mxu0 0.0
    %3921 = vmatpush1.msra.mxu0 0.0
    %3922 = vmatprep.subr.mxu0 0.0
    %3923 = vmatpush1.msra.mxu0 0.0
    %3924 = vmatprep.subr.mxu0 0.0
    %3925 = vmatpush1.msra.mxu0 0.0
    %3926 = vmatprep.subr.mxu0 0.0
    %3927 = vmatpush1.msra.mxu0 0.0
    %3928 = vmatprep.subr.mxu0 0.0
    %3929 = vmatpush1.msra.mxu0 0.0
    %3930 = vmatprep.subr.mxu0 0.0
    %3931 = vmatpush1.msra.mxu0 0.0
    %3932 = vmatprep.subr.mxu0 0.0
    %3933 = vmatpush1.msra.mxu0 0.0
    %3934 = vmatprep.subr.mxu0 0.0
    %3935 = vmatpush1.msra.mxu0 0.0
    %3936 = vmatprep.subr.mxu0 0.0
    %3937 = vmatpush1.msra.mxu0 0.0
    %3938 = vmatprep.subr.mxu0 0.0
    %3939 = vmatpush1.msra.mxu0 0.0
    %3940 = vmatprep.subr.mxu0 0.0
    %3941 = vmatpush1.msra.mxu0 0.0
    %3942 = vmatprep.subr.mxu0 0.0
    %3943 = vmatpush1.msra.mxu0 0.0
    %3944 = vmatprep.subr.mxu0 0.0
    %3945 = vmatpush1.msra.mxu0 0.0
    %3946 = vmatprep.subr.mxu0 0.0
    %3947 = vmatpush1.msra.mxu0 0.0
    %3948 = vmatprep.mubr.f32.mxu0 0.0
    %3949 = vmatmul.mubr.f32.gmra.mrb[0].mxu0 %v3811
    %v3950 = vpop.f32.mrb[0].mxu0
    %v3951 = vadd.f32 0.0, %v3950
    %v3952 = vpop.f32.mrb[0].mxu0
    %v3953 = vadd.f32 0.0, %v3952
    %3954 = vdwg.mxu0
    %v3955 = vxor.u32 %v3445, 2147483648
    %v3956 = vxor.u32 %v3447, 2147483648
    %v3957 = vxor.u32 %v3516, 2147483648
    %v3958 = vxor.u32 %v3590, 2147483648
    %v3959 = vxor.u32 %v3592, 2147483648
    %v3960 = vxor.u32 %v3661, 2147483648
    %v3961 = vxor.u32 %v3735, 2147483648
    %v3962 = vxor.u32 %v3737, 2147483648
    %v3963 = vxor.u32 %v3806, 2147483648
    %v3964 = vxor.u32 %v3880, 2147483648
    %v3965 = vxor.u32 %v3882, 2147483648
    %v3966 = vxor.u32 %v3951, 2147483648
    %v3967 = vmul.f32 %v3955, 1.442695
    %v3968 = vpow.pop %v3967
    %v3969 = vmul.f32 %v3956, 1.442695
    %v3970 = vpow.pop %v3969
    %v3971 = vmul.f32 %v3957, 1.442695
    %v3972 = vpow.pop %v3971
    %v3973 = vmul.f32 %v3958, 1.442695
    %v3974 = vpow.pop %v3973
    %v3975 = vmul.f32 %v3959, 1.442695
    %v3976 = vpow.pop %v3975
    %v3977 = vmul.f32 %v3960, 1.442695
    %v3978 = vpow.pop %v3977
    %v3979 = vmul.f32 %v3961, 1.442695
    %v3980 = vpow.pop %v3979
    %v3981 = vmul.f32 %v3962, 1.442695
    %v3982 = vpow.pop %v3981
    %v3983 = vmul.f32 %v3963, 1.442695
    %v3984 = vpow.pop %v3983
    %v3985 = vmul.f32 %v3964, 1.442695
    %v3986 = vpow.pop %v3985
    %v3987 = vmul.f32 %v3965, 1.442695
    %v3988 = vpow.pop %v3987
    %v3989 = vmul.f32 %v3966, 1.442695
    %v3990 = vpow.pop %v3989
    %v3991 = vadd.f32 %v3968, 1.0
    %v3992 = vadd.f32 %v3970, 1.0
    %v3993 = vadd.f32 %v3972, 1.0
    %v3994 = vadd.f32 %v3974, 1.0
    %v3995 = vadd.f32 %v3976, 1.0
    %v3996 = vadd.f32 %v3978, 1.0
    %v3997 = vadd.f32 %v3980, 1.0
    %v3998 = vadd.f32 %v3982, 1.0
    %v3999 = vadd.f32 %v3984, 1.0
    %v4000 = vadd.f32 %v3986, 1.0
    %v4001 = vadd.f32 %v3988, 1.0
    %v4002 = vadd.f32 %v3990, 1.0
    %v4003 = vrcp.pop %v3991
    %v4004 = vmul.f32 1.0, %v4003
    %v4005 = vrcp.pop %v3992
    %v4006 = vmul.f32 1.0, %v4005
    %v4007 = vrcp.pop %v3993
    %v4008 = vmul.f32 1.0, %v4007
    %v4009 = vrcp.pop %v3994
    %v4010 = vmul.f32 1.0, %v4009
    %v4011 = vrcp.pop %v3995
    %v4012 = vmul.f32 1.0, %v4011
    %v4013 = vrcp.pop %v3996
    %v4014 = vmul.f32 1.0, %v4013
    %v4015 = vrcp.pop %v3997
    %v4016 = vmul.f32 1.0, %v4015
    %v4017 = vrcp.pop %v3998
    %v4018 = vmul.f32 1.0, %v4017
    %v4019 = vrcp.pop %v3999
    %v4020 = vmul.f32 1.0, %v4019
    %v4021 = vrcp.pop %v4000
    %v4022 = vmul.f32 1.0, %v4021
    %v4023 = vrcp.pop %v4001
    %v4024 = vmul.f32 1.0, %v4023
    %v4025 = vrcp.pop %v4002
    %v4026 = vmul.f32 1.0, %v4025
    %v4027 = vtanh.pop %v3518
    %v4028 = vtanh.pop %v3663
    %v4029 = vtanh.pop %v3808
    %v4030 = vtanh.pop %v3953
    %v4031 = vmul.f32 %v4006, %v3240
    %v4032 = vmul.f32 %v4012, %v3241
    %v4033 = vmul.f32 %v4018, %v3242
    %v4034 = vmul.f32 %v4024, %v3243
    %v4035 = vmul.f32 %v4004, %v4027
    %v4036 = vmul.f32 %v4010, %v4028
    %v4037 = vmul.f32 %v4016, %v4029
    %v4038 = vmul.f32 %v4022, %v4030
    %v4039 = vadd.f32 %v4031, %v4035
    %v4040 = vadd.f32 %v4032, %v4036
    %v4041 = vadd.f32 %v4033, %v4037
    %v4042 = vadd.f32 %v4034, %v4038
    %v4043 = vtanh.pop %v4039
    %v4044 = vtanh.pop %v4040
    %v4045 = vtanh.pop %v4041
    %v4046 = vtanh.pop %v4042
    %v4047 = vmul.f32 %v4008, %v4043
    %v4048 = vmul.f32 %v4014, %v4044
    %v4049 = vmul.f32 %v4020, %v4045
    %v4050 = vmul.f32 %v4026, %v4046
    %4051 = vst.msk [vmem:[#allocation2] sm:$0x3] %vm832, %v4047
    %4052 = vst.msk [vmem:[#allocation2 + $0x2] sm:$0x3] %vm832, %v4048
    %4053 = vst.msk [vmem:[#allocation2 + $0x4] sm:$0x3] %vm832, %v4049
    %4054 = vst.msk [vmem:[#allocation2 + $0x6] sm:$0x3] %vm832, %v4050
    %4058 = vrot.lane.b32.xlu0 %v4047, 20
    %v4059 = vpop.permute.xlu0 %4058
    %4060 = vrot.lane.b32.xlu0 %v4048, 20
    %v4061 = vpop.permute.xlu0 %4060
    %4062 = vrot.lane.b32.xlu0 %v4049, 20
    %v4063 = vpop.permute.xlu0 %4062
    %4067 = vst.msk [vmem:[%s849] sm:$0x3] %vm41, %v4059
    %4068 = vst.msk [vmem:[%s849 + $0x2] sm:$0x3] %vm41, %v4061
    %4069 = vst.msk [vmem:[%s849 + $0x4] sm:$0x3] %vm41, %v4063
    %4070 = vst.msk [vmem:[#allocation3 + $0x2] sm:$0x3] %vm832, %v4050
    %s4071 = scalar_lea.vmem %s0, 10
    %v4072 = vld [vmem:[%s4071] sm:$0x3]
    %4073 = vst.msk [vmem:[#allocation2] sm:$0x3] %vm41, %v4072
    %v4074 = vld [vmem:[#allocation2] sm:$0x3]
    %v4075 = vld [vmem:[#allocation2 + $0x2] sm:$0x3]
    %v4076 = vld [vmem:[#allocation2 + $0x4] sm:$0x3]
    %v4077 = vld [vmem:[#allocation2 + $0x6] sm:$0x3]
    %v4078 = vld [vmem:[#allocation4] sm:$0xff]
    %v4079 = vld [vmem:[#allocation4 + $0x8] sm:$0xff]
    %v4080 = vld [vmem:[#allocation4 + $0x10] sm:$0xff]
    %v4081 = vld [vmem:[#allocation4 + $0x18] sm:$0xff]
    %v4082 = vld [vmem:[#allocation4 + $0x20] sm:$0xff]
    %v4083 = vld [vmem:[#allocation4 + $0x28] sm:$0xff]
    %v4084 = vld [vmem:[#allocation4 + $0x30] sm:$0xff]
    %v4085 = vld [vmem:[#allocation4 + $0x38] sm:$0xff]
    %v4086 = vld [vmem:[#allocation4 + $0x40] sm:$0xff]
    %v4087 = vld [vmem:[#allocation4 + $0x48] sm:$0xff]
    %v4088 = vld [vmem:[#allocation4 + $0x50] sm:$0xff]
    %v4089 = vld [vmem:[#allocation4 + $0x58] sm:$0xff]
    %v4090 = vld [vmem:[#allocation4 + $0x60] sm:$0xff]
    %v4091 = vld [vmem:[#allocation4 + $0x68] sm:$0xff]
    %v4092 = vld [vmem:[#allocation4 + $0x70] sm:$0xff]
    %v4093 = vld [vmem:[#allocation4 + $0x78] sm:$0xff]
    %v4094 = vld [vmem:[#allocation4 + $0x80] sm:$0xff]
    %v4095 = vld [vmem:[#allocation4 + $0x88] sm:$0xff]
    %v4096 = vld [vmem:[#allocation4 + $0x90] sm:$0xff]
    %v4097 = vld [vmem:[#allocation4 + $0x98] sm:$0xff]
    %v4098 = vld [vmem:[#allocation4 + $0xa0] sm:$0xff]
    %v4099 = vld [vmem:[#allocation4 + $0xa8] sm:$0xff]
    %v4100 = vld [vmem:[#allocation4 + $0xb0] sm:$0xff]
    %v4101 = vld [vmem:[#allocation4 + $0xb8] sm:$0xff]
    %v4102 = vld [vmem:[#allocation4 + $0xc0] sm:$0xff]
    %v4103 = vld [vmem:[#allocation4 + $0xc8] sm:$0xff]
    %v4104 = vld [vmem:[#allocation4 + $0xd0] sm:$0xff]
    %v4105 = vld [vmem:[#allocation4 + $0xd8] sm:$0xff]
    %v4106 = vld [vmem:[#allocation4 + $0xe0] sm:$0xff]
    %v4107 = vld [vmem:[#allocation4 + $0xe8] sm:$0xff]
    %v4108 = vld [vmem:[#allocation4 + $0xf0] sm:$0xff]
    %v4109 = vld [vmem:[#allocation4 + $0xf8] sm:$0xff]
    %v4110 = vld [vmem:[#allocation4 + $0x100] sm:$0xff]
    %v4111 = vld [vmem:[#allocation4 + $0x108] sm:$0xff]
    %v4112 = vld [vmem:[#allocation4 + $0x110] sm:$0xff]
    %v4113 = vld [vmem:[#allocation4 + $0x118] sm:$0xff]
    %v4114 = vld [vmem:[#allocation4 + $0x120] sm:$0xff]
    %v4115 = vld [vmem:[#allocation4 + $0x128] sm:$0xff]
    %v4116 = vld [vmem:[#allocation4 + $0x130] sm:$0xff]
    %v4117 = vld [vmem:[#allocation4 + $0x138] sm:$0xff]
    %v4118 = vld [vmem:[#allocation4 + $0x140] sm:$0xff]
    %v4119 = vld [vmem:[#allocation4 + $0x148] sm:$0xff]
    %v4120 = vld [vmem:[#allocation4 + $0x150] sm:$0xff]
    %v4121 = vld [vmem:[#allocation4 + $0x158] sm:$0xff]
    %v4122 = vld [vmem:[#allocation4 + $0x160] sm:$0xff]
    %v4123 = vld [vmem:[#allocation4 + $0x168] sm:$0xff]
    %v4124 = vld [vmem:[#allocation4 + $0x170] sm:$0xff]
    %v4125 = vld [vmem:[#allocation4 + $0x178] sm:$0xff]
    %v4126 = vld [vmem:[#allocation4 + $0x180] sm:$0xff]
    %v4127 = vld [vmem:[#allocation4 + $0x188] sm:$0xff]
    %v4128 = vld [vmem:[#allocation4 + $0x190] sm:$0xff]
    %v4129 = vld [vmem:[#allocation4 + $0x198] sm:$0xff]
    %v4130 = vld [vmem:[#allocation4 + $0x1a0] sm:$0xff]
    %v4131 = vld [vmem:[#allocation4 + $0x1a8] sm:$0xff]
    %v4132 = vld [vmem:[#allocation4 + $0x1b0] sm:$0xff]
    %v4133 = vld [vmem:[#allocation4 + $0x1b8] sm:$0xff]
    %v4134 = vld [vmem:[#allocation4 + $0x1c0] sm:$0xff]
    %v4135 = vld [vmem:[#allocation4 + $0x1c8] sm:$0xff]
    %v4136 = vld [vmem:[#allocation4 + $0x1d0] sm:$0xff]
    %v4137 = vld [vmem:[#allocation4 + $0x1d8] sm:$0xff]
    %v4138 = vld [vmem:[#allocation4 + $0x1e0] sm:$0xff]
    %v4139 = vld [vmem:[#allocation4 + $0x1e8] sm:$0xff]
    %v4140 = vld [vmem:[#allocation4 + $0x1f0] sm:$0xff]
    %v4141 = vld [vmem:[#allocation4 + $0x1f8] sm:$0xff]
    %v4142 = vld [vmem:[#allocation4 + $0x200] sm:$0xff]
    %v4143 = vld [vmem:[#allocation4 + $0x208] sm:$0xff]
    %v4144 = vld [vmem:[#allocation4 + $0x210] sm:$0xff]
    %v4145 = vld [vmem:[#allocation4 + $0x218] sm:$0xff]
    %v4146 = vld [vmem:[#allocation4 + $0x220] sm:$0xff]
    %v4147 = vld [vmem:[#allocation4 + $0x228] sm:$0xff]
    %v4148 = vld [vmem:[#allocation4 + $0x230] sm:$0xff]
    %v4149 = vld [vmem:[#allocation4 + $0x238] sm:$0xff]
    %v4150 = vld [vmem:[#allocation4 + $0x240] sm:$0xff]
    %v4151 = vld [vmem:[#allocation4 + $0x248] sm:$0xff]
    %v4152 = vld [vmem:[#allocation4 + $0x250] sm:$0xff]
    %v4153 = vld [vmem:[#allocation4 + $0x258] sm:$0xff]
    %v4154 = vld [vmem:[#allocation4 + $0x260] sm:$0xff]
    %v4155 = vld [vmem:[#allocation4 + $0x268] sm:$0xff]
    %v4156 = vld [vmem:[#allocation4 + $0x270] sm:$0xff]
    %v4157 = vld [vmem:[#allocation4 + $0x278] sm:$0xff]
    %v4158 = vld [vmem:[#allocation4 + $0x280] sm:$0xff]
    %v4159 = vld [vmem:[#allocation4 + $0x288] sm:$0xff]
    %v4160 = vld [vmem:[#allocation4 + $0x290] sm:$0xff]
    %v4161 = vld [vmem:[#allocation4 + $0x298] sm:$0xff]
    %v4162 = vld [vmem:[#allocation4 + $0x2a0] sm:$0xff]
    %v4163 = vld [vmem:[#allocation4 + $0x2a8] sm:$0xff]
    %v4164 = vld [vmem:[#allocation4 + $0x2b0] sm:$0xff]
    %v4165 = vld [vmem:[#allocation4 + $0x2b8] sm:$0xff]
    %v4166 = vld [vmem:[#allocation4 + $0x2c0] sm:$0xff]
    %v4167 = vld [vmem:[#allocation4 + $0x2c8] sm:$0xff]
    %v4168 = vld [vmem:[#allocation4 + $0x2d0] sm:$0xff]
    %v4169 = vld [vmem:[#allocation4 + $0x2d8] sm:$0xff]
    %v4170 = vld [vmem:[#allocation4 + $0x2e0] sm:$0xff]
    %v4171 = vld [vmem:[#allocation4 + $0x2e8] sm:$0xff]
    %v4172 = vld [vmem:[#allocation4 + $0x2f0] sm:$0xff]
    %v4173 = vld [vmem:[#allocation4 + $0x2f8] sm:$0xff]
    %v4175 = vsel %vm143, %v4074, 0
    %4177 = vmatprep.subr.mxu0 %v4079
    %4178 = vmatpush1.msra.mxu0 %v4078
    %4179 = vmatprep.subr.mxu0 %v4083
    %4180 = vmatpush1.msra.mxu0 %v4082
    %4181 = vmatprep.subr.mxu0 %v4087
    %4182 = vmatpush1.msra.mxu0 %v4086
    %4183 = vmatprep.subr.mxu0 %v4091
    %4184 = vmatpush1.msra.mxu0 %v4090
    %4185 = vmatprep.subr.mxu0 %v4095
    %4186 = vmatpush1.msra.mxu0 %v4094
    %4187 = vmatprep.subr.mxu0 %v4099
    %4188 = vmatpush1.msra.mxu0 %v4098
    %4189 = vmatprep.subr.mxu0 0.0
    %4190 = vmatpush1.msra.mxu0 0.0
    %4191 = vmatprep.subr.mxu0 0.0
    %4192 = vmatpush1.msra.mxu0 0.0
    %4193 = vmatprep.subr.mxu0 0.0
    %4194 = vmatpush1.msra.mxu0 0.0
    %4195 = vmatprep.subr.mxu0 0.0
    %4196 = vmatpush1.msra.mxu0 0.0
    %4197 = vmatprep.subr.mxu0 0.0
    %4198 = vmatpush1.msra.mxu0 0.0
    %4199 = vmatprep.subr.mxu0 0.0
    %4200 = vmatpush1.msra.mxu0 0.0
    %4201 = vmatprep.subr.mxu0 0.0
    %4202 = vmatpush1.msra.mxu0 0.0
    %4203 = vmatprep.subr.mxu0 0.0
    %4204 = vmatpush1.msra.mxu0 0.0
    %4205 = vmatprep.subr.mxu0 0.0
    %4206 = vmatpush1.msra.mxu0 0.0
    %4207 = vmatprep.subr.mxu0 0.0
    %4208 = vmatpush1.msra.mxu0 0.0
    %4209 = vmatprep.subr.mxu0 0.0
    %4210 = vmatpush1.msra.mxu0 0.0
    %4211 = vmatprep.subr.mxu0 0.0
    %4212 = vmatpush1.msra.mxu0 0.0
    %4213 = vmatprep.subr.mxu0 0.0
    %4214 = vmatpush1.msra.mxu0 0.0
    %4215 = vmatprep.subr.mxu0 0.0
    %4216 = vmatpush1.msra.mxu0 0.0
    %4217 = vmatprep.subr.mxu0 0.0
    %4218 = vmatpush1.msra.mxu0 0.0
    %4219 = vmatprep.subr.mxu0 0.0
    %4220 = vmatpush1.msra.mxu0 0.0
    %4221 = vmatprep.subr.mxu0 0.0
    %4222 = vmatpush1.msra.mxu0 0.0
    %4223 = vmatprep.subr.mxu0 0.0
    %4224 = vmatpush1.msra.mxu0 0.0
    %4225 = vmatprep.subr.mxu0 0.0
    %4226 = vmatpush1.msra.mxu0 0.0
    %4227 = vmatprep.subr.mxu0 0.0
    %4228 = vmatpush1.msra.mxu0 0.0
    %4229 = vmatprep.subr.mxu0 0.0
    %4230 = vmatpush1.msra.mxu0 0.0
    %4231 = vmatprep.subr.mxu0 0.0
    %4232 = vmatpush1.msra.mxu0 0.0
    %4233 = vmatprep.subr.mxu0 0.0
    %4234 = vmatpush1.msra.mxu0 0.0
    %4235 = vmatprep.subr.mxu0 0.0
    %4236 = vmatpush1.msra.mxu0 0.0
    %4237 = vmatprep.subr.mxu0 0.0
    %4238 = vmatpush1.msra.mxu0 0.0
    %4239 = vmatprep.subr.mxu0 0.0
    %4240 = vmatpush1.msra.mxu0 0.0
    %4241 = vmatprep.mubr.f32.mxu0 0.0
    %4242 = vmatmul.mubr.f32.gmra.mrb[0].mxu0 %v4175
    %v4243 = vpop.f32.mrb[0].mxu0
    %v4244 = vadd.f32 0.0, %v4243
    %v4245 = vpop.f32.mrb[0].mxu0
    %v4246 = vadd.f32 0.0, %v4245
    %4247 = vdwg.mxu0
    %4248 = vmatprep.subr.mxu0 %v4081
    %4249 = vmatpush1.msra.mxu0 %v4080
    %4250 = vmatprep.subr.mxu0 %v4085
    %4251 = vmatpush1.msra.mxu0 %v4084
    %4252 = vmatprep.subr.mxu0 %v4089
    %4253 = vmatpush1.msra.mxu0 %v4088
    %4254 = vmatprep.subr.mxu0 %v4093
    %4255 = vmatpush1.msra.mxu0 %v4092
    %4256 = vmatprep.subr.mxu0 %v4097
    %4257 = vmatpush1.msra.mxu0 %v4096
    %4258 = vmatprep.subr.mxu0 %v4101
    %4259 = vmatpush1.msra.mxu0 %v4100
    %4260 = vmatprep.subr.mxu0 0.0
    %4261 = vmatpush1.msra.mxu0 0.0
    %4262 = vmatprep.subr.mxu0 0.0
    %4263 = vmatpush1.msra.mxu0 0.0
    %4264 = vmatprep.subr.mxu0 0.0
    %4265 = vmatpush1.msra.mxu0 0.0
    %4266 = vmatprep.subr.mxu0 0.0
    %4267 = vmatpush1.msra.mxu0 0.0
    %4268 = vmatprep.subr.mxu0 0.0
    %4269 = vmatpush1.msra.mxu0 0.0
    %4270 = vmatprep.subr.mxu0 0.0
    %4271 = vmatpush1.msra.mxu0 0.0
    %4272 = vmatprep.subr.mxu0 0.0
    %4273 = vmatpush1.msra.mxu0 0.0
    %4274 = vmatprep.subr.mxu0 0.0
    %4275 = vmatpush1.msra.mxu0 0.0
    %4276 = vmatprep.subr.mxu0 0.0
    %4277 = vmatpush1.msra.mxu0 0.0
    %4278 = vmatprep.subr.mxu0 0.0
    %4279 = vmatpush1.msra.mxu0 0.0
    %4280 = vmatprep.subr.mxu0 0.0
    %4281 = vmatpush1.msra.mxu0 0.0
    %4282 = vmatprep.subr.mxu0 0.0
    %4283 = vmatpush1.msra.mxu0 0.0
    %4284 = vmatprep.subr.mxu0 0.0
    %4285 = vmatpush1.msra.mxu0 0.0
    %4286 = vmatprep.subr.mxu0 0.0
    %4287 = vmatpush1.msra.mxu0 0.0
    %4288 = vmatprep.subr.mxu0 0.0
    %4289 = vmatpush1.msra.mxu0 0.0
    %4290 = vmatprep.subr.mxu0 0.0
    %4291 = vmatpush1.msra.mxu0 0.0
    %4292 = vmatprep.subr.mxu0 0.0
    %4293 = vmatpush1.msra.mxu0 0.0
    %4294 = vmatprep.subr.mxu0 0.0
    %4295 = vmatpush1.msra.mxu0 0.0
    %4296 = vmatprep.subr.mxu0 0.0
    %4297 = vmatpush1.msra.mxu0 0.0
    %4298 = vmatprep.subr.mxu0 0.0
    %4299 = vmatpush1.msra.mxu0 0.0
    %4300 = vmatprep.subr.mxu0 0.0
    %4301 = vmatpush1.msra.mxu0 0.0
    %4302 = vmatprep.subr.mxu0 0.0
    %4303 = vmatpush1.msra.mxu0 0.0
    %4304 = vmatprep.subr.mxu0 0.0
    %4305 = vmatpush1.msra.mxu0 0.0
    %4306 = vmatprep.subr.mxu0 0.0
    %4307 = vmatpush1.msra.mxu0 0.0
    %4308 = vmatprep.subr.mxu0 0.0
    %4309 = vmatpush1.msra.mxu0 0.0
    %4310 = vmatprep.subr.mxu0 0.0
    %4311 = vmatpush1.msra.mxu0 0.0
    %4312 = vmatprep.mubr.f32.mxu0 0.0
    %4313 = vmatmul.mubr.f32.gmra.mrb[0].mxu0 %v4175
    %v4314 = vpop.f32.mrb[0].mxu0
    %v4315 = vadd.f32 0.0, %v4314
    %v4316 = vpop.f32.mrb[0].mxu0
    %v4317 = vadd.f32 0.0, %v4316
    %4318 = vdwg.mxu0
    %v4320 = vsel %vm143, %v4075, 0
    %4322 = vmatprep.subr.mxu0 %v4103
    %4323 = vmatpush1.msra.mxu0 %v4102
    %4324 = vmatprep.subr.mxu0 %v4107
    %4325 = vmatpush1.msra.mxu0 %v4106
    %4326 = vmatprep.subr.mxu0 %v4111
    %4327 = vmatpush1.msra.mxu0 %v4110
    %4328 = vmatprep.subr.mxu0 %v4115
    %4329 = vmatpush1.msra.mxu0 %v4114
    %4330 = vmatprep.subr.mxu0 %v4119
    %4331 = vmatpush1.msra.mxu0 %v4118
    %4332 = vmatprep.subr.mxu0 %v4123
    %4333 = vmatpush1.msra.mxu0 %v4122
    %4334 = vmatprep.subr.mxu0 0.0
    %4335 = vmatpush1.msra.mxu0 0.0
    %4336 = vmatprep.subr.mxu0 0.0
    %4337 = vmatpush1.msra.mxu0 0.0
    %4338 = vmatprep.subr.mxu0 0.0
    %4339 = vmatpush1.msra.mxu0 0.0
    %4340 = vmatprep.subr.mxu0 0.0
    %4341 = vmatpush1.msra.mxu0 0.0
    %4342 = vmatprep.subr.mxu0 0.0
    %4343 = vmatpush1.msra.mxu0 0.0
    %4344 = vmatprep.subr.mxu0 0.0
    %4345 = vmatpush1.msra.mxu0 0.0
    %4346 = vmatprep.subr.mxu0 0.0
    %4347 = vmatpush1.msra.mxu0 0.0
    %4348 = vmatprep.subr.mxu0 0.0
    %4349 = vmatpush1.msra.mxu0 0.0
    %4350 = vmatprep.subr.mxu0 0.0
    %4351 = vmatpush1.msra.mxu0 0.0
    %4352 = vmatprep.subr.mxu0 0.0
    %4353 = vmatpush1.msra.mxu0 0.0
    %4354 = vmatprep.subr.mxu0 0.0
    %4355 = vmatpush1.msra.mxu0 0.0
    %4356 = vmatprep.subr.mxu0 0.0
    %4357 = vmatpush1.msra.mxu0 0.0
    %4358 = vmatprep.subr.mxu0 0.0
    %4359 = vmatpush1.msra.mxu0 0.0
    %4360 = vmatprep.subr.mxu0 0.0
    %4361 = vmatpush1.msra.mxu0 0.0
    %4362 = vmatprep.subr.mxu0 0.0
    %4363 = vmatpush1.msra.mxu0 0.0
    %4364 = vmatprep.subr.mxu0 0.0
    %4365 = vmatpush1.msra.mxu0 0.0
    %4366 = vmatprep.subr.mxu0 0.0
    %4367 = vmatpush1.msra.mxu0 0.0
    %4368 = vmatprep.subr.mxu0 0.0
    %4369 = vmatpush1.msra.mxu0 0.0
    %4370 = vmatprep.subr.mxu0 0.0
    %4371 = vmatpush1.msra.mxu0 0.0
    %4372 = vmatprep.subr.mxu0 0.0
    %4373 = vmatpush1.msra.mxu0 0.0
    %4374 = vmatprep.subr.mxu0 0.0
    %4375 = vmatpush1.msra.mxu0 0.0
    %4376 = vmatprep.subr.mxu0 0.0
    %4377 = vmatpush1.msra.mxu0 0.0
    %4378 = vmatprep.subr.mxu0 0.0
    %4379 = vmatpush1.msra.mxu0 0.0
    %4380 = vmatprep.subr.mxu0 0.0
    %4381 = vmatpush1.msra.mxu0 0.0
    %4382 = vmatprep.subr.mxu0 0.0
    %4383 = vmatpush1.msra.mxu0 0.0
    %4384 = vmatprep.subr.mxu0 0.0
    %4385 = vmatpush1.msra.mxu0 0.0
    %4386 = vmatprep.mubr.f32.mxu0 0.0
    %4387 = vmatmul.mubr.f32.gmra.mrb[0].mxu0 %v4320
    %v4388 = vpop.f32.mrb[0].mxu0
    %v4389 = vadd.f32 0.0, %v4388
    %v4390 = vpop.f32.mrb[0].mxu0
    %v4391 = vadd.f32 0.0, %v4390
    %4392 = vdwg.mxu0
    %4393 = vmatprep.subr.mxu0 %v4105
    %4394 = vmatpush1.msra.mxu0 %v4104
    %4395 = vmatprep.subr.mxu0 %v4109
    %4396 = vmatpush1.msra.mxu0 %v4108
    %4397 = vmatprep.subr.mxu0 %v4113
    %4398 = vmatpush1.msra.mxu0 %v4112
    %4399 = vmatprep.subr.mxu0 %v4117
    %4400 = vmatpush1.msra.mxu0 %v4116
    %4401 = vmatprep.subr.mxu0 %v4121
    %4402 = vmatpush1.msra.mxu0 %v4120
    %4403 = vmatprep.subr.mxu0 %v4125
    %4404 = vmatpush1.msra.mxu0 %v4124
    %4405 = vmatprep.subr.mxu0 0.0
    %4406 = vmatpush1.msra.mxu0 0.0
    %4407 = vmatprep.subr.mxu0 0.0
    %4408 = vmatpush1.msra.mxu0 0.0
    %4409 = vmatprep.subr.mxu0 0.0
    %4410 = vmatpush1.msra.mxu0 0.0
    %4411 = vmatprep.subr.mxu0 0.0
    %4412 = vmatpush1.msra.mxu0 0.0
    %4413 = vmatprep.subr.mxu0 0.0
    %4414 = vmatpush1.msra.mxu0 0.0
    %4415 = vmatprep.subr.mxu0 0.0
    %4416 = vmatpush1.msra.mxu0 0.0
    %4417 = vmatprep.subr.mxu0 0.0
    %4418 = vmatpush1.msra.mxu0 0.0
    %4419 = vmatprep.subr.mxu0 0.0
    %4420 = vmatpush1.msra.mxu0 0.0
    %4421 = vmatprep.subr.mxu0 0.0
    %4422 = vmatpush1.msra.mxu0 0.0
    %4423 = vmatprep.subr.mxu0 0.0
    %4424 = vmatpush1.msra.mxu0 0.0
    %4425 = vmatprep.subr.mxu0 0.0
    %4426 = vmatpush1.msra.mxu0 0.0
    %4427 = vmatprep.subr.mxu0 0.0
    %4428 = vmatpush1.msra.mxu0 0.0
    %4429 = vmatprep.subr.mxu0 0.0
    %4430 = vmatpush1.msra.mxu0 0.0
    %4431 = vmatprep.subr.mxu0 0.0
    %4432 = vmatpush1.msra.mxu0 0.0
    %4433 = vmatprep.subr.mxu0 0.0
    %4434 = vmatpush1.msra.mxu0 0.0
    %4435 = vmatprep.subr.mxu0 0.0
    %4436 = vmatpush1.msra.mxu0 0.0
    %4437 = vmatprep.subr.mxu0 0.0
    %4438 = vmatpush1.msra.mxu0 0.0
    %4439 = vmatprep.subr.mxu0 0.0
    %4440 = vmatpush1.msra.mxu0 0.0
    %4441 = vmatprep.subr.mxu0 0.0
    %4442 = vmatpush1.msra.mxu0 0.0
    %4443 = vmatprep.subr.mxu0 0.0
    %4444 = vmatpush1.msra.mxu0 0.0
    %4445 = vmatprep.subr.mxu0 0.0
    %4446 = vmatpush1.msra.mxu0 0.0
    %4447 = vmatprep.subr.mxu0 0.0
    %4448 = vmatpush1.msra.mxu0 0.0
    %4449 = vmatprep.subr.mxu0 0.0
    %4450 = vmatpush1.msra.mxu0 0.0
    %4451 = vmatprep.subr.mxu0 0.0
    %4452 = vmatpush1.msra.mxu0 0.0
    %4453 = vmatprep.subr.mxu0 0.0
    %4454 = vmatpush1.msra.mxu0 0.0
    %4455 = vmatprep.subr.mxu0 0.0
    %4456 = vmatpush1.msra.mxu0 0.0
    %4457 = vmatprep.mubr.f32.mxu0 0.0
    %4458 = vmatmul.mubr.f32.gmra.mrb[0].mxu0 %v4320
    %v4459 = vpop.f32.mrb[0].mxu0
    %v4460 = vadd.f32 0.0, %v4459
    %v4461 = vpop.f32.mrb[0].mxu0
    %v4462 = vadd.f32 0.0, %v4461
    %4463 = vdwg.mxu0
    %v4465 = vsel %vm143, %v4076, 0
    %4467 = vmatprep.subr.mxu0 %v4127
    %4468 = vmatpush1.msra.mxu0 %v4126
    %4469 = vmatprep.subr.mxu0 %v4131
    %4470 = vmatpush1.msra.mxu0 %v4130
    %4471 = vmatprep.subr.mxu0 %v4135
    %4472 = vmatpush1.msra.mxu0 %v4134
    %4473 = vmatprep.subr.mxu0 %v4139
    %4474 = vmatpush1.msra.mxu0 %v4138
    %4475 = vmatprep.subr.mxu0 %v4143
    %4476 = vmatpush1.msra.mxu0 %v4142
    %4477 = vmatprep.subr.mxu0 %v4147
    %4478 = vmatpush1.msra.mxu0 %v4146
    %4479 = vmatprep.subr.mxu0 0.0
    %4480 = vmatpush1.msra.mxu0 0.0
    %4481 = vmatprep.subr.mxu0 0.0
    %4482 = vmatpush1.msra.mxu0 0.0
    %4483 = vmatprep.subr.mxu0 0.0
    %4484 = vmatpush1.msra.mxu0 0.0
    %4485 = vmatprep.subr.mxu0 0.0
    %4486 = vmatpush1.msra.mxu0 0.0
    %4487 = vmatprep.subr.mxu0 0.0
    %4488 = vmatpush1.msra.mxu0 0.0
    %4489 = vmatprep.subr.mxu0 0.0
    %4490 = vmatpush1.msra.mxu0 0.0
    %4491 = vmatprep.subr.mxu0 0.0
    %4492 = vmatpush1.msra.mxu0 0.0
    %4493 = vmatprep.subr.mxu0 0.0
    %4494 = vmatpush1.msra.mxu0 0.0
    %4495 = vmatprep.subr.mxu0 0.0
    %4496 = vmatpush1.msra.mxu0 0.0
    %4497 = vmatprep.subr.mxu0 0.0
    %4498 = vmatpush1.msra.mxu0 0.0
    %4499 = vmatprep.subr.mxu0 0.0
    %4500 = vmatpush1.msra.mxu0 0.0
    %4501 = vmatprep.subr.mxu0 0.0
    %4502 = vmatpush1.msra.mxu0 0.0
    %4503 = vmatprep.subr.mxu0 0.0
    %4504 = vmatpush1.msra.mxu0 0.0
    %4505 = vmatprep.subr.mxu0 0.0
    %4506 = vmatpush1.msra.mxu0 0.0
    %4507 = vmatprep.subr.mxu0 0.0
    %4508 = vmatpush1.msra.mxu0 0.0
    %4509 = vmatprep.subr.mxu0 0.0
    %4510 = vmatpush1.msra.mxu0 0.0
    %4511 = vmatprep.subr.mxu0 0.0
    %4512 = vmatpush1.msra.mxu0 0.0
    %4513 = vmatprep.subr.mxu0 0.0
    %4514 = vmatpush1.msra.mxu0 0.0
    %4515 = vmatprep.subr.mxu0 0.0
    %4516 = vmatpush1.msra.mxu0 0.0
    %4517 = vmatprep.subr.mxu0 0.0
    %4518 = vmatpush1.msra.mxu0 0.0
    %4519 = vmatprep.subr.mxu0 0.0
    %4520 = vmatpush1.msra.mxu0 0.0
    %4521 = vmatprep.subr.mxu0 0.0
    %4522 = vmatpush1.msra.mxu0 0.0
    %4523 = vmatprep.subr.mxu0 0.0
    %4524 = vmatpush1.msra.mxu0 0.0
    %4525 = vmatprep.subr.mxu0 0.0
    %4526 = vmatpush1.msra.mxu0 0.0
    %4527 = vmatprep.subr.mxu0 0.0
    %4528 = vmatpush1.msra.mxu0 0.0
    %4529 = vmatprep.subr.mxu0 0.0
    %4530 = vmatpush1.msra.mxu0 0.0
    %4531 = vmatprep.mubr.f32.mxu0 0.0
    %4532 = vmatmul.mubr.f32.gmra.mrb[0].mxu0 %v4465
    %v4533 = vpop.f32.mrb[0].mxu0
    %v4534 = vadd.f32 0.0, %v4533
    %v4535 = vpop.f32.mrb[0].mxu0
    %v4536 = vadd.f32 0.0, %v4535
    %4537 = vdwg.mxu0
    %4538 = vmatprep.subr.mxu0 %v4129
    %4539 = vmatpush1.msra.mxu0 %v4128
    %4540 = vmatprep.subr.mxu0 %v4133
    %4541 = vmatpush1.msra.mxu0 %v4132
    %4542 = vmatprep.subr.mxu0 %v4137
    %4543 = vmatpush1.msra.mxu0 %v4136
    %4544 = vmatprep.subr.mxu0 %v4141
    %4545 = vmatpush1.msra.mxu0 %v4140
    %4546 = vmatprep.subr.mxu0 %v4145
    %4547 = vmatpush1.msra.mxu0 %v4144
    %4548 = vmatprep.subr.mxu0 %v4149
    %4549 = vmatpush1.msra.mxu0 %v4148
    %4550 = vmatprep.subr.mxu0 0.0
    %4551 = vmatpush1.msra.mxu0 0.0
    %4552 = vmatprep.subr.mxu0 0.0
    %4553 = vmatpush1.msra.mxu0 0.0
    %4554 = vmatprep.subr.mxu0 0.0
    %4555 = vmatpush1.msra.mxu0 0.0
    %4556 = vmatprep.subr.mxu0 0.0
    %4557 = vmatpush1.msra.mxu0 0.0
    %4558 = vmatprep.subr.mxu0 0.0
    %4559 = vmatpush1.msra.mxu0 0.0
    %4560 = vmatprep.subr.mxu0 0.0
    %4561 = vmatpush1.msra.mxu0 0.0
    %4562 = vmatprep.subr.mxu0 0.0
    %4563 = vmatpush1.msra.mxu0 0.0
    %4564 = vmatprep.subr.mxu0 0.0
    %4565 = vmatpush1.msra.mxu0 0.0
    %4566 = vmatprep.subr.mxu0 0.0
    %4567 = vmatpush1.msra.mxu0 0.0
    %4568 = vmatprep.subr.mxu0 0.0
    %4569 = vmatpush1.msra.mxu0 0.0
    %4570 = vmatprep.subr.mxu0 0.0
    %4571 = vmatpush1.msra.mxu0 0.0
    %4572 = vmatprep.subr.mxu0 0.0
    %4573 = vmatpush1.msra.mxu0 0.0
    %4574 = vmatprep.subr.mxu0 0.0
    %4575 = vmatpush1.msra.mxu0 0.0
    %4576 = vmatprep.subr.mxu0 0.0
    %4577 = vmatpush1.msra.mxu0 0.0
    %4578 = vmatprep.subr.mxu0 0.0
    %4579 = vmatpush1.msra.mxu0 0.0
    %4580 = vmatprep.subr.mxu0 0.0
    %4581 = vmatpush1.msra.mxu0 0.0
    %4582 = vmatprep.subr.mxu0 0.0
    %4583 = vmatpush1.msra.mxu0 0.0
    %4584 = vmatprep.subr.mxu0 0.0
    %4585 = vmatpush1.msra.mxu0 0.0
    %4586 = vmatprep.subr.mxu0 0.0
    %4587 = vmatpush1.msra.mxu0 0.0
    %4588 = vmatprep.subr.mxu0 0.0
    %4589 = vmatpush1.msra.mxu0 0.0
    %4590 = vmatprep.subr.mxu0 0.0
    %4591 = vmatpush1.msra.mxu0 0.0
    %4592 = vmatprep.subr.mxu0 0.0
    %4593 = vmatpush1.msra.mxu0 0.0
    %4594 = vmatprep.subr.mxu0 0.0
    %4595 = vmatpush1.msra.mxu0 0.0
    %4596 = vmatprep.subr.mxu0 0.0
    %4597 = vmatpush1.msra.mxu0 0.0
    %4598 = vmatprep.subr.mxu0 0.0
    %4599 = vmatpush1.msra.mxu0 0.0
    %4600 = vmatprep.subr.mxu0 0.0
    %4601 = vmatpush1.msra.mxu0 0.0
    %4602 = vmatprep.mubr.f32.mxu0 0.0
    %4603 = vmatmul.mubr.f32.gmra.mrb[0].mxu0 %v4465
    %v4604 = vpop.f32.mrb[0].mxu0
    %v4605 = vadd.f32 0.0, %v4604
    %v4606 = vpop.f32.mrb[0].mxu0
    %v4607 = vadd.f32 0.0, %v4606
    %4608 = vdwg.mxu0
    %v4610 = vsel %vm143, %v4077, 0
    %4612 = vmatprep.subr.mxu0 %v4151
    %4613 = vmatpush1.msra.mxu0 %v4150
    %4614 = vmatprep.subr.mxu0 %v4155
    %4615 = vmatpush1.msra.mxu0 %v4154
    %4616 = vmatprep.subr.mxu0 %v4159
    %4617 = vmatpush1.msra.mxu0 %v4158
    %4618 = vmatprep.subr.mxu0 %v4163
    %4619 = vmatpush1.msra.mxu0 %v4162
    %4620 = vmatprep.subr.mxu0 %v4167
    %4621 = vmatpush1.msra.mxu0 %v4166
    %4622 = vmatprep.subr.mxu0 %v4171
    %4623 = vmatpush1.msra.mxu0 %v4170
    %4624 = vmatprep.subr.mxu0 0.0
    %4625 = vmatpush1.msra.mxu0 0.0
    %4626 = vmatprep.subr.mxu0 0.0
    %4627 = vmatpush1.msra.mxu0 0.0
    %4628 = vmatprep.subr.mxu0 0.0
    %4629 = vmatpush1.msra.mxu0 0.0
    %4630 = vmatprep.subr.mxu0 0.0
    %4631 = vmatpush1.msra.mxu0 0.0
    %4632 = vmatprep.subr.mxu0 0.0
    %4633 = vmatpush1.msra.mxu0 0.0
    %4634 = vmatprep.subr.mxu0 0.0
    %4635 = vmatpush1.msra.mxu0 0.0
    %4636 = vmatprep.subr.mxu0 0.0
    %4637 = vmatpush1.msra.mxu0 0.0
    %4638 = vmatprep.subr.mxu0 0.0
    %4639 = vmatpush1.msra.mxu0 0.0
    %4640 = vmatprep.subr.mxu0 0.0
    %4641 = vmatpush1.msra.mxu0 0.0
    %4642 = vmatprep.subr.mxu0 0.0
    %4643 = vmatpush1.msra.mxu0 0.0
    %4644 = vmatprep.subr.mxu0 0.0
    %4645 = vmatpush1.msra.mxu0 0.0
    %4646 = vmatprep.subr.mxu0 0.0
    %4647 = vmatpush1.msra.mxu0 0.0
    %4648 = vmatprep.subr.mxu0 0.0
    %4649 = vmatpush1.msra.mxu0 0.0
    %4650 = vmatprep.subr.mxu0 0.0
    %4651 = vmatpush1.msra.mxu0 0.0
    %4652 = vmatprep.subr.mxu0 0.0
    %4653 = vmatpush1.msra.mxu0 0.0
    %4654 = vmatprep.subr.mxu0 0.0
    %4655 = vmatpush1.msra.mxu0 0.0
    %4656 = vmatprep.subr.mxu0 0.0
    %4657 = vmatpush1.msra.mxu0 0.0
    %4658 = vmatprep.subr.mxu0 0.0
    %4659 = vmatpush1.msra.mxu0 0.0
    %4660 = vmatprep.subr.mxu0 0.0
    %4661 = vmatpush1.msra.mxu0 0.0
    %4662 = vmatprep.subr.mxu0 0.0
    %4663 = vmatpush1.msra.mxu0 0.0
    %4664 = vmatprep.subr.mxu0 0.0
    %4665 = vmatpush1.msra.mxu0 0.0
    %4666 = vmatprep.subr.mxu0 0.0
    %4667 = vmatpush1.msra.mxu0 0.0
    %4668 = vmatprep.subr.mxu0 0.0
    %4669 = vmatpush1.msra.mxu0 0.0
    %4670 = vmatprep.subr.mxu0 0.0
    %4671 = vmatpush1.msra.mxu0 0.0
    %4672 = vmatprep.subr.mxu0 0.0
    %4673 = vmatpush1.msra.mxu0 0.0
    %4674 = vmatprep.subr.mxu0 0.0
    %4675 = vmatpush1.msra.mxu0 0.0
    %4676 = vmatprep.mubr.f32.mxu0 0.0
    %4677 = vmatmul.mubr.f32.gmra.mrb[0].mxu0 %v4610
    %v4678 = vpop.f32.mrb[0].mxu0
    %v4679 = vadd.f32 0.0, %v4678
    %v4680 = vpop.f32.mrb[0].mxu0
    %v4681 = vadd.f32 0.0, %v4680
    %4682 = vdwg.mxu0
    %4683 = vmatprep.subr.mxu0 %v4153
    %4684 = vmatpush1.msra.mxu0 %v4152
    %4685 = vmatprep.subr.mxu0 %v4157
    %4686 = vmatpush1.msra.mxu0 %v4156
    %4687 = vmatprep.subr.mxu0 %v4161
    %4688 = vmatpush1.msra.mxu0 %v4160
    %4689 = vmatprep.subr.mxu0 %v4165
    %4690 = vmatpush1.msra.mxu0 %v4164
    %4691 = vmatprep.subr.mxu0 %v4169
    %4692 = vmatpush1.msra.mxu0 %v4168
    %4693 = vmatprep.subr.mxu0 %v4173
    %4694 = vmatpush1.msra.mxu0 %v4172
    %4695 = vmatprep.subr.mxu0 0.0
    %4696 = vmatpush1.msra.mxu0 0.0
    %4697 = vmatprep.subr.mxu0 0.0
    %4698 = vmatpush1.msra.mxu0 0.0
    %4699 = vmatprep.subr.mxu0 0.0
    %4700 = vmatpush1.msra.mxu0 0.0
    %4701 = vmatprep.subr.mxu0 0.0
    %4702 = vmatpush1.msra.mxu0 0.0
    %4703 = vmatprep.subr.mxu0 0.0
    %4704 = vmatpush1.msra.mxu0 0.0
    %4705 = vmatprep.subr.mxu0 0.0
    %4706 = vmatpush1.msra.mxu0 0.0
    %4707 = vmatprep.subr.mxu0 0.0
    %4708 = vmatpush1.msra.mxu0 0.0
    %4709 = vmatprep.subr.mxu0 0.0
    %4710 = vmatpush1.msra.mxu0 0.0
    %4711 = vmatprep.subr.mxu0 0.0
    %4712 = vmatpush1.msra.mxu0 0.0
    %4713 = vmatprep.subr.mxu0 0.0
    %4714 = vmatpush1.msra.mxu0 0.0
    %4715 = vmatprep.subr.mxu0 0.0
    %4716 = vmatpush1.msra.mxu0 0.0
    %4717 = vmatprep.subr.mxu0 0.0
    %4718 = vmatpush1.msra.mxu0 0.0
    %4719 = vmatprep.subr.mxu0 0.0
    %4720 = vmatpush1.msra.mxu0 0.0
    %4721 = vmatprep.subr.mxu0 0.0
    %4722 = vmatpush1.msra.mxu0 0.0
    %4723 = vmatprep.subr.mxu0 0.0
    %4724 = vmatpush1.msra.mxu0 0.0
    %4725 = vmatprep.subr.mxu0 0.0
    %4726 = vmatpush1.msra.mxu0 0.0
    %4727 = vmatprep.subr.mxu0 0.0
    %4728 = vmatpush1.msra.mxu0 0.0
    %4729 = vmatprep.subr.mxu0 0.0
    %4730 = vmatpush1.msra.mxu0 0.0
    %4731 = vmatprep.subr.mxu0 0.0
    %4732 = vmatpush1.msra.mxu0 0.0
    %4733 = vmatprep.subr.mxu0 0.0
    %4734 = vmatpush1.msra.mxu0 0.0
    %4735 = vmatprep.subr.mxu0 0.0
    %4736 = vmatpush1.msra.mxu0 0.0
    %4737 = vmatprep.subr.mxu0 0.0
    %4738 = vmatpush1.msra.mxu0 0.0
    %4739 = vmatprep.subr.mxu0 0.0
    %4740 = vmatpush1.msra.mxu0 0.0
    %4741 = vmatprep.subr.mxu0 0.0
    %4742 = vmatpush1.msra.mxu0 0.0
    %4743 = vmatprep.subr.mxu0 0.0
    %4744 = vmatpush1.msra.mxu0 0.0
    %4745 = vmatprep.subr.mxu0 0.0
    %4746 = vmatpush1.msra.mxu0 0.0
    %4747 = vmatprep.mubr.f32.mxu0 0.0
    %4748 = vmatmul.mubr.f32.gmra.mrb[0].mxu0 %v4610
    %v4749 = vpop.f32.mrb[0].mxu0
    %v4750 = vadd.f32 0.0, %v4749
    %v4751 = vpop.f32.mrb[0].mxu0
    %v4752 = vadd.f32 0.0, %v4751
    %4753 = vdwg.mxu0
    %v4754 = vxor.u32 %v4244, 2147483648
    %v4755 = vxor.u32 %v4246, 2147483648
    %v4756 = vxor.u32 %v4315, 2147483648
    %v4757 = vxor.u32 %v4389, 2147483648
    %v4758 = vxor.u32 %v4391, 2147483648
    %v4759 = vxor.u32 %v4460, 2147483648
    %v4760 = vxor.u32 %v4534, 2147483648
    %v4761 = vxor.u32 %v4536, 2147483648
    %v4762 = vxor.u32 %v4605, 2147483648
    %v4763 = vxor.u32 %v4679, 2147483648
    %v4764 = vxor.u32 %v4681, 2147483648
    %v4765 = vxor.u32 %v4750, 2147483648
    %v4766 = vmul.f32 %v4754, 1.442695
    %v4767 = vpow.pop %v4766
    %v4768 = vmul.f32 %v4755, 1.442695
    %v4769 = vpow.pop %v4768
    %v4770 = vmul.f32 %v4756, 1.442695
    %v4771 = vpow.pop %v4770
    %v4772 = vmul.f32 %v4757, 1.442695
    %v4773 = vpow.pop %v4772
    %v4774 = vmul.f32 %v4758, 1.442695
    %v4775 = vpow.pop %v4774
    %v4776 = vmul.f32 %v4759, 1.442695
    %v4777 = vpow.pop %v4776
    %v4778 = vmul.f32 %v4760, 1.442695
    %v4779 = vpow.pop %v4778
    %v4780 = vmul.f32 %v4761, 1.442695
    %v4781 = vpow.pop %v4780
    %v4782 = vmul.f32 %v4762, 1.442695
    %v4783 = vpow.pop %v4782
    %v4784 = vmul.f32 %v4763, 1.442695
    %v4785 = vpow.pop %v4784
    %v4786 = vmul.f32 %v4764, 1.442695
    %v4787 = vpow.pop %v4786
    %v4788 = vmul.f32 %v4765, 1.442695
    %v4789 = vpow.pop %v4788
    %v4790 = vadd.f32 %v4767, 1.0
    %v4791 = vadd.f32 %v4769, 1.0
    %v4792 = vadd.f32 %v4771, 1.0
    %v4793 = vadd.f32 %v4773, 1.0
    %v4794 = vadd.f32 %v4775, 1.0
    %v4795 = vadd.f32 %v4777, 1.0
    %v4796 = vadd.f32 %v4779, 1.0
    %v4797 = vadd.f32 %v4781, 1.0
    %v4798 = vadd.f32 %v4783, 1.0
    %v4799 = vadd.f32 %v4785, 1.0
    %v4800 = vadd.f32 %v4787, 1.0
    %v4801 = vadd.f32 %v4789, 1.0
    %v4802 = vrcp.pop %v4790
    %v4803 = vmul.f32 1.0, %v4802
    %v4804 = vrcp.pop %v4791
    %v4805 = vmul.f32 1.0, %v4804
    %v4806 = vrcp.pop %v4792
    %v4807 = vmul.f32 1.0, %v4806
    %v4808 = vrcp.pop %v4793
    %v4809 = vmul.f32 1.0, %v4808
    %v4810 = vrcp.pop %v4794
    %v4811 = vmul.f32 1.0, %v4810
    %v4812 = vrcp.pop %v4795
    %v4813 = vmul.f32 1.0, %v4812
    %v4814 = vrcp.pop %v4796
    %v4815 = vmul.f32 1.0, %v4814
    %v4816 = vrcp.pop %v4797
    %v4817 = vmul.f32 1.0, %v4816
    %v4818 = vrcp.pop %v4798
    %v4819 = vmul.f32 1.0, %v4818
    %v4820 = vrcp.pop %v4799
    %v4821 = vmul.f32 1.0, %v4820
    %v4822 = vrcp.pop %v4800
    %v4823 = vmul.f32 1.0, %v4822
    %v4824 = vrcp.pop %v4801
    %v4825 = vmul.f32 1.0, %v4824
    %v4826 = vtanh.pop %v4317
    %v4827 = vtanh.pop %v4462
    %v4828 = vtanh.pop %v4607
    %v4829 = vtanh.pop %v4752
    %v4830 = vmul.f32 %v4805, %v4039
    %v4831 = vmul.f32 %v4811, %v4040
    %v4832 = vmul.f32 %v4817, %v4041
    %v4833 = vmul.f32 %v4823, %v4042
    %v4834 = vmul.f32 %v4803, %v4826
    %v4835 = vmul.f32 %v4809, %v4827
    %v4836 = vmul.f32 %v4815, %v4828
    %v4837 = vmul.f32 %v4821, %v4829
    %v4838 = vadd.f32 %v4830, %v4834
    %v4839 = vadd.f32 %v4831, %v4835
    %v4840 = vadd.f32 %v4832, %v4836
    %v4841 = vadd.f32 %v4833, %v4837
    %v4842 = vtanh.pop %v4838
    %v4843 = vtanh.pop %v4839
    %v4844 = vtanh.pop %v4840
    %v4845 = vtanh.pop %v4841
    %v4846 = vmul.f32 %v4807, %v4842
    %v4847 = vmul.f32 %v4813, %v4843
    %v4848 = vmul.f32 %v4819, %v4844
    %v4849 = vmul.f32 %v4825, %v4845
    %4850 = vst.msk [vmem:[#allocation2] sm:$0x3] %vm832, %v4846
    %4851 = vst.msk [vmem:[#allocation2 + $0x2] sm:$0x3] %vm832, %v4847
    %4852 = vst.msk [vmem:[#allocation2 + $0x4] sm:$0x3] %vm832, %v4848
    %4853 = vst.msk [vmem:[#allocation2 + $0x6] sm:$0x3] %vm832, %v4849
    %4857 = vrot.lane.b32.xlu0 %v4846, 20
    %v4858 = vpop.permute.xlu0 %4857
    %4859 = vrot.lane.b32.xlu0 %v4847, 20
    %v4860 = vpop.permute.xlu0 %4859
    %4861 = vrot.lane.b32.xlu0 %v4848, 20
    %v4862 = vpop.permute.xlu0 %4861
    %4866 = vst.msk [vmem:[%s849] sm:$0x3] %vm41, %v4858
    %4867 = vst.msk [vmem:[%s849 + $0x2] sm:$0x3] %vm41, %v4860
    %4868 = vst.msk [vmem:[%s849 + $0x4] sm:$0x3] %vm41, %v4862
    %4869 = vst.msk [vmem:[#allocation3 + $0x4] sm:$0x3] %vm832, %v4849
    %s4870 = scalar_lea.vmem %s0, 12
    %v4871 = vld [vmem:[%s4870] sm:$0x3]
    %4872 = vst.msk [vmem:[#allocation2] sm:$0x3] %vm41, %v4871
    %v4873 = vld [vmem:[#allocation2] sm:$0x3]
    %v4874 = vld [vmem:[#allocation2 + $0x2] sm:$0x3]
    %v4875 = vld [vmem:[#allocation2 + $0x4] sm:$0x3]
    %v4876 = vld [vmem:[#allocation2 + $0x6] sm:$0x3]
    %v4877 = vld [vmem:[#allocation4] sm:$0xff]
    %v4878 = vld [vmem:[#allocation4 + $0x8] sm:$0xff]
    %v4879 = vld [vmem:[#allocation4 + $0x10] sm:$0xff]
    %v4880 = vld [vmem:[#allocation4 + $0x18] sm:$0xff]
    %v4881 = vld [vmem:[#allocation4 + $0x20] sm:$0xff]
    %v4882 = vld [vmem:[#allocation4 + $0x28] sm:$0xff]
    %v4883 = vld [vmem:[#allocation4 + $0x30] sm:$0xff]
    %v4884 = vld [vmem:[#allocation4 + $0x38] sm:$0xff]
    %v4885 = vld [vmem:[#allocation4 + $0x40] sm:$0xff]
    %v4886 = vld [vmem:[#allocation4 + $0x48] sm:$0xff]
    %v4887 = vld [vmem:[#allocation4 + $0x50] sm:$0xff]
    %v4888 = vld [vmem:[#allocation4 + $0x58] sm:$0xff]
    %v4889 = vld [vmem:[#allocation4 + $0x60] sm:$0xff]
    %v4890 = vld [vmem:[#allocation4 + $0x68] sm:$0xff]
    %v4891 = vld [vmem:[#allocation4 + $0x70] sm:$0xff]
    %v4892 = vld [vmem:[#allocation4 + $0x78] sm:$0xff]
    %v4893 = vld [vmem:[#allocation4 + $0x80] sm:$0xff]
    %v4894 = vld [vmem:[#allocation4 + $0x88] sm:$0xff]
    %v4895 = vld [vmem:[#allocation4 + $0x90] sm:$0xff]
    %v4896 = vld [vmem:[#allocation4 + $0x98] sm:$0xff]
    %v4897 = vld [vmem:[#allocation4 + $0xa0] sm:$0xff]
    %v4898 = vld [vmem:[#allocation4 + $0xa8] sm:$0xff]
    %v4899 = vld [vmem:[#allocation4 + $0xb0] sm:$0xff]
    %v4900 = vld [vmem:[#allocation4 + $0xb8] sm:$0xff]
    %v4901 = vld [vmem:[#allocation4 + $0xc0] sm:$0xff]
    %v4902 = vld [vmem:[#allocation4 + $0xc8] sm:$0xff]
    %v4903 = vld [vmem:[#allocation4 + $0xd0] sm:$0xff]
    %v4904 = vld [vmem:[#allocation4 + $0xd8] sm:$0xff]
    %v4905 = vld [vmem:[#allocation4 + $0xe0] sm:$0xff]
    %v4906 = vld [vmem:[#allocation4 + $0xe8] sm:$0xff]
    %v4907 = vld [vmem:[#allocation4 + $0xf0] sm:$0xff]
    %v4908 = vld [vmem:[#allocation4 + $0xf8] sm:$0xff]
    %v4909 = vld [vmem:[#allocation4 + $0x100] sm:$0xff]
    %v4910 = vld [vmem:[#allocation4 + $0x108] sm:$0xff]
    %v4911 = vld [vmem:[#allocation4 + $0x110] sm:$0xff]
    %v4912 = vld [vmem:[#allocation4 + $0x118] sm:$0xff]
    %v4913 = vld [vmem:[#allocation4 + $0x120] sm:$0xff]
    %v4914 = vld [vmem:[#allocation4 + $0x128] sm:$0xff]
    %v4915 = vld [vmem:[#allocation4 + $0x130] sm:$0xff]
    %v4916 = vld [vmem:[#allocation4 + $0x138] sm:$0xff]
    %v4917 = vld [vmem:[#allocation4 + $0x140] sm:$0xff]
    %v4918 = vld [vmem:[#allocation4 + $0x148] sm:$0xff]
    %v4919 = vld [vmem:[#allocation4 + $0x150] sm:$0xff]
    %v4920 = vld [vmem:[#allocation4 + $0x158] sm:$0xff]
    %v4921 = vld [vmem:[#allocation4 + $0x160] sm:$0xff]
    %v4922 = vld [vmem:[#allocation4 + $0x168] sm:$0xff]
    %v4923 = vld [vmem:[#allocation4 + $0x170] sm:$0xff]
    %v4924 = vld [vmem:[#allocation4 + $0x178] sm:$0xff]
    %v4925 = vld [vmem:[#allocation4 + $0x180] sm:$0xff]
    %v4926 = vld [vmem:[#allocation4 + $0x188] sm:$0xff]
    %v4927 = vld [vmem:[#allocation4 + $0x190] sm:$0xff]
    %v4928 = vld [vmem:[#allocation4 + $0x198] sm:$0xff]
    %v4929 = vld [vmem:[#allocation4 + $0x1a0] sm:$0xff]
    %v4930 = vld [vmem:[#allocation4 + $0x1a8] sm:$0xff]
    %v4931 = vld [vmem:[#allocation4 + $0x1b0] sm:$0xff]
    %v4932 = vld [vmem:[#allocation4 + $0x1b8] sm:$0xff]
    %v4933 = vld [vmem:[#allocation4 + $0x1c0] sm:$0xff]
    %v4934 = vld [vmem:[#allocation4 + $0x1c8] sm:$0xff]
    %v4935 = vld [vmem:[#allocation4 + $0x1d0] sm:$0xff]
    %v4936 = vld [vmem:[#allocation4 + $0x1d8] sm:$0xff]
    %v4937 = vld [vmem:[#allocation4 + $0x1e0] sm:$0xff]
    %v4938 = vld [vmem:[#allocation4 + $0x1e8] sm:$0xff]
    %v4939 = vld [vmem:[#allocation4 + $0x1f0] sm:$0xff]
    %v4940 = vld [vmem:[#allocation4 + $0x1f8] sm:$0xff]
    %v4941 = vld [vmem:[#allocation4 + $0x200] sm:$0xff]
    %v4942 = vld [vmem:[#allocation4 + $0x208] sm:$0xff]
    %v4943 = vld [vmem:[#allocation4 + $0x210] sm:$0xff]
    %v4944 = vld [vmem:[#allocation4 + $0x218] sm:$0xff]
    %v4945 = vld [vmem:[#allocation4 + $0x220] sm:$0xff]
    %v4946 = vld [vmem:[#allocation4 + $0x228] sm:$0xff]
    %v4947 = vld [vmem:[#allocation4 + $0x230] sm:$0xff]
    %v4948 = vld [vmem:[#allocation4 + $0x238] sm:$0xff]
    %v4949 = vld [vmem:[#allocation4 + $0x240] sm:$0xff]
    %v4950 = vld [vmem:[#allocation4 + $0x248] sm:$0xff]
    %v4951 = vld [vmem:[#allocation4 + $0x250] sm:$0xff]
    %v4952 = vld [vmem:[#allocation4 + $0x258] sm:$0xff]
    %v4953 = vld [vmem:[#allocation4 + $0x260] sm:$0xff]
    %v4954 = vld [vmem:[#allocation4 + $0x268] sm:$0xff]
    %v4955 = vld [vmem:[#allocation4 + $0x270] sm:$0xff]
    %v4956 = vld [vmem:[#allocation4 + $0x278] sm:$0xff]
    %v4957 = vld [vmem:[#allocation4 + $0x280] sm:$0xff]
    %v4958 = vld [vmem:[#allocation4 + $0x288] sm:$0xff]
    %v4959 = vld [vmem:[#allocation4 + $0x290] sm:$0xff]
    %v4960 = vld [vmem:[#allocation4 + $0x298] sm:$0xff]
    %v4961 = vld [vmem:[#allocation4 + $0x2a0] sm:$0xff]
    %v4962 = vld [vmem:[#allocation4 + $0x2a8] sm:$0xff]
    %v4963 = vld [vmem:[#allocation4 + $0x2b0] sm:$0xff]
    %v4964 = vld [vmem:[#allocation4 + $0x2b8] sm:$0xff]
    %v4965 = vld [vmem:[#allocation4 + $0x2c0] sm:$0xff]
    %v4966 = vld [vmem:[#allocation4 + $0x2c8] sm:$0xff]
    %v4967 = vld [vmem:[#allocation4 + $0x2d0] sm:$0xff]
    %v4968 = vld [vmem:[#allocation4 + $0x2d8] sm:$0xff]
    %v4969 = vld [vmem:[#allocation4 + $0x2e0] sm:$0xff]
    %v4970 = vld [vmem:[#allocation4 + $0x2e8] sm:$0xff]
    %v4971 = vld [vmem:[#allocation4 + $0x2f0] sm:$0xff]
    %v4972 = vld [vmem:[#allocation4 + $0x2f8] sm:$0xff]
    %v4974 = vsel %vm143, %v4873, 0
    %4976 = vmatprep.subr.mxu0 %v4878
    %4977 = vmatpush1.msra.mxu0 %v4877
    %4978 = vmatprep.subr.mxu0 %v4882
    %4979 = vmatpush1.msra.mxu0 %v4881
    %4980 = vmatprep.subr.mxu0 %v4886
    %4981 = vmatpush1.msra.mxu0 %v4885
    %4982 = vmatprep.subr.mxu0 %v4890
    %4983 = vmatpush1.msra.mxu0 %v4889
    %4984 = vmatprep.subr.mxu0 %v4894
    %4985 = vmatpush1.msra.mxu0 %v4893
    %4986 = vmatprep.subr.mxu0 %v4898
    %4987 = vmatpush1.msra.mxu0 %v4897
    %4988 = vmatprep.subr.mxu0 0.0
    %4989 = vmatpush1.msra.mxu0 0.0
    %4990 = vmatprep.subr.mxu0 0.0
    %4991 = vmatpush1.msra.mxu0 0.0
    %4992 = vmatprep.subr.mxu0 0.0
    %4993 = vmatpush1.msra.mxu0 0.0
    %4994 = vmatprep.subr.mxu0 0.0
    %4995 = vmatpush1.msra.mxu0 0.0
    %4996 = vmatprep.subr.mxu0 0.0
    %4997 = vmatpush1.msra.mxu0 0.0
    %4998 = vmatprep.subr.mxu0 0.0
    %4999 = vmatpush1.msra.mxu0 0.0
    %5000 = vmatprep.subr.mxu0 0.0
    %5001 = vmatpush1.msra.mxu0 0.0
    %5002 = vmatprep.subr.mxu0 0.0
    %5003 = vmatpush1.msra.mxu0 0.0
    %5004 = vmatprep.subr.mxu0 0.0
    %5005 = vmatpush1.msra.mxu0 0.0
    %5006 = vmatprep.subr.mxu0 0.0
    %5007 = vmatpush1.msra.mxu0 0.0
    %5008 = vmatprep.subr.mxu0 0.0
    %5009 = vmatpush1.msra.mxu0 0.0
    %5010 = vmatprep.subr.mxu0 0.0
    %5011 = vmatpush1.msra.mxu0 0.0
    %5012 = vmatprep.subr.mxu0 0.0
    %5013 = vmatpush1.msra.mxu0 0.0
    %5014 = vmatprep.subr.mxu0 0.0
    %5015 = vmatpush1.msra.mxu0 0.0
    %5016 = vmatprep.subr.mxu0 0.0
    %5017 = vmatpush1.msra.mxu0 0.0
    %5018 = vmatprep.subr.mxu0 0.0
    %5019 = vmatpush1.msra.mxu0 0.0
    %5020 = vmatprep.subr.mxu0 0.0
    %5021 = vmatpush1.msra.mxu0 0.0
    %5022 = vmatprep.subr.mxu0 0.0
    %5023 = vmatpush1.msra.mxu0 0.0
    %5024 = vmatprep.subr.mxu0 0.0
    %5025 = vmatpush1.msra.mxu0 0.0
    %5026 = vmatprep.subr.mxu0 0.0
    %5027 = vmatpush1.msra.mxu0 0.0
    %5028 = vmatprep.subr.mxu0 0.0
    %5029 = vmatpush1.msra.mxu0 0.0
    %5030 = vmatprep.subr.mxu0 0.0
    %5031 = vmatpush1.msra.mxu0 0.0
    %5032 = vmatprep.subr.mxu0 0.0
    %5033 = vmatpush1.msra.mxu0 0.0
    %5034 = vmatprep.subr.mxu0 0.0
    %5035 = vmatpush1.msra.mxu0 0.0
    %5036 = vmatprep.subr.mxu0 0.0
    %5037 = vmatpush1.msra.mxu0 0.0
    %5038 = vmatprep.subr.mxu0 0.0
    %5039 = vmatpush1.msra.mxu0 0.0
    %5040 = vmatprep.mubr.f32.mxu0 0.0
    %5041 = vmatmul.mubr.f32.gmra.mrb[0].mxu0 %v4974
    %v5042 = vpop.f32.mrb[0].mxu0
    %v5043 = vadd.f32 0.0, %v5042
    %v5044 = vpop.f32.mrb[0].mxu0
    %v5045 = vadd.f32 0.0, %v5044
    %5046 = vdwg.mxu0
    %5047 = vmatprep.subr.mxu0 %v4880
    %5048 = vmatpush1.msra.mxu0 %v4879
    %5049 = vmatprep.subr.mxu0 %v4884
    %5050 = vmatpush1.msra.mxu0 %v4883
    %5051 = vmatprep.subr.mxu0 %v4888
    %5052 = vmatpush1.msra.mxu0 %v4887
    %5053 = vmatprep.subr.mxu0 %v4892
    %5054 = vmatpush1.msra.mxu0 %v4891
    %5055 = vmatprep.subr.mxu0 %v4896
    %5056 = vmatpush1.msra.mxu0 %v4895
    %5057 = vmatprep.subr.mxu0 %v4900
    %5058 = vmatpush1.msra.mxu0 %v4899
    %5059 = vmatprep.subr.mxu0 0.0
    %5060 = vmatpush1.msra.mxu0 0.0
    %5061 = vmatprep.subr.mxu0 0.0
    %5062 = vmatpush1.msra.mxu0 0.0
    %5063 = vmatprep.subr.mxu0 0.0
    %5064 = vmatpush1.msra.mxu0 0.0
    %5065 = vmatprep.subr.mxu0 0.0
    %5066 = vmatpush1.msra.mxu0 0.0
    %5067 = vmatprep.subr.mxu0 0.0
    %5068 = vmatpush1.msra.mxu0 0.0
    %5069 = vmatprep.subr.mxu0 0.0
    %5070 = vmatpush1.msra.mxu0 0.0
    %5071 = vmatprep.subr.mxu0 0.0
    %5072 = vmatpush1.msra.mxu0 0.0
    %5073 = vmatprep.subr.mxu0 0.0
    %5074 = vmatpush1.msra.mxu0 0.0
    %5075 = vmatprep.subr.mxu0 0.0
    %5076 = vmatpush1.msra.mxu0 0.0
    %5077 = vmatprep.subr.mxu0 0.0
    %5078 = vmatpush1.msra.mxu0 0.0
    %5079 = vmatprep.subr.mxu0 0.0
    %5080 = vmatpush1.msra.mxu0 0.0
    %5081 = vmatprep.subr.mxu0 0.0
    %5082 = vmatpush1.msra.mxu0 0.0
    %5083 = vmatprep.subr.mxu0 0.0
    %5084 = vmatpush1.msra.mxu0 0.0
    %5085 = vmatprep.subr.mxu0 0.0
    %5086 = vmatpush1.msra.mxu0 0.0
    %5087 = vmatprep.subr.mxu0 0.0
    %5088 = vmatpush1.msra.mxu0 0.0
    %5089 = vmatprep.subr.mxu0 0.0
    %5090 = vmatpush1.msra.mxu0 0.0
    %5091 = vmatprep.subr.mxu0 0.0
    %5092 = vmatpush1.msra.mxu0 0.0
    %5093 = vmatprep.subr.mxu0 0.0
    %5094 = vmatpush1.msra.mxu0 0.0
    %5095 = vmatprep.subr.mxu0 0.0
    %5096 = vmatpush1.msra.mxu0 0.0
    %5097 = vmatprep.subr.mxu0 0.0
    %5098 = vmatpush1.msra.mxu0 0.0
    %5099 = vmatprep.subr.mxu0 0.0
    %5100 = vmatpush1.msra.mxu0 0.0
    %5101 = vmatprep.subr.mxu0 0.0
    %5102 = vmatpush1.msra.mxu0 0.0
    %5103 = vmatprep.subr.mxu0 0.0
    %5104 = vmatpush1.msra.mxu0 0.0
    %5105 = vmatprep.subr.mxu0 0.0
    %5106 = vmatpush1.msra.mxu0 0.0
    %5107 = vmatprep.subr.mxu0 0.0
    %5108 = vmatpush1.msra.mxu0 0.0
    %5109 = vmatprep.subr.mxu0 0.0
    %5110 = vmatpush1.msra.mxu0 0.0
    %5111 = vmatprep.mubr.f32.mxu0 0.0
    %5112 = vmatmul.mubr.f32.gmra.mrb[0].mxu0 %v4974
    %v5113 = vpop.f32.mrb[0].mxu0
    %v5114 = vadd.f32 0.0, %v5113
    %v5115 = vpop.f32.mrb[0].mxu0
    %v5116 = vadd.f32 0.0, %v5115
    %5117 = vdwg.mxu0
    %v5119 = vsel %vm143, %v4874, 0
    %5121 = vmatprep.subr.mxu0 %v4902
    %5122 = vmatpush1.msra.mxu0 %v4901
    %5123 = vmatprep.subr.mxu0 %v4906
    %5124 = vmatpush1.msra.mxu0 %v4905
    %5125 = vmatprep.subr.mxu0 %v4910
    %5126 = vmatpush1.msra.mxu0 %v4909
    %5127 = vmatprep.subr.mxu0 %v4914
    %5128 = vmatpush1.msra.mxu0 %v4913
    %5129 = vmatprep.subr.mxu0 %v4918
    %5130 = vmatpush1.msra.mxu0 %v4917
    %5131 = vmatprep.subr.mxu0 %v4922
    %5132 = vmatpush1.msra.mxu0 %v4921
    %5133 = vmatprep.subr.mxu0 0.0
    %5134 = vmatpush1.msra.mxu0 0.0
    %5135 = vmatprep.subr.mxu0 0.0
    %5136 = vmatpush1.msra.mxu0 0.0
    %5137 = vmatprep.subr.mxu0 0.0
    %5138 = vmatpush1.msra.mxu0 0.0
    %5139 = vmatprep.subr.mxu0 0.0
    %5140 = vmatpush1.msra.mxu0 0.0
    %5141 = vmatprep.subr.mxu0 0.0
    %5142 = vmatpush1.msra.mxu0 0.0
    %5143 = vmatprep.subr.mxu0 0.0
    %5144 = vmatpush1.msra.mxu0 0.0
    %5145 = vmatprep.subr.mxu0 0.0
    %5146 = vmatpush1.msra.mxu0 0.0
    %5147 = vmatprep.subr.mxu0 0.0
    %5148 = vmatpush1.msra.mxu0 0.0
    %5149 = vmatprep.subr.mxu0 0.0
    %5150 = vmatpush1.msra.mxu0 0.0
    %5151 = vmatprep.subr.mxu0 0.0
    %5152 = vmatpush1.msra.mxu0 0.0
    %5153 = vmatprep.subr.mxu0 0.0
    %5154 = vmatpush1.msra.mxu0 0.0
    %5155 = vmatprep.subr.mxu0 0.0
    %5156 = vmatpush1.msra.mxu0 0.0
    %5157 = vmatprep.subr.mxu0 0.0
    %5158 = vmatpush1.msra.mxu0 0.0
    %5159 = vmatprep.subr.mxu0 0.0
    %5160 = vmatpush1.msra.mxu0 0.0
    %5161 = vmatprep.subr.mxu0 0.0
    %5162 = vmatpush1.msra.mxu0 0.0
    %5163 = vmatprep.subr.mxu0 0.0
    %5164 = vmatpush1.msra.mxu0 0.0
    %5165 = vmatprep.subr.mxu0 0.0
    %5166 = vmatpush1.msra.mxu0 0.0
    %5167 = vmatprep.subr.mxu0 0.0
    %5168 = vmatpush1.msra.mxu0 0.0
    %5169 = vmatprep.subr.mxu0 0.0
    %5170 = vmatpush1.msra.mxu0 0.0
    %5171 = vmatprep.subr.mxu0 0.0
    %5172 = vmatpush1.msra.mxu0 0.0
    %5173 = vmatprep.subr.mxu0 0.0
    %5174 = vmatpush1.msra.mxu0 0.0
    %5175 = vmatprep.subr.mxu0 0.0
    %5176 = vmatpush1.msra.mxu0 0.0
    %5177 = vmatprep.subr.mxu0 0.0
    %5178 = vmatpush1.msra.mxu0 0.0
    %5179 = vmatprep.subr.mxu0 0.0
    %5180 = vmatpush1.msra.mxu0 0.0
    %5181 = vmatprep.subr.mxu0 0.0
    %5182 = vmatpush1.msra.mxu0 0.0
    %5183 = vmatprep.subr.mxu0 0.0
    %5184 = vmatpush1.msra.mxu0 0.0
    %5185 = vmatprep.mubr.f32.mxu0 0.0
    %5186 = vmatmul.mubr.f32.gmra.mrb[0].mxu0 %v5119
    %v5187 = vpop.f32.mrb[0].mxu0
    %v5188 = vadd.f32 0.0, %v5187
    %v5189 = vpop.f32.mrb[0].mxu0
    %v5190 = vadd.f32 0.0, %v5189
    %5191 = vdwg.mxu0
    %5192 = vmatprep.subr.mxu0 %v4904
    %5193 = vmatpush1.msra.mxu0 %v4903
    %5194 = vmatprep.subr.mxu0 %v4908
    %5195 = vmatpush1.msra.mxu0 %v4907
    %5196 = vmatprep.subr.mxu0 %v4912
    %5197 = vmatpush1.msra.mxu0 %v4911
    %5198 = vmatprep.subr.mxu0 %v4916
    %5199 = vmatpush1.msra.mxu0 %v4915
    %5200 = vmatprep.subr.mxu0 %v4920
    %5201 = vmatpush1.msra.mxu0 %v4919
    %5202 = vmatprep.subr.mxu0 %v4924
    %5203 = vmatpush1.msra.mxu0 %v4923
    %5204 = vmatprep.subr.mxu0 0.0
    %5205 = vmatpush1.msra.mxu0 0.0
    %5206 = vmatprep.subr.mxu0 0.0
    %5207 = vmatpush1.msra.mxu0 0.0
    %5208 = vmatprep.subr.mxu0 0.0
    %5209 = vmatpush1.msra.mxu0 0.0
    %5210 = vmatprep.subr.mxu0 0.0
    %5211 = vmatpush1.msra.mxu0 0.0
    %5212 = vmatprep.subr.mxu0 0.0
    %5213 = vmatpush1.msra.mxu0 0.0
    %5214 = vmatprep.subr.mxu0 0.0
    %5215 = vmatpush1.msra.mxu0 0.0
    %5216 = vmatprep.subr.mxu0 0.0
    %5217 = vmatpush1.msra.mxu0 0.0
    %5218 = vmatprep.subr.mxu0 0.0
    %5219 = vmatpush1.msra.mxu0 0.0
    %5220 = vmatprep.subr.mxu0 0.0
    %5221 = vmatpush1.msra.mxu0 0.0
    %5222 = vmatprep.subr.mxu0 0.0
    %5223 = vmatpush1.msra.mxu0 0.0
    %5224 = vmatprep.subr.mxu0 0.0
    %5225 = vmatpush1.msra.mxu0 0.0
    %5226 = vmatprep.subr.mxu0 0.0
    %5227 = vmatpush1.msra.mxu0 0.0
    %5228 = vmatprep.subr.mxu0 0.0
    %5229 = vmatpush1.msra.mxu0 0.0
    %5230 = vmatprep.subr.mxu0 0.0
    %5231 = vmatpush1.msra.mxu0 0.0
    %5232 = vmatprep.subr.mxu0 0.0
    %5233 = vmatpush1.msra.mxu0 0.0
    %5234 = vmatprep.subr.mxu0 0.0
    %5235 = vmatpush1.msra.mxu0 0.0
    %5236 = vmatprep.subr.mxu0 0.0
    %5237 = vmatpush1.msra.mxu0 0.0
    %5238 = vmatprep.subr.mxu0 0.0
    %5239 = vmatpush1.msra.mxu0 0.0
    %5240 = vmatprep.subr.mxu0 0.0
    %5241 = vmatpush1.msra.mxu0 0.0
    %5242 = vmatprep.subr.mxu0 0.0
    %5243 = vmatpush1.msra.mxu0 0.0
    %5244 = vmatprep.subr.mxu0 0.0
    %5245 = vmatpush1.msra.mxu0 0.0
    %5246 = vmatprep.subr.mxu0 0.0
    %5247 = vmatpush1.msra.mxu0 0.0
    %5248 = vmatprep.subr.mxu0 0.0
    %5249 = vmatpush1.msra.mxu0 0.0
    %5250 = vmatprep.subr.mxu0 0.0
    %5251 = vmatpush1.msra.mxu0 0.0
    %5252 = vmatprep.subr.mxu0 0.0
    %5253 = vmatpush1.msra.mxu0 0.0
    %5254 = vmatprep.subr.mxu0 0.0
    %5255 = vmatpush1.msra.mxu0 0.0
    %5256 = vmatprep.mubr.f32.mxu0 0.0
    %5257 = vmatmul.mubr.f32.gmra.mrb[0].mxu0 %v5119
    %v5258 = vpop.f32.mrb[0].mxu0
    %v5259 = vadd.f32 0.0, %v5258
    %v5260 = vpop.f32.mrb[0].mxu0
    %v5261 = vadd.f32 0.0, %v5260
    %5262 = vdwg.mxu0
    %v5264 = vsel %vm143, %v4875, 0
    %5266 = vmatprep.subr.mxu0 %v4926
    %5267 = vmatpush1.msra.mxu0 %v4925
    %5268 = vmatprep.subr.mxu0 %v4930
    %5269 = vmatpush1.msra.mxu0 %v4929
    %5270 = vmatprep.subr.mxu0 %v4934
    %5271 = vmatpush1.msra.mxu0 %v4933
    %5272 = vmatprep.subr.mxu0 %v4938
    %5273 = vmatpush1.msra.mxu0 %v4937
    %5274 = vmatprep.subr.mxu0 %v4942
    %5275 = vmatpush1.msra.mxu0 %v4941
    %5276 = vmatprep.subr.mxu0 %v4946
    %5277 = vmatpush1.msra.mxu0 %v4945
    %5278 = vmatprep.subr.mxu0 0.0
    %5279 = vmatpush1.msra.mxu0 0.0
    %5280 = vmatprep.subr.mxu0 0.0
    %5281 = vmatpush1.msra.mxu0 0.0
    %5282 = vmatprep.subr.mxu0 0.0
    %5283 = vmatpush1.msra.mxu0 0.0
    %5284 = vmatprep.subr.mxu0 0.0
    %5285 = vmatpush1.msra.mxu0 0.0
    %5286 = vmatprep.subr.mxu0 0.0
    %5287 = vmatpush1.msra.mxu0 0.0
    %5288 = vmatprep.subr.mxu0 0.0
    %5289 = vmatpush1.msra.mxu0 0.0
    %5290 = vmatprep.subr.mxu0 0.0
    %5291 = vmatpush1.msra.mxu0 0.0
    %5292 = vmatprep.subr.mxu0 0.0
    %5293 = vmatpush1.msra.mxu0 0.0
    %5294 = vmatprep.subr.mxu0 0.0
    %5295 = vmatpush1.msra.mxu0 0.0
    %5296 = vmatprep.subr.mxu0 0.0
    %5297 = vmatpush1.msra.mxu0 0.0
    %5298 = vmatprep.subr.mxu0 0.0
    %5299 = vmatpush1.msra.mxu0 0.0
    %5300 = vmatprep.subr.mxu0 0.0
    %5301 = vmatpush1.msra.mxu0 0.0
    %5302 = vmatprep.subr.mxu0 0.0
    %5303 = vmatpush1.msra.mxu0 0.0
    %5304 = vmatprep.subr.mxu0 0.0
    %5305 = vmatpush1.msra.mxu0 0.0
    %5306 = vmatprep.subr.mxu0 0.0
    %5307 = vmatpush1.msra.mxu0 0.0
    %5308 = vmatprep.subr.mxu0 0.0
    %5309 = vmatpush1.msra.mxu0 0.0
    %5310 = vmatprep.subr.mxu0 0.0
    %5311 = vmatpush1.msra.mxu0 0.0
    %5312 = vmatprep.subr.mxu0 0.0
    %5313 = vmatpush1.msra.mxu0 0.0
    %5314 = vmatprep.subr.mxu0 0.0
    %5315 = vmatpush1.msra.mxu0 0.0
    %5316 = vmatprep.subr.mxu0 0.0
    %5317 = vmatpush1.msra.mxu0 0.0
    %5318 = vmatprep.subr.mxu0 0.0
    %5319 = vmatpush1.msra.mxu0 0.0
    %5320 = vmatprep.subr.mxu0 0.0
    %5321 = vmatpush1.msra.mxu0 0.0
    %5322 = vmatprep.subr.mxu0 0.0
    %5323 = vmatpush1.msra.mxu0 0.0
    %5324 = vmatprep.subr.mxu0 0.0
    %5325 = vmatpush1.msra.mxu0 0.0
    %5326 = vmatprep.subr.mxu0 0.0
    %5327 = vmatpush1.msra.mxu0 0.0
    %5328 = vmatprep.subr.mxu0 0.0
    %5329 = vmatpush1.msra.mxu0 0.0
    %5330 = vmatprep.mubr.f32.mxu0 0.0
    %5331 = vmatmul.mubr.f32.gmra.mrb[0].mxu0 %v5264
    %v5332 = vpop.f32.mrb[0].mxu0
    %v5333 = vadd.f32 0.0, %v5332
    %v5334 = vpop.f32.mrb[0].mxu0
    %v5335 = vadd.f32 0.0, %v5334
    %5336 = vdwg.mxu0
    %5337 = vmatprep.subr.mxu0 %v4928
    %5338 = vmatpush1.msra.mxu0 %v4927
    %5339 = vmatprep.subr.mxu0 %v4932
    %5340 = vmatpush1.msra.mxu0 %v4931
    %5341 = vmatprep.subr.mxu0 %v4936
    %5342 = vmatpush1.msra.mxu0 %v4935
    %5343 = vmatprep.subr.mxu0 %v4940
    %5344 = vmatpush1.msra.mxu0 %v4939
    %5345 = vmatprep.subr.mxu0 %v4944
    %5346 = vmatpush1.msra.mxu0 %v4943
    %5347 = vmatprep.subr.mxu0 %v4948
    %5348 = vmatpush1.msra.mxu0 %v4947
    %5349 = vmatprep.subr.mxu0 0.0
    %5350 = vmatpush1.msra.mxu0 0.0
    %5351 = vmatprep.subr.mxu0 0.0
    %5352 = vmatpush1.msra.mxu0 0.0
    %5353 = vmatprep.subr.mxu0 0.0
    %5354 = vmatpush1.msra.mxu0 0.0
    %5355 = vmatprep.subr.mxu0 0.0
    %5356 = vmatpush1.msra.mxu0 0.0
    %5357 = vmatprep.subr.mxu0 0.0
    %5358 = vmatpush1.msra.mxu0 0.0
    %5359 = vmatprep.subr.mxu0 0.0
    %5360 = vmatpush1.msra.mxu0 0.0
    %5361 = vmatprep.subr.mxu0 0.0
    %5362 = vmatpush1.msra.mxu0 0.0
    %5363 = vmatprep.subr.mxu0 0.0
    %5364 = vmatpush1.msra.mxu0 0.0
    %5365 = vmatprep.subr.mxu0 0.0
    %5366 = vmatpush1.msra.mxu0 0.0
    %5367 = vmatprep.subr.mxu0 0.0
    %5368 = vmatpush1.msra.mxu0 0.0
    %5369 = vmatprep.subr.mxu0 0.0
    %5370 = vmatpush1.msra.mxu0 0.0
    %5371 = vmatprep.subr.mxu0 0.0
    %5372 = vmatpush1.msra.mxu0 0.0
    %5373 = vmatprep.subr.mxu0 0.0
    %5374 = vmatpush1.msra.mxu0 0.0
    %5375 = vmatprep.subr.mxu0 0.0
    %5376 = vmatpush1.msra.mxu0 0.0
    %5377 = vmatprep.subr.mxu0 0.0
    %5378 = vmatpush1.msra.mxu0 0.0
    %5379 = vmatprep.subr.mxu0 0.0
    %5380 = vmatpush1.msra.mxu0 0.0
    %5381 = vmatprep.subr.mxu0 0.0
    %5382 = vmatpush1.msra.mxu0 0.0
    %5383 = vmatprep.subr.mxu0 0.0
    %5384 = vmatpush1.msra.mxu0 0.0
    %5385 = vmatprep.subr.mxu0 0.0
    %5386 = vmatpush1.msra.mxu0 0.0
    %5387 = vmatprep.subr.mxu0 0.0
    %5388 = vmatpush1.msra.mxu0 0.0
    %5389 = vmatprep.subr.mxu0 0.0
    %5390 = vmatpush1.msra.mxu0 0.0
    %5391 = vmatprep.subr.mxu0 0.0
    %5392 = vmatpush1.msra.mxu0 0.0
    %5393 = vmatprep.subr.mxu0 0.0
    %5394 = vmatpush1.msra.mxu0 0.0
    %5395 = vmatprep.subr.mxu0 0.0
    %5396 = vmatpush1.msra.mxu0 0.0
    %5397 = vmatprep.subr.mxu0 0.0
    %5398 = vmatpush1.msra.mxu0 0.0
    %5399 = vmatprep.subr.mxu0 0.0
    %5400 = vmatpush1.msra.mxu0 0.0
    %5401 = vmatprep.mubr.f32.mxu0 0.0
    %5402 = vmatmul.mubr.f32.gmra.mrb[0].mxu0 %v5264
    %v5403 = vpop.f32.mrb[0].mxu0
    %v5404 = vadd.f32 0.0, %v5403
    %v5405 = vpop.f32.mrb[0].mxu0
    %v5406 = vadd.f32 0.0, %v5405
    %5407 = vdwg.mxu0
    %v5409 = vsel %vm143, %v4876, 0
    %5411 = vmatprep.subr.mxu0 %v4950
    %5412 = vmatpush1.msra.mxu0 %v4949
    %5413 = vmatprep.subr.mxu0 %v4954
    %5414 = vmatpush1.msra.mxu0 %v4953
    %5415 = vmatprep.subr.mxu0 %v4958
    %5416 = vmatpush1.msra.mxu0 %v4957
    %5417 = vmatprep.subr.mxu0 %v4962
    %5418 = vmatpush1.msra.mxu0 %v4961
    %5419 = vmatprep.subr.mxu0 %v4966
    %5420 = vmatpush1.msra.mxu0 %v4965
    %5421 = vmatprep.subr.mxu0 %v4970
    %5422 = vmatpush1.msra.mxu0 %v4969
    %5423 = vmatprep.subr.mxu0 0.0
    %5424 = vmatpush1.msra.mxu0 0.0
    %5425 = vmatprep.subr.mxu0 0.0
    %5426 = vmatpush1.msra.mxu0 0.0
    %5427 = vmatprep.subr.mxu0 0.0
    %5428 = vmatpush1.msra.mxu0 0.0
    %5429 = vmatprep.subr.mxu0 0.0
    %5430 = vmatpush1.msra.mxu0 0.0
    %5431 = vmatprep.subr.mxu0 0.0
    %5432 = vmatpush1.msra.mxu0 0.0
    %5433 = vmatprep.subr.mxu0 0.0
    %5434 = vmatpush1.msra.mxu0 0.0
    %5435 = vmatprep.subr.mxu0 0.0
    %5436 = vmatpush1.msra.mxu0 0.0
    %5437 = vmatprep.subr.mxu0 0.0
    %5438 = vmatpush1.msra.mxu0 0.0
    %5439 = vmatprep.subr.mxu0 0.0
    %5440 = vmatpush1.msra.mxu0 0.0
    %5441 = vmatprep.subr.mxu0 0.0
    %5442 = vmatpush1.msra.mxu0 0.0
    %5443 = vmatprep.subr.mxu0 0.0
    %5444 = vmatpush1.msra.mxu0 0.0
    %5445 = vmatprep.subr.mxu0 0.0
    %5446 = vmatpush1.msra.mxu0 0.0
    %5447 = vmatprep.subr.mxu0 0.0
    %5448 = vmatpush1.msra.mxu0 0.0
    %5449 = vmatprep.subr.mxu0 0.0
    %5450 = vmatpush1.msra.mxu0 0.0
    %5451 = vmatprep.subr.mxu0 0.0
    %5452 = vmatpush1.msra.mxu0 0.0
    %5453 = vmatprep.subr.mxu0 0.0
    %5454 = vmatpush1.msra.mxu0 0.0
    %5455 = vmatprep.subr.mxu0 0.0
    %5456 = vmatpush1.msra.mxu0 0.0
    %5457 = vmatprep.subr.mxu0 0.0
    %5458 = vmatpush1.msra.mxu0 0.0
    %5459 = vmatprep.subr.mxu0 0.0
    %5460 = vmatpush1.msra.mxu0 0.0
    %5461 = vmatprep.subr.mxu0 0.0
    %5462 = vmatpush1.msra.mxu0 0.0
    %5463 = vmatprep.subr.mxu0 0.0
    %5464 = vmatpush1.msra.mxu0 0.0
    %5465 = vmatprep.subr.mxu0 0.0
    %5466 = vmatpush1.msra.mxu0 0.0
    %5467 = vmatprep.subr.mxu0 0.0
    %5468 = vmatpush1.msra.mxu0 0.0
    %5469 = vmatprep.subr.mxu0 0.0
    %5470 = vmatpush1.msra.mxu0 0.0
    %5471 = vmatprep.subr.mxu0 0.0
    %5472 = vmatpush1.msra.mxu0 0.0
    %5473 = vmatprep.subr.mxu0 0.0
    %5474 = vmatpush1.msra.mxu0 0.0
    %5475 = vmatprep.mubr.f32.mxu0 0.0
    %5476 = vmatmul.mubr.f32.gmra.mrb[0].mxu0 %v5409
    %v5477 = vpop.f32.mrb[0].mxu0
    %v5478 = vadd.f32 0.0, %v5477
    %v5479 = vpop.f32.mrb[0].mxu0
    %v5480 = vadd.f32 0.0, %v5479
    %5481 = vdwg.mxu0
    %5482 = vmatprep.subr.mxu0 %v4952
    %5483 = vmatpush1.msra.mxu0 %v4951
    %5484 = vmatprep.subr.mxu0 %v4956
    %5485 = vmatpush1.msra.mxu0 %v4955
    %5486 = vmatprep.subr.mxu0 %v4960
    %5487 = vmatpush1.msra.mxu0 %v4959
    %5488 = vmatprep.subr.mxu0 %v4964
    %5489 = vmatpush1.msra.mxu0 %v4963
    %5490 = vmatprep.subr.mxu0 %v4968
    %5491 = vmatpush1.msra.mxu0 %v4967
    %5492 = vmatprep.subr.mxu0 %v4972
    %5493 = vmatpush1.msra.mxu0 %v4971
    %5494 = vmatprep.subr.mxu0 0.0
    %5495 = vmatpush1.msra.mxu0 0.0
    %5496 = vmatprep.subr.mxu0 0.0
    %5497 = vmatpush1.msra.mxu0 0.0
    %5498 = vmatprep.subr.mxu0 0.0
    %5499 = vmatpush1.msra.mxu0 0.0
    %5500 = vmatprep.subr.mxu0 0.0
    %5501 = vmatpush1.msra.mxu0 0.0
    %5502 = vmatprep.subr.mxu0 0.0
    %5503 = vmatpush1.msra.mxu0 0.0
    %5504 = vmatprep.subr.mxu0 0.0
    %5505 = vmatpush1.msra.mxu0 0.0
    %5506 = vmatprep.subr.mxu0 0.0
    %5507 = vmatpush1.msra.mxu0 0.0
    %5508 = vmatprep.subr.mxu0 0.0
    %5509 = vmatpush1.msra.mxu0 0.0
    %5510 = vmatprep.subr.mxu0 0.0
    %5511 = vmatpush1.msra.mxu0 0.0
    %5512 = vmatprep.subr.mxu0 0.0
    %5513 = vmatpush1.msra.mxu0 0.0
    %5514 = vmatprep.subr.mxu0 0.0
    %5515 = vmatpush1.msra.mxu0 0.0
    %5516 = vmatprep.subr.mxu0 0.0
    %5517 = vmatpush1.msra.mxu0 0.0
    %5518 = vmatprep.subr.mxu0 0.0
    %5519 = vmatpush1.msra.mxu0 0.0
    %5520 = vmatprep.subr.mxu0 0.0
    %5521 = vmatpush1.msra.mxu0 0.0
    %5522 = vmatprep.subr.mxu0 0.0
    %5523 = vmatpush1.msra.mxu0 0.0
    %5524 = vmatprep.subr.mxu0 0.0
    %5525 = vmatpush1.msra.mxu0 0.0
    %5526 = vmatprep.subr.mxu0 0.0
    %5527 = vmatpush1.msra.mxu0 0.0
    %5528 = vmatprep.subr.mxu0 0.0
    %5529 = vmatpush1.msra.mxu0 0.0
    %5530 = vmatprep.subr.mxu0 0.0
    %5531 = vmatpush1.msra.mxu0 0.0
    %5532 = vmatprep.subr.mxu0 0.0
    %5533 = vmatpush1.msra.mxu0 0.0
    %5534 = vmatprep.subr.mxu0 0.0
    %5535 = vmatpush1.msra.mxu0 0.0
    %5536 = vmatprep.subr.mxu0 0.0
    %5537 = vmatpush1.msra.mxu0 0.0
    %5538 = vmatprep.subr.mxu0 0.0
    %5539 = vmatpush1.msra.mxu0 0.0
    %5540 = vmatprep.subr.mxu0 0.0
    %5541 = vmatpush1.msra.mxu0 0.0
    %5542 = vmatprep.subr.mxu0 0.0
    %5543 = vmatpush1.msra.mxu0 0.0
    %5544 = vmatprep.subr.mxu0 0.0
    %5545 = vmatpush1.msra.mxu0 0.0
    %5546 = vmatprep.mubr.f32.mxu0 0.0
    %5547 = vmatmul.mubr.f32.gmra.mrb[0].mxu0 %v5409
    %v5548 = vpop.f32.mrb[0].mxu0
    %v5549 = vadd.f32 0.0, %v5548
    %v5550 = vpop.f32.mrb[0].mxu0
    %v5551 = vadd.f32 0.0, %v5550
    %5552 = vdwg.mxu0
    %v5553 = vxor.u32 %v5043, 2147483648
    %v5554 = vxor.u32 %v5045, 2147483648
    %v5555 = vxor.u32 %v5114, 2147483648
    %v5556 = vxor.u32 %v5188, 2147483648
    %v5557 = vxor.u32 %v5190, 2147483648
    %v5558 = vxor.u32 %v5259, 2147483648
    %v5559 = vxor.u32 %v5333, 2147483648
    %v5560 = vxor.u32 %v5335, 2147483648
    %v5561 = vxor.u32 %v5404, 2147483648
    %v5562 = vxor.u32 %v5478, 2147483648
    %v5563 = vxor.u32 %v5480, 2147483648
    %v5564 = vxor.u32 %v5549, 2147483648
    %v5565 = vmul.f32 %v5553, 1.442695
    %v5566 = vpow.pop %v5565
    %v5567 = vmul.f32 %v5554, 1.442695
    %v5568 = vpow.pop %v5567
    %v5569 = vmul.f32 %v5555, 1.442695
    %v5570 = vpow.pop %v5569
    %v5571 = vmul.f32 %v5556, 1.442695
    %v5572 = vpow.pop %v5571
    %v5573 = vmul.f32 %v5557, 1.442695
    %v5574 = vpow.pop %v5573
    %v5575 = vmul.f32 %v5558, 1.442695
    %v5576 = vpow.pop %v5575
    %v5577 = vmul.f32 %v5559, 1.442695
    %v5578 = vpow.pop %v5577
    %v5579 = vmul.f32 %v5560, 1.442695
    %v5580 = vpow.pop %v5579
    %v5581 = vmul.f32 %v5561, 1.442695
    %v5582 = vpow.pop %v5581
    %v5583 = vmul.f32 %v5562, 1.442695
    %v5584 = vpow.pop %v5583
    %v5585 = vmul.f32 %v5563, 1.442695
    %v5586 = vpow.pop %v5585
    %v5587 = vmul.f32 %v5564, 1.442695
    %v5588 = vpow.pop %v5587
    %v5589 = vadd.f32 %v5566, 1.0
    %v5590 = vadd.f32 %v5568, 1.0
    %v5591 = vadd.f32 %v5570, 1.0
    %v5592 = vadd.f32 %v5572, 1.0
    %v5593 = vadd.f32 %v5574, 1.0
    %v5594 = vadd.f32 %v5576, 1.0
    %v5595 = vadd.f32 %v5578, 1.0
    %v5596 = vadd.f32 %v5580, 1.0
    %v5597 = vadd.f32 %v5582, 1.0
    %v5598 = vadd.f32 %v5584, 1.0
    %v5599 = vadd.f32 %v5586, 1.0
    %v5600 = vadd.f32 %v5588, 1.0
    %v5601 = vrcp.pop %v5589
    %v5602 = vmul.f32 1.0, %v5601
    %v5603 = vrcp.pop %v5590
    %v5604 = vmul.f32 1.0, %v5603
    %v5605 = vrcp.pop %v5591
    %v5606 = vmul.f32 1.0, %v5605
    %v5607 = vrcp.pop %v5592
    %v5608 = vmul.f32 1.0, %v5607
    %v5609 = vrcp.pop %v5593
    %v5610 = vmul.f32 1.0, %v5609
    %v5611 = vrcp.pop %v5594
    %v5612 = vmul.f32 1.0, %v5611
    %v5613 = vrcp.pop %v5595
    %v5614 = vmul.f32 1.0, %v5613
    %v5615 = vrcp.pop %v5596
    %v5616 = vmul.f32 1.0, %v5615
    %v5617 = vrcp.pop %v5597
    %v5618 = vmul.f32 1.0, %v5617
    %v5619 = vrcp.pop %v5598
    %v5620 = vmul.f32 1.0, %v5619
    %v5621 = vrcp.pop %v5599
    %v5622 = vmul.f32 1.0, %v5621
    %v5623 = vrcp.pop %v5600
    %v5624 = vmul.f32 1.0, %v5623
    %v5625 = vtanh.pop %v5116
    %v5626 = vtanh.pop %v5261
    %v5627 = vtanh.pop %v5406
    %v5628 = vtanh.pop %v5551
    %v5629 = vmul.f32 %v5604, %v4838
    %v5630 = vmul.f32 %v5610, %v4839
    %v5631 = vmul.f32 %v5616, %v4840
    %v5632 = vmul.f32 %v5622, %v4841
    %v5633 = vmul.f32 %v5602, %v5625
    %v5634 = vmul.f32 %v5608, %v5626
    %v5635 = vmul.f32 %v5614, %v5627
    %v5636 = vmul.f32 %v5620, %v5628
    %v5637 = vadd.f32 %v5629, %v5633
    %v5638 = vadd.f32 %v5630, %v5634
    %v5639 = vadd.f32 %v5631, %v5635
    %v5640 = vadd.f32 %v5632, %v5636
    %v5641 = vtanh.pop %v5637
    %v5642 = vtanh.pop %v5638
    %v5643 = vtanh.pop %v5639
    %v5644 = vtanh.pop %v5640
    %v5645 = vmul.f32 %v5606, %v5641
    %v5646 = vmul.f32 %v5612, %v5642
    %v5647 = vmul.f32 %v5618, %v5643
    %v5648 = vmul.f32 %v5624, %v5644
    %5649 = vst.msk [vmem:[#allocation2] sm:$0x3] %vm832, %v5645
    %5650 = vst.msk [vmem:[#allocation2 + $0x2] sm:$0x3] %vm832, %v5646
    %5651 = vst.msk [vmem:[#allocation2 + $0x4] sm:$0x3] %vm832, %v5647
    %5652 = vst.msk [vmem:[#allocation2 + $0x6] sm:$0x3] %vm832, %v5648
    %5656 = vrot.lane.b32.xlu0 %v5645, 20
    %v5657 = vpop.permute.xlu0 %5656
    %5658 = vrot.lane.b32.xlu0 %v5646, 20
    %v5659 = vpop.permute.xlu0 %5658
    %5660 = vrot.lane.b32.xlu0 %v5647, 20
    %v5661 = vpop.permute.xlu0 %5660
    %5665 = vst.msk [vmem:[%s849] sm:$0x3] %vm41, %v5657
    %5666 = vst.msk [vmem:[%s849 + $0x2] sm:$0x3] %vm41, %v5659
    %5667 = vst.msk [vmem:[%s849 + $0x4] sm:$0x3] %vm41, %v5661
    %5668 = vst.msk [vmem:[#allocation3 + $0x6] sm:$0x3] %vm832, %v5648
    %s5669 = scalar_lea.vmem %s0, 14
    %v5670 = vld [vmem:[%s5669] sm:$0x3]
    %5671 = vst.msk [vmem:[#allocation2] sm:$0x3] %vm41, %v5670
    %v5672 = vld [vmem:[#allocation2] sm:$0x3]
    %v5673 = vld [vmem:[#allocation2 + $0x2] sm:$0x3]
    %v5674 = vld [vmem:[#allocation2 + $0x4] sm:$0x3]
    %v5675 = vld [vmem:[#allocation2 + $0x6] sm:$0x3]
    %v5676 = vld [vmem:[#allocation4] sm:$0xff]
    %v5677 = vld [vmem:[#allocation4 + $0x8] sm:$0xff]
    %v5678 = vld [vmem:[#allocation4 + $0x10] sm:$0xff]
    %v5679 = vld [vmem:[#allocation4 + $0x18] sm:$0xff]
    %v5680 = vld [vmem:[#allocation4 + $0x20] sm:$0xff]
    %v5681 = vld [vmem:[#allocation4 + $0x28] sm:$0xff]
    %v5682 = vld [vmem:[#allocation4 + $0x30] sm:$0xff]
    %v5683 = vld [vmem:[#allocation4 + $0x38] sm:$0xff]
    %v5684 = vld [vmem:[#allocation4 + $0x40] sm:$0xff]
    %v5685 = vld [vmem:[#allocation4 + $0x48] sm:$0xff]
    %v5686 = vld [vmem:[#allocation4 + $0x50] sm:$0xff]
    %v5687 = vld [vmem:[#allocation4 + $0x58] sm:$0xff]
    %v5688 = vld [vmem:[#allocation4 + $0x60] sm:$0xff]
    %v5689 = vld [vmem:[#allocation4 + $0x68] sm:$0xff]
    %v5690 = vld [vmem:[#allocation4 + $0x70] sm:$0xff]
    %v5691 = vld [vmem:[#allocation4 + $0x78] sm:$0xff]
    %v5692 = vld [vmem:[#allocation4 + $0x80] sm:$0xff]
    %v5693 = vld [vmem:[#allocation4 + $0x88] sm:$0xff]
    %v5694 = vld [vmem:[#allocation4 + $0x90] sm:$0xff]
    %v5695 = vld [vmem:[#allocation4 + $0x98] sm:$0xff]
    %v5696 = vld [vmem:[#allocation4 + $0xa0] sm:$0xff]
    %v5697 = vld [vmem:[#allocation4 + $0xa8] sm:$0xff]
    %v5698 = vld [vmem:[#allocation4 + $0xb0] sm:$0xff]
    %v5699 = vld [vmem:[#allocation4 + $0xb8] sm:$0xff]
    %v5700 = vld [vmem:[#allocation4 + $0xc0] sm:$0xff]
    %v5701 = vld [vmem:[#allocation4 + $0xc8] sm:$0xff]
    %v5702 = vld [vmem:[#allocation4 + $0xd0] sm:$0xff]
    %v5703 = vld [vmem:[#allocation4 + $0xd8] sm:$0xff]
    %v5704 = vld [vmem:[#allocation4 + $0xe0] sm:$0xff]
    %v5705 = vld [vmem:[#allocation4 + $0xe8] sm:$0xff]
    %v5706 = vld [vmem:[#allocation4 + $0xf0] sm:$0xff]
    %v5707 = vld [vmem:[#allocation4 + $0xf8] sm:$0xff]
    %v5708 = vld [vmem:[#allocation4 + $0x100] sm:$0xff]
    %v5709 = vld [vmem:[#allocation4 + $0x108] sm:$0xff]
    %v5710 = vld [vmem:[#allocation4 + $0x110] sm:$0xff]
    %v5711 = vld [vmem:[#allocation4 + $0x118] sm:$0xff]
    %v5712 = vld [vmem:[#allocation4 + $0x120] sm:$0xff]
    %v5713 = vld [vmem:[#allocation4 + $0x128] sm:$0xff]
    %v5714 = vld [vmem:[#allocation4 + $0x130] sm:$0xff]
    %v5715 = vld [vmem:[#allocation4 + $0x138] sm:$0xff]
    %v5716 = vld [vmem:[#allocation4 + $0x140] sm:$0xff]
    %v5717 = vld [vmem:[#allocation4 + $0x148] sm:$0xff]
    %v5718 = vld [vmem:[#allocation4 + $0x150] sm:$0xff]
    %v5719 = vld [vmem:[#allocation4 + $0x158] sm:$0xff]
    %v5720 = vld [vmem:[#allocation4 + $0x160] sm:$0xff]
    %v5721 = vld [vmem:[#allocation4 + $0x168] sm:$0xff]
    %v5722 = vld [vmem:[#allocation4 + $0x170] sm:$0xff]
    %v5723 = vld [vmem:[#allocation4 + $0x178] sm:$0xff]
    %v5724 = vld [vmem:[#allocation4 + $0x180] sm:$0xff]
    %v5725 = vld [vmem:[#allocation4 + $0x188] sm:$0xff]
    %v5726 = vld [vmem:[#allocation4 + $0x190] sm:$0xff]
    %v5727 = vld [vmem:[#allocation4 + $0x198] sm:$0xff]
    %v5728 = vld [vmem:[#allocation4 + $0x1a0] sm:$0xff]
    %v5729 = vld [vmem:[#allocation4 + $0x1a8] sm:$0xff]
    %v5730 = vld [vmem:[#allocation4 + $0x1b0] sm:$0xff]
    %v5731 = vld [vmem:[#allocation4 + $0x1b8] sm:$0xff]
    %v5732 = vld [vmem:[#allocation4 + $0x1c0] sm:$0xff]
    %v5733 = vld [vmem:[#allocation4 + $0x1c8] sm:$0xff]
    %v5734 = vld [vmem:[#allocation4 + $0x1d0] sm:$0xff]
    %v5735 = vld [vmem:[#allocation4 + $0x1d8] sm:$0xff]
    %v5736 = vld [vmem:[#allocation4 + $0x1e0] sm:$0xff]
    %v5737 = vld [vmem:[#allocation4 + $0x1e8] sm:$0xff]
    %v5738 = vld [vmem:[#allocation4 + $0x1f0] sm:$0xff]
    %v5739 = vld [vmem:[#allocation4 + $0x1f8] sm:$0xff]
    %v5740 = vld [vmem:[#allocation4 + $0x200] sm:$0xff]
    %v5741 = vld [vmem:[#allocation4 + $0x208] sm:$0xff]
    %v5742 = vld [vmem:[#allocation4 + $0x210] sm:$0xff]
    %v5743 = vld [vmem:[#allocation4 + $0x218] sm:$0xff]
    %v5744 = vld [vmem:[#allocation4 + $0x220] sm:$0xff]
    %v5745 = vld [vmem:[#allocation4 + $0x228] sm:$0xff]
    %v5746 = vld [vmem:[#allocation4 + $0x230] sm:$0xff]
    %v5747 = vld [vmem:[#allocation4 + $0x238] sm:$0xff]
    %v5748 = vld [vmem:[#allocation4 + $0x240] sm:$0xff]
    %v5749 = vld [vmem:[#allocation4 + $0x248] sm:$0xff]
    %v5750 = vld [vmem:[#allocation4 + $0x250] sm:$0xff]
    %v5751 = vld [vmem:[#allocation4 + $0x258] sm:$0xff]
    %v5752 = vld [vmem:[#allocation4 + $0x260] sm:$0xff]
    %v5753 = vld [vmem:[#allocation4 + $0x268] sm:$0xff]
    %v5754 = vld [vmem:[#allocation4 + $0x270] sm:$0xff]
    %v5755 = vld [vmem:[#allocation4 + $0x278] sm:$0xff]
    %v5756 = vld [vmem:[#allocation4 + $0x280] sm:$0xff]
    %v5757 = vld [vmem:[#allocation4 + $0x288] sm:$0xff]
    %v5758 = vld [vmem:[#allocation4 + $0x290] sm:$0xff]
    %v5759 = vld [vmem:[#allocation4 + $0x298] sm:$0xff]
    %v5760 = vld [vmem:[#allocation4 + $0x2a0] sm:$0xff]
    %v5761 = vld [vmem:[#allocation4 + $0x2a8] sm:$0xff]
    %v5762 = vld [vmem:[#allocation4 + $0x2b0] sm:$0xff]
    %v5763 = vld [vmem:[#allocation4 + $0x2b8] sm:$0xff]
    %v5764 = vld [vmem:[#allocation4 + $0x2c0] sm:$0xff]
    %v5765 = vld [vmem:[#allocation4 + $0x2c8] sm:$0xff]
    %v5766 = vld [vmem:[#allocation4 + $0x2d0] sm:$0xff]
    %v5767 = vld [vmem:[#allocation4 + $0x2d8] sm:$0xff]
    %v5768 = vld [vmem:[#allocation4 + $0x2e0] sm:$0xff]
    %v5769 = vld [vmem:[#allocation4 + $0x2e8] sm:$0xff]
    %v5770 = vld [vmem:[#allocation4 + $0x2f0] sm:$0xff]
    %v5771 = vld [vmem:[#allocation4 + $0x2f8] sm:$0xff]
    %v5773 = vsel %vm143, %v5672, 0
    %5775 = vmatprep.subr.mxu0 %v5677
    %5776 = vmatpush1.msra.mxu0 %v5676
    %5777 = vmatprep.subr.mxu0 %v5681
    %5778 = vmatpush1.msra.mxu0 %v5680
    %5779 = vmatprep.subr.mxu0 %v5685
    %5780 = vmatpush1.msra.mxu0 %v5684
    %5781 = vmatprep.subr.mxu0 %v5689
    %5782 = vmatpush1.msra.mxu0 %v5688
    %5783 = vmatprep.subr.mxu0 %v5693
    %5784 = vmatpush1.msra.mxu0 %v5692
    %5785 = vmatprep.subr.mxu0 %v5697
    %5786 = vmatpush1.msra.mxu0 %v5696
    %5787 = vmatprep.subr.mxu0 0.0
    %5788 = vmatpush1.msra.mxu0 0.0
    %5789 = vmatprep.subr.mxu0 0.0
    %5790 = vmatpush1.msra.mxu0 0.0
    %5791 = vmatprep.subr.mxu0 0.0
    %5792 = vmatpush1.msra.mxu0 0.0
    %5793 = vmatprep.subr.mxu0 0.0
    %5794 = vmatpush1.msra.mxu0 0.0
    %5795 = vmatprep.subr.mxu0 0.0
    %5796 = vmatpush1.msra.mxu0 0.0
    %5797 = vmatprep.subr.mxu0 0.0
    %5798 = vmatpush1.msra.mxu0 0.0
    %5799 = vmatprep.subr.mxu0 0.0
    %5800 = vmatpush1.msra.mxu0 0.0
    %5801 = vmatprep.subr.mxu0 0.0
    %5802 = vmatpush1.msra.mxu0 0.0
    %5803 = vmatprep.subr.mxu0 0.0
    %5804 = vmatpush1.msra.mxu0 0.0
    %5805 = vmatprep.subr.mxu0 0.0
    %5806 = vmatpush1.msra.mxu0 0.0
    %5807 = vmatprep.subr.mxu0 0.0
    %5808 = vmatpush1.msra.mxu0 0.0
    %5809 = vmatprep.subr.mxu0 0.0
    %5810 = vmatpush1.msra.mxu0 0.0
    %5811 = vmatprep.subr.mxu0 0.0
    %5812 = vmatpush1.msra.mxu0 0.0
    %5813 = vmatprep.subr.mxu0 0.0
    %5814 = vmatpush1.msra.mxu0 0.0
    %5815 = vmatprep.subr.mxu0 0.0
    %5816 = vmatpush1.msra.mxu0 0.0
    %5817 = vmatprep.subr.mxu0 0.0
    %5818 = vmatpush1.msra.mxu0 0.0
    %5819 = vmatprep.subr.mxu0 0.0
    %5820 = vmatpush1.msra.mxu0 0.0
    %5821 = vmatprep.subr.mxu0 0.0
    %5822 = vmatpush1.msra.mxu0 0.0
    %5823 = vmatprep.subr.mxu0 0.0
    %5824 = vmatpush1.msra.mxu0 0.0
    %5825 = vmatprep.subr.mxu0 0.0
    %5826 = vmatpush1.msra.mxu0 0.0
    %5827 = vmatprep.subr.mxu0 0.0
    %5828 = vmatpush1.msra.mxu0 0.0
    %5829 = vmatprep.subr.mxu0 0.0
    %5830 = vmatpush1.msra.mxu0 0.0
    %5831 = vmatprep.subr.mxu0 0.0
    %5832 = vmatpush1.msra.mxu0 0.0
    %5833 = vmatprep.subr.mxu0 0.0
    %5834 = vmatpush1.msra.mxu0 0.0
    %5835 = vmatprep.subr.mxu0 0.0
    %5836 = vmatpush1.msra.mxu0 0.0
    %5837 = vmatprep.subr.mxu0 0.0
    %5838 = vmatpush1.msra.mxu0 0.0
    %5839 = vmatprep.mubr.f32.mxu0 0.0
    %5840 = vmatmul.mubr.f32.gmra.mrb[0].mxu0 %v5773
    %v5841 = vpop.f32.mrb[0].mxu0
    %v5842 = vadd.f32 0.0, %v5841
    %v5843 = vpop.f32.mrb[0].mxu0
    %v5844 = vadd.f32 0.0, %v5843
    %5845 = vdwg.mxu0
    %5846 = vmatprep.subr.mxu0 %v5679
    %5847 = vmatpush1.msra.mxu0 %v5678
    %5848 = vmatprep.subr.mxu0 %v5683
    %5849 = vmatpush1.msra.mxu0 %v5682
    %5850 = vmatprep.subr.mxu0 %v5687
    %5851 = vmatpush1.msra.mxu0 %v5686
    %5852 = vmatprep.subr.mxu0 %v5691
    %5853 = vmatpush1.msra.mxu0 %v5690
    %5854 = vmatprep.subr.mxu0 %v5695
    %5855 = vmatpush1.msra.mxu0 %v5694
    %5856 = vmatprep.subr.mxu0 %v5699
    %5857 = vmatpush1.msra.mxu0 %v5698
    %5858 = vmatprep.subr.mxu0 0.0
    %5859 = vmatpush1.msra.mxu0 0.0
    %5860 = vmatprep.subr.mxu0 0.0
    %5861 = vmatpush1.msra.mxu0 0.0
    %5862 = vmatprep.subr.mxu0 0.0
    %5863 = vmatpush1.msra.mxu0 0.0
    %5864 = vmatprep.subr.mxu0 0.0
    %5865 = vmatpush1.msra.mxu0 0.0
    %5866 = vmatprep.subr.mxu0 0.0
    %5867 = vmatpush1.msra.mxu0 0.0
    %5868 = vmatprep.subr.mxu0 0.0
    %5869 = vmatpush1.msra.mxu0 0.0
    %5870 = vmatprep.subr.mxu0 0.0
    %5871 = vmatpush1.msra.mxu0 0.0
    %5872 = vmatprep.subr.mxu0 0.0
    %5873 = vmatpush1.msra.mxu0 0.0
    %5874 = vmatprep.subr.mxu0 0.0
    %5875 = vmatpush1.msra.mxu0 0.0
    %5876 = vmatprep.subr.mxu0 0.0
    %5877 = vmatpush1.msra.mxu0 0.0
    %5878 = vmatprep.subr.mxu0 0.0
    %5879 = vmatpush1.msra.mxu0 0.0
    %5880 = vmatprep.subr.mxu0 0.0
    %5881 = vmatpush1.msra.mxu0 0.0
    %5882 = vmatprep.subr.mxu0 0.0
    %5883 = vmatpush1.msra.mxu0 0.0
    %5884 = vmatprep.subr.mxu0 0.0
    %5885 = vmatpush1.msra.mxu0 0.0
    %5886 = vmatprep.subr.mxu0 0.0
    %5887 = vmatpush1.msra.mxu0 0.0
    %5888 = vmatprep.subr.mxu0 0.0
    %5889 = vmatpush1.msra.mxu0 0.0
    %5890 = vmatprep.subr.mxu0 0.0
    %5891 = vmatpush1.msra.mxu0 0.0
    %5892 = vmatprep.subr.mxu0 0.0
    %5893 = vmatpush1.msra.mxu0 0.0
    %5894 = vmatprep.subr.mxu0 0.0
    %5895 = vmatpush1.msra.mxu0 0.0
    %5896 = vmatprep.subr.mxu0 0.0
    %5897 = vmatpush1.msra.mxu0 0.0
    %5898 = vmatprep.subr.mxu0 0.0
    %5899 = vmatpush1.msra.mxu0 0.0
    %5900 = vmatprep.subr.mxu0 0.0
    %5901 = vmatpush1.msra.mxu0 0.0
    %5902 = vmatprep.subr.mxu0 0.0
    %5903 = vmatpush1.msra.mxu0 0.0
    %5904 = vmatprep.subr.mxu0 0.0
    %5905 = vmatpush1.msra.mxu0 0.0
    %5906 = vmatprep.subr.mxu0 0.0
    %5907 = vmatpush1.msra.mxu0 0.0
    %5908 = vmatprep.subr.mxu0 0.0
    %5909 = vmatpush1.msra.mxu0 0.0
    %5910 = vmatprep.mubr.f32.mxu0 0.0
    %5911 = vmatmul.mubr.f32.gmra.mrb[0].mxu0 %v5773
    %v5912 = vpop.f32.mrb[0].mxu0
    %v5913 = vadd.f32 0.0, %v5912
    %v5914 = vpop.f32.mrb[0].mxu0
    %v5915 = vadd.f32 0.0, %v5914
    %5916 = vdwg.mxu0
    %v5918 = vsel %vm143, %v5673, 0
    %5920 = vmatprep.subr.mxu0 %v5701
    %5921 = vmatpush1.msra.mxu0 %v5700
    %5922 = vmatprep.subr.mxu0 %v5705
    %5923 = vmatpush1.msra.mxu0 %v5704
    %5924 = vmatprep.subr.mxu0 %v5709
    %5925 = vmatpush1.msra.mxu0 %v5708
    %5926 = vmatprep.subr.mxu0 %v5713
    %5927 = vmatpush1.msra.mxu0 %v5712
    %5928 = vmatprep.subr.mxu0 %v5717
    %5929 = vmatpush1.msra.mxu0 %v5716
    %5930 = vmatprep.subr.mxu0 %v5721
    %5931 = vmatpush1.msra.mxu0 %v5720
    %5932 = vmatprep.subr.mxu0 0.0
    %5933 = vmatpush1.msra.mxu0 0.0
    %5934 = vmatprep.subr.mxu0 0.0
    %5935 = vmatpush1.msra.mxu0 0.0
    %5936 = vmatprep.subr.mxu0 0.0
    %5937 = vmatpush1.msra.mxu0 0.0
    %5938 = vmatprep.subr.mxu0 0.0
    %5939 = vmatpush1.msra.mxu0 0.0
    %5940 = vmatprep.subr.mxu0 0.0
    %5941 = vmatpush1.msra.mxu0 0.0
    %5942 = vmatprep.subr.mxu0 0.0
    %5943 = vmatpush1.msra.mxu0 0.0
    %5944 = vmatprep.subr.mxu0 0.0
    %5945 = vmatpush1.msra.mxu0 0.0
    %5946 = vmatprep.subr.mxu0 0.0
    %5947 = vmatpush1.msra.mxu0 0.0
    %5948 = vmatprep.subr.mxu0 0.0
    %5949 = vmatpush1.msra.mxu0 0.0
    %5950 = vmatprep.subr.mxu0 0.0
    %5951 = vmatpush1.msra.mxu0 0.0
    %5952 = vmatprep.subr.mxu0 0.0
    %5953 = vmatpush1.msra.mxu0 0.0
    %5954 = vmatprep.subr.mxu0 0.0
    %5955 = vmatpush1.msra.mxu0 0.0
    %5956 = vmatprep.subr.mxu0 0.0
    %5957 = vmatpush1.msra.mxu0 0.0
    %5958 = vmatprep.subr.mxu0 0.0
    %5959 = vmatpush1.msra.mxu0 0.0
    %5960 = vmatprep.subr.mxu0 0.0
    %5961 = vmatpush1.msra.mxu0 0.0
    %5962 = vmatprep.subr.mxu0 0.0
    %5963 = vmatpush1.msra.mxu0 0.0
    %5964 = vmatprep.subr.mxu0 0.0
    %5965 = vmatpush1.msra.mxu0 0.0
    %5966 = vmatprep.subr.mxu0 0.0
    %5967 = vmatpush1.msra.mxu0 0.0
    %5968 = vmatprep.subr.mxu0 0.0
    %5969 = vmatpush1.msra.mxu0 0.0
    %5970 = vmatprep.subr.mxu0 0.0
    %5971 = vmatpush1.msra.mxu0 0.0
    %5972 = vmatprep.subr.mxu0 0.0
    %5973 = vmatpush1.msra.mxu0 0.0
    %5974 = vmatprep.subr.mxu0 0.0
    %5975 = vmatpush1.msra.mxu0 0.0
    %5976 = vmatprep.subr.mxu0 0.0
    %5977 = vmatpush1.msra.mxu0 0.0
    %5978 = vmatprep.subr.mxu0 0.0
    %5979 = vmatpush1.msra.mxu0 0.0
    %5980 = vmatprep.subr.mxu0 0.0
    %5981 = vmatpush1.msra.mxu0 0.0
    %5982 = vmatprep.subr.mxu0 0.0
    %5983 = vmatpush1.msra.mxu0 0.0
    %5984 = vmatprep.mubr.f32.mxu0 0.0
    %5985 = vmatmul.mubr.f32.gmra.mrb[0].mxu0 %v5918
    %v5986 = vpop.f32.mrb[0].mxu0
    %v5987 = vadd.f32 0.0, %v5986
    %v5988 = vpop.f32.mrb[0].mxu0
    %v5989 = vadd.f32 0.0, %v5988
    %5990 = vdwg.mxu0
    %5991 = vmatprep.subr.mxu0 %v5703
    %5992 = vmatpush1.msra.mxu0 %v5702
    %5993 = vmatprep.subr.mxu0 %v5707
    %5994 = vmatpush1.msra.mxu0 %v5706
    %5995 = vmatprep.subr.mxu0 %v5711
    %5996 = vmatpush1.msra.mxu0 %v5710
    %5997 = vmatprep.subr.mxu0 %v5715
    %5998 = vmatpush1.msra.mxu0 %v5714
    %5999 = vmatprep.subr.mxu0 %v5719
    %6000 = vmatpush1.msra.mxu0 %v5718
    %6001 = vmatprep.subr.mxu0 %v5723
    %6002 = vmatpush1.msra.mxu0 %v5722
    %6003 = vmatprep.subr.mxu0 0.0
    %6004 = vmatpush1.msra.mxu0 0.0
    %6005 = vmatprep.subr.mxu0 0.0
    %6006 = vmatpush1.msra.mxu0 0.0
    %6007 = vmatprep.subr.mxu0 0.0
    %6008 = vmatpush1.msra.mxu0 0.0
    %6009 = vmatprep.subr.mxu0 0.0
    %6010 = vmatpush1.msra.mxu0 0.0
    %6011 = vmatprep.subr.mxu0 0.0
    %6012 = vmatpush1.msra.mxu0 0.0
    %6013 = vmatprep.subr.mxu0 0.0
    %6014 = vmatpush1.msra.mxu0 0.0
    %6015 = vmatprep.subr.mxu0 0.0
    %6016 = vmatpush1.msra.mxu0 0.0
    %6017 = vmatprep.subr.mxu0 0.0
    %6018 = vmatpush1.msra.mxu0 0.0
    %6019 = vmatprep.subr.mxu0 0.0
    %6020 = vmatpush1.msra.mxu0 0.0
    %6021 = vmatprep.subr.mxu0 0.0
    %6022 = vmatpush1.msra.mxu0 0.0
    %6023 = vmatprep.subr.mxu0 0.0
    %6024 = vmatpush1.msra.mxu0 0.0
    %6025 = vmatprep.subr.mxu0 0.0
    %6026 = vmatpush1.msra.mxu0 0.0
    %6027 = vmatprep.subr.mxu0 0.0
    %6028 = vmatpush1.msra.mxu0 0.0
    %6029 = vmatprep.subr.mxu0 0.0
    %6030 = vmatpush1.msra.mxu0 0.0
    %6031 = vmatprep.subr.mxu0 0.0
    %6032 = vmatpush1.msra.mxu0 0.0
    %6033 = vmatprep.subr.mxu0 0.0
    %6034 = vmatpush1.msra.mxu0 0.0
    %6035 = vmatprep.subr.mxu0 0.0
    %6036 = vmatpush1.msra.mxu0 0.0
    %6037 = vmatprep.subr.mxu0 0.0
    %6038 = vmatpush1.msra.mxu0 0.0
    %6039 = vmatprep.subr.mxu0 0.0
    %6040 = vmatpush1.msra.mxu0 0.0
    %6041 = vmatprep.subr.mxu0 0.0
    %6042 = vmatpush1.msra.mxu0 0.0
    %6043 = vmatprep.subr.mxu0 0.0
    %6044 = vmatpush1.msra.mxu0 0.0
    %6045 = vmatprep.subr.mxu0 0.0
    %6046 = vmatpush1.msra.mxu0 0.0
    %6047 = vmatprep.subr.mxu0 0.0
    %6048 = vmatpush1.msra.mxu0 0.0
    %6049 = vmatprep.subr.mxu0 0.0
    %6050 = vmatpush1.msra.mxu0 0.0
    %6051 = vmatprep.subr.mxu0 0.0
    %6052 = vmatpush1.msra.mxu0 0.0
    %6053 = vmatprep.subr.mxu0 0.0
    %6054 = vmatpush1.msra.mxu0 0.0
    %6055 = vmatprep.mubr.f32.mxu0 0.0
    %6056 = vmatmul.mubr.f32.gmra.mrb[0].mxu0 %v5918
    %v6057 = vpop.f32.mrb[0].mxu0
    %v6058 = vadd.f32 0.0, %v6057
    %v6059 = vpop.f32.mrb[0].mxu0
    %v6060 = vadd.f32 0.0, %v6059
    %6061 = vdwg.mxu0
    %v6063 = vsel %vm143, %v5674, 0
    %6065 = vmatprep.subr.mxu0 %v5725
    %6066 = vmatpush1.msra.mxu0 %v5724
    %6067 = vmatprep.subr.mxu0 %v5729
    %6068 = vmatpush1.msra.mxu0 %v5728
    %6069 = vmatprep.subr.mxu0 %v5733
    %6070 = vmatpush1.msra.mxu0 %v5732
    %6071 = vmatprep.subr.mxu0 %v5737
    %6072 = vmatpush1.msra.mxu0 %v5736
    %6073 = vmatprep.subr.mxu0 %v5741
    %6074 = vmatpush1.msra.mxu0 %v5740
    %6075 = vmatprep.subr.mxu0 %v5745
    %6076 = vmatpush1.msra.mxu0 %v5744
    %6077 = vmatprep.subr.mxu0 0.0
    %6078 = vmatpush1.msra.mxu0 0.0
    %6079 = vmatprep.subr.mxu0 0.0
    %6080 = vmatpush1.msra.mxu0 0.0
    %6081 = vmatprep.subr.mxu0 0.0
    %6082 = vmatpush1.msra.mxu0 0.0
    %6083 = vmatprep.subr.mxu0 0.0
    %6084 = vmatpush1.msra.mxu0 0.0
    %6085 = vmatprep.subr.mxu0 0.0
    %6086 = vmatpush1.msra.mxu0 0.0
    %6087 = vmatprep.subr.mxu0 0.0
    %6088 = vmatpush1.msra.mxu0 0.0
    %6089 = vmatprep.subr.mxu0 0.0
    %6090 = vmatpush1.msra.mxu0 0.0
    %6091 = vmatprep.subr.mxu0 0.0
    %6092 = vmatpush1.msra.mxu0 0.0
    %6093 = vmatprep.subr.mxu0 0.0
    %6094 = vmatpush1.msra.mxu0 0.0
    %6095 = vmatprep.subr.mxu0 0.0
    %6096 = vmatpush1.msra.mxu0 0.0
    %6097 = vmatprep.subr.mxu0 0.0
    %6098 = vmatpush1.msra.mxu0 0.0
    %6099 = vmatprep.subr.mxu0 0.0
    %6100 = vmatpush1.msra.mxu0 0.0
    %6101 = vmatprep.subr.mxu0 0.0
    %6102 = vmatpush1.msra.mxu0 0.0
    %6103 = vmatprep.subr.mxu0 0.0
    %6104 = vmatpush1.msra.mxu0 0.0
    %6105 = vmatprep.subr.mxu0 0.0
    %6106 = vmatpush1.msra.mxu0 0.0
    %6107 = vmatprep.subr.mxu0 0.0
    %6108 = vmatpush1.msra.mxu0 0.0
    %6109 = vmatprep.subr.mxu0 0.0
    %6110 = vmatpush1.msra.mxu0 0.0
    %6111 = vmatprep.subr.mxu0 0.0
    %6112 = vmatpush1.msra.mxu0 0.0
    %6113 = vmatprep.subr.mxu0 0.0
    %6114 = vmatpush1.msra.mxu0 0.0
    %6115 = vmatprep.subr.mxu0 0.0
    %6116 = vmatpush1.msra.mxu0 0.0
    %6117 = vmatprep.subr.mxu0 0.0
    %6118 = vmatpush1.msra.mxu0 0.0
    %6119 = vmatprep.subr.mxu0 0.0
    %6120 = vmatpush1.msra.mxu0 0.0
    %6121 = vmatprep.subr.mxu0 0.0
    %6122 = vmatpush1.msra.mxu0 0.0
    %6123 = vmatprep.subr.mxu0 0.0
    %6124 = vmatpush1.msra.mxu0 0.0
    %6125 = vmatprep.subr.mxu0 0.0
    %6126 = vmatpush1.msra.mxu0 0.0
    %6127 = vmatprep.subr.mxu0 0.0
    %6128 = vmatpush1.msra.mxu0 0.0
    %6129 = vmatprep.mubr.f32.mxu0 0.0
    %6130 = vmatmul.mubr.f32.gmra.mrb[0].mxu0 %v6063
    %v6131 = vpop.f32.mrb[0].mxu0
    %v6132 = vadd.f32 0.0, %v6131
    %v6133 = vpop.f32.mrb[0].mxu0
    %v6134 = vadd.f32 0.0, %v6133
    %6135 = vdwg.mxu0
    %6136 = vmatprep.subr.mxu0 %v5727
    %6137 = vmatpush1.msra.mxu0 %v5726
    %6138 = vmatprep.subr.mxu0 %v5731
    %6139 = vmatpush1.msra.mxu0 %v5730
    %6140 = vmatprep.subr.mxu0 %v5735
    %6141 = vmatpush1.msra.mxu0 %v5734
    %6142 = vmatprep.subr.mxu0 %v5739
    %6143 = vmatpush1.msra.mxu0 %v5738
    %6144 = vmatprep.subr.mxu0 %v5743
    %6145 = vmatpush1.msra.mxu0 %v5742
    %6146 = vmatprep.subr.mxu0 %v5747
    %6147 = vmatpush1.msra.mxu0 %v5746
    %6148 = vmatprep.subr.mxu0 0.0
    %6149 = vmatpush1.msra.mxu0 0.0
    %6150 = vmatprep.subr.mxu0 0.0
    %6151 = vmatpush1.msra.mxu0 0.0
    %6152 = vmatprep.subr.mxu0 0.0
    %6153 = vmatpush1.msra.mxu0 0.0
    %6154 = vmatprep.subr.mxu0 0.0
    %6155 = vmatpush1.msra.mxu0 0.0
    %6156 = vmatprep.subr.mxu0 0.0
    %6157 = vmatpush1.msra.mxu0 0.0
    %6158 = vmatprep.subr.mxu0 0.0
    %6159 = vmatpush1.msra.mxu0 0.0
    %6160 = vmatprep.subr.mxu0 0.0
    %6161 = vmatpush1.msra.mxu0 0.0
    %6162 = vmatprep.subr.mxu0 0.0
    %6163 = vmatpush1.msra.mxu0 0.0
    %6164 = vmatprep.subr.mxu0 0.0
    %6165 = vmatpush1.msra.mxu0 0.0
    %6166 = vmatprep.subr.mxu0 0.0
    %6167 = vmatpush1.msra.mxu0 0.0
    %6168 = vmatprep.subr.mxu0 0.0
    %6169 = vmatpush1.msra.mxu0 0.0
    %6170 = vmatprep.subr.mxu0 0.0
    %6171 = vmatpush1.msra.mxu0 0.0
    %6172 = vmatprep.subr.mxu0 0.0
    %6173 = vmatpush1.msra.mxu0 0.0
    %6174 = vmatprep.subr.mxu0 0.0
    %6175 = vmatpush1.msra.mxu0 0.0
    %6176 = vmatprep.subr.mxu0 0.0
    %6177 = vmatpush1.msra.mxu0 0.0
    %6178 = vmatprep.subr.mxu0 0.0
    %6179 = vmatpush1.msra.mxu0 0.0
    %6180 = vmatprep.subr.mxu0 0.0
    %6181 = vmatpush1.msra.mxu0 0.0
    %6182 = vmatprep.subr.mxu0 0.0
    %6183 = vmatpush1.msra.mxu0 0.0
    %6184 = vmatprep.subr.mxu0 0.0
    %6185 = vmatpush1.msra.mxu0 0.0
    %6186 = vmatprep.subr.mxu0 0.0
    %6187 = vmatpush1.msra.mxu0 0.0
    %6188 = vmatprep.subr.mxu0 0.0
    %6189 = vmatpush1.msra.mxu0 0.0
    %6190 = vmatprep.subr.mxu0 0.0
    %6191 = vmatpush1.msra.mxu0 0.0
    %6192 = vmatprep.subr.mxu0 0.0
    %6193 = vmatpush1.msra.mxu0 0.0
    %6194 = vmatprep.subr.mxu0 0.0
    %6195 = vmatpush1.msra.mxu0 0.0
    %6196 = vmatprep.subr.mxu0 0.0
    %6197 = vmatpush1.msra.mxu0 0.0
    %6198 = vmatprep.subr.mxu0 0.0
    %6199 = vmatpush1.msra.mxu0 0.0
    %6200 = vmatprep.mubr.f32.mxu0 0.0
    %6201 = vmatmul.mubr.f32.gmra.mrb[0].mxu0 %v6063
    %v6202 = vpop.f32.mrb[0].mxu0
    %v6203 = vadd.f32 0.0, %v6202
    %v6204 = vpop.f32.mrb[0].mxu0
    %v6205 = vadd.f32 0.0, %v6204
    %6206 = vdwg.mxu0
    %v6208 = vsel %vm143, %v5675, 0
    %6210 = vmatprep.subr.mxu0 %v5749
    %6211 = vmatpush1.msra.mxu0 %v5748
    %6212 = vmatprep.subr.mxu0 %v5753
    %6213 = vmatpush1.msra.mxu0 %v5752
    %6214 = vmatprep.subr.mxu0 %v5757
    %6215 = vmatpush1.msra.mxu0 %v5756
    %6216 = vmatprep.subr.mxu0 %v5761
    %6217 = vmatpush1.msra.mxu0 %v5760
    %6218 = vmatprep.subr.mxu0 %v5765
    %6219 = vmatpush1.msra.mxu0 %v5764
    %6220 = vmatprep.subr.mxu0 %v5769
    %6221 = vmatpush1.msra.mxu0 %v5768
    %6222 = vmatprep.subr.mxu0 0.0
    %6223 = vmatpush1.msra.mxu0 0.0
    %6224 = vmatprep.subr.mxu0 0.0
    %6225 = vmatpush1.msra.mxu0 0.0
    %6226 = vmatprep.subr.mxu0 0.0
    %6227 = vmatpush1.msra.mxu0 0.0
    %6228 = vmatprep.subr.mxu0 0.0
    %6229 = vmatpush1.msra.mxu0 0.0
    %6230 = vmatprep.subr.mxu0 0.0
    %6231 = vmatpush1.msra.mxu0 0.0
    %6232 = vmatprep.subr.mxu0 0.0
    %6233 = vmatpush1.msra.mxu0 0.0
    %6234 = vmatprep.subr.mxu0 0.0
    %6235 = vmatpush1.msra.mxu0 0.0
    %6236 = vmatprep.subr.mxu0 0.0
    %6237 = vmatpush1.msra.mxu0 0.0
    %6238 = vmatprep.subr.mxu0 0.0
    %6239 = vmatpush1.msra.mxu0 0.0
    %6240 = vmatprep.subr.mxu0 0.0
    %6241 = vmatpush1.msra.mxu0 0.0
    %6242 = vmatprep.subr.mxu0 0.0
    %6243 = vmatpush1.msra.mxu0 0.0
    %6244 = vmatprep.subr.mxu0 0.0
    %6245 = vmatpush1.msra.mxu0 0.0
    %6246 = vmatprep.subr.mxu0 0.0
    %6247 = vmatpush1.msra.mxu0 0.0
    %6248 = vmatprep.subr.mxu0 0.0
    %6249 = vmatpush1.msra.mxu0 0.0
    %6250 = vmatprep.subr.mxu0 0.0
    %6251 = vmatpush1.msra.mxu0 0.0
    %6252 = vmatprep.subr.mxu0 0.0
    %6253 = vmatpush1.msra.mxu0 0.0
    %6254 = vmatprep.subr.mxu0 0.0
    %6255 = vmatpush1.msra.mxu0 0.0
    %6256 = vmatprep.subr.mxu0 0.0
    %6257 = vmatpush1.msra.mxu0 0.0
    %6258 = vmatprep.subr.mxu0 0.0
    %6259 = vmatpush1.msra.mxu0 0.0
    %6260 = vmatprep.subr.mxu0 0.0
    %6261 = vmatpush1.msra.mxu0 0.0
    %6262 = vmatprep.subr.mxu0 0.0
    %6263 = vmatpush1.msra.mxu0 0.0
    %6264 = vmatprep.subr.mxu0 0.0
    %6265 = vmatpush1.msra.mxu0 0.0
    %6266 = vmatprep.subr.mxu0 0.0
    %6267 = vmatpush1.msra.mxu0 0.0
    %6268 = vmatprep.subr.mxu0 0.0
    %6269 = vmatpush1.msra.mxu0 0.0
    %6270 = vmatprep.subr.mxu0 0.0
    %6271 = vmatpush1.msra.mxu0 0.0
    %6272 = vmatprep.subr.mxu0 0.0
    %6273 = vmatpush1.msra.mxu0 0.0
    %6274 = vmatprep.mubr.f32.mxu0 0.0
    %6275 = vmatmul.mubr.f32.gmra.mrb[0].mxu0 %v6208
    %v6276 = vpop.f32.mrb[0].mxu0
    %v6277 = vadd.f32 0.0, %v6276
    %v6278 = vpop.f32.mrb[0].mxu0
    %v6279 = vadd.f32 0.0, %v6278
    %6280 = vdwg.mxu0
    %6281 = vmatprep.subr.mxu0 %v5751
    %6282 = vmatpush1.msra.mxu0 %v5750
    %6283 = vmatprep.subr.mxu0 %v5755
    %6284 = vmatpush1.msra.mxu0 %v5754
    %6285 = vmatprep.subr.mxu0 %v5759
    %6286 = vmatpush1.msra.mxu0 %v5758
    %6287 = vmatprep.subr.mxu0 %v5763
    %6288 = vmatpush1.msra.mxu0 %v5762
    %6289 = vmatprep.subr.mxu0 %v5767
    %6290 = vmatpush1.msra.mxu0 %v5766
    %6291 = vmatprep.subr.mxu0 %v5771
    %6292 = vmatpush1.msra.mxu0 %v5770
    %6293 = vmatprep.subr.mxu0 0.0
    %6294 = vmatpush1.msra.mxu0 0.0
    %6295 = vmatprep.subr.mxu0 0.0
    %6296 = vmatpush1.msra.mxu0 0.0
    %6297 = vmatprep.subr.mxu0 0.0
    %6298 = vmatpush1.msra.mxu0 0.0
    %6299 = vmatprep.subr.mxu0 0.0
    %6300 = vmatpush1.msra.mxu0 0.0
    %6301 = vmatprep.subr.mxu0 0.0
    %6302 = vmatpush1.msra.mxu0 0.0
    %6303 = vmatprep.subr.mxu0 0.0
    %6304 = vmatpush1.msra.mxu0 0.0
    %6305 = vmatprep.subr.mxu0 0.0
    %6306 = vmatpush1.msra.mxu0 0.0
    %6307 = vmatprep.subr.mxu0 0.0
    %6308 = vmatpush1.msra.mxu0 0.0
    %6309 = vmatprep.subr.mxu0 0.0
    %6310 = vmatpush1.msra.mxu0 0.0
    %6311 = vmatprep.subr.mxu0 0.0
    %6312 = vmatpush1.msra.mxu0 0.0
    %6313 = vmatprep.subr.mxu0 0.0
    %6314 = vmatpush1.msra.mxu0 0.0
    %6315 = vmatprep.subr.mxu0 0.0
    %6316 = vmatpush1.msra.mxu0 0.0
    %6317 = vmatprep.subr.mxu0 0.0
    %6318 = vmatpush1.msra.mxu0 0.0
    %6319 = vmatprep.subr.mxu0 0.0
    %6320 = vmatpush1.msra.mxu0 0.0
    %6321 = vmatprep.subr.mxu0 0.0
    %6322 = vmatpush1.msra.mxu0 0.0
    %6323 = vmatprep.subr.mxu0 0.0
    %6324 = vmatpush1.msra.mxu0 0.0
    %6325 = vmatprep.subr.mxu0 0.0
    %6326 = vmatpush1.msra.mxu0 0.0
    %6327 = vmatprep.subr.mxu0 0.0
    %6328 = vmatpush1.msra.mxu0 0.0
    %6329 = vmatprep.subr.mxu0 0.0
    %6330 = vmatpush1.msra.mxu0 0.0
    %6331 = vmatprep.subr.mxu0 0.0
    %6332 = vmatpush1.msra.mxu0 0.0
    %6333 = vmatprep.subr.mxu0 0.0
    %6334 = vmatpush1.msra.mxu0 0.0
    %6335 = vmatprep.subr.mxu0 0.0
    %6336 = vmatpush1.msra.mxu0 0.0
    %6337 = vmatprep.subr.mxu0 0.0
    %6338 = vmatpush1.msra.mxu0 0.0
    %6339 = vmatprep.subr.mxu0 0.0
    %6340 = vmatpush1.msra.mxu0 0.0
    %6341 = vmatprep.subr.mxu0 0.0
    %6342 = vmatpush1.msra.mxu0 0.0
    %6343 = vmatprep.subr.mxu0 0.0
    %6344 = vmatpush1.msra.mxu0 0.0
    %6345 = vmatprep.mubr.f32.mxu0 0.0
    %6346 = vmatmul.mubr.f32.gmra.mrb[0].mxu0 %v6208
    %v6347 = vpop.f32.mrb[0].mxu0
    %v6348 = vadd.f32 0.0, %v6347
    %v6349 = vpop.f32.mrb[0].mxu0
    %v6350 = vadd.f32 0.0, %v6349
    %6351 = vdwg.mxu0
    %v6352 = vxor.u32 %v5842, 2147483648
    %v6353 = vxor.u32 %v5844, 2147483648
    %v6354 = vxor.u32 %v5913, 2147483648
    %v6355 = vxor.u32 %v5987, 2147483648
    %v6356 = vxor.u32 %v5989, 2147483648
    %v6357 = vxor.u32 %v6058, 2147483648
    %v6358 = vxor.u32 %v6132, 2147483648
    %v6359 = vxor.u32 %v6134, 2147483648
    %v6360 = vxor.u32 %v6203, 2147483648
    %v6361 = vxor.u32 %v6277, 2147483648
    %v6362 = vxor.u32 %v6279, 2147483648
    %v6363 = vxor.u32 %v6348, 2147483648
    %v6364 = vmul.f32 %v6352, 1.442695
    %v6365 = vpow.pop %v6364
    %v6366 = vmul.f32 %v6353, 1.442695
    %v6367 = vpow.pop %v6366
    %v6368 = vmul.f32 %v6354, 1.442695
    %v6369 = vpow.pop %v6368
    %v6370 = vmul.f32 %v6355, 1.442695
    %v6371 = vpow.pop %v6370
    %v6372 = vmul.f32 %v6356, 1.442695
    %v6373 = vpow.pop %v6372
    %v6374 = vmul.f32 %v6357, 1.442695
    %v6375 = vpow.pop %v6374
    %v6376 = vmul.f32 %v6358, 1.442695
    %v6377 = vpow.pop %v6376
    %v6378 = vmul.f32 %v6359, 1.442695
    %v6379 = vpow.pop %v6378
    %v6380 = vmul.f32 %v6360, 1.442695
    %v6381 = vpow.pop %v6380
    %v6382 = vmul.f32 %v6361, 1.442695
    %v6383 = vpow.pop %v6382
    %v6384 = vmul.f32 %v6362, 1.442695
    %v6385 = vpow.pop %v6384
    %v6386 = vmul.f32 %v6363, 1.442695
    %v6387 = vpow.pop %v6386
    %v6388 = vadd.f32 %v6365, 1.0
    %v6389 = vadd.f32 %v6367, 1.0
    %v6390 = vadd.f32 %v6369, 1.0
    %v6391 = vadd.f32 %v6371, 1.0
    %v6392 = vadd.f32 %v6373, 1.0
    %v6393 = vadd.f32 %v6375, 1.0
    %v6394 = vadd.f32 %v6377, 1.0
    %v6395 = vadd.f32 %v6379, 1.0
    %v6396 = vadd.f32 %v6381, 1.0
    %v6397 = vadd.f32 %v6383, 1.0
    %v6398 = vadd.f32 %v6385, 1.0
    %v6399 = vadd.f32 %v6387, 1.0
    %v6400 = vrcp.pop %v6388
    %v6401 = vmul.f32 1.0, %v6400
    %v6402 = vrcp.pop %v6389
    %v6403 = vmul.f32 1.0, %v6402
    %v6404 = vrcp.pop %v6390
    %v6405 = vmul.f32 1.0, %v6404
    %v6406 = vrcp.pop %v6391
    %v6407 = vmul.f32 1.0, %v6406
    %v6408 = vrcp.pop %v6392
    %v6409 = vmul.f32 1.0, %v6408
    %v6410 = vrcp.pop %v6393
    %v6411 = vmul.f32 1.0, %v6410
    %v6412 = vrcp.pop %v6394
    %v6413 = vmul.f32 1.0, %v6412
    %v6414 = vrcp.pop %v6395
    %v6415 = vmul.f32 1.0, %v6414
    %v6416 = vrcp.pop %v6396
    %v6417 = vmul.f32 1.0, %v6416
    %v6418 = vrcp.pop %v6397
    %v6419 = vmul.f32 1.0, %v6418
    %v6420 = vrcp.pop %v6398
    %v6421 = vmul.f32 1.0, %v6420
    %v6422 = vrcp.pop %v6399
    %v6423 = vmul.f32 1.0, %v6422
    %v6424 = vtanh.pop %v5915
    %v6425 = vtanh.pop %v6060
    %v6426 = vtanh.pop %v6205
    %v6427 = vtanh.pop %v6350
    %v6428 = vmul.f32 %v6403, %v5637
    %v6429 = vmul.f32 %v6409, %v5638
    %v6430 = vmul.f32 %v6415, %v5639
    %v6431 = vmul.f32 %v6421, %v5640
    %v6432 = vmul.f32 %v6401, %v6424
    %v6433 = vmul.f32 %v6407, %v6425
    %v6434 = vmul.f32 %v6413, %v6426
    %v6435 = vmul.f32 %v6419, %v6427
    %v6436 = vadd.f32 %v6428, %v6432
    %v6437 = vadd.f32 %v6429, %v6433
    %v6438 = vadd.f32 %v6430, %v6434
    %v6439 = vadd.f32 %v6431, %v6435
    %v6440 = vtanh.pop %v6436
    %v6441 = vtanh.pop %v6437
    %v6442 = vtanh.pop %v6438
    %v6443 = vtanh.pop %v6439
    %v6444 = vmul.f32 %v6405, %v6440
    %v6445 = vmul.f32 %v6411, %v6441
    %v6446 = vmul.f32 %v6417, %v6442
    %v6447 = vmul.f32 %v6423, %v6443
    %6448 = vst.msk [vmem:[#allocation2] sm:$0x3] %vm832, %v6444
    %6449 = vst.msk [vmem:[#allocation2 + $0x2] sm:$0x3] %vm832, %v6445
    %6450 = vst.msk [vmem:[#allocation2 + $0x4] sm:$0x3] %vm832, %v6446
    %6451 = vst.msk [vmem:[#allocation2 + $0x6] sm:$0x3] %vm832, %v6447
    %6455 = vrot.lane.b32.xlu0 %v6444, 20
    %v6456 = vpop.permute.xlu0 %6455
    %6457 = vrot.lane.b32.xlu0 %v6445, 20
    %v6458 = vpop.permute.xlu0 %6457
    %6459 = vrot.lane.b32.xlu0 %v6446, 20
    %v6460 = vpop.permute.xlu0 %6459
    %6464 = vst.msk [vmem:[%s849] sm:$0x3] %vm41, %v6456
    %6465 = vst.msk [vmem:[%s849 + $0x2] sm:$0x3] %vm41, %v6458
    %6466 = vst.msk [vmem:[%s849 + $0x4] sm:$0x3] %vm41, %v6460
    %6467 = vst.msk [vmem:[#allocation3 + $0x8] sm:$0x3] %vm832, %v6447
    %v6468 = vld [vmem:[#allocation2] sm:$0x3]
    %v6469 = vld [vmem:[#allocation2 + $0x2] sm:$0x3]
    %v6470 = vld [vmem:[#allocation2 + $0x4] sm:$0x3]
    %v6471 = vld [vmem:[#allocation2 + $0x6] sm:$0x3]
    %v6472 = vld [vmem:[#allocation4] sm:$0xff]
    %v6473 = vld [vmem:[#allocation4 + $0x8] sm:$0xff]
    %v6474 = vld [vmem:[#allocation4 + $0x10] sm:$0xff]
    %v6475 = vld [vmem:[#allocation4 + $0x18] sm:$0xff]
    %v6476 = vld [vmem:[#allocation4 + $0x20] sm:$0xff]
    %v6477 = vld [vmem:[#allocation4 + $0x28] sm:$0xff]
    %v6478 = vld [vmem:[#allocation4 + $0x30] sm:$0xff]
    %v6479 = vld [vmem:[#allocation4 + $0x38] sm:$0xff]
    %v6480 = vld [vmem:[#allocation4 + $0x40] sm:$0xff]
    %v6481 = vld [vmem:[#allocation4 + $0x48] sm:$0xff]
    %v6482 = vld [vmem:[#allocation4 + $0x50] sm:$0xff]
    %v6483 = vld [vmem:[#allocation4 + $0x58] sm:$0xff]
    %v6484 = vld [vmem:[#allocation4 + $0x60] sm:$0xff]
    %v6485 = vld [vmem:[#allocation4 + $0x68] sm:$0xff]
    %v6486 = vld [vmem:[#allocation4 + $0x70] sm:$0xff]
    %v6487 = vld [vmem:[#allocation4 + $0x78] sm:$0xff]
    %v6488 = vld [vmem:[#allocation4 + $0x80] sm:$0xff]
    %v6489 = vld [vmem:[#allocation4 + $0x88] sm:$0xff]
    %v6490 = vld [vmem:[#allocation4 + $0x90] sm:$0xff]
    %v6491 = vld [vmem:[#allocation4 + $0x98] sm:$0xff]
    %v6492 = vld [vmem:[#allocation4 + $0xa0] sm:$0xff]
    %v6493 = vld [vmem:[#allocation4 + $0xa8] sm:$0xff]
    %v6494 = vld [vmem:[#allocation4 + $0xb0] sm:$0xff]
    %v6495 = vld [vmem:[#allocation4 + $0xb8] sm:$0xff]
    %v6496 = vld [vmem:[#allocation4 + $0xc0] sm:$0xff]
    %v6497 = vld [vmem:[#allocation4 + $0xc8] sm:$0xff]
    %v6498 = vld [vmem:[#allocation4 + $0xd0] sm:$0xff]
    %v6499 = vld [vmem:[#allocation4 + $0xd8] sm:$0xff]
    %v6500 = vld [vmem:[#allocation4 + $0xe0] sm:$0xff]
    %v6501 = vld [vmem:[#allocation4 + $0xe8] sm:$0xff]
    %v6502 = vld [vmem:[#allocation4 + $0xf0] sm:$0xff]
    %v6503 = vld [vmem:[#allocation4 + $0xf8] sm:$0xff]
    %v6504 = vld [vmem:[#allocation4 + $0x100] sm:$0xff]
    %v6505 = vld [vmem:[#allocation4 + $0x108] sm:$0xff]
    %v6506 = vld [vmem:[#allocation4 + $0x110] sm:$0xff]
    %v6507 = vld [vmem:[#allocation4 + $0x118] sm:$0xff]
    %v6508 = vld [vmem:[#allocation4 + $0x120] sm:$0xff]
    %v6509 = vld [vmem:[#allocation4 + $0x128] sm:$0xff]
    %v6510 = vld [vmem:[#allocation4 + $0x130] sm:$0xff]
    %v6511 = vld [vmem:[#allocation4 + $0x138] sm:$0xff]
    %v6512 = vld [vmem:[#allocation4 + $0x140] sm:$0xff]
    %v6513 = vld [vmem:[#allocation4 + $0x148] sm:$0xff]
    %v6514 = vld [vmem:[#allocation4 + $0x150] sm:$0xff]
    %v6515 = vld [vmem:[#allocation4 + $0x158] sm:$0xff]
    %v6516 = vld [vmem:[#allocation4 + $0x160] sm:$0xff]
    %v6517 = vld [vmem:[#allocation4 + $0x168] sm:$0xff]
    %v6518 = vld [vmem:[#allocation4 + $0x170] sm:$0xff]
    %v6519 = vld [vmem:[#allocation4 + $0x178] sm:$0xff]
    %v6520 = vld [vmem:[#allocation4 + $0x180] sm:$0xff]
    %v6521 = vld [vmem:[#allocation4 + $0x188] sm:$0xff]
    %v6522 = vld [vmem:[#allocation4 + $0x190] sm:$0xff]
    %v6523 = vld [vmem:[#allocation4 + $0x198] sm:$0xff]
    %v6524 = vld [vmem:[#allocation4 + $0x1a0] sm:$0xff]
    %v6525 = vld [vmem:[#allocation4 + $0x1a8] sm:$0xff]
    %v6526 = vld [vmem:[#allocation4 + $0x1b0] sm:$0xff]
    %v6527 = vld [vmem:[#allocation4 + $0x1b8] sm:$0xff]
    %v6528 = vld [vmem:[#allocation4 + $0x1c0] sm:$0xff]
    %v6529 = vld [vmem:[#allocation4 + $0x1c8] sm:$0xff]
    %v6530 = vld [vmem:[#allocation4 + $0x1d0] sm:$0xff]
    %v6531 = vld [vmem:[#allocation4 + $0x1d8] sm:$0xff]
    %v6532 = vld [vmem:[#allocation4 + $0x1e0] sm:$0xff]
    %v6533 = vld [vmem:[#allocation4 + $0x1e8] sm:$0xff]
    %v6534 = vld [vmem:[#allocation4 + $0x1f0] sm:$0xff]
    %v6535 = vld [vmem:[#allocation4 + $0x1f8] sm:$0xff]
    %v6536 = vld [vmem:[#allocation4 + $0x200] sm:$0xff]
    %v6537 = vld [vmem:[#allocation4 + $0x208] sm:$0xff]
    %v6538 = vld [vmem:[#allocation4 + $0x210] sm:$0xff]
    %v6539 = vld [vmem:[#allocation4 + $0x218] sm:$0xff]
    %v6540 = vld [vmem:[#allocation4 + $0x220] sm:$0xff]
    %v6541 = vld [vmem:[#allocation4 + $0x228] sm:$0xff]
    %v6542 = vld [vmem:[#allocation4 + $0x230] sm:$0xff]
    %v6543 = vld [vmem:[#allocation4 + $0x238] sm:$0xff]
    %v6544 = vld [vmem:[#allocation4 + $0x240] sm:$0xff]
    %v6545 = vld [vmem:[#allocation4 + $0x248] sm:$0xff]
    %v6546 = vld [vmem:[#allocation4 + $0x250] sm:$0xff]
    %v6547 = vld [vmem:[#allocation4 + $0x258] sm:$0xff]
    %v6548 = vld [vmem:[#allocation4 + $0x260] sm:$0xff]
    %v6549 = vld [vmem:[#allocation4 + $0x268] sm:$0xff]
    %v6550 = vld [vmem:[#allocation4 + $0x270] sm:$0xff]
    %v6551 = vld [vmem:[#allocation4 + $0x278] sm:$0xff]
    %v6552 = vld [vmem:[#allocation4 + $0x280] sm:$0xff]
    %v6553 = vld [vmem:[#allocation4 + $0x288] sm:$0xff]
    %v6554 = vld [vmem:[#allocation4 + $0x290] sm:$0xff]
    %v6555 = vld [vmem:[#allocation4 + $0x298] sm:$0xff]
    %v6556 = vld [vmem:[#allocation4 + $0x2a0] sm:$0xff]
    %v6557 = vld [vmem:[#allocation4 + $0x2a8] sm:$0xff]
    %v6558 = vld [vmem:[#allocation4 + $0x2b0] sm:$0xff]
    %v6559 = vld [vmem:[#allocation4 + $0x2b8] sm:$0xff]
    %v6560 = vld [vmem:[#allocation4 + $0x2c0] sm:$0xff]
    %v6561 = vld [vmem:[#allocation4 + $0x2c8] sm:$0xff]
    %v6562 = vld [vmem:[#allocation4 + $0x2d0] sm:$0xff]
    %v6563 = vld [vmem:[#allocation4 + $0x2d8] sm:$0xff]
    %v6564 = vld [vmem:[#allocation4 + $0x2e0] sm:$0xff]
    %v6565 = vld [vmem:[#allocation4 + $0x2e8] sm:$0xff]
    %v6566 = vld [vmem:[#allocation4 + $0x2f0] sm:$0xff]
    %v6567 = vld [vmem:[#allocation4 + $0x2f8] sm:$0xff]
    %v6569 = vsel %vm143, %v6468, 0
    %6571 = vmatprep.subr.mxu0 %v6473
    %6572 = vmatpush1.msra.mxu0 %v6472
    %6573 = vmatprep.subr.mxu0 %v6477
    %6574 = vmatpush1.msra.mxu0 %v6476
    %6575 = vmatprep.subr.mxu0 %v6481
    %6576 = vmatpush1.msra.mxu0 %v6480
    %6577 = vmatprep.subr.mxu0 %v6485
    %6578 = vmatpush1.msra.mxu0 %v6484
    %6579 = vmatprep.subr.mxu0 %v6489
    %6580 = vmatpush1.msra.mxu0 %v6488
    %6581 = vmatprep.subr.mxu0 %v6493
    %6582 = vmatpush1.msra.mxu0 %v6492
    %6583 = vmatprep.subr.mxu0 0.0
    %6584 = vmatpush1.msra.mxu0 0.0
    %6585 = vmatprep.subr.mxu0 0.0
    %6586 = vmatpush1.msra.mxu0 0.0
    %6587 = vmatprep.subr.mxu0 0.0
    %6588 = vmatpush1.msra.mxu0 0.0
    %6589 = vmatprep.subr.mxu0 0.0
    %6590 = vmatpush1.msra.mxu0 0.0
    %6591 = vmatprep.subr.mxu0 0.0
    %6592 = vmatpush1.msra.mxu0 0.0
    %6593 = vmatprep.subr.mxu0 0.0
    %6594 = vmatpush1.msra.mxu0 0.0
    %6595 = vmatprep.subr.mxu0 0.0
    %6596 = vmatpush1.msra.mxu0 0.0
    %6597 = vmatprep.subr.mxu0 0.0
    %6598 = vmatpush1.msra.mxu0 0.0
    %6599 = vmatprep.subr.mxu0 0.0
    %6600 = vmatpush1.msra.mxu0 0.0
    %6601 = vmatprep.subr.mxu0 0.0
    %6602 = vmatpush1.msra.mxu0 0.0
    %6603 = vmatprep.subr.mxu0 0.0
    %6604 = vmatpush1.msra.mxu0 0.0
    %6605 = vmatprep.subr.mxu0 0.0
    %6606 = vmatpush1.msra.mxu0 0.0
    %6607 = vmatprep.subr.mxu0 0.0
    %6608 = vmatpush1.msra.mxu0 0.0
    %6609 = vmatprep.subr.mxu0 0.0
    %6610 = vmatpush1.msra.mxu0 0.0
    %6611 = vmatprep.subr.mxu0 0.0
    %6612 = vmatpush1.msra.mxu0 0.0
    %6613 = vmatprep.subr.mxu0 0.0
    %6614 = vmatpush1.msra.mxu0 0.0
    %6615 = vmatprep.subr.mxu0 0.0
    %6616 = vmatpush1.msra.mxu0 0.0
    %6617 = vmatprep.subr.mxu0 0.0
    %6618 = vmatpush1.msra.mxu0 0.0
    %6619 = vmatprep.subr.mxu0 0.0
    %6620 = vmatpush1.msra.mxu0 0.0
    %6621 = vmatprep.subr.mxu0 0.0
    %6622 = vmatpush1.msra.mxu0 0.0
    %6623 = vmatprep.subr.mxu0 0.0
    %6624 = vmatpush1.msra.mxu0 0.0
    %6625 = vmatprep.subr.mxu0 0.0
    %6626 = vmatpush1.msra.mxu0 0.0
    %6627 = vmatprep.subr.mxu0 0.0
    %6628 = vmatpush1.msra.mxu0 0.0
    %6629 = vmatprep.subr.mxu0 0.0
    %6630 = vmatpush1.msra.mxu0 0.0
    %6631 = vmatprep.subr.mxu0 0.0
    %6632 = vmatpush1.msra.mxu0 0.0
    %6633 = vmatprep.subr.mxu0 0.0
    %6634 = vmatpush1.msra.mxu0 0.0
    %6635 = vmatprep.mubr.f32.mxu0 0.0
    %6636 = vmatmul.mubr.f32.gmra.mrb[0].mxu0 %v6569
    %v6637 = vpop.f32.mrb[0].mxu0
    %v6638 = vadd.f32 0.0, %v6637
    %v6639 = vpop.f32.mrb[0].mxu0
    %v6640 = vadd.f32 0.0, %v6639
    %6641 = vdwg.mxu0
    %6642 = vmatprep.subr.mxu0 %v6475
    %6643 = vmatpush1.msra.mxu0 %v6474
    %6644 = vmatprep.subr.mxu0 %v6479
    %6645 = vmatpush1.msra.mxu0 %v6478
    %6646 = vmatprep.subr.mxu0 %v6483
    %6647 = vmatpush1.msra.mxu0 %v6482
    %6648 = vmatprep.subr.mxu0 %v6487
    %6649 = vmatpush1.msra.mxu0 %v6486
    %6650 = vmatprep.subr.mxu0 %v6491
    %6651 = vmatpush1.msra.mxu0 %v6490
    %6652 = vmatprep.subr.mxu0 %v6495
    %6653 = vmatpush1.msra.mxu0 %v6494
    %6654 = vmatprep.subr.mxu0 0.0
    %6655 = vmatpush1.msra.mxu0 0.0
    %6656 = vmatprep.subr.mxu0 0.0
    %6657 = vmatpush1.msra.mxu0 0.0
    %6658 = vmatprep.subr.mxu0 0.0
    %6659 = vmatpush1.msra.mxu0 0.0
    %6660 = vmatprep.subr.mxu0 0.0
    %6661 = vmatpush1.msra.mxu0 0.0
    %6662 = vmatprep.subr.mxu0 0.0
    %6663 = vmatpush1.msra.mxu0 0.0
    %6664 = vmatprep.subr.mxu0 0.0
    %6665 = vmatpush1.msra.mxu0 0.0
    %6666 = vmatprep.subr.mxu0 0.0
    %6667 = vmatpush1.msra.mxu0 0.0
    %6668 = vmatprep.subr.mxu0 0.0
    %6669 = vmatpush1.msra.mxu0 0.0
    %6670 = vmatprep.subr.mxu0 0.0
    %6671 = vmatpush1.msra.mxu0 0.0
    %6672 = vmatprep.subr.mxu0 0.0
    %6673 = vmatpush1.msra.mxu0 0.0
    %6674 = vmatprep.subr.mxu0 0.0
    %6675 = vmatpush1.msra.mxu0 0.0
    %6676 = vmatprep.subr.mxu0 0.0
    %6677 = vmatpush1.msra.mxu0 0.0
    %6678 = vmatprep.subr.mxu0 0.0
    %6679 = vmatpush1.msra.mxu0 0.0
    %6680 = vmatprep.subr.mxu0 0.0
    %6681 = vmatpush1.msra.mxu0 0.0
    %6682 = vmatprep.subr.mxu0 0.0
    %6683 = vmatpush1.msra.mxu0 0.0
    %6684 = vmatprep.subr.mxu0 0.0
    %6685 = vmatpush1.msra.mxu0 0.0
    %6686 = vmatprep.subr.mxu0 0.0
    %6687 = vmatpush1.msra.mxu0 0.0
    %6688 = vmatprep.subr.mxu0 0.0
    %6689 = vmatpush1.msra.mxu0 0.0
    %6690 = vmatprep.subr.mxu0 0.0
    %6691 = vmatpush1.msra.mxu0 0.0
    %6692 = vmatprep.subr.mxu0 0.0
    %6693 = vmatpush1.msra.mxu0 0.0
    %6694 = vmatprep.subr.mxu0 0.0
    %6695 = vmatpush1.msra.mxu0 0.0
    %6696 = vmatprep.subr.mxu0 0.0
    %6697 = vmatpush1.msra.mxu0 0.0
    %6698 = vmatprep.subr.mxu0 0.0
    %6699 = vmatpush1.msra.mxu0 0.0
    %6700 = vmatprep.subr.mxu0 0.0
    %6701 = vmatpush1.msra.mxu0 0.0
    %6702 = vmatprep.subr.mxu0 0.0
    %6703 = vmatpush1.msra.mxu0 0.0
    %6704 = vmatprep.subr.mxu0 0.0
    %6705 = vmatpush1.msra.mxu0 0.0
    %6706 = vmatprep.mubr.f32.mxu0 0.0
    %6707 = vmatmul.mubr.f32.gmra.mrb[0].mxu0 %v6569
    %v6708 = vpop.f32.mrb[0].mxu0
    %v6709 = vadd.f32 0.0, %v6708
    %v6710 = vpop.f32.mrb[0].mxu0
    %v6711 = vadd.f32 0.0, %v6710
    %6712 = vdwg.mxu0
    %v6714 = vsel %vm143, %v6469, 0
    %6716 = vmatprep.subr.mxu0 %v6497
    %6717 = vmatpush1.msra.mxu0 %v6496
    %6718 = vmatprep.subr.mxu0 %v6501
    %6719 = vmatpush1.msra.mxu0 %v6500
    %6720 = vmatprep.subr.mxu0 %v6505
    %6721 = vmatpush1.msra.mxu0 %v6504
    %6722 = vmatprep.subr.mxu0 %v6509
    %6723 = vmatpush1.msra.mxu0 %v6508
    %6724 = vmatprep.subr.mxu0 %v6513
    %6725 = vmatpush1.msra.mxu0 %v6512
    %6726 = vmatprep.subr.mxu0 %v6517
    %6727 = vmatpush1.msra.mxu0 %v6516
    %6728 = vmatprep.subr.mxu0 0.0
    %6729 = vmatpush1.msra.mxu0 0.0
    %6730 = vmatprep.subr.mxu0 0.0
    %6731 = vmatpush1.msra.mxu0 0.0
    %6732 = vmatprep.subr.mxu0 0.0
    %6733 = vmatpush1.msra.mxu0 0.0
    %6734 = vmatprep.subr.mxu0 0.0
    %6735 = vmatpush1.msra.mxu0 0.0
    %6736 = vmatprep.subr.mxu0 0.0
    %6737 = vmatpush1.msra.mxu0 0.0
    %6738 = vmatprep.subr.mxu0 0.0
    %6739 = vmatpush1.msra.mxu0 0.0
    %6740 = vmatprep.subr.mxu0 0.0
    %6741 = vmatpush1.msra.mxu0 0.0
    %6742 = vmatprep.subr.mxu0 0.0
    %6743 = vmatpush1.msra.mxu0 0.0
    %6744 = vmatprep.subr.mxu0 0.0
    %6745 = vmatpush1.msra.mxu0 0.0
    %6746 = vmatprep.subr.mxu0 0.0
    %6747 = vmatpush1.msra.mxu0 0.0
    %6748 = vmatprep.subr.mxu0 0.0
    %6749 = vmatpush1.msra.mxu0 0.0
    %6750 = vmatprep.subr.mxu0 0.0
    %6751 = vmatpush1.msra.mxu0 0.0
    %6752 = vmatprep.subr.mxu0 0.0
    %6753 = vmatpush1.msra.mxu0 0.0
    %6754 = vmatprep.subr.mxu0 0.0
    %6755 = vmatpush1.msra.mxu0 0.0
    %6756 = vmatprep.subr.mxu0 0.0
    %6757 = vmatpush1.msra.mxu0 0.0
    %6758 = vmatprep.subr.mxu0 0.0
    %6759 = vmatpush1.msra.mxu0 0.0
    %6760 = vmatprep.subr.mxu0 0.0
    %6761 = vmatpush1.msra.mxu0 0.0
    %6762 = vmatprep.subr.mxu0 0.0
    %6763 = vmatpush1.msra.mxu0 0.0
    %6764 = vmatprep.subr.mxu0 0.0
    %6765 = vmatpush1.msra.mxu0 0.0
    %6766 = vmatprep.subr.mxu0 0.0
    %6767 = vmatpush1.msra.mxu0 0.0
    %6768 = vmatprep.subr.mxu0 0.0
    %6769 = vmatpush1.msra.mxu0 0.0
    %6770 = vmatprep.subr.mxu0 0.0
    %6771 = vmatpush1.msra.mxu0 0.0
    %6772 = vmatprep.subr.mxu0 0.0
    %6773 = vmatpush1.msra.mxu0 0.0
    %6774 = vmatprep.subr.mxu0 0.0
    %6775 = vmatpush1.msra.mxu0 0.0
    %6776 = vmatprep.subr.mxu0 0.0
    %6777 = vmatpush1.msra.mxu0 0.0
    %6778 = vmatprep.subr.mxu0 0.0
    %6779 = vmatpush1.msra.mxu0 0.0
    %6780 = vmatprep.mubr.f32.mxu0 0.0
    %6781 = vmatmul.mubr.f32.gmra.mrb[0].mxu0 %v6714
    %v6782 = vpop.f32.mrb[0].mxu0
    %v6783 = vadd.f32 0.0, %v6782
    %v6784 = vpop.f32.mrb[0].mxu0
    %v6785 = vadd.f32 0.0, %v6784
    %6786 = vdwg.mxu0
    %6787 = vmatprep.subr.mxu0 %v6499
    %6788 = vmatpush1.msra.mxu0 %v6498
    %6789 = vmatprep.subr.mxu0 %v6503
    %6790 = vmatpush1.msra.mxu0 %v6502
    %6791 = vmatprep.subr.mxu0 %v6507
    %6792 = vmatpush1.msra.mxu0 %v6506
    %6793 = vmatprep.subr.mxu0 %v6511
    %6794 = vmatpush1.msra.mxu0 %v6510
    %6795 = vmatprep.subr.mxu0 %v6515
    %6796 = vmatpush1.msra.mxu0 %v6514
    %6797 = vmatprep.subr.mxu0 %v6519
    %6798 = vmatpush1.msra.mxu0 %v6518
    %6799 = vmatprep.subr.mxu0 0.0
    %6800 = vmatpush1.msra.mxu0 0.0
    %6801 = vmatprep.subr.mxu0 0.0
    %6802 = vmatpush1.msra.mxu0 0.0
    %6803 = vmatprep.subr.mxu0 0.0
    %6804 = vmatpush1.msra.mxu0 0.0
    %6805 = vmatprep.subr.mxu0 0.0
    %6806 = vmatpush1.msra.mxu0 0.0
    %6807 = vmatprep.subr.mxu0 0.0
    %6808 = vmatpush1.msra.mxu0 0.0
    %6809 = vmatprep.subr.mxu0 0.0
    %6810 = vmatpush1.msra.mxu0 0.0
    %6811 = vmatprep.subr.mxu0 0.0
    %6812 = vmatpush1.msra.mxu0 0.0
    %6813 = vmatprep.subr.mxu0 0.0
    %6814 = vmatpush1.msra.mxu0 0.0
    %6815 = vmatprep.subr.mxu0 0.0
    %6816 = vmatpush1.msra.mxu0 0.0
    %6817 = vmatprep.subr.mxu0 0.0
    %6818 = vmatpush1.msra.mxu0 0.0
    %6819 = vmatprep.subr.mxu0 0.0
    %6820 = vmatpush1.msra.mxu0 0.0
    %6821 = vmatprep.subr.mxu0 0.0
    %6822 = vmatpush1.msra.mxu0 0.0
    %6823 = vmatprep.subr.mxu0 0.0
    %6824 = vmatpush1.msra.mxu0 0.0
    %6825 = vmatprep.subr.mxu0 0.0
    %6826 = vmatpush1.msra.mxu0 0.0
    %6827 = vmatprep.subr.mxu0 0.0
    %6828 = vmatpush1.msra.mxu0 0.0
    %6829 = vmatprep.subr.mxu0 0.0
    %6830 = vmatpush1.msra.mxu0 0.0
    %6831 = vmatprep.subr.mxu0 0.0
    %6832 = vmatpush1.msra.mxu0 0.0
    %6833 = vmatprep.subr.mxu0 0.0
    %6834 = vmatpush1.msra.mxu0 0.0
    %6835 = vmatprep.subr.mxu0 0.0
    %6836 = vmatpush1.msra.mxu0 0.0
    %6837 = vmatprep.subr.mxu0 0.0
    %6838 = vmatpush1.msra.mxu0 0.0
    %6839 = vmatprep.subr.mxu0 0.0
    %6840 = vmatpush1.msra.mxu0 0.0
    %6841 = vmatprep.subr.mxu0 0.0
    %6842 = vmatpush1.msra.mxu0 0.0
    %6843 = vmatprep.subr.mxu0 0.0
    %6844 = vmatpush1.msra.mxu0 0.0
    %6845 = vmatprep.subr.mxu0 0.0
    %6846 = vmatpush1.msra.mxu0 0.0
    %6847 = vmatprep.subr.mxu0 0.0
    %6848 = vmatpush1.msra.mxu0 0.0
    %6849 = vmatprep.subr.mxu0 0.0
    %6850 = vmatpush1.msra.mxu0 0.0
    %6851 = vmatprep.mubr.f32.mxu0 0.0
    %6852 = vmatmul.mubr.f32.gmra.mrb[0].mxu0 %v6714
    %v6853 = vpop.f32.mrb[0].mxu0
    %v6854 = vadd.f32 0.0, %v6853
    %v6855 = vpop.f32.mrb[0].mxu0
    %v6856 = vadd.f32 0.0, %v6855
    %6857 = vdwg.mxu0
    %v6859 = vsel %vm143, %v6470, 0
    %6861 = vmatprep.subr.mxu0 %v6521
    %6862 = vmatpush1.msra.mxu0 %v6520
    %6863 = vmatprep.subr.mxu0 %v6525
    %6864 = vmatpush1.msra.mxu0 %v6524
    %6865 = vmatprep.subr.mxu0 %v6529
    %6866 = vmatpush1.msra.mxu0 %v6528
    %6867 = vmatprep.subr.mxu0 %v6533
    %6868 = vmatpush1.msra.mxu0 %v6532
    %6869 = vmatprep.subr.mxu0 %v6537
    %6870 = vmatpush1.msra.mxu0 %v6536
    %6871 = vmatprep.subr.mxu0 %v6541
    %6872 = vmatpush1.msra.mxu0 %v6540
    %6873 = vmatprep.subr.mxu0 0.0
    %6874 = vmatpush1.msra.mxu0 0.0
    %6875 = vmatprep.subr.mxu0 0.0
    %6876 = vmatpush1.msra.mxu0 0.0
    %6877 = vmatprep.subr.mxu0 0.0
    %6878 = vmatpush1.msra.mxu0 0.0
    %6879 = vmatprep.subr.mxu0 0.0
    %6880 = vmatpush1.msra.mxu0 0.0
    %6881 = vmatprep.subr.mxu0 0.0
    %6882 = vmatpush1.msra.mxu0 0.0
    %6883 = vmatprep.subr.mxu0 0.0
    %6884 = vmatpush1.msra.mxu0 0.0
    %6885 = vmatprep.subr.mxu0 0.0
    %6886 = vmatpush1.msra.mxu0 0.0
    %6887 = vmatprep.subr.mxu0 0.0
    %6888 = vmatpush1.msra.mxu0 0.0
    %6889 = vmatprep.subr.mxu0 0.0
    %6890 = vmatpush1.msra.mxu0 0.0
    %6891 = vmatprep.subr.mxu0 0.0
    %6892 = vmatpush1.msra.mxu0 0.0
    %6893 = vmatprep.subr.mxu0 0.0
    %6894 = vmatpush1.msra.mxu0 0.0
    %6895 = vmatprep.subr.mxu0 0.0
    %6896 = vmatpush1.msra.mxu0 0.0
    %6897 = vmatprep.subr.mxu0 0.0
    %6898 = vmatpush1.msra.mxu0 0.0
    %6899 = vmatprep.subr.mxu0 0.0
    %6900 = vmatpush1.msra.mxu0 0.0
    %6901 = vmatprep.subr.mxu0 0.0
    %6902 = vmatpush1.msra.mxu0 0.0
    %6903 = vmatprep.subr.mxu0 0.0
    %6904 = vmatpush1.msra.mxu0 0.0
    %6905 = vmatprep.subr.mxu0 0.0
    %6906 = vmatpush1.msra.mxu0 0.0
    %6907 = vmatprep.subr.mxu0 0.0
    %6908 = vmatpush1.msra.mxu0 0.0
    %6909 = vmatprep.subr.mxu0 0.0
    %6910 = vmatpush1.msra.mxu0 0.0
    %6911 = vmatprep.subr.mxu0 0.0
    %6912 = vmatpush1.msra.mxu0 0.0
    %6913 = vmatprep.subr.mxu0 0.0
    %6914 = vmatpush1.msra.mxu0 0.0
    %6915 = vmatprep.subr.mxu0 0.0
    %6916 = vmatpush1.msra.mxu0 0.0
    %6917 = vmatprep.subr.mxu0 0.0
    %6918 = vmatpush1.msra.mxu0 0.0
    %6919 = vmatprep.subr.mxu0 0.0
    %6920 = vmatpush1.msra.mxu0 0.0
    %6921 = vmatprep.subr.mxu0 0.0
    %6922 = vmatpush1.msra.mxu0 0.0
    %6923 = vmatprep.subr.mxu0 0.0
    %6924 = vmatpush1.msra.mxu0 0.0
    %6925 = vmatprep.mubr.f32.mxu0 0.0
    %6926 = vmatmul.mubr.f32.gmra.mrb[0].mxu0 %v6859
    %v6927 = vpop.f32.mrb[0].mxu0
    %v6928 = vadd.f32 0.0, %v6927
    %v6929 = vpop.f32.mrb[0].mxu0
    %v6930 = vadd.f32 0.0, %v6929
    %6931 = vdwg.mxu0
    %6932 = vmatprep.subr.mxu0 %v6523
    %6933 = vmatpush1.msra.mxu0 %v6522
    %6934 = vmatprep.subr.mxu0 %v6527
    %6935 = vmatpush1.msra.mxu0 %v6526
    %6936 = vmatprep.subr.mxu0 %v6531
    %6937 = vmatpush1.msra.mxu0 %v6530
    %6938 = vmatprep.subr.mxu0 %v6535
    %6939 = vmatpush1.msra.mxu0 %v6534
    %6940 = vmatprep.subr.mxu0 %v6539
    %6941 = vmatpush1.msra.mxu0 %v6538
    %6942 = vmatprep.subr.mxu0 %v6543
    %6943 = vmatpush1.msra.mxu0 %v6542
    %6944 = vmatprep.subr.mxu0 0.0
    %6945 = vmatpush1.msra.mxu0 0.0
    %6946 = vmatprep.subr.mxu0 0.0
    %6947 = vmatpush1.msra.mxu0 0.0
    %6948 = vmatprep.subr.mxu0 0.0
    %6949 = vmatpush1.msra.mxu0 0.0
    %6950 = vmatprep.subr.mxu0 0.0
    %6951 = vmatpush1.msra.mxu0 0.0
    %6952 = vmatprep.subr.mxu0 0.0
    %6953 = vmatpush1.msra.mxu0 0.0
    %6954 = vmatprep.subr.mxu0 0.0
    %6955 = vmatpush1.msra.mxu0 0.0
    %6956 = vmatprep.subr.mxu0 0.0
    %6957 = vmatpush1.msra.mxu0 0.0
    %6958 = vmatprep.subr.mxu0 0.0
    %6959 = vmatpush1.msra.mxu0 0.0
    %6960 = vmatprep.subr.mxu0 0.0
    %6961 = vmatpush1.msra.mxu0 0.0
    %6962 = vmatprep.subr.mxu0 0.0
    %6963 = vmatpush1.msra.mxu0 0.0
    %6964 = vmatprep.subr.mxu0 0.0
    %6965 = vmatpush1.msra.mxu0 0.0
    %6966 = vmatprep.subr.mxu0 0.0
    %6967 = vmatpush1.msra.mxu0 0.0
    %6968 = vmatprep.subr.mxu0 0.0
    %6969 = vmatpush1.msra.mxu0 0.0
    %6970 = vmatprep.subr.mxu0 0.0
    %6971 = vmatpush1.msra.mxu0 0.0
    %6972 = vmatprep.subr.mxu0 0.0
    %6973 = vmatpush1.msra.mxu0 0.0
    %6974 = vmatprep.subr.mxu0 0.0
    %6975 = vmatpush1.msra.mxu0 0.0
    %6976 = vmatprep.subr.mxu0 0.0
    %6977 = vmatpush1.msra.mxu0 0.0
    %6978 = vmatprep.subr.mxu0 0.0
    %6979 = vmatpush1.msra.mxu0 0.0
    %6980 = vmatprep.subr.mxu0 0.0
    %6981 = vmatpush1.msra.mxu0 0.0
    %6982 = vmatprep.subr.mxu0 0.0
    %6983 = vmatpush1.msra.mxu0 0.0
    %6984 = vmatprep.subr.mxu0 0.0
    %6985 = vmatpush1.msra.mxu0 0.0
    %6986 = vmatprep.subr.mxu0 0.0
    %6987 = vmatpush1.msra.mxu0 0.0
    %6988 = vmatprep.subr.mxu0 0.0
    %6989 = vmatpush1.msra.mxu0 0.0
    %6990 = vmatprep.subr.mxu0 0.0
    %6991 = vmatpush1.msra.mxu0 0.0
    %6992 = vmatprep.subr.mxu0 0.0
    %6993 = vmatpush1.msra.mxu0 0.0
    %6994 = vmatprep.subr.mxu0 0.0
    %6995 = vmatpush1.msra.mxu0 0.0
    %6996 = vmatprep.mubr.f32.mxu0 0.0
    %6997 = vmatmul.mubr.f32.gmra.mrb[0].mxu0 %v6859
    %v6998 = vpop.f32.mrb[0].mxu0
    %v6999 = vadd.f32 0.0, %v6998
    %v7000 = vpop.f32.mrb[0].mxu0
    %v7001 = vadd.f32 0.0, %v7000
    %7002 = vdwg.mxu0
    %v7004 = vsel %vm143, %v6471, 0
    %7006 = vmatprep.subr.mxu0 %v6545
    %7007 = vmatpush1.msra.mxu0 %v6544
    %7008 = vmatprep.subr.mxu0 %v6549
    %7009 = vmatpush1.msra.mxu0 %v6548
    %7010 = vmatprep.subr.mxu0 %v6553
    %7011 = vmatpush1.msra.mxu0 %v6552
    %7012 = vmatprep.subr.mxu0 %v6557
    %7013 = vmatpush1.msra.mxu0 %v6556
    %7014 = vmatprep.subr.mxu0 %v6561
    %7015 = vmatpush1.msra.mxu0 %v6560
    %7016 = vmatprep.subr.mxu0 %v6565
    %7017 = vmatpush1.msra.mxu0 %v6564
    %7018 = vmatprep.subr.mxu0 0.0
    %7019 = vmatpush1.msra.mxu0 0.0
    %7020 = vmatprep.subr.mxu0 0.0
    %7021 = vmatpush1.msra.mxu0 0.0
    %7022 = vmatprep.subr.mxu0 0.0
    %7023 = vmatpush1.msra.mxu0 0.0
    %7024 = vmatprep.subr.mxu0 0.0
    %7025 = vmatpush1.msra.mxu0 0.0
    %7026 = vmatprep.subr.mxu0 0.0
    %7027 = vmatpush1.msra.mxu0 0.0
    %7028 = vmatprep.subr.mxu0 0.0
    %7029 = vmatpush1.msra.mxu0 0.0
    %7030 = vmatprep.subr.mxu0 0.0
    %7031 = vmatpush1.msra.mxu0 0.0
    %7032 = vmatprep.subr.mxu0 0.0
    %7033 = vmatpush1.msra.mxu0 0.0
    %7034 = vmatprep.subr.mxu0 0.0
    %7035 = vmatpush1.msra.mxu0 0.0
    %7036 = vmatprep.subr.mxu0 0.0
    %7037 = vmatpush1.msra.mxu0 0.0
    %7038 = vmatprep.subr.mxu0 0.0
    %7039 = vmatpush1.msra.mxu0 0.0
    %7040 = vmatprep.subr.mxu0 0.0
    %7041 = vmatpush1.msra.mxu0 0.0
    %7042 = vmatprep.subr.mxu0 0.0
    %7043 = vmatpush1.msra.mxu0 0.0
    %7044 = vmatprep.subr.mxu0 0.0
    %7045 = vmatpush1.msra.mxu0 0.0
    %7046 = vmatprep.subr.mxu0 0.0
    %7047 = vmatpush1.msra.mxu0 0.0
    %7048 = vmatprep.subr.mxu0 0.0
    %7049 = vmatpush1.msra.mxu0 0.0
    %7050 = vmatprep.subr.mxu0 0.0
    %7051 = vmatpush1.msra.mxu0 0.0
    %7052 = vmatprep.subr.mxu0 0.0
    %7053 = vmatpush1.msra.mxu0 0.0
    %7054 = vmatprep.subr.mxu0 0.0
    %7055 = vmatpush1.msra.mxu0 0.0
    %7056 = vmatprep.subr.mxu0 0.0
    %7057 = vmatpush1.msra.mxu0 0.0
    %7058 = vmatprep.subr.mxu0 0.0
    %7059 = vmatpush1.msra.mxu0 0.0
    %7060 = vmatprep.subr.mxu0 0.0
    %7061 = vmatpush1.msra.mxu0 0.0
    %7062 = vmatprep.subr.mxu0 0.0
    %7063 = vmatpush1.msra.mxu0 0.0
    %7064 = vmatprep.subr.mxu0 0.0
    %7065 = vmatpush1.msra.mxu0 0.0
    %7066 = vmatprep.subr.mxu0 0.0
    %7067 = vmatpush1.msra.mxu0 0.0
    %7068 = vmatprep.subr.mxu0 0.0
    %7069 = vmatpush1.msra.mxu0 0.0
    %7070 = vmatprep.mubr.f32.mxu0 0.0
    %7071 = vmatmul.mubr.f32.gmra.mrb[0].mxu0 %v7004
    %v7072 = vpop.f32.mrb[0].mxu0
    %v7073 = vadd.f32 0.0, %v7072
    %v7074 = vpop.f32.mrb[0].mxu0
    %v7075 = vadd.f32 0.0, %v7074
    %7076 = vdwg.mxu0
    %7077 = vmatprep.subr.mxu0 %v6547
    %7078 = vmatpush1.msra.mxu0 %v6546
    %7079 = vmatprep.subr.mxu0 %v6551
    %7080 = vmatpush1.msra.mxu0 %v6550
    %7081 = vmatprep.subr.mxu0 %v6555
    %7082 = vmatpush1.msra.mxu0 %v6554
    %7083 = vmatprep.subr.mxu0 %v6559
    %7084 = vmatpush1.msra.mxu0 %v6558
    %7085 = vmatprep.subr.mxu0 %v6563
    %7086 = vmatpush1.msra.mxu0 %v6562
    %7087 = vmatprep.subr.mxu0 %v6567
    %7088 = vmatpush1.msra.mxu0 %v6566
    %7089 = vmatprep.subr.mxu0 0.0
    %7090 = vmatpush1.msra.mxu0 0.0
    %7091 = vmatprep.subr.mxu0 0.0
    %7092 = vmatpush1.msra.mxu0 0.0
    %7093 = vmatprep.subr.mxu0 0.0
    %7094 = vmatpush1.msra.mxu0 0.0
    %7095 = vmatprep.subr.mxu0 0.0
    %7096 = vmatpush1.msra.mxu0 0.0
    %7097 = vmatprep.subr.mxu0 0.0
    %7098 = vmatpush1.msra.mxu0 0.0
    %7099 = vmatprep.subr.mxu0 0.0
    %7100 = vmatpush1.msra.mxu0 0.0
    %7101 = vmatprep.subr.mxu0 0.0
    %7102 = vmatpush1.msra.mxu0 0.0
    %7103 = vmatprep.subr.mxu0 0.0
    %7104 = vmatpush1.msra.mxu0 0.0
    %7105 = vmatprep.subr.mxu0 0.0
    %7106 = vmatpush1.msra.mxu0 0.0
    %7107 = vmatprep.subr.mxu0 0.0
    %7108 = vmatpush1.msra.mxu0 0.0
    %7109 = vmatprep.subr.mxu0 0.0
    %7110 = vmatpush1.msra.mxu0 0.0
    %7111 = vmatprep.subr.mxu0 0.0
    %7112 = vmatpush1.msra.mxu0 0.0
    %7113 = vmatprep.subr.mxu0 0.0
    %7114 = vmatpush1.msra.mxu0 0.0
    %7115 = vmatprep.subr.mxu0 0.0
    %7116 = vmatpush1.msra.mxu0 0.0
    %7117 = vmatprep.subr.mxu0 0.0
    %7118 = vmatpush1.msra.mxu0 0.0
    %7119 = vmatprep.subr.mxu0 0.0
    %7120 = vmatpush1.msra.mxu0 0.0
    %7121 = vmatprep.subr.mxu0 0.0
    %7122 = vmatpush1.msra.mxu0 0.0
    %7123 = vmatprep.subr.mxu0 0.0
    %7124 = vmatpush1.msra.mxu0 0.0
    %7125 = vmatprep.subr.mxu0 0.0
    %7126 = vmatpush1.msra.mxu0 0.0
    %7127 = vmatprep.subr.mxu0 0.0
    %7128 = vmatpush1.msra.mxu0 0.0
    %7129 = vmatprep.subr.mxu0 0.0
    %7130 = vmatpush1.msra.mxu0 0.0
    %7131 = vmatprep.subr.mxu0 0.0
    %7132 = vmatpush1.msra.mxu0 0.0
    %7133 = vmatprep.subr.mxu0 0.0
    %7134 = vmatpush1.msra.mxu0 0.0
    %7135 = vmatprep.subr.mxu0 0.0
    %7136 = vmatpush1.msra.mxu0 0.0
    %7137 = vmatprep.subr.mxu0 0.0
    %7138 = vmatpush1.msra.mxu0 0.0
    %7139 = vmatprep.subr.mxu0 0.0
    %7140 = vmatpush1.msra.mxu0 0.0
    %7141 = vmatprep.mubr.f32.mxu0 0.0
    %7142 = vmatmul.mubr.f32.gmra.mrb[0].mxu0 %v7004
    %v7143 = vpop.f32.mrb[0].mxu0
    %v7144 = vadd.f32 0.0, %v7143
    %v7145 = vpop.f32.mrb[0].mxu0
    %v7146 = vadd.f32 0.0, %v7145
    %7147 = vdwg.mxu0
    %v7148 = vxor.u32 %v6638, 2147483648
    %v7149 = vxor.u32 %v6640, 2147483648
    %v7150 = vxor.u32 %v6709, 2147483648
    %v7151 = vxor.u32 %v6783, 2147483648
    %v7152 = vxor.u32 %v6785, 2147483648
    %v7153 = vxor.u32 %v6854, 2147483648
    %v7154 = vxor.u32 %v6928, 2147483648
    %v7155 = vxor.u32 %v6930, 2147483648
    %v7156 = vxor.u32 %v6999, 2147483648
    %v7157 = vxor.u32 %v7073, 2147483648
    %v7158 = vxor.u32 %v7075, 2147483648
    %v7159 = vxor.u32 %v7144, 2147483648
    %v7160 = vmul.f32 %v7148, 1.442695
    %v7161 = vpow.pop %v7160
    %v7162 = vmul.f32 %v7149, 1.442695
    %v7163 = vpow.pop %v7162
    %v7164 = vmul.f32 %v7150, 1.442695
    %v7165 = vpow.pop %v7164
    %v7166 = vmul.f32 %v7151, 1.442695
    %v7167 = vpow.pop %v7166
    %v7168 = vmul.f32 %v7152, 1.442695
    %v7169 = vpow.pop %v7168
    %v7170 = vmul.f32 %v7153, 1.442695
    %v7171 = vpow.pop %v7170
    %v7172 = vmul.f32 %v7154, 1.442695
    %v7173 = vpow.pop %v7172
    %v7174 = vmul.f32 %v7155, 1.442695
    %v7175 = vpow.pop %v7174
    %v7176 = vmul.f32 %v7156, 1.442695
    %v7177 = vpow.pop %v7176
    %v7178 = vmul.f32 %v7157, 1.442695
    %v7179 = vpow.pop %v7178
    %v7180 = vmul.f32 %v7158, 1.442695
    %v7181 = vpow.pop %v7180
    %v7182 = vmul.f32 %v7159, 1.442695
    %v7183 = vpow.pop %v7182
    %v7184 = vadd.f32 %v7161, 1.0
    %v7185 = vadd.f32 %v7163, 1.0
    %v7186 = vadd.f32 %v7165, 1.0
    %v7187 = vadd.f32 %v7167, 1.0
    %v7188 = vadd.f32 %v7169, 1.0
    %v7189 = vadd.f32 %v7171, 1.0
    %v7190 = vadd.f32 %v7173, 1.0
    %v7191 = vadd.f32 %v7175, 1.0
    %v7192 = vadd.f32 %v7177, 1.0
    %v7193 = vadd.f32 %v7179, 1.0
    %v7194 = vadd.f32 %v7181, 1.0
    %v7195 = vadd.f32 %v7183, 1.0
    %v7196 = vrcp.pop %v7184
    %v7197 = vmul.f32 1.0, %v7196
    %v7198 = vrcp.pop %v7185
    %v7199 = vmul.f32 1.0, %v7198
    %v7200 = vrcp.pop %v7186
    %v7201 = vmul.f32 1.0, %v7200
    %v7202 = vrcp.pop %v7187
    %v7203 = vmul.f32 1.0, %v7202
    %v7204 = vrcp.pop %v7188
    %v7205 = vmul.f32 1.0, %v7204
    %v7206 = vrcp.pop %v7189
    %v7207 = vmul.f32 1.0, %v7206
    %v7208 = vrcp.pop %v7190
    %v7209 = vmul.f32 1.0, %v7208
    %v7210 = vrcp.pop %v7191
    %v7211 = vmul.f32 1.0, %v7210
    %v7212 = vrcp.pop %v7192
    %v7213 = vmul.f32 1.0, %v7212
    %v7214 = vrcp.pop %v7193
    %v7215 = vmul.f32 1.0, %v7214
    %v7216 = vrcp.pop %v7194
    %v7217 = vmul.f32 1.0, %v7216
    %v7218 = vrcp.pop %v7195
    %v7219 = vmul.f32 1.0, %v7218
    %v7220 = vtanh.pop %v6711
    %v7221 = vtanh.pop %v6856
    %v7222 = vtanh.pop %v7001
    %v7223 = vtanh.pop %v7146
    %v7224 = vmul.f32 %v7199, %v6436
    %v7225 = vmul.f32 %v7205, %v6437
    %v7226 = vmul.f32 %v7211, %v6438
    %v7227 = vmul.f32 %v7217, %v6439
    %v7228 = vmul.f32 %v7197, %v7220
    %v7229 = vmul.f32 %v7203, %v7221
    %v7230 = vmul.f32 %v7209, %v7222
    %v7231 = vmul.f32 %v7215, %v7223
    %v7232 = vadd.f32 %v7224, %v7228
    %v7233 = vadd.f32 %v7225, %v7229
    %v7234 = vadd.f32 %v7226, %v7230
    %v7235 = vadd.f32 %v7227, %v7231
    %v7236 = vtanh.pop %v7232
    %v7237 = vtanh.pop %v7233
    %v7238 = vtanh.pop %v7234
    %v7239 = vtanh.pop %v7235
    %v7240 = vmul.f32 %v7201, %v7236
    %v7241 = vmul.f32 %v7207, %v7237
    %v7242 = vmul.f32 %v7213, %v7238
    %v7243 = vmul.f32 %v7219, %v7239
    %7244 = vst.msk [vmem:[#allocation2] sm:$0x3] %vm832, %v7240
    %7245 = vst.msk [vmem:[#allocation2 + $0x2] sm:$0x3] %vm832, %v7241
    %7246 = vst.msk [vmem:[#allocation2 + $0x4] sm:$0x3] %vm832, %v7242
    %7247 = vst.msk [vmem:[#allocation2 + $0x6] sm:$0x3] %vm832, %v7243
    %7251 = vrot.lane.b32.xlu0 %v7240, 20
    %v7252 = vpop.permute.xlu0 %7251
    %7253 = vrot.lane.b32.xlu0 %v7241, 20
    %v7254 = vpop.permute.xlu0 %7253
    %7255 = vrot.lane.b32.xlu0 %v7242, 20
    %v7256 = vpop.permute.xlu0 %7255
    %7260 = vst.msk [vmem:[%s849] sm:$0x3] %vm41, %v7252
    %7261 = vst.msk [vmem:[%s849 + $0x2] sm:$0x3] %vm41, %v7254
    %7262 = vst.msk [vmem:[%s849 + $0x4] sm:$0x3] %vm41, %v7256
    %7263 = vst.msk [vmem:[#allocation3 + $0xa] sm:$0x3] %vm832, %v7243
    %v7264 = vld [vmem:[#allocation2] sm:$0x3]
    %v7265 = vld [vmem:[#allocation2 + $0x2] sm:$0x3]
    %v7266 = vld [vmem:[#allocation2 + $0x4] sm:$0x3]
    %v7267 = vld [vmem:[#allocation2 + $0x6] sm:$0x3]
    %v7268 = vld [vmem:[#allocation4] sm:$0xff]
    %v7269 = vld [vmem:[#allocation4 + $0x8] sm:$0xff]
    %v7270 = vld [vmem:[#allocation4 + $0x10] sm:$0xff]
    %v7271 = vld [vmem:[#allocation4 + $0x18] sm:$0xff]
    %v7272 = vld [vmem:[#allocation4 + $0x20] sm:$0xff]
    %v7273 = vld [vmem:[#allocation4 + $0x28] sm:$0xff]
    %v7274 = vld [vmem:[#allocation4 + $0x30] sm:$0xff]
    %v7275 = vld [vmem:[#allocation4 + $0x38] sm:$0xff]
    %v7276 = vld [vmem:[#allocation4 + $0x40] sm:$0xff]
    %v7277 = vld [vmem:[#allocation4 + $0x48] sm:$0xff]
    %v7278 = vld [vmem:[#allocation4 + $0x50] sm:$0xff]
    %v7279 = vld [vmem:[#allocation4 + $0x58] sm:$0xff]
    %v7280 = vld [vmem:[#allocation4 + $0x60] sm:$0xff]
    %v7281 = vld [vmem:[#allocation4 + $0x68] sm:$0xff]
    %v7282 = vld [vmem:[#allocation4 + $0x70] sm:$0xff]
    %v7283 = vld [vmem:[#allocation4 + $0x78] sm:$0xff]
    %v7284 = vld [vmem:[#allocation4 + $0x80] sm:$0xff]
    %v7285 = vld [vmem:[#allocation4 + $0x88] sm:$0xff]
    %v7286 = vld [vmem:[#allocation4 + $0x90] sm:$0xff]
    %v7287 = vld [vmem:[#allocation4 + $0x98] sm:$0xff]
    %v7288 = vld [vmem:[#allocation4 + $0xa0] sm:$0xff]
    %v7289 = vld [vmem:[#allocation4 + $0xa8] sm:$0xff]
    %v7290 = vld [vmem:[#allocation4 + $0xb0] sm:$0xff]
    %v7291 = vld [vmem:[#allocation4 + $0xb8] sm:$0xff]
    %v7292 = vld [vmem:[#allocation4 + $0xc0] sm:$0xff]
    %v7293 = vld [vmem:[#allocation4 + $0xc8] sm:$0xff]
    %v7294 = vld [vmem:[#allocation4 + $0xd0] sm:$0xff]
    %v7295 = vld [vmem:[#allocation4 + $0xd8] sm:$0xff]
    %v7296 = vld [vmem:[#allocation4 + $0xe0] sm:$0xff]
    %v7297 = vld [vmem:[#allocation4 + $0xe8] sm:$0xff]
    %v7298 = vld [vmem:[#allocation4 + $0xf0] sm:$0xff]
    %v7299 = vld [vmem:[#allocation4 + $0xf8] sm:$0xff]
    %v7300 = vld [vmem:[#allocation4 + $0x100] sm:$0xff]
    %v7301 = vld [vmem:[#allocation4 + $0x108] sm:$0xff]
    %v7302 = vld [vmem:[#allocation4 + $0x110] sm:$0xff]
    %v7303 = vld [vmem:[#allocation4 + $0x118] sm:$0xff]
    %v7304 = vld [vmem:[#allocation4 + $0x120] sm:$0xff]
    %v7305 = vld [vmem:[#allocation4 + $0x128] sm:$0xff]
    %v7306 = vld [vmem:[#allocation4 + $0x130] sm:$0xff]
    %v7307 = vld [vmem:[#allocation4 + $0x138] sm:$0xff]
    %v7308 = vld [vmem:[#allocation4 + $0x140] sm:$0xff]
    %v7309 = vld [vmem:[#allocation4 + $0x148] sm:$0xff]
    %v7310 = vld [vmem:[#allocation4 + $0x150] sm:$0xff]
    %v7311 = vld [vmem:[#allocation4 + $0x158] sm:$0xff]
    %v7312 = vld [vmem:[#allocation4 + $0x160] sm:$0xff]
    %v7313 = vld [vmem:[#allocation4 + $0x168] sm:$0xff]
    %v7314 = vld [vmem:[#allocation4 + $0x170] sm:$0xff]
    %v7315 = vld [vmem:[#allocation4 + $0x178] sm:$0xff]
    %v7316 = vld [vmem:[#allocation4 + $0x180] sm:$0xff]
    %v7317 = vld [vmem:[#allocation4 + $0x188] sm:$0xff]
    %v7318 = vld [vmem:[#allocation4 + $0x190] sm:$0xff]
    %v7319 = vld [vmem:[#allocation4 + $0x198] sm:$0xff]
    %v7320 = vld [vmem:[#allocation4 + $0x1a0] sm:$0xff]
    %v7321 = vld [vmem:[#allocation4 + $0x1a8] sm:$0xff]
    %v7322 = vld [vmem:[#allocation4 + $0x1b0] sm:$0xff]
    %v7323 = vld [vmem:[#allocation4 + $0x1b8] sm:$0xff]
    %v7324 = vld [vmem:[#allocation4 + $0x1c0] sm:$0xff]
    %v7325 = vld [vmem:[#allocation4 + $0x1c8] sm:$0xff]
    %v7326 = vld [vmem:[#allocation4 + $0x1d0] sm:$0xff]
    %v7327 = vld [vmem:[#allocation4 + $0x1d8] sm:$0xff]
    %v7328 = vld [vmem:[#allocation4 + $0x1e0] sm:$0xff]
    %v7329 = vld [vmem:[#allocation4 + $0x1e8] sm:$0xff]
    %v7330 = vld [vmem:[#allocation4 + $0x1f0] sm:$0xff]
    %v7331 = vld [vmem:[#allocation4 + $0x1f8] sm:$0xff]
    %v7332 = vld [vmem:[#allocation4 + $0x200] sm:$0xff]
    %v7333 = vld [vmem:[#allocation4 + $0x208] sm:$0xff]
    %v7334 = vld [vmem:[#allocation4 + $0x210] sm:$0xff]
    %v7335 = vld [vmem:[#allocation4 + $0x218] sm:$0xff]
    %v7336 = vld [vmem:[#allocation4 + $0x220] sm:$0xff]
    %v7337 = vld [vmem:[#allocation4 + $0x228] sm:$0xff]
    %v7338 = vld [vmem:[#allocation4 + $0x230] sm:$0xff]
    %v7339 = vld [vmem:[#allocation4 + $0x238] sm:$0xff]
    %v7340 = vld [vmem:[#allocation4 + $0x240] sm:$0xff]
    %v7341 = vld [vmem:[#allocation4 + $0x248] sm:$0xff]
    %v7342 = vld [vmem:[#allocation4 + $0x250] sm:$0xff]
    %v7343 = vld [vmem:[#allocation4 + $0x258] sm:$0xff]
    %v7344 = vld [vmem:[#allocation4 + $0x260] sm:$0xff]
    %v7345 = vld [vmem:[#allocation4 + $0x268] sm:$0xff]
    %v7346 = vld [vmem:[#allocation4 + $0x270] sm:$0xff]
    %v7347 = vld [vmem:[#allocation4 + $0x278] sm:$0xff]
    %v7348 = vld [vmem:[#allocation4 + $0x280] sm:$0xff]
    %v7349 = vld [vmem:[#allocation4 + $0x288] sm:$0xff]
    %v7350 = vld [vmem:[#allocation4 + $0x290] sm:$0xff]
    %v7351 = vld [vmem:[#allocation4 + $0x298] sm:$0xff]
    %v7352 = vld [vmem:[#allocation4 + $0x2a0] sm:$0xff]
    %v7353 = vld [vmem:[#allocation4 + $0x2a8] sm:$0xff]
    %v7354 = vld [vmem:[#allocation4 + $0x2b0] sm:$0xff]
    %v7355 = vld [vmem:[#allocation4 + $0x2b8] sm:$0xff]
    %v7356 = vld [vmem:[#allocation4 + $0x2c0] sm:$0xff]
    %v7357 = vld [vmem:[#allocation4 + $0x2c8] sm:$0xff]
    %v7358 = vld [vmem:[#allocation4 + $0x2d0] sm:$0xff]
    %v7359 = vld [vmem:[#allocation4 + $0x2d8] sm:$0xff]
    %v7360 = vld [vmem:[#allocation4 + $0x2e0] sm:$0xff]
    %v7361 = vld [vmem:[#allocation4 + $0x2e8] sm:$0xff]
    %v7362 = vld [vmem:[#allocation4 + $0x2f0] sm:$0xff]
    %v7363 = vld [vmem:[#allocation4 + $0x2f8] sm:$0xff]
    %v7365 = vsel %vm143, %v7264, 0
    %7367 = vmatprep.subr.mxu0 %v7269
    %7368 = vmatpush1.msra.mxu0 %v7268
    %7369 = vmatprep.subr.mxu0 %v7273
    %7370 = vmatpush1.msra.mxu0 %v7272
    %7371 = vmatprep.subr.mxu0 %v7277
    %7372 = vmatpush1.msra.mxu0 %v7276
    %7373 = vmatprep.subr.mxu0 %v7281
    %7374 = vmatpush1.msra.mxu0 %v7280
    %7375 = vmatprep.subr.mxu0 %v7285
    %7376 = vmatpush1.msra.mxu0 %v7284
    %7377 = vmatprep.subr.mxu0 %v7289
    %7378 = vmatpush1.msra.mxu0 %v7288
    %7379 = vmatprep.subr.mxu0 0.0
    %7380 = vmatpush1.msra.mxu0 0.0
    %7381 = vmatprep.subr.mxu0 0.0
    %7382 = vmatpush1.msra.mxu0 0.0
    %7383 = vmatprep.subr.mxu0 0.0
    %7384 = vmatpush1.msra.mxu0 0.0
    %7385 = vmatprep.subr.mxu0 0.0
    %7386 = vmatpush1.msra.mxu0 0.0
    %7387 = vmatprep.subr.mxu0 0.0
    %7388 = vmatpush1.msra.mxu0 0.0
    %7389 = vmatprep.subr.mxu0 0.0
    %7390 = vmatpush1.msra.mxu0 0.0
    %7391 = vmatprep.subr.mxu0 0.0
    %7392 = vmatpush1.msra.mxu0 0.0
    %7393 = vmatprep.subr.mxu0 0.0
    %7394 = vmatpush1.msra.mxu0 0.0
    %7395 = vmatprep.subr.mxu0 0.0
    %7396 = vmatpush1.msra.mxu0 0.0
    %7397 = vmatprep.subr.mxu0 0.0
    %7398 = vmatpush1.msra.mxu0 0.0
    %7399 = vmatprep.subr.mxu0 0.0
    %7400 = vmatpush1.msra.mxu0 0.0
    %7401 = vmatprep.subr.mxu0 0.0
    %7402 = vmatpush1.msra.mxu0 0.0
    %7403 = vmatprep.subr.mxu0 0.0
    %7404 = vmatpush1.msra.mxu0 0.0
    %7405 = vmatprep.subr.mxu0 0.0
    %7406 = vmatpush1.msra.mxu0 0.0
    %7407 = vmatprep.subr.mxu0 0.0
    %7408 = vmatpush1.msra.mxu0 0.0
    %7409 = vmatprep.subr.mxu0 0.0
    %7410 = vmatpush1.msra.mxu0 0.0
    %7411 = vmatprep.subr.mxu0 0.0
    %7412 = vmatpush1.msra.mxu0 0.0
    %7413 = vmatprep.subr.mxu0 0.0
    %7414 = vmatpush1.msra.mxu0 0.0
    %7415 = vmatprep.subr.mxu0 0.0
    %7416 = vmatpush1.msra.mxu0 0.0
    %7417 = vmatprep.subr.mxu0 0.0
    %7418 = vmatpush1.msra.mxu0 0.0
    %7419 = vmatprep.subr.mxu0 0.0
    %7420 = vmatpush1.msra.mxu0 0.0
    %7421 = vmatprep.subr.mxu0 0.0
    %7422 = vmatpush1.msra.mxu0 0.0
    %7423 = vmatprep.subr.mxu0 0.0
    %7424 = vmatpush1.msra.mxu0 0.0
    %7425 = vmatprep.subr.mxu0 0.0
    %7426 = vmatpush1.msra.mxu0 0.0
    %7427 = vmatprep.subr.mxu0 0.0
    %7428 = vmatpush1.msra.mxu0 0.0
    %7429 = vmatprep.subr.mxu0 0.0
    %7430 = vmatpush1.msra.mxu0 0.0
    %7431 = vmatprep.mubr.f32.mxu0 0.0
    %7432 = vmatmul.mubr.f32.gmra.mrb[0].mxu0 %v7365
    %v7433 = vpop.f32.mrb[0].mxu0
    %v7434 = vadd.f32 0.0, %v7433
    %v7435 = vpop.f32.mrb[0].mxu0
    %v7436 = vadd.f32 0.0, %v7435
    %7437 = vdwg.mxu0
    %7438 = vmatprep.subr.mxu0 %v7271
    %7439 = vmatpush1.msra.mxu0 %v7270
    %7440 = vmatprep.subr.mxu0 %v7275
    %7441 = vmatpush1.msra.mxu0 %v7274
    %7442 = vmatprep.subr.mxu0 %v7279
    %7443 = vmatpush1.msra.mxu0 %v7278
    %7444 = vmatprep.subr.mxu0 %v7283
    %7445 = vmatpush1.msra.mxu0 %v7282
    %7446 = vmatprep.subr.mxu0 %v7287
    %7447 = vmatpush1.msra.mxu0 %v7286
    %7448 = vmatprep.subr.mxu0 %v7291
    %7449 = vmatpush1.msra.mxu0 %v7290
    %7450 = vmatprep.subr.mxu0 0.0
    %7451 = vmatpush1.msra.mxu0 0.0
    %7452 = vmatprep.subr.mxu0 0.0
    %7453 = vmatpush1.msra.mxu0 0.0
    %7454 = vmatprep.subr.mxu0 0.0
    %7455 = vmatpush1.msra.mxu0 0.0
    %7456 = vmatprep.subr.mxu0 0.0
    %7457 = vmatpush1.msra.mxu0 0.0
    %7458 = vmatprep.subr.mxu0 0.0
    %7459 = vmatpush1.msra.mxu0 0.0
    %7460 = vmatprep.subr.mxu0 0.0
    %7461 = vmatpush1.msra.mxu0 0.0
    %7462 = vmatprep.subr.mxu0 0.0
    %7463 = vmatpush1.msra.mxu0 0.0
    %7464 = vmatprep.subr.mxu0 0.0
    %7465 = vmatpush1.msra.mxu0 0.0
    %7466 = vmatprep.subr.mxu0 0.0
    %7467 = vmatpush1.msra.mxu0 0.0
    %7468 = vmatprep.subr.mxu0 0.0
    %7469 = vmatpush1.msra.mxu0 0.0
    %7470 = vmatprep.subr.mxu0 0.0
    %7471 = vmatpush1.msra.mxu0 0.0
    %7472 = vmatprep.subr.mxu0 0.0
    %7473 = vmatpush1.msra.mxu0 0.0
    %7474 = vmatprep.subr.mxu0 0.0
    %7475 = vmatpush1.msra.mxu0 0.0
    %7476 = vmatprep.subr.mxu0 0.0
    %7477 = vmatpush1.msra.mxu0 0.0
    %7478 = vmatprep.subr.mxu0 0.0
    %7479 = vmatpush1.msra.mxu0 0.0
    %7480 = vmatprep.subr.mxu0 0.0
    %7481 = vmatpush1.msra.mxu0 0.0
    %7482 = vmatprep.subr.mxu0 0.0
    %7483 = vmatpush1.msra.mxu0 0.0
    %7484 = vmatprep.subr.mxu0 0.0
    %7485 = vmatpush1.msra.mxu0 0.0
    %7486 = vmatprep.subr.mxu0 0.0
    %7487 = vmatpush1.msra.mxu0 0.0
    %7488 = vmatprep.subr.mxu0 0.0
    %7489 = vmatpush1.msra.mxu0 0.0
    %7490 = vmatprep.subr.mxu0 0.0
    %7491 = vmatpush1.msra.mxu0 0.0
    %7492 = vmatprep.subr.mxu0 0.0
    %7493 = vmatpush1.msra.mxu0 0.0
    %7494 = vmatprep.subr.mxu0 0.0
    %7495 = vmatpush1.msra.mxu0 0.0
    %7496 = vmatprep.subr.mxu0 0.0
    %7497 = vmatpush1.msra.mxu0 0.0
    %7498 = vmatprep.subr.mxu0 0.0
    %7499 = vmatpush1.msra.mxu0 0.0
    %7500 = vmatprep.subr.mxu0 0.0
    %7501 = vmatpush1.msra.mxu0 0.0
    %7502 = vmatprep.mubr.f32.mxu0 0.0
    %7503 = vmatmul.mubr.f32.gmra.mrb[0].mxu0 %v7365
    %v7504 = vpop.f32.mrb[0].mxu0
    %v7505 = vadd.f32 0.0, %v7504
    %v7506 = vpop.f32.mrb[0].mxu0
    %v7507 = vadd.f32 0.0, %v7506
    %7508 = vdwg.mxu0
    %v7510 = vsel %vm143, %v7265, 0
    %7512 = vmatprep.subr.mxu0 %v7293
    %7513 = vmatpush1.msra.mxu0 %v7292
    %7514 = vmatprep.subr.mxu0 %v7297
    %7515 = vmatpush1.msra.mxu0 %v7296
    %7516 = vmatprep.subr.mxu0 %v7301
    %7517 = vmatpush1.msra.mxu0 %v7300
    %7518 = vmatprep.subr.mxu0 %v7305
    %7519 = vmatpush1.msra.mxu0 %v7304
    %7520 = vmatprep.subr.mxu0 %v7309
    %7521 = vmatpush1.msra.mxu0 %v7308
    %7522 = vmatprep.subr.mxu0 %v7313
    %7523 = vmatpush1.msra.mxu0 %v7312
    %7524 = vmatprep.subr.mxu0 0.0
    %7525 = vmatpush1.msra.mxu0 0.0
    %7526 = vmatprep.subr.mxu0 0.0
    %7527 = vmatpush1.msra.mxu0 0.0
    %7528 = vmatprep.subr.mxu0 0.0
    %7529 = vmatpush1.msra.mxu0 0.0
    %7530 = vmatprep.subr.mxu0 0.0
    %7531 = vmatpush1.msra.mxu0 0.0
    %7532 = vmatprep.subr.mxu0 0.0
    %7533 = vmatpush1.msra.mxu0 0.0
    %7534 = vmatprep.subr.mxu0 0.0
    %7535 = vmatpush1.msra.mxu0 0.0
    %7536 = vmatprep.subr.mxu0 0.0
    %7537 = vmatpush1.msra.mxu0 0.0
    %7538 = vmatprep.subr.mxu0 0.0
    %7539 = vmatpush1.msra.mxu0 0.0
    %7540 = vmatprep.subr.mxu0 0.0
    %7541 = vmatpush1.msra.mxu0 0.0
    %7542 = vmatprep.subr.mxu0 0.0
    %7543 = vmatpush1.msra.mxu0 0.0
    %7544 = vmatprep.subr.mxu0 0.0
    %7545 = vmatpush1.msra.mxu0 0.0
    %7546 = vmatprep.subr.mxu0 0.0
    %7547 = vmatpush1.msra.mxu0 0.0
    %7548 = vmatprep.subr.mxu0 0.0
    %7549 = vmatpush1.msra.mxu0 0.0
    %7550 = vmatprep.subr.mxu0 0.0
    %7551 = vmatpush1.msra.mxu0 0.0
    %7552 = vmatprep.subr.mxu0 0.0
    %7553 = vmatpush1.msra.mxu0 0.0
    %7554 = vmatprep.subr.mxu0 0.0
    %7555 = vmatpush1.msra.mxu0 0.0
    %7556 = vmatprep.subr.mxu0 0.0
    %7557 = vmatpush1.msra.mxu0 0.0
    %7558 = vmatprep.subr.mxu0 0.0
    %7559 = vmatpush1.msra.mxu0 0.0
    %7560 = vmatprep.subr.mxu0 0.0
    %7561 = vmatpush1.msra.mxu0 0.0
    %7562 = vmatprep.subr.mxu0 0.0
    %7563 = vmatpush1.msra.mxu0 0.0
    %7564 = vmatprep.subr.mxu0 0.0
    %7565 = vmatpush1.msra.mxu0 0.0
    %7566 = vmatprep.subr.mxu0 0.0
    %7567 = vmatpush1.msra.mxu0 0.0
    %7568 = vmatprep.subr.mxu0 0.0
    %7569 = vmatpush1.msra.mxu0 0.0
    %7570 = vmatprep.subr.mxu0 0.0
    %7571 = vmatpush1.msra.mxu0 0.0
    %7572 = vmatprep.subr.mxu0 0.0
    %7573 = vmatpush1.msra.mxu0 0.0
    %7574 = vmatprep.subr.mxu0 0.0
    %7575 = vmatpush1.msra.mxu0 0.0
    %7576 = vmatprep.mubr.f32.mxu0 0.0
    %7577 = vmatmul.mubr.f32.gmra.mrb[0].mxu0 %v7510
    %v7578 = vpop.f32.mrb[0].mxu0
    %v7579 = vadd.f32 0.0, %v7578
    %v7580 = vpop.f32.mrb[0].mxu0
    %v7581 = vadd.f32 0.0, %v7580
    %7582 = vdwg.mxu0
    %7583 = vmatprep.subr.mxu0 %v7295
    %7584 = vmatpush1.msra.mxu0 %v7294
    %7585 = vmatprep.subr.mxu0 %v7299
    %7586 = vmatpush1.msra.mxu0 %v7298
    %7587 = vmatprep.subr.mxu0 %v7303
    %7588 = vmatpush1.msra.mxu0 %v7302
    %7589 = vmatprep.subr.mxu0 %v7307
    %7590 = vmatpush1.msra.mxu0 %v7306
    %7591 = vmatprep.subr.mxu0 %v7311
    %7592 = vmatpush1.msra.mxu0 %v7310
    %7593 = vmatprep.subr.mxu0 %v7315
    %7594 = vmatpush1.msra.mxu0 %v7314
    %7595 = vmatprep.subr.mxu0 0.0
    %7596 = vmatpush1.msra.mxu0 0.0
    %7597 = vmatprep.subr.mxu0 0.0
    %7598 = vmatpush1.msra.mxu0 0.0
    %7599 = vmatprep.subr.mxu0 0.0
    %7600 = vmatpush1.msra.mxu0 0.0
    %7601 = vmatprep.subr.mxu0 0.0
    %7602 = vmatpush1.msra.mxu0 0.0
    %7603 = vmatprep.subr.mxu0 0.0
    %7604 = vmatpush1.msra.mxu0 0.0
    %7605 = vmatprep.subr.mxu0 0.0
    %7606 = vmatpush1.msra.mxu0 0.0
    %7607 = vmatprep.subr.mxu0 0.0
    %7608 = vmatpush1.msra.mxu0 0.0
    %7609 = vmatprep.subr.mxu0 0.0
    %7610 = vmatpush1.msra.mxu0 0.0
    %7611 = vmatprep.subr.mxu0 0.0
    %7612 = vmatpush1.msra.mxu0 0.0
    %7613 = vmatprep.subr.mxu0 0.0
    %7614 = vmatpush1.msra.mxu0 0.0
    %7615 = vmatprep.subr.mxu0 0.0
    %7616 = vmatpush1.msra.mxu0 0.0
    %7617 = vmatprep.subr.mxu0 0.0
    %7618 = vmatpush1.msra.mxu0 0.0
    %7619 = vmatprep.subr.mxu0 0.0
    %7620 = vmatpush1.msra.mxu0 0.0
    %7621 = vmatprep.subr.mxu0 0.0
    %7622 = vmatpush1.msra.mxu0 0.0
    %7623 = vmatprep.subr.mxu0 0.0
    %7624 = vmatpush1.msra.mxu0 0.0
    %7625 = vmatprep.subr.mxu0 0.0
    %7626 = vmatpush1.msra.mxu0 0.0
    %7627 = vmatprep.subr.mxu0 0.0
    %7628 = vmatpush1.msra.mxu0 0.0
    %7629 = vmatprep.subr.mxu0 0.0
    %7630 = vmatpush1.msra.mxu0 0.0
    %7631 = vmatprep.subr.mxu0 0.0
    %7632 = vmatpush1.msra.mxu0 0.0
    %7633 = vmatprep.subr.mxu0 0.0
    %7634 = vmatpush1.msra.mxu0 0.0
    %7635 = vmatprep.subr.mxu0 0.0
    %7636 = vmatpush1.msra.mxu0 0.0
    %7637 = vmatprep.subr.mxu0 0.0
    %7638 = vmatpush1.msra.mxu0 0.0
    %7639 = vmatprep.subr.mxu0 0.0
    %7640 = vmatpush1.msra.mxu0 0.0
    %7641 = vmatprep.subr.mxu0 0.0
    %7642 = vmatpush1.msra.mxu0 0.0
    %7643 = vmatprep.subr.mxu0 0.0
    %7644 = vmatpush1.msra.mxu0 0.0
    %7645 = vmatprep.subr.mxu0 0.0
    %7646 = vmatpush1.msra.mxu0 0.0
    %7647 = vmatprep.mubr.f32.mxu0 0.0
    %7648 = vmatmul.mubr.f32.gmra.mrb[0].mxu0 %v7510
    %v7649 = vpop.f32.mrb[0].mxu0
    %v7650 = vadd.f32 0.0, %v7649
    %v7651 = vpop.f32.mrb[0].mxu0
    %v7652 = vadd.f32 0.0, %v7651
    %7653 = vdwg.mxu0
    %v7655 = vsel %vm143, %v7266, 0
    %7657 = vmatprep.subr.mxu0 %v7317
    %7658 = vmatpush1.msra.mxu0 %v7316
    %7659 = vmatprep.subr.mxu0 %v7321
    %7660 = vmatpush1.msra.mxu0 %v7320
    %7661 = vmatprep.subr.mxu0 %v7325
    %7662 = vmatpush1.msra.mxu0 %v7324
    %7663 = vmatprep.subr.mxu0 %v7329
    %7664 = vmatpush1.msra.mxu0 %v7328
    %7665 = vmatprep.subr.mxu0 %v7333
    %7666 = vmatpush1.msra.mxu0 %v7332
    %7667 = vmatprep.subr.mxu0 %v7337
    %7668 = vmatpush1.msra.mxu0 %v7336
    %7669 = vmatprep.subr.mxu0 0.0
    %7670 = vmatpush1.msra.mxu0 0.0
    %7671 = vmatprep.subr.mxu0 0.0
    %7672 = vmatpush1.msra.mxu0 0.0
    %7673 = vmatprep.subr.mxu0 0.0
    %7674 = vmatpush1.msra.mxu0 0.0
    %7675 = vmatprep.subr.mxu0 0.0
    %7676 = vmatpush1.msra.mxu0 0.0
    %7677 = vmatprep.subr.mxu0 0.0
    %7678 = vmatpush1.msra.mxu0 0.0
    %7679 = vmatprep.subr.mxu0 0.0
    %7680 = vmatpush1.msra.mxu0 0.0
    %7681 = vmatprep.subr.mxu0 0.0
    %7682 = vmatpush1.msra.mxu0 0.0
    %7683 = vmatprep.subr.mxu0 0.0
    %7684 = vmatpush1.msra.mxu0 0.0
    %7685 = vmatprep.subr.mxu0 0.0
    %7686 = vmatpush1.msra.mxu0 0.0
    %7687 = vmatprep.subr.mxu0 0.0
    %7688 = vmatpush1.msra.mxu0 0.0
    %7689 = vmatprep.subr.mxu0 0.0
    %7690 = vmatpush1.msra.mxu0 0.0
    %7691 = vmatprep.subr.mxu0 0.0
    %7692 = vmatpush1.msra.mxu0 0.0
    %7693 = vmatprep.subr.mxu0 0.0
    %7694 = vmatpush1.msra.mxu0 0.0
    %7695 = vmatprep.subr.mxu0 0.0
    %7696 = vmatpush1.msra.mxu0 0.0
    %7697 = vmatprep.subr.mxu0 0.0
    %7698 = vmatpush1.msra.mxu0 0.0
    %7699 = vmatprep.subr.mxu0 0.0
    %7700 = vmatpush1.msra.mxu0 0.0
    %7701 = vmatprep.subr.mxu0 0.0
    %7702 = vmatpush1.msra.mxu0 0.0
    %7703 = vmatprep.subr.mxu0 0.0
    %7704 = vmatpush1.msra.mxu0 0.0
    %7705 = vmatprep.subr.mxu0 0.0
    %7706 = vmatpush1.msra.mxu0 0.0
    %7707 = vmatprep.subr.mxu0 0.0
    %7708 = vmatpush1.msra.mxu0 0.0
    %7709 = vmatprep.subr.mxu0 0.0
    %7710 = vmatpush1.msra.mxu0 0.0
    %7711 = vmatprep.subr.mxu0 0.0
    %7712 = vmatpush1.msra.mxu0 0.0
    %7713 = vmatprep.subr.mxu0 0.0
    %7714 = vmatpush1.msra.mxu0 0.0
    %7715 = vmatprep.subr.mxu0 0.0
    %7716 = vmatpush1.msra.mxu0 0.0
    %7717 = vmatprep.subr.mxu0 0.0
    %7718 = vmatpush1.msra.mxu0 0.0
    %7719 = vmatprep.subr.mxu0 0.0
    %7720 = vmatpush1.msra.mxu0 0.0
    %7721 = vmatprep.mubr.f32.mxu0 0.0
    %7722 = vmatmul.mubr.f32.gmra.mrb[0].mxu0 %v7655
    %v7723 = vpop.f32.mrb[0].mxu0
    %v7724 = vadd.f32 0.0, %v7723
    %v7725 = vpop.f32.mrb[0].mxu0
    %v7726 = vadd.f32 0.0, %v7725
    %7727 = vdwg.mxu0
    %7728 = vmatprep.subr.mxu0 %v7319
    %7729 = vmatpush1.msra.mxu0 %v7318
    %7730 = vmatprep.subr.mxu0 %v7323
    %7731 = vmatpush1.msra.mxu0 %v7322
    %7732 = vmatprep.subr.mxu0 %v7327
    %7733 = vmatpush1.msra.mxu0 %v7326
    %7734 = vmatprep.subr.mxu0 %v7331
    %7735 = vmatpush1.msra.mxu0 %v7330
    %7736 = vmatprep.subr.mxu0 %v7335
    %7737 = vmatpush1.msra.mxu0 %v7334
    %7738 = vmatprep.subr.mxu0 %v7339
    %7739 = vmatpush1.msra.mxu0 %v7338
    %7740 = vmatprep.subr.mxu0 0.0
    %7741 = vmatpush1.msra.mxu0 0.0
    %7742 = vmatprep.subr.mxu0 0.0
    %7743 = vmatpush1.msra.mxu0 0.0
    %7744 = vmatprep.subr.mxu0 0.0
    %7745 = vmatpush1.msra.mxu0 0.0
    %7746 = vmatprep.subr.mxu0 0.0
    %7747 = vmatpush1.msra.mxu0 0.0
    %7748 = vmatprep.subr.mxu0 0.0
    %7749 = vmatpush1.msra.mxu0 0.0
    %7750 = vmatprep.subr.mxu0 0.0
    %7751 = vmatpush1.msra.mxu0 0.0
    %7752 = vmatprep.subr.mxu0 0.0
    %7753 = vmatpush1.msra.mxu0 0.0
    %7754 = vmatprep.subr.mxu0 0.0
    %7755 = vmatpush1.msra.mxu0 0.0
    %7756 = vmatprep.subr.mxu0 0.0
    %7757 = vmatpush1.msra.mxu0 0.0
    %7758 = vmatprep.subr.mxu0 0.0
    %7759 = vmatpush1.msra.mxu0 0.0
    %7760 = vmatprep.subr.mxu0 0.0
    %7761 = vmatpush1.msra.mxu0 0.0
    %7762 = vmatprep.subr.mxu0 0.0
    %7763 = vmatpush1.msra.mxu0 0.0
    %7764 = vmatprep.subr.mxu0 0.0
    %7765 = vmatpush1.msra.mxu0 0.0
    %7766 = vmatprep.subr.mxu0 0.0
    %7767 = vmatpush1.msra.mxu0 0.0
    %7768 = vmatprep.subr.mxu0 0.0
    %7769 = vmatpush1.msra.mxu0 0.0
    %7770 = vmatprep.subr.mxu0 0.0
    %7771 = vmatpush1.msra.mxu0 0.0
    %7772 = vmatprep.subr.mxu0 0.0
    %7773 = vmatpush1.msra.mxu0 0.0
    %7774 = vmatprep.subr.mxu0 0.0
    %7775 = vmatpush1.msra.mxu0 0.0
    %7776 = vmatprep.subr.mxu0 0.0
    %7777 = vmatpush1.msra.mxu0 0.0
    %7778 = vmatprep.subr.mxu0 0.0
    %7779 = vmatpush1.msra.mxu0 0.0
    %7780 = vmatprep.subr.mxu0 0.0
    %7781 = vmatpush1.msra.mxu0 0.0
    %7782 = vmatprep.subr.mxu0 0.0
    %7783 = vmatpush1.msra.mxu0 0.0
    %7784 = vmatprep.subr.mxu0 0.0
    %7785 = vmatpush1.msra.mxu0 0.0
    %7786 = vmatprep.subr.mxu0 0.0
    %7787 = vmatpush1.msra.mxu0 0.0
    %7788 = vmatprep.subr.mxu0 0.0
    %7789 = vmatpush1.msra.mxu0 0.0
    %7790 = vmatprep.subr.mxu0 0.0
    %7791 = vmatpush1.msra.mxu0 0.0
    %7792 = vmatprep.mubr.f32.mxu0 0.0
    %7793 = vmatmul.mubr.f32.gmra.mrb[0].mxu0 %v7655
    %v7794 = vpop.f32.mrb[0].mxu0
    %v7795 = vadd.f32 0.0, %v7794
    %v7796 = vpop.f32.mrb[0].mxu0
    %v7797 = vadd.f32 0.0, %v7796
    %7798 = vdwg.mxu0
    %v7800 = vsel %vm143, %v7267, 0
    %7802 = vmatprep.subr.mxu0 %v7341
    %7803 = vmatpush1.msra.mxu0 %v7340
    %7804 = vmatprep.subr.mxu0 %v7345
    %7805 = vmatpush1.msra.mxu0 %v7344
    %7806 = vmatprep.subr.mxu0 %v7349
    %7807 = vmatpush1.msra.mxu0 %v7348
    %7808 = vmatprep.subr.mxu0 %v7353
    %7809 = vmatpush1.msra.mxu0 %v7352
    %7810 = vmatprep.subr.mxu0 %v7357
    %7811 = vmatpush1.msra.mxu0 %v7356
    %7812 = vmatprep.subr.mxu0 %v7361
    %7813 = vmatpush1.msra.mxu0 %v7360
    %7814 = vmatprep.subr.mxu0 0.0
    %7815 = vmatpush1.msra.mxu0 0.0
    %7816 = vmatprep.subr.mxu0 0.0
    %7817 = vmatpush1.msra.mxu0 0.0
    %7818 = vmatprep.subr.mxu0 0.0
    %7819 = vmatpush1.msra.mxu0 0.0
    %7820 = vmatprep.subr.mxu0 0.0
    %7821 = vmatpush1.msra.mxu0 0.0
    %7822 = vmatprep.subr.mxu0 0.0
    %7823 = vmatpush1.msra.mxu0 0.0
    %7824 = vmatprep.subr.mxu0 0.0
    %7825 = vmatpush1.msra.mxu0 0.0
    %7826 = vmatprep.subr.mxu0 0.0
    %7827 = vmatpush1.msra.mxu0 0.0
    %7828 = vmatprep.subr.mxu0 0.0
    %7829 = vmatpush1.msra.mxu0 0.0
    %7830 = vmatprep.subr.mxu0 0.0
    %7831 = vmatpush1.msra.mxu0 0.0
    %7832 = vmatprep.subr.mxu0 0.0
    %7833 = vmatpush1.msra.mxu0 0.0
    %7834 = vmatprep.subr.mxu0 0.0
    %7835 = vmatpush1.msra.mxu0 0.0
    %7836 = vmatprep.subr.mxu0 0.0
    %7837 = vmatpush1.msra.mxu0 0.0
    %7838 = vmatprep.subr.mxu0 0.0
    %7839 = vmatpush1.msra.mxu0 0.0
    %7840 = vmatprep.subr.mxu0 0.0
    %7841 = vmatpush1.msra.mxu0 0.0
    %7842 = vmatprep.subr.mxu0 0.0
    %7843 = vmatpush1.msra.mxu0 0.0
    %7844 = vmatprep.subr.mxu0 0.0
    %7845 = vmatpush1.msra.mxu0 0.0
    %7846 = vmatprep.subr.mxu0 0.0
    %7847 = vmatpush1.msra.mxu0 0.0
    %7848 = vmatprep.subr.mxu0 0.0
    %7849 = vmatpush1.msra.mxu0 0.0
    %7850 = vmatprep.subr.mxu0 0.0
    %7851 = vmatpush1.msra.mxu0 0.0
    %7852 = vmatprep.subr.mxu0 0.0
    %7853 = vmatpush1.msra.mxu0 0.0
    %7854 = vmatprep.subr.mxu0 0.0
    %7855 = vmatpush1.msra.mxu0 0.0
    %7856 = vmatprep.subr.mxu0 0.0
    %7857 = vmatpush1.msra.mxu0 0.0
    %7858 = vmatprep.subr.mxu0 0.0
    %7859 = vmatpush1.msra.mxu0 0.0
    %7860 = vmatprep.subr.mxu0 0.0
    %7861 = vmatpush1.msra.mxu0 0.0
    %7862 = vmatprep.subr.mxu0 0.0
    %7863 = vmatpush1.msra.mxu0 0.0
    %7864 = vmatprep.subr.mxu0 0.0
    %7865 = vmatpush1.msra.mxu0 0.0
    %7866 = vmatprep.mubr.f32.mxu0 0.0
    %7867 = vmatmul.mubr.f32.gmra.mrb[0].mxu0 %v7800
    %v7868 = vpop.f32.mrb[0].mxu0
    %v7869 = vadd.f32 0.0, %v7868
    %v7870 = vpop.f32.mrb[0].mxu0
    %v7871 = vadd.f32 0.0, %v7870
    %7872 = vdwg.mxu0
    %7873 = vmatprep.subr.mxu0 %v7343
    %7874 = vmatpush1.msra.mxu0 %v7342
    %7875 = vmatprep.subr.mxu0 %v7347
    %7876 = vmatpush1.msra.mxu0 %v7346
    %7877 = vmatprep.subr.mxu0 %v7351
    %7878 = vmatpush1.msra.mxu0 %v7350
    %7879 = vmatprep.subr.mxu0 %v7355
    %7880 = vmatpush1.msra.mxu0 %v7354
    %7881 = vmatprep.subr.mxu0 %v7359
    %7882 = vmatpush1.msra.mxu0 %v7358
    %7883 = vmatprep.subr.mxu0 %v7363
    %7884 = vmatpush1.msra.mxu0 %v7362
    %7885 = vmatprep.subr.mxu0 0.0
    %7886 = vmatpush1.msra.mxu0 0.0
    %7887 = vmatprep.subr.mxu0 0.0
    %7888 = vmatpush1.msra.mxu0 0.0
    %7889 = vmatprep.subr.mxu0 0.0
    %7890 = vmatpush1.msra.mxu0 0.0
    %7891 = vmatprep.subr.mxu0 0.0
    %7892 = vmatpush1.msra.mxu0 0.0
    %7893 = vmatprep.subr.mxu0 0.0
    %7894 = vmatpush1.msra.mxu0 0.0
    %7895 = vmatprep.subr.mxu0 0.0
    %7896 = vmatpush1.msra.mxu0 0.0
    %7897 = vmatprep.subr.mxu0 0.0
    %7898 = vmatpush1.msra.mxu0 0.0
    %7899 = vmatprep.subr.mxu0 0.0
    %7900 = vmatpush1.msra.mxu0 0.0
    %7901 = vmatprep.subr.mxu0 0.0
    %7902 = vmatpush1.msra.mxu0 0.0
    %7903 = vmatprep.subr.mxu0 0.0
    %7904 = vmatpush1.msra.mxu0 0.0
    %7905 = vmatprep.subr.mxu0 0.0
    %7906 = vmatpush1.msra.mxu0 0.0
    %7907 = vmatprep.subr.mxu0 0.0
    %7908 = vmatpush1.msra.mxu0 0.0
    %7909 = vmatprep.subr.mxu0 0.0
    %7910 = vmatpush1.msra.mxu0 0.0
    %7911 = vmatprep.subr.mxu0 0.0
    %7912 = vmatpush1.msra.mxu0 0.0
    %7913 = vmatprep.subr.mxu0 0.0
    %7914 = vmatpush1.msra.mxu0 0.0
    %7915 = vmatprep.subr.mxu0 0.0
    %7916 = vmatpush1.msra.mxu0 0.0
    %7917 = vmatprep.subr.mxu0 0.0
    %7918 = vmatpush1.msra.mxu0 0.0
    %7919 = vmatprep.subr.mxu0 0.0
    %7920 = vmatpush1.msra.mxu0 0.0
    %7921 = vmatprep.subr.mxu0 0.0
    %7922 = vmatpush1.msra.mxu0 0.0
    %7923 = vmatprep.subr.mxu0 0.0
    %7924 = vmatpush1.msra.mxu0 0.0
    %7925 = vmatprep.subr.mxu0 0.0
    %7926 = vmatpush1.msra.mxu0 0.0
    %7927 = vmatprep.subr.mxu0 0.0
    %7928 = vmatpush1.msra.mxu0 0.0
    %7929 = vmatprep.subr.mxu0 0.0
    %7930 = vmatpush1.msra.mxu0 0.0
    %7931 = vmatprep.subr.mxu0 0.0
    %7932 = vmatpush1.msra.mxu0 0.0
    %7933 = vmatprep.subr.mxu0 0.0
    %7934 = vmatpush1.msra.mxu0 0.0
    %7935 = vmatprep.subr.mxu0 0.0
    %7936 = vmatpush1.msra.mxu0 0.0
    %7937 = vmatprep.mubr.f32.mxu0 0.0
    %7938 = vmatmul.mubr.f32.gmra.mrb[0].mxu0 %v7800
    %v7939 = vpop.f32.mrb[0].mxu0
    %v7940 = vadd.f32 0.0, %v7939
    %v7941 = vpop.f32.mrb[0].mxu0
    %v7942 = vadd.f32 0.0, %v7941
    %7943 = vdwg.mxu0
    %v7944 = vxor.u32 %v7434, 2147483648
    %v7945 = vxor.u32 %v7436, 2147483648
    %v7946 = vxor.u32 %v7505, 2147483648
    %v7947 = vxor.u32 %v7579, 2147483648
    %v7948 = vxor.u32 %v7581, 2147483648
    %v7949 = vxor.u32 %v7650, 2147483648
    %v7950 = vxor.u32 %v7724, 2147483648
    %v7951 = vxor.u32 %v7726, 2147483648
    %v7952 = vxor.u32 %v7795, 2147483648
    %v7953 = vxor.u32 %v7869, 2147483648
    %v7954 = vxor.u32 %v7871, 2147483648
    %v7955 = vxor.u32 %v7940, 2147483648
    %v7956 = vmul.f32 %v7944, 1.442695
    %v7957 = vpow.pop %v7956
    %v7958 = vmul.f32 %v7945, 1.442695
    %v7959 = vpow.pop %v7958
    %v7960 = vmul.f32 %v7946, 1.442695
    %v7961 = vpow.pop %v7960
    %v7962 = vmul.f32 %v7947, 1.442695
    %v7963 = vpow.pop %v7962
    %v7964 = vmul.f32 %v7948, 1.442695
    %v7965 = vpow.pop %v7964
    %v7966 = vmul.f32 %v7949, 1.442695
    %v7967 = vpow.pop %v7966
    %v7968 = vmul.f32 %v7950, 1.442695
    %v7969 = vpow.pop %v7968
    %v7970 = vmul.f32 %v7951, 1.442695
    %v7971 = vpow.pop %v7970
    %v7972 = vmul.f32 %v7952, 1.442695
    %v7973 = vpow.pop %v7972
    %v7974 = vmul.f32 %v7953, 1.442695
    %v7975 = vpow.pop %v7974
    %v7976 = vmul.f32 %v7954, 1.442695
    %v7977 = vpow.pop %v7976
    %v7978 = vmul.f32 %v7955, 1.442695
    %v7979 = vpow.pop %v7978
    %v7980 = vadd.f32 %v7957, 1.0
    %v7981 = vadd.f32 %v7959, 1.0
    %v7982 = vadd.f32 %v7961, 1.0
    %v7983 = vadd.f32 %v7963, 1.0
    %v7984 = vadd.f32 %v7965, 1.0
    %v7985 = vadd.f32 %v7967, 1.0
    %v7986 = vadd.f32 %v7969, 1.0
    %v7987 = vadd.f32 %v7971, 1.0
    %v7988 = vadd.f32 %v7973, 1.0
    %v7989 = vadd.f32 %v7975, 1.0
    %v7990 = vadd.f32 %v7977, 1.0
    %v7991 = vadd.f32 %v7979, 1.0
    %v7992 = vrcp.pop %v7980
    %v7993 = vmul.f32 1.0, %v7992
    %v7994 = vrcp.pop %v7981
    %v7995 = vmul.f32 1.0, %v7994
    %v7996 = vrcp.pop %v7982
    %v7997 = vmul.f32 1.0, %v7996
    %v7998 = vrcp.pop %v7983
    %v7999 = vmul.f32 1.0, %v7998
    %v8000 = vrcp.pop %v7984
    %v8001 = vmul.f32 1.0, %v8000
    %v8002 = vrcp.pop %v7985
    %v8003 = vmul.f32 1.0, %v8002
    %v8004 = vrcp.pop %v7986
    %v8005 = vmul.f32 1.0, %v8004
    %v8006 = vrcp.pop %v7987
    %v8007 = vmul.f32 1.0, %v8006
    %v8008 = vrcp.pop %v7988
    %v8009 = vmul.f32 1.0, %v8008
    %v8010 = vrcp.pop %v7989
    %v8011 = vmul.f32 1.0, %v8010
    %v8012 = vrcp.pop %v7990
    %v8013 = vmul.f32 1.0, %v8012
    %v8014 = vrcp.pop %v7991
    %v8015 = vmul.f32 1.0, %v8014
    %v8016 = vtanh.pop %v7507
    %v8017 = vtanh.pop %v7652
    %v8018 = vtanh.pop %v7797
    %v8019 = vtanh.pop %v7942
    %v8020 = vmul.f32 %v7995, %v7232
    %v8021 = vmul.f32 %v8001, %v7233
    %v8022 = vmul.f32 %v8007, %v7234
    %v8023 = vmul.f32 %v8013, %v7235
    %v8024 = vmul.f32 %v7993, %v8016
    %v8025 = vmul.f32 %v7999, %v8017
    %v8026 = vmul.f32 %v8005, %v8018
    %v8027 = vmul.f32 %v8011, %v8019
    %v8028 = vadd.f32 %v8020, %v8024
    %v8029 = vadd.f32 %v8021, %v8025
    %v8030 = vadd.f32 %v8022, %v8026
    %v8031 = vadd.f32 %v8023, %v8027
    %v8032 = vtanh.pop %v8028
    %v8033 = vtanh.pop %v8029
    %v8034 = vtanh.pop %v8030
    %v8035 = vtanh.pop %v8031
    %v8036 = vmul.f32 %v7997, %v8032
    %v8037 = vmul.f32 %v8003, %v8033
    %v8038 = vmul.f32 %v8009, %v8034
    %v8039 = vmul.f32 %v8015, %v8035
    %8040 = vst.msk [vmem:[#allocation2] sm:$0x3] %vm832, %v8036
    %8041 = vst.msk [vmem:[#allocation2 + $0x2] sm:$0x3] %vm832, %v8037
    %8042 = vst.msk [vmem:[#allocation2 + $0x4] sm:$0x3] %vm832, %v8038
    %8043 = vst.msk [vmem:[#allocation2 + $0x6] sm:$0x3] %vm832, %v8039
    %8047 = vrot.lane.b32.xlu0 %v8036, 20
    %v8048 = vpop.permute.xlu0 %8047
    %8049 = vrot.lane.b32.xlu0 %v8037, 20
    %v8050 = vpop.permute.xlu0 %8049
    %8051 = vrot.lane.b32.xlu0 %v8038, 20
    %v8052 = vpop.permute.xlu0 %8051
    %8056 = vst.msk [vmem:[%s849] sm:$0x3] %vm41, %v8048
    %8057 = vst.msk [vmem:[%s849 + $0x2] sm:$0x3] %vm41, %v8050
    %8058 = vst.msk [vmem:[%s849 + $0x4] sm:$0x3] %vm41, %v8052
    %8059 = vst.msk [vmem:[#allocation3 + $0xc] sm:$0x3] %vm832, %v8039
    %v8060 = vld [vmem:[#allocation2] sm:$0x3]
    %v8061 = vld [vmem:[#allocation2 + $0x2] sm:$0x3]
    %v8062 = vld [vmem:[#allocation2 + $0x4] sm:$0x3]
    %v8063 = vld [vmem:[#allocation2 + $0x6] sm:$0x3]
    %v8064 = vld [vmem:[#allocation4] sm:$0xff]
    %v8065 = vld [vmem:[#allocation4 + $0x8] sm:$0xff]
    %v8066 = vld [vmem:[#allocation4 + $0x10] sm:$0xff]
    %v8067 = vld [vmem:[#allocation4 + $0x18] sm:$0xff]
    %v8068 = vld [vmem:[#allocation4 + $0x20] sm:$0xff]
    %v8069 = vld [vmem:[#allocation4 + $0x28] sm:$0xff]
    %v8070 = vld [vmem:[#allocation4 + $0x30] sm:$0xff]
    %v8071 = vld [vmem:[#allocation4 + $0x38] sm:$0xff]
    %v8072 = vld [vmem:[#allocation4 + $0x40] sm:$0xff]
    %v8073 = vld [vmem:[#allocation4 + $0x48] sm:$0xff]
    %v8074 = vld [vmem:[#allocation4 + $0x50] sm:$0xff]
    %v8075 = vld [vmem:[#allocation4 + $0x58] sm:$0xff]
    %v8076 = vld [vmem:[#allocation4 + $0x60] sm:$0xff]
    %v8077 = vld [vmem:[#allocation4 + $0x68] sm:$0xff]
    %v8078 = vld [vmem:[#allocation4 + $0x70] sm:$0xff]
    %v8079 = vld [vmem:[#allocation4 + $0x78] sm:$0xff]
    %v8080 = vld [vmem:[#allocation4 + $0x80] sm:$0xff]
    %v8081 = vld [vmem:[#allocation4 + $0x88] sm:$0xff]
    %v8082 = vld [vmem:[#allocation4 + $0x90] sm:$0xff]
    %v8083 = vld [vmem:[#allocation4 + $0x98] sm:$0xff]
    %v8084 = vld [vmem:[#allocation4 + $0xa0] sm:$0xff]
    %v8085 = vld [vmem:[#allocation4 + $0xa8] sm:$0xff]
    %v8086 = vld [vmem:[#allocation4 + $0xb0] sm:$0xff]
    %v8087 = vld [vmem:[#allocation4 + $0xb8] sm:$0xff]
    %v8088 = vld [vmem:[#allocation4 + $0xc0] sm:$0xff]
    %v8089 = vld [vmem:[#allocation4 + $0xc8] sm:$0xff]
    %v8090 = vld [vmem:[#allocation4 + $0xd0] sm:$0xff]
    %v8091 = vld [vmem:[#allocation4 + $0xd8] sm:$0xff]
    %v8092 = vld [vmem:[#allocation4 + $0xe0] sm:$0xff]
    %v8093 = vld [vmem:[#allocation4 + $0xe8] sm:$0xff]
    %v8094 = vld [vmem:[#allocation4 + $0xf0] sm:$0xff]
    %v8095 = vld [vmem:[#allocation4 + $0xf8] sm:$0xff]
    %v8096 = vld [vmem:[#allocation4 + $0x100] sm:$0xff]
    %v8097 = vld [vmem:[#allocation4 + $0x108] sm:$0xff]
    %v8098 = vld [vmem:[#allocation4 + $0x110] sm:$0xff]
    %v8099 = vld [vmem:[#allocation4 + $0x118] sm:$0xff]
    %v8100 = vld [vmem:[#allocation4 + $0x120] sm:$0xff]
    %v8101 = vld [vmem:[#allocation4 + $0x128] sm:$0xff]
    %v8102 = vld [vmem:[#allocation4 + $0x130] sm:$0xff]
    %v8103 = vld [vmem:[#allocation4 + $0x138] sm:$0xff]
    %v8104 = vld [vmem:[#allocation4 + $0x140] sm:$0xff]
    %v8105 = vld [vmem:[#allocation4 + $0x148] sm:$0xff]
    %v8106 = vld [vmem:[#allocation4 + $0x150] sm:$0xff]
    %v8107 = vld [vmem:[#allocation4 + $0x158] sm:$0xff]
    %v8108 = vld [vmem:[#allocation4 + $0x160] sm:$0xff]
    %v8109 = vld [vmem:[#allocation4 + $0x168] sm:$0xff]
    %v8110 = vld [vmem:[#allocation4 + $0x170] sm:$0xff]
    %v8111 = vld [vmem:[#allocation4 + $0x178] sm:$0xff]
    %v8112 = vld [vmem:[#allocation4 + $0x180] sm:$0xff]
    %v8113 = vld [vmem:[#allocation4 + $0x188] sm:$0xff]
    %v8114 = vld [vmem:[#allocation4 + $0x190] sm:$0xff]
    %v8115 = vld [vmem:[#allocation4 + $0x198] sm:$0xff]
    %v8116 = vld [vmem:[#allocation4 + $0x1a0] sm:$0xff]
    %v8117 = vld [vmem:[#allocation4 + $0x1a8] sm:$0xff]
    %v8118 = vld [vmem:[#allocation4 + $0x1b0] sm:$0xff]
    %v8119 = vld [vmem:[#allocation4 + $0x1b8] sm:$0xff]
    %v8120 = vld [vmem:[#allocation4 + $0x1c0] sm:$0xff]
    %v8121 = vld [vmem:[#allocation4 + $0x1c8] sm:$0xff]
    %v8122 = vld [vmem:[#allocation4 + $0x1d0] sm:$0xff]
    %v8123 = vld [vmem:[#allocation4 + $0x1d8] sm:$0xff]
    %v8124 = vld [vmem:[#allocation4 + $0x1e0] sm:$0xff]
    %v8125 = vld [vmem:[#allocation4 + $0x1e8] sm:$0xff]
    %v8126 = vld [vmem:[#allocation4 + $0x1f0] sm:$0xff]
    %v8127 = vld [vmem:[#allocation4 + $0x1f8] sm:$0xff]
    %v8128 = vld [vmem:[#allocation4 + $0x200] sm:$0xff]
    %v8129 = vld [vmem:[#allocation4 + $0x208] sm:$0xff]
    %v8130 = vld [vmem:[#allocation4 + $0x210] sm:$0xff]
    %v8131 = vld [vmem:[#allocation4 + $0x218] sm:$0xff]
    %v8132 = vld [vmem:[#allocation4 + $0x220] sm:$0xff]
    %v8133 = vld [vmem:[#allocation4 + $0x228] sm:$0xff]
    %v8134 = vld [vmem:[#allocation4 + $0x230] sm:$0xff]
    %v8135 = vld [vmem:[#allocation4 + $0x238] sm:$0xff]
    %v8136 = vld [vmem:[#allocation4 + $0x240] sm:$0xff]
    %v8137 = vld [vmem:[#allocation4 + $0x248] sm:$0xff]
    %v8138 = vld [vmem:[#allocation4 + $0x250] sm:$0xff]
    %v8139 = vld [vmem:[#allocation4 + $0x258] sm:$0xff]
    %v8140 = vld [vmem:[#allocation4 + $0x260] sm:$0xff]
    %v8141 = vld [vmem:[#allocation4 + $0x268] sm:$0xff]
    %v8142 = vld [vmem:[#allocation4 + $0x270] sm:$0xff]
    %v8143 = vld [vmem:[#allocation4 + $0x278] sm:$0xff]
    %v8144 = vld [vmem:[#allocation4 + $0x280] sm:$0xff]
    %v8145 = vld [vmem:[#allocation4 + $0x288] sm:$0xff]
    %v8146 = vld [vmem:[#allocation4 + $0x290] sm:$0xff]
    %v8147 = vld [vmem:[#allocation4 + $0x298] sm:$0xff]
    %v8148 = vld [vmem:[#allocation4 + $0x2a0] sm:$0xff]
    %v8149 = vld [vmem:[#allocation4 + $0x2a8] sm:$0xff]
    %v8150 = vld [vmem:[#allocation4 + $0x2b0] sm:$0xff]
    %v8151 = vld [vmem:[#allocation4 + $0x2b8] sm:$0xff]
    %v8152 = vld [vmem:[#allocation4 + $0x2c0] sm:$0xff]
    %v8153 = vld [vmem:[#allocation4 + $0x2c8] sm:$0xff]
    %v8154 = vld [vmem:[#allocation4 + $0x2d0] sm:$0xff]
    %v8155 = vld [vmem:[#allocation4 + $0x2d8] sm:$0xff]
    %v8156 = vld [vmem:[#allocation4 + $0x2e0] sm:$0xff]
    %v8157 = vld [vmem:[#allocation4 + $0x2e8] sm:$0xff]
    %v8158 = vld [vmem:[#allocation4 + $0x2f0] sm:$0xff]
    %v8159 = vld [vmem:[#allocation4 + $0x2f8] sm:$0xff]
    %v8161 = vsel %vm143, %v8060, 0
    %8163 = vmatprep.subr.mxu0 %v8065
    %8164 = vmatpush1.msra.mxu0 %v8064
    %8165 = vmatprep.subr.mxu0 %v8069
    %8166 = vmatpush1.msra.mxu0 %v8068
    %8167 = vmatprep.subr.mxu0 %v8073
    %8168 = vmatpush1.msra.mxu0 %v8072
    %8169 = vmatprep.subr.mxu0 %v8077
    %8170 = vmatpush1.msra.mxu0 %v8076
    %8171 = vmatprep.subr.mxu0 %v8081
    %8172 = vmatpush1.msra.mxu0 %v8080
    %8173 = vmatprep.subr.mxu0 %v8085
    %8174 = vmatpush1.msra.mxu0 %v8084
    %8175 = vmatprep.subr.mxu0 0.0
    %8176 = vmatpush1.msra.mxu0 0.0
    %8177 = vmatprep.subr.mxu0 0.0
    %8178 = vmatpush1.msra.mxu0 0.0
    %8179 = vmatprep.subr.mxu0 0.0
    %8180 = vmatpush1.msra.mxu0 0.0
    %8181 = vmatprep.subr.mxu0 0.0
    %8182 = vmatpush1.msra.mxu0 0.0
    %8183 = vmatprep.subr.mxu0 0.0
    %8184 = vmatpush1.msra.mxu0 0.0
    %8185 = vmatprep.subr.mxu0 0.0
    %8186 = vmatpush1.msra.mxu0 0.0
    %8187 = vmatprep.subr.mxu0 0.0
    %8188 = vmatpush1.msra.mxu0 0.0
    %8189 = vmatprep.subr.mxu0 0.0
    %8190 = vmatpush1.msra.mxu0 0.0
    %8191 = vmatprep.subr.mxu0 0.0
    %8192 = vmatpush1.msra.mxu0 0.0
    %8193 = vmatprep.subr.mxu0 0.0
    %8194 = vmatpush1.msra.mxu0 0.0
    %8195 = vmatprep.subr.mxu0 0.0
    %8196 = vmatpush1.msra.mxu0 0.0
    %8197 = vmatprep.subr.mxu0 0.0
    %8198 = vmatpush1.msra.mxu0 0.0
    %8199 = vmatprep.subr.mxu0 0.0
    %8200 = vmatpush1.msra.mxu0 0.0
    %8201 = vmatprep.subr.mxu0 0.0
    %8202 = vmatpush1.msra.mxu0 0.0
    %8203 = vmatprep.subr.mxu0 0.0
    %8204 = vmatpush1.msra.mxu0 0.0
    %8205 = vmatprep.subr.mxu0 0.0
    %8206 = vmatpush1.msra.mxu0 0.0
    %8207 = vmatprep.subr.mxu0 0.0
    %8208 = vmatpush1.msra.mxu0 0.0
    %8209 = vmatprep.subr.mxu0 0.0
    %8210 = vmatpush1.msra.mxu0 0.0
    %8211 = vmatprep.subr.mxu0 0.0
    %8212 = vmatpush1.msra.mxu0 0.0
    %8213 = vmatprep.subr.mxu0 0.0
    %8214 = vmatpush1.msra.mxu0 0.0
    %8215 = vmatprep.subr.mxu0 0.0
    %8216 = vmatpush1.msra.mxu0 0.0
    %8217 = vmatprep.subr.mxu0 0.0
    %8218 = vmatpush1.msra.mxu0 0.0
    %8219 = vmatprep.subr.mxu0 0.0
    %8220 = vmatpush1.msra.mxu0 0.0
    %8221 = vmatprep.subr.mxu0 0.0
    %8222 = vmatpush1.msra.mxu0 0.0
    %8223 = vmatprep.subr.mxu0 0.0
    %8224 = vmatpush1.msra.mxu0 0.0
    %8225 = vmatprep.subr.mxu0 0.0
    %8226 = vmatpush1.msra.mxu0 0.0
    %8227 = vmatprep.mubr.f32.mxu0 0.0
    %8228 = vmatmul.mubr.f32.gmra.mrb[0].mxu0 %v8161
    %v8229 = vpop.f32.mrb[0].mxu0
    %v8230 = vadd.f32 0.0, %v8229
    %v8231 = vpop.f32.mrb[0].mxu0
    %v8232 = vadd.f32 0.0, %v8231
    %8233 = vdwg.mxu0
    %8234 = vmatprep.subr.mxu0 %v8067
    %8235 = vmatpush1.msra.mxu0 %v8066
    %8236 = vmatprep.subr.mxu0 %v8071
    %8237 = vmatpush1.msra.mxu0 %v8070
    %8238 = vmatprep.subr.mxu0 %v8075
    %8239 = vmatpush1.msra.mxu0 %v8074
    %8240 = vmatprep.subr.mxu0 %v8079
    %8241 = vmatpush1.msra.mxu0 %v8078
    %8242 = vmatprep.subr.mxu0 %v8083
    %8243 = vmatpush1.msra.mxu0 %v8082
    %8244 = vmatprep.subr.mxu0 %v8087
    %8245 = vmatpush1.msra.mxu0 %v8086
    %8246 = vmatprep.subr.mxu0 0.0
    %8247 = vmatpush1.msra.mxu0 0.0
    %8248 = vmatprep.subr.mxu0 0.0
    %8249 = vmatpush1.msra.mxu0 0.0
    %8250 = vmatprep.subr.mxu0 0.0
    %8251 = vmatpush1.msra.mxu0 0.0
    %8252 = vmatprep.subr.mxu0 0.0
    %8253 = vmatpush1.msra.mxu0 0.0
    %8254 = vmatprep.subr.mxu0 0.0
    %8255 = vmatpush1.msra.mxu0 0.0
    %8256 = vmatprep.subr.mxu0 0.0
    %8257 = vmatpush1.msra.mxu0 0.0
    %8258 = vmatprep.subr.mxu0 0.0
    %8259 = vmatpush1.msra.mxu0 0.0
    %8260 = vmatprep.subr.mxu0 0.0
    %8261 = vmatpush1.msra.mxu0 0.0
    %8262 = vmatprep.subr.mxu0 0.0
    %8263 = vmatpush1.msra.mxu0 0.0
    %8264 = vmatprep.subr.mxu0 0.0
    %8265 = vmatpush1.msra.mxu0 0.0
    %8266 = vmatprep.subr.mxu0 0.0
    %8267 = vmatpush1.msra.mxu0 0.0
    %8268 = vmatprep.subr.mxu0 0.0
    %8269 = vmatpush1.msra.mxu0 0.0
    %8270 = vmatprep.subr.mxu0 0.0
    %8271 = vmatpush1.msra.mxu0 0.0
    %8272 = vmatprep.subr.mxu0 0.0
    %8273 = vmatpush1.msra.mxu0 0.0
    %8274 = vmatprep.subr.mxu0 0.0
    %8275 = vmatpush1.msra.mxu0 0.0
    %8276 = vmatprep.subr.mxu0 0.0
    %8277 = vmatpush1.msra.mxu0 0.0
    %8278 = vmatprep.subr.mxu0 0.0
    %8279 = vmatpush1.msra.mxu0 0.0
    %8280 = vmatprep.subr.mxu0 0.0
    %8281 = vmatpush1.msra.mxu0 0.0
    %8282 = vmatprep.subr.mxu0 0.0
    %8283 = vmatpush1.msra.mxu0 0.0
    %8284 = vmatprep.subr.mxu0 0.0
    %8285 = vmatpush1.msra.mxu0 0.0
    %8286 = vmatprep.subr.mxu0 0.0
    %8287 = vmatpush1.msra.mxu0 0.0
    %8288 = vmatprep.subr.mxu0 0.0
    %8289 = vmatpush1.msra.mxu0 0.0
    %8290 = vmatprep.subr.mxu0 0.0
    %8291 = vmatpush1.msra.mxu0 0.0
    %8292 = vmatprep.subr.mxu0 0.0
    %8293 = vmatpush1.msra.mxu0 0.0
    %8294 = vmatprep.subr.mxu0 0.0
    %8295 = vmatpush1.msra.mxu0 0.0
    %8296 = vmatprep.subr.mxu0 0.0
    %8297 = vmatpush1.msra.mxu0 0.0
    %8298 = vmatprep.mubr.f32.mxu0 0.0
    %8299 = vmatmul.mubr.f32.gmra.mrb[0].mxu0 %v8161
    %v8300 = vpop.f32.mrb[0].mxu0
    %v8301 = vadd.f32 0.0, %v8300
    %v8302 = vpop.f32.mrb[0].mxu0
    %v8303 = vadd.f32 0.0, %v8302
    %8304 = vdwg.mxu0
    %v8306 = vsel %vm143, %v8061, 0
    %8308 = vmatprep.subr.mxu0 %v8089
    %8309 = vmatpush1.msra.mxu0 %v8088
    %8310 = vmatprep.subr.mxu0 %v8093
    %8311 = vmatpush1.msra.mxu0 %v8092
    %8312 = vmatprep.subr.mxu0 %v8097
    %8313 = vmatpush1.msra.mxu0 %v8096
    %8314 = vmatprep.subr.mxu0 %v8101
    %8315 = vmatpush1.msra.mxu0 %v8100
    %8316 = vmatprep.subr.mxu0 %v8105
    %8317 = vmatpush1.msra.mxu0 %v8104
    %8318 = vmatprep.subr.mxu0 %v8109
    %8319 = vmatpush1.msra.mxu0 %v8108
    %8320 = vmatprep.subr.mxu0 0.0
    %8321 = vmatpush1.msra.mxu0 0.0
    %8322 = vmatprep.subr.mxu0 0.0
    %8323 = vmatpush1.msra.mxu0 0.0
    %8324 = vmatprep.subr.mxu0 0.0
    %8325 = vmatpush1.msra.mxu0 0.0
    %8326 = vmatprep.subr.mxu0 0.0
    %8327 = vmatpush1.msra.mxu0 0.0
    %8328 = vmatprep.subr.mxu0 0.0
    %8329 = vmatpush1.msra.mxu0 0.0
    %8330 = vmatprep.subr.mxu0 0.0
    %8331 = vmatpush1.msra.mxu0 0.0
    %8332 = vmatprep.subr.mxu0 0.0
    %8333 = vmatpush1.msra.mxu0 0.0
    %8334 = vmatprep.subr.mxu0 0.0
    %8335 = vmatpush1.msra.mxu0 0.0
    %8336 = vmatprep.subr.mxu0 0.0
    %8337 = vmatpush1.msra.mxu0 0.0
    %8338 = vmatprep.subr.mxu0 0.0
    %8339 = vmatpush1.msra.mxu0 0.0
    %8340 = vmatprep.subr.mxu0 0.0
    %8341 = vmatpush1.msra.mxu0 0.0
    %8342 = vmatprep.subr.mxu0 0.0
    %8343 = vmatpush1.msra.mxu0 0.0
    %8344 = vmatprep.subr.mxu0 0.0
    %8345 = vmatpush1.msra.mxu0 0.0
    %8346 = vmatprep.subr.mxu0 0.0
    %8347 = vmatpush1.msra.mxu0 0.0
    %8348 = vmatprep.subr.mxu0 0.0
    %8349 = vmatpush1.msra.mxu0 0.0
    %8350 = vmatprep.subr.mxu0 0.0
    %8351 = vmatpush1.msra.mxu0 0.0
    %8352 = vmatprep.subr.mxu0 0.0
    %8353 = vmatpush1.msra.mxu0 0.0
    %8354 = vmatprep.subr.mxu0 0.0
    %8355 = vmatpush1.msra.mxu0 0.0
    %8356 = vmatprep.subr.mxu0 0.0
    %8357 = vmatpush1.msra.mxu0 0.0
    %8358 = vmatprep.subr.mxu0 0.0
    %8359 = vmatpush1.msra.mxu0 0.0
    %8360 = vmatprep.subr.mxu0 0.0
    %8361 = vmatpush1.msra.mxu0 0.0
    %8362 = vmatprep.subr.mxu0 0.0
    %8363 = vmatpush1.msra.mxu0 0.0
    %8364 = vmatprep.subr.mxu0 0.0
    %8365 = vmatpush1.msra.mxu0 0.0
    %8366 = vmatprep.subr.mxu0 0.0
    %8367 = vmatpush1.msra.mxu0 0.0
    %8368 = vmatprep.subr.mxu0 0.0
    %8369 = vmatpush1.msra.mxu0 0.0
    %8370 = vmatprep.subr.mxu0 0.0
    %8371 = vmatpush1.msra.mxu0 0.0
    %8372 = vmatprep.mubr.f32.mxu0 0.0
    %8373 = vmatmul.mubr.f32.gmra.mrb[0].mxu0 %v8306
    %v8374 = vpop.f32.mrb[0].mxu0
    %v8375 = vadd.f32 0.0, %v8374
    %v8376 = vpop.f32.mrb[0].mxu0
    %v8377 = vadd.f32 0.0, %v8376
    %8378 = vdwg.mxu0
    %8379 = vmatprep.subr.mxu0 %v8091
    %8380 = vmatpush1.msra.mxu0 %v8090
    %8381 = vmatprep.subr.mxu0 %v8095
    %8382 = vmatpush1.msra.mxu0 %v8094
    %8383 = vmatprep.subr.mxu0 %v8099
    %8384 = vmatpush1.msra.mxu0 %v8098
    %8385 = vmatprep.subr.mxu0 %v8103
    %8386 = vmatpush1.msra.mxu0 %v8102
    %8387 = vmatprep.subr.mxu0 %v8107
    %8388 = vmatpush1.msra.mxu0 %v8106
    %8389 = vmatprep.subr.mxu0 %v8111
    %8390 = vmatpush1.msra.mxu0 %v8110
    %8391 = vmatprep.subr.mxu0 0.0
    %8392 = vmatpush1.msra.mxu0 0.0
    %8393 = vmatprep.subr.mxu0 0.0
    %8394 = vmatpush1.msra.mxu0 0.0
    %8395 = vmatprep.subr.mxu0 0.0
    %8396 = vmatpush1.msra.mxu0 0.0
    %8397 = vmatprep.subr.mxu0 0.0
    %8398 = vmatpush1.msra.mxu0 0.0
    %8399 = vmatprep.subr.mxu0 0.0
    %8400 = vmatpush1.msra.mxu0 0.0
    %8401 = vmatprep.subr.mxu0 0.0
    %8402 = vmatpush1.msra.mxu0 0.0
    %8403 = vmatprep.subr.mxu0 0.0
    %8404 = vmatpush1.msra.mxu0 0.0
    %8405 = vmatprep.subr.mxu0 0.0
    %8406 = vmatpush1.msra.mxu0 0.0
    %8407 = vmatprep.subr.mxu0 0.0
    %8408 = vmatpush1.msra.mxu0 0.0
    %8409 = vmatprep.subr.mxu0 0.0
    %8410 = vmatpush1.msra.mxu0 0.0
    %8411 = vmatprep.subr.mxu0 0.0
    %8412 = vmatpush1.msra.mxu0 0.0
    %8413 = vmatprep.subr.mxu0 0.0
    %8414 = vmatpush1.msra.mxu0 0.0
    %8415 = vmatprep.subr.mxu0 0.0
    %8416 = vmatpush1.msra.mxu0 0.0
    %8417 = vmatprep.subr.mxu0 0.0
    %8418 = vmatpush1.msra.mxu0 0.0
    %8419 = vmatprep.subr.mxu0 0.0
    %8420 = vmatpush1.msra.mxu0 0.0
    %8421 = vmatprep.subr.mxu0 0.0
    %8422 = vmatpush1.msra.mxu0 0.0
    %8423 = vmatprep.subr.mxu0 0.0
    %8424 = vmatpush1.msra.mxu0 0.0
    %8425 = vmatprep.subr.mxu0 0.0
    %8426 = vmatpush1.msra.mxu0 0.0
    %8427 = vmatprep.subr.mxu0 0.0
    %8428 = vmatpush1.msra.mxu0 0.0
    %8429 = vmatprep.subr.mxu0 0.0
    %8430 = vmatpush1.msra.mxu0 0.0
    %8431 = vmatprep.subr.mxu0 0.0
    %8432 = vmatpush1.msra.mxu0 0.0
    %8433 = vmatprep.subr.mxu0 0.0
    %8434 = vmatpush1.msra.mxu0 0.0
    %8435 = vmatprep.subr.mxu0 0.0
    %8436 = vmatpush1.msra.mxu0 0.0
    %8437 = vmatprep.subr.mxu0 0.0
    %8438 = vmatpush1.msra.mxu0 0.0
    %8439 = vmatprep.subr.mxu0 0.0
    %8440 = vmatpush1.msra.mxu0 0.0
    %8441 = vmatprep.subr.mxu0 0.0
    %8442 = vmatpush1.msra.mxu0 0.0
    %8443 = vmatprep.mubr.f32.mxu0 0.0
    %8444 = vmatmul.mubr.f32.gmra.mrb[0].mxu0 %v8306
    %v8445 = vpop.f32.mrb[0].mxu0
    %v8446 = vadd.f32 0.0, %v8445
    %v8447 = vpop.f32.mrb[0].mxu0
    %v8448 = vadd.f32 0.0, %v8447
    %8449 = vdwg.mxu0
    %v8451 = vsel %vm143, %v8062, 0
    %8453 = vmatprep.subr.mxu0 %v8113
    %8454 = vmatpush1.msra.mxu0 %v8112
    %8455 = vmatprep.subr.mxu0 %v8117
    %8456 = vmatpush1.msra.mxu0 %v8116
    %8457 = vmatprep.subr.mxu0 %v8121
    %8458 = vmatpush1.msra.mxu0 %v8120
    %8459 = vmatprep.subr.mxu0 %v8125
    %8460 = vmatpush1.msra.mxu0 %v8124
    %8461 = vmatprep.subr.mxu0 %v8129
    %8462 = vmatpush1.msra.mxu0 %v8128
    %8463 = vmatprep.subr.mxu0 %v8133
    %8464 = vmatpush1.msra.mxu0 %v8132
    %8465 = vmatprep.subr.mxu0 0.0
    %8466 = vmatpush1.msra.mxu0 0.0
    %8467 = vmatprep.subr.mxu0 0.0
    %8468 = vmatpush1.msra.mxu0 0.0
    %8469 = vmatprep.subr.mxu0 0.0
    %8470 = vmatpush1.msra.mxu0 0.0
    %8471 = vmatprep.subr.mxu0 0.0
    %8472 = vmatpush1.msra.mxu0 0.0
    %8473 = vmatprep.subr.mxu0 0.0
    %8474 = vmatpush1.msra.mxu0 0.0
    %8475 = vmatprep.subr.mxu0 0.0
    %8476 = vmatpush1.msra.mxu0 0.0
    %8477 = vmatprep.subr.mxu0 0.0
    %8478 = vmatpush1.msra.mxu0 0.0
    %8479 = vmatprep.subr.mxu0 0.0
    %8480 = vmatpush1.msra.mxu0 0.0
    %8481 = vmatprep.subr.mxu0 0.0
    %8482 = vmatpush1.msra.mxu0 0.0
    %8483 = vmatprep.subr.mxu0 0.0
    %8484 = vmatpush1.msra.mxu0 0.0
    %8485 = vmatprep.subr.mxu0 0.0
    %8486 = vmatpush1.msra.mxu0 0.0
    %8487 = vmatprep.subr.mxu0 0.0
    %8488 = vmatpush1.msra.mxu0 0.0
    %8489 = vmatprep.subr.mxu0 0.0
    %8490 = vmatpush1.msra.mxu0 0.0
    %8491 = vmatprep.subr.mxu0 0.0
    %8492 = vmatpush1.msra.mxu0 0.0
    %8493 = vmatprep.subr.mxu0 0.0
    %8494 = vmatpush1.msra.mxu0 0.0
    %8495 = vmatprep.subr.mxu0 0.0
    %8496 = vmatpush1.msra.mxu0 0.0
    %8497 = vmatprep.subr.mxu0 0.0
    %8498 = vmatpush1.msra.mxu0 0.0
    %8499 = vmatprep.subr.mxu0 0.0
    %8500 = vmatpush1.msra.mxu0 0.0
    %8501 = vmatprep.subr.mxu0 0.0
    %8502 = vmatpush1.msra.mxu0 0.0
    %8503 = vmatprep.subr.mxu0 0.0
    %8504 = vmatpush1.msra.mxu0 0.0
    %8505 = vmatprep.subr.mxu0 0.0
    %8506 = vmatpush1.msra.mxu0 0.0
    %8507 = vmatprep.subr.mxu0 0.0
    %8508 = vmatpush1.msra.mxu0 0.0
    %8509 = vmatprep.subr.mxu0 0.0
    %8510 = vmatpush1.msra.mxu0 0.0
    %8511 = vmatprep.subr.mxu0 0.0
    %8512 = vmatpush1.msra.mxu0 0.0
    %8513 = vmatprep.subr.mxu0 0.0
    %8514 = vmatpush1.msra.mxu0 0.0
    %8515 = vmatprep.subr.mxu0 0.0
    %8516 = vmatpush1.msra.mxu0 0.0
    %8517 = vmatprep.mubr.f32.mxu0 0.0
    %8518 = vmatmul.mubr.f32.gmra.mrb[0].mxu0 %v8451
    %v8519 = vpop.f32.mrb[0].mxu0
    %v8520 = vadd.f32 0.0, %v8519
    %v8521 = vpop.f32.mrb[0].mxu0
    %v8522 = vadd.f32 0.0, %v8521
    %8523 = vdwg.mxu0
    %8524 = vmatprep.subr.mxu0 %v8115
    %8525 = vmatpush1.msra.mxu0 %v8114
    %8526 = vmatprep.subr.mxu0 %v8119
    %8527 = vmatpush1.msra.mxu0 %v8118
    %8528 = vmatprep.subr.mxu0 %v8123
    %8529 = vmatpush1.msra.mxu0 %v8122
    %8530 = vmatprep.subr.mxu0 %v8127
    %8531 = vmatpush1.msra.mxu0 %v8126
    %8532 = vmatprep.subr.mxu0 %v8131
    %8533 = vmatpush1.msra.mxu0 %v8130
    %8534 = vmatprep.subr.mxu0 %v8135
    %8535 = vmatpush1.msra.mxu0 %v8134
    %8536 = vmatprep.subr.mxu0 0.0
    %8537 = vmatpush1.msra.mxu0 0.0
    %8538 = vmatprep.subr.mxu0 0.0
    %8539 = vmatpush1.msra.mxu0 0.0
    %8540 = vmatprep.subr.mxu0 0.0
    %8541 = vmatpush1.msra.mxu0 0.0
    %8542 = vmatprep.subr.mxu0 0.0
    %8543 = vmatpush1.msra.mxu0 0.0
    %8544 = vmatprep.subr.mxu0 0.0
    %8545 = vmatpush1.msra.mxu0 0.0
    %8546 = vmatprep.subr.mxu0 0.0
    %8547 = vmatpush1.msra.mxu0 0.0
    %8548 = vmatprep.subr.mxu0 0.0
    %8549 = vmatpush1.msra.mxu0 0.0
    %8550 = vmatprep.subr.mxu0 0.0
    %8551 = vmatpush1.msra.mxu0 0.0
    %8552 = vmatprep.subr.mxu0 0.0
    %8553 = vmatpush1.msra.mxu0 0.0
    %8554 = vmatprep.subr.mxu0 0.0
    %8555 = vmatpush1.msra.mxu0 0.0
    %8556 = vmatprep.subr.mxu0 0.0
    %8557 = vmatpush1.msra.mxu0 0.0
    %8558 = vmatprep.subr.mxu0 0.0
    %8559 = vmatpush1.msra.mxu0 0.0
    %8560 = vmatprep.subr.mxu0 0.0
    %8561 = vmatpush1.msra.mxu0 0.0
    %8562 = vmatprep.subr.mxu0 0.0
    %8563 = vmatpush1.msra.mxu0 0.0
    %8564 = vmatprep.subr.mxu0 0.0
    %8565 = vmatpush1.msra.mxu0 0.0
    %8566 = vmatprep.subr.mxu0 0.0
    %8567 = vmatpush1.msra.mxu0 0.0
    %8568 = vmatprep.subr.mxu0 0.0
    %8569 = vmatpush1.msra.mxu0 0.0
    %8570 = vmatprep.subr.mxu0 0.0
    %8571 = vmatpush1.msra.mxu0 0.0
    %8572 = vmatprep.subr.mxu0 0.0
    %8573 = vmatpush1.msra.mxu0 0.0
    %8574 = vmatprep.subr.mxu0 0.0
    %8575 = vmatpush1.msra.mxu0 0.0
    %8576 = vmatprep.subr.mxu0 0.0
    %8577 = vmatpush1.msra.mxu0 0.0
    %8578 = vmatprep.subr.mxu0 0.0
    %8579 = vmatpush1.msra.mxu0 0.0
    %8580 = vmatprep.subr.mxu0 0.0
    %8581 = vmatpush1.msra.mxu0 0.0
    %8582 = vmatprep.subr.mxu0 0.0
    %8583 = vmatpush1.msra.mxu0 0.0
    %8584 = vmatprep.subr.mxu0 0.0
    %8585 = vmatpush1.msra.mxu0 0.0
    %8586 = vmatprep.subr.mxu0 0.0
    %8587 = vmatpush1.msra.mxu0 0.0
    %8588 = vmatprep.mubr.f32.mxu0 0.0
    %8589 = vmatmul.mubr.f32.gmra.mrb[0].mxu0 %v8451
    %v8590 = vpop.f32.mrb[0].mxu0
    %v8591 = vadd.f32 0.0, %v8590
    %v8592 = vpop.f32.mrb[0].mxu0
    %v8593 = vadd.f32 0.0, %v8592
    %8594 = vdwg.mxu0
    %v8596 = vsel %vm143, %v8063, 0
    %8598 = vmatprep.subr.mxu0 %v8137
    %8599 = vmatpush1.msra.mxu0 %v8136
    %8600 = vmatprep.subr.mxu0 %v8141
    %8601 = vmatpush1.msra.mxu0 %v8140
    %8602 = vmatprep.subr.mxu0 %v8145
    %8603 = vmatpush1.msra.mxu0 %v8144
    %8604 = vmatprep.subr.mxu0 %v8149
    %8605 = vmatpush1.msra.mxu0 %v8148
    %8606 = vmatprep.subr.mxu0 %v8153
    %8607 = vmatpush1.msra.mxu0 %v8152
    %8608 = vmatprep.subr.mxu0 %v8157
    %8609 = vmatpush1.msra.mxu0 %v8156
    %8610 = vmatprep.subr.mxu0 0.0
    %8611 = vmatpush1.msra.mxu0 0.0
    %8612 = vmatprep.subr.mxu0 0.0
    %8613 = vmatpush1.msra.mxu0 0.0
    %8614 = vmatprep.subr.mxu0 0.0
    %8615 = vmatpush1.msra.mxu0 0.0
    %8616 = vmatprep.subr.mxu0 0.0
    %8617 = vmatpush1.msra.mxu0 0.0
    %8618 = vmatprep.subr.mxu0 0.0
    %8619 = vmatpush1.msra.mxu0 0.0
    %8620 = vmatprep.subr.mxu0 0.0
    %8621 = vmatpush1.msra.mxu0 0.0
    %8622 = vmatprep.subr.mxu0 0.0
    %8623 = vmatpush1.msra.mxu0 0.0
    %8624 = vmatprep.subr.mxu0 0.0
    %8625 = vmatpush1.msra.mxu0 0.0
    %8626 = vmatprep.subr.mxu0 0.0
    %8627 = vmatpush1.msra.mxu0 0.0
    %8628 = vmatprep.subr.mxu0 0.0
    %8629 = vmatpush1.msra.mxu0 0.0
    %8630 = vmatprep.subr.mxu0 0.0
    %8631 = vmatpush1.msra.mxu0 0.0
    %8632 = vmatprep.subr.mxu0 0.0
    %8633 = vmatpush1.msra.mxu0 0.0
    %8634 = vmatprep.subr.mxu0 0.0
    %8635 = vmatpush1.msra.mxu0 0.0
    %8636 = vmatprep.subr.mxu0 0.0
    %8637 = vmatpush1.msra.mxu0 0.0
    %8638 = vmatprep.subr.mxu0 0.0
    %8639 = vmatpush1.msra.mxu0 0.0
    %8640 = vmatprep.subr.mxu0 0.0
    %8641 = vmatpush1.msra.mxu0 0.0
    %8642 = vmatprep.subr.mxu0 0.0
    %8643 = vmatpush1.msra.mxu0 0.0
    %8644 = vmatprep.subr.mxu0 0.0
    %8645 = vmatpush1.msra.mxu0 0.0
    %8646 = vmatprep.subr.mxu0 0.0
    %8647 = vmatpush1.msra.mxu0 0.0
    %8648 = vmatprep.subr.mxu0 0.0
    %8649 = vmatpush1.msra.mxu0 0.0
    %8650 = vmatprep.subr.mxu0 0.0
    %8651 = vmatpush1.msra.mxu0 0.0
    %8652 = vmatprep.subr.mxu0 0.0
    %8653 = vmatpush1.msra.mxu0 0.0
    %8654 = vmatprep.subr.mxu0 0.0
    %8655 = vmatpush1.msra.mxu0 0.0
    %8656 = vmatprep.subr.mxu0 0.0
    %8657 = vmatpush1.msra.mxu0 0.0
    %8658 = vmatprep.subr.mxu0 0.0
    %8659 = vmatpush1.msra.mxu0 0.0
    %8660 = vmatprep.subr.mxu0 0.0
    %8661 = vmatpush1.msra.mxu0 0.0
    %8662 = vmatprep.mubr.f32.mxu0 0.0
    %8663 = vmatmul.mubr.f32.gmra.mrb[0].mxu0 %v8596
    %v8664 = vpop.f32.mrb[0].mxu0
    %v8665 = vadd.f32 0.0, %v8664
    %v8666 = vpop.f32.mrb[0].mxu0
    %v8667 = vadd.f32 0.0, %v8666
    %8668 = vdwg.mxu0
    %8669 = vmatprep.subr.mxu0 %v8139
    %8670 = vmatpush1.msra.mxu0 %v8138
    %8671 = vmatprep.subr.mxu0 %v8143
    %8672 = vmatpush1.msra.mxu0 %v8142
    %8673 = vmatprep.subr.mxu0 %v8147
    %8674 = vmatpush1.msra.mxu0 %v8146
    %8675 = vmatprep.subr.mxu0 %v8151
    %8676 = vmatpush1.msra.mxu0 %v8150
    %8677 = vmatprep.subr.mxu0 %v8155
    %8678 = vmatpush1.msra.mxu0 %v8154
    %8679 = vmatprep.subr.mxu0 %v8159
    %8680 = vmatpush1.msra.mxu0 %v8158
    %8681 = vmatprep.subr.mxu0 0.0
    %8682 = vmatpush1.msra.mxu0 0.0
    %8683 = vmatprep.subr.mxu0 0.0
    %8684 = vmatpush1.msra.mxu0 0.0
    %8685 = vmatprep.subr.mxu0 0.0
    %8686 = vmatpush1.msra.mxu0 0.0
    %8687 = vmatprep.subr.mxu0 0.0
    %8688 = vmatpush1.msra.mxu0 0.0
    %8689 = vmatprep.subr.mxu0 0.0
    %8690 = vmatpush1.msra.mxu0 0.0
    %8691 = vmatprep.subr.mxu0 0.0
    %8692 = vmatpush1.msra.mxu0 0.0
    %8693 = vmatprep.subr.mxu0 0.0
    %8694 = vmatpush1.msra.mxu0 0.0
    %8695 = vmatprep.subr.mxu0 0.0
    %8696 = vmatpush1.msra.mxu0 0.0
    %8697 = vmatprep.subr.mxu0 0.0
    %8698 = vmatpush1.msra.mxu0 0.0
    %8699 = vmatprep.subr.mxu0 0.0
    %8700 = vmatpush1.msra.mxu0 0.0
    %8701 = vmatprep.subr.mxu0 0.0
    %8702 = vmatpush1.msra.mxu0 0.0
    %8703 = vmatprep.subr.mxu0 0.0
    %8704 = vmatpush1.msra.mxu0 0.0
    %8705 = vmatprep.subr.mxu0 0.0
    %8706 = vmatpush1.msra.mxu0 0.0
    %8707 = vmatprep.subr.mxu0 0.0
    %8708 = vmatpush1.msra.mxu0 0.0
    %8709 = vmatprep.subr.mxu0 0.0
    %8710 = vmatpush1.msra.mxu0 0.0
    %8711 = vmatprep.subr.mxu0 0.0
    %8712 = vmatpush1.msra.mxu0 0.0
    %8713 = vmatprep.subr.mxu0 0.0
    %8714 = vmatpush1.msra.mxu0 0.0
    %8715 = vmatprep.subr.mxu0 0.0
    %8716 = vmatpush1.msra.mxu0 0.0
    %8717 = vmatprep.subr.mxu0 0.0
    %8718 = vmatpush1.msra.mxu0 0.0
    %8719 = vmatprep.subr.mxu0 0.0
    %8720 = vmatpush1.msra.mxu0 0.0
    %8721 = vmatprep.subr.mxu0 0.0
    %8722 = vmatpush1.msra.mxu0 0.0
    %8723 = vmatprep.subr.mxu0 0.0
    %8724 = vmatpush1.msra.mxu0 0.0
    %8725 = vmatprep.subr.mxu0 0.0
    %8726 = vmatpush1.msra.mxu0 0.0
    %8727 = vmatprep.subr.mxu0 0.0
    %8728 = vmatpush1.msra.mxu0 0.0
    %8729 = vmatprep.subr.mxu0 0.0
    %8730 = vmatpush1.msra.mxu0 0.0
    %8731 = vmatprep.subr.mxu0 0.0
    %8732 = vmatpush1.msra.mxu0 0.0
    %8733 = vmatprep.mubr.f32.mxu0 0.0
    %8734 = vmatmul.mubr.f32.gmra.mrb[0].mxu0 %v8596
    %v8735 = vpop.f32.mrb[0].mxu0
    %v8736 = vadd.f32 0.0, %v8735
    %v8737 = vpop.f32.mrb[0].mxu0
    %v8738 = vadd.f32 0.0, %v8737
    %8739 = vdwg.mxu0
    %v8740 = vxor.u32 %v8230, 2147483648
    %v8741 = vxor.u32 %v8232, 2147483648
    %v8742 = vxor.u32 %v8301, 2147483648
    %v8743 = vxor.u32 %v8375, 2147483648
    %v8744 = vxor.u32 %v8377, 2147483648
    %v8745 = vxor.u32 %v8446, 2147483648
    %v8746 = vxor.u32 %v8520, 2147483648
    %v8747 = vxor.u32 %v8522, 2147483648
    %v8748 = vxor.u32 %v8591, 2147483648
    %v8749 = vxor.u32 %v8665, 2147483648
    %v8750 = vxor.u32 %v8667, 2147483648
    %v8751 = vxor.u32 %v8736, 2147483648
    %v8752 = vmul.f32 %v8740, 1.442695
    %v8753 = vpow.pop %v8752
    %v8754 = vmul.f32 %v8741, 1.442695
    %v8755 = vpow.pop %v8754
    %v8756 = vmul.f32 %v8742, 1.442695
    %v8757 = vpow.pop %v8756
    %v8758 = vmul.f32 %v8743, 1.442695
    %v8759 = vpow.pop %v8758
    %v8760 = vmul.f32 %v8744, 1.442695
    %v8761 = vpow.pop %v8760
    %v8762 = vmul.f32 %v8745, 1.442695
    %v8763 = vpow.pop %v8762
    %v8764 = vmul.f32 %v8746, 1.442695
    %v8765 = vpow.pop %v8764
    %v8766 = vmul.f32 %v8747, 1.442695
    %v8767 = vpow.pop %v8766
    %v8768 = vmul.f32 %v8748, 1.442695
    %v8769 = vpow.pop %v8768
    %v8770 = vmul.f32 %v8749, 1.442695
    %v8771 = vpow.pop %v8770
    %v8772 = vmul.f32 %v8750, 1.442695
    %v8773 = vpow.pop %v8772
    %v8774 = vmul.f32 %v8751, 1.442695
    %v8775 = vpow.pop %v8774
    %v8776 = vadd.f32 %v8753, 1.0
    %v8777 = vadd.f32 %v8755, 1.0
    %v8778 = vadd.f32 %v8757, 1.0
    %v8779 = vadd.f32 %v8759, 1.0
    %v8780 = vadd.f32 %v8761, 1.0
    %v8781 = vadd.f32 %v8763, 1.0
    %v8782 = vadd.f32 %v8765, 1.0
    %v8783 = vadd.f32 %v8767, 1.0
    %v8784 = vadd.f32 %v8769, 1.0
    %v8785 = vadd.f32 %v8771, 1.0
    %v8786 = vadd.f32 %v8773, 1.0
    %v8787 = vadd.f32 %v8775, 1.0
    %v8788 = vrcp.pop %v8776
    %v8789 = vmul.f32 1.0, %v8788
    %v8790 = vrcp.pop %v8777
    %v8791 = vmul.f32 1.0, %v8790
    %v8792 = vrcp.pop %v8778
    %v8793 = vmul.f32 1.0, %v8792
    %v8794 = vrcp.pop %v8779
    %v8795 = vmul.f32 1.0, %v8794
    %v8796 = vrcp.pop %v8780
    %v8797 = vmul.f32 1.0, %v8796
    %v8798 = vrcp.pop %v8781
    %v8799 = vmul.f32 1.0, %v8798
    %v8800 = vrcp.pop %v8782
    %v8801 = vmul.f32 1.0, %v8800
    %v8802 = vrcp.pop %v8783
    %v8803 = vmul.f32 1.0, %v8802
    %v8804 = vrcp.pop %v8784
    %v8805 = vmul.f32 1.0, %v8804
    %v8806 = vrcp.pop %v8785
    %v8807 = vmul.f32 1.0, %v8806
    %v8808 = vrcp.pop %v8786
    %v8809 = vmul.f32 1.0, %v8808
    %v8810 = vrcp.pop %v8787
    %v8811 = vmul.f32 1.0, %v8810
    %v8812 = vtanh.pop %v8303
    %v8813 = vtanh.pop %v8448
    %v8814 = vtanh.pop %v8593
    %v8815 = vtanh.pop %v8738
    %v8816 = vmul.f32 %v8791, %v8028
    %v8817 = vmul.f32 %v8797, %v8029
    %v8818 = vmul.f32 %v8803, %v8030
    %v8819 = vmul.f32 %v8809, %v8031
    %v8820 = vmul.f32 %v8789, %v8812
    %v8821 = vmul.f32 %v8795, %v8813
    %v8822 = vmul.f32 %v8801, %v8814
    %v8823 = vmul.f32 %v8807, %v8815
    %v8824 = vadd.f32 %v8816, %v8820
    %v8825 = vadd.f32 %v8817, %v8821
    %v8826 = vadd.f32 %v8818, %v8822
    %v8827 = vadd.f32 %v8819, %v8823
    %v8828 = vtanh.pop %v8824
    %v8829 = vtanh.pop %v8825
    %v8830 = vtanh.pop %v8826
    %v8831 = vtanh.pop %v8827
    %v8832 = vmul.f32 %v8793, %v8828
    %v8833 = vmul.f32 %v8799, %v8829
    %v8834 = vmul.f32 %v8805, %v8830
    %v8835 = vmul.f32 %v8811, %v8831
    %8836 = vst.msk [vmem:[#allocation2] sm:$0x3] %vm832, %v8832
    %8837 = vst.msk [vmem:[#allocation2 + $0x2] sm:$0x3] %vm832, %v8833
    %8838 = vst.msk [vmem:[#allocation2 + $0x4] sm:$0x3] %vm832, %v8834
    %8839 = vst.msk [vmem:[#allocation2 + $0x6] sm:$0x3] %vm832, %v8835
    %8843 = vrot.lane.b32.xlu0 %v8832, 20
    %v8844 = vpop.permute.xlu0 %8843
    %8845 = vrot.lane.b32.xlu0 %v8833, 20
    %v8846 = vpop.permute.xlu0 %8845
    %8847 = vrot.lane.b32.xlu0 %v8834, 20
    %v8848 = vpop.permute.xlu0 %8847
    %8852 = vst.msk [vmem:[%s849] sm:$0x3] %vm41, %v8844
    %8853 = vst.msk [vmem:[%s849 + $0x2] sm:$0x3] %vm41, %v8846
    %8854 = vst.msk [vmem:[%s849 + $0x4] sm:$0x3] %vm41, %v8848
    %8855 = vst.msk [vmem:[#allocation3 + $0xe] sm:$0x3] %vm832, %v8835
    %v8856 = vld [vmem:[#allocation3] sm:$0xff]
    %v8857 = vld [vmem:[#allocation3 + $0x8] sm:$0xff]
    %vm8858 = vcmask 162816
    %v8859 = vsel %vm8858, %v8856, -inf
    %8860 = vmax.xlane.f32.xlu0 %v8859
    %v8861 = vpop.xlane.xlu0 %8860
    %v8862 = vsel %vm8858, %v8857, -inf
    %8863 = vmax.xlane.f32.xlu0 %v8862
    %v8864 = vpop.xlane.xlu0 %8863
    %v8865 = vsub.f32 %v8856, %v8861
    %v8866 = vsub.f32 %v8857, %v8864
    %v8867 = vmul.f32 %v8865, 1.442695
    %v8868 = vpow.pop %v8867
    %v8869 = vmul.f32 %v8866, 1.442695
    %v8870 = vpow.pop %v8869
    %v8871 = vsel %vm8858, %v8868, 0.0
    %8872 = vadd.xlane.f32.xlu0 %v8871
    %v8873 = vpop.xlane.xlu0 %8872
    %v8874 = vsel %vm8858, %v8870, 0.0
    %8875 = vadd.xlane.f32.xlu0 %v8874
    %v8876 = vpop.xlane.xlu0 %8875
    %v8877 = vrcp.pop %v8873
    %v8878 = vrcp.pop %v8876
    %v8879 = vld [vmem:[%s2] sm:$0xff]
    %v8880 = vld [vmem:[%s2 + $0x8] sm:$0xff]
    %v8881 = vld [vmem:[%s2 + $0x10] sm:$0xf]
    %v8883 = vsel %vm8858, %v8868, 0
    %v8886 = vsel %vm8858, %v8870, 0
    %vm8888 = vcmask 1043456
    %v8890 = vsel %vm8888, %v8881, 0
    %8892 = vmatprep.subr.mxu0 0.0
    %8893 = vmatpush1.msra.mxu0 %v8879
    %8894 = vmatprep.subr.mxu0 0.0
    %8895 = vmatpush1.msra.mxu0 %v8880
    %8896 = vmatprep.subr.mxu0 0.0
    %8897 = vmatpush1.msra.mxu0 %v8890
    %8898 = vmatprep.subr.mxu0 0.0
    %8899 = vmatpush1.msra.mxu0 0.0
    %8900 = vmatprep.subr.mxu0 0.0
    %8901 = vmatpush1.msra.mxu0 0.0
    %8902 = vmatprep.subr.mxu0 0.0
    %8903 = vmatpush1.msra.mxu0 0.0
    %8904 = vmatprep.subr.mxu0 0.0
    %8905 = vmatpush1.msra.mxu0 0.0
    %8906 = vmatprep.subr.mxu0 0.0
    %8907 = vmatpush1.msra.mxu0 0.0
    %8908 = vmatprep.subr.mxu0 0.0
    %8909 = vmatpush1.msra.mxu0 0.0
    %8910 = vmatprep.subr.mxu0 0.0
    %8911 = vmatpush1.msra.mxu0 0.0
    %8912 = vmatprep.subr.mxu0 0.0
    %8913 = vmatpush1.msra.mxu0 0.0
    %8914 = vmatprep.subr.mxu0 0.0
    %8915 = vmatpush1.msra.mxu0 0.0
    %8916 = vmatprep.subr.mxu0 0.0
    %8917 = vmatpush1.msra.mxu0 0.0
    %8918 = vmatprep.subr.mxu0 0.0
    %8919 = vmatpush1.msra.mxu0 0.0
    %8920 = vmatprep.subr.mxu0 0.0
    %8921 = vmatpush1.msra.mxu0 0.0
    %8922 = vmatprep.subr.mxu0 0.0
    %8923 = vmatpush1.msra.mxu0 0.0
    %8924 = vmatprep.subr.mxu0 0.0
    %8925 = vmatpush1.msra.mxu0 0.0
    %8926 = vmatprep.subr.mxu0 0.0
    %8927 = vmatpush1.msra.mxu0 0.0
    %8928 = vmatprep.subr.mxu0 0.0
    %8929 = vmatpush1.msra.mxu0 0.0
    %8930 = vmatprep.subr.mxu0 0.0
    %8931 = vmatpush1.msra.mxu0 0.0
    %8932 = vmatprep.subr.mxu0 0.0
    %8933 = vmatpush1.msra.mxu0 0.0
    %8934 = vmatprep.subr.mxu0 0.0
    %8935 = vmatpush1.msra.mxu0 0.0
    %8936 = vmatprep.subr.mxu0 0.0
    %8937 = vmatpush1.msra.mxu0 0.0
    %8938 = vmatprep.subr.mxu0 0.0
    %8939 = vmatpush1.msra.mxu0 0.0
    %8940 = vmatprep.subr.mxu0 0.0
    %8941 = vmatpush1.msra.mxu0 0.0
    %8942 = vmatprep.subr.mxu0 0.0
    %8943 = vmatpush1.msra.mxu0 0.0
    %8944 = vmatprep.subr.mxu0 0.0
    %8945 = vmatpush1.msra.mxu0 0.0
    %8946 = vmatprep.subr.mxu0 0.0
    %8947 = vmatpush1.msra.mxu0 0.0
    %8948 = vmatprep.subr.mxu0 0.0
    %8949 = vmatpush1.msra.mxu0 0.0
    %8950 = vmatprep.subr.mxu0 0.0
    %8951 = vmatpush1.msra.mxu0 0.0
    %8952 = vmatprep.subr.mxu0 0.0
    %8953 = vmatpush1.msra.mxu0 0.0
    %8954 = vmatprep.subr.mxu0 0.0
    %8955 = vmatpush1.msra.mxu0 0.0
    %8956 = vmatprep.mubr.f32.mxu0 0.0
    %8957 = vmatmul.mubr.f32.gmra.mrb[0].mxu0 %v8883
    %v8958 = vpop.f32.mrb[0].mxu0
    %v8959 = vadd.f32 0.0, %v8958
    %v8960 = vpop.f32.mrb[0].mxu0
    %8961 = vmatprep.mubr.f32.mxu0 0.0
    %8962 = vmatmul.mubr.f32.gmra.mrb[0].mxu0 %v8886
    %v8963 = vpop.f32.mrb[0].mxu0
    %v8964 = vadd.f32 0.0, %v8963
    %v8965 = vpop.f32.mrb[0].mxu0
    %8966 = vdwg.mxu0
    %v8967 = vmul.f32 %v8959, %v8877
    %v8968 = vmul.f32 %v8964, %v8878
    %v8969 = vld [vmem:[%s3] sm:$0x1]
    %v8971 = vlaneseq
    %v8972 = vshrl.u32 %v8971, 7
    %v8973 = vsub.s32 0, %v8972
    %v8974 = vrot.slane %v8969, %v8973
    %v8976 = vadd.f32 %v8967, %v8974
    %v8977 = vadd.f32 %v8968, %v8974
    %vm8978 = vcmask 23552
    %8979 = vst.msk [vmem:[%s4] sm:$0xff] %vm8978, %v8976
    %8980 = vst.msk [vmem:[%s4 + $0x8] sm:$0xff] %vm8978, %v8977
    // Predicated region
    $region22: #{tpu_custom_call.1} parent=1 // pred_check
      _
    $region23: #{tpu_custom_call.1} parent=1 // pred_check_branch
      %8982 = sbr.rel (0) target = $region25
    $region24: #{tpu_custom_call.1} parent=1 // pred_region
      _
    $region25: #{tpu_custom_call.1} parent=1 // pred_fallthru
      _
    // Predicated region
    $region26: #{tpu_custom_call.1} parent=1 // pred_check
      _
    $region27: #{tpu_custom_call.1} parent=1 // pred_check_branch
      %8984 = sbr.rel (0) target = $region29
    $region28: #{tpu_custom_call.1} parent=1 // pred_region
      _
    $region29: #{tpu_custom_call.1} parent=1 // pred_fallthru
      _
    %8985 = vsyncpa [#allocation5], 1

</llo_original>
